<compile_context>
chip_gen: v6e
topology: v6e:2x2x1
jax: 0.10.0
libtpu: 0.0.40
codegen_flags: <defaults>
</compile_context>

<pallas_src>
import functools

import numpy as np
import jax
import jax.numpy as jnp
from jax import lax
from jax.experimental import pallas as pl
from jax.experimental.pallas import tpu as pltpu

KH = 5                      # conv kernel height/width (both convs are 5x5)
LANE = 128                  # TPU vreg lane width
CONV_DTYPE = jnp.bfloat16   # banded conv weights + conv LHS (f32 accumulation)


def _round_up(v, m):
    return (v + m - 1) // m * m


# ------------------ one-time parameter preprocessing (host) ------------------

def _banded_conv_matrix(w, w_in, lanes_in, lanes_out, dtype):
    """Banded conv-as-matmul weights, kh-stacked, with the width pool folded in.

    Returns M of shape (KH*lanes_in, 2*lanes_out) such that for a per-sample
    activation X with X[h, c*w_in + w] = x[c, h, w] (zero-padded to lanes_in)
    and the height-only im2col LHS  L[oh, kh*lanes_in + l] = X[oh + kh, l]:

        (L @ M)[oh, p*lanes_out + o*owh + k] = conv(x, w)[o, oh, 2*k + p]

    so the elementwise max of the two column halves is the width-pooled
    (window 2, stride 2) convolution.  Padded rows / columns are zero.
    """
    w = np.asarray(w, np.float32)
    o_ch, c_ch, kh_sz, kw_sz = w.shape
    ow = w_in - kw_sz + 1
    owh = ow // 2
    m = np.zeros((kh_sz, lanes_in, 2, lanes_out), np.float32)
    for kh in range(kh_sz):
        for p in (0, 1):
            for k in range(owh):
                for kw in range(kw_sz):
                    rows = np.arange(c_ch) * w_in + (2 * k + p + kw)
                    cols = np.arange(o_ch) * owh + k
                    m[kh, rows[:, None], p, cols[None, :]] = w[:, :, kh, kw].T
    return jnp.asarray(m.reshape(kh_sz * lanes_in, 2 * lanes_out), dtype)


def _fc1_matrix(fc1_w, o_ch, sp, lanes_in):
    """fc1 weights with the NCHW flatten order and lane padding folded in.

    The kernel's p2 is (N, sp, lanes_in) with lane = o*sp + k == pooled conv2
    activation [o, r, k]; F1[r*lanes_in + o*sp + k, j] = fc1_w[j, o*sp*sp+r*sp+k].
    """
    fc1_w = np.asarray(fc1_w, np.float32)
    hid = fc1_w.shape[0]
    f = np.zeros((sp, lanes_in, hid), np.float32)
    w = fc1_w.reshape(hid, o_ch, sp, sp)                       # [j, o, r, k]
    f[:, :o_ch * sp, :] = w.transpose(2, 1, 3, 0).reshape(sp, o_ch * sp, hid)
    return jnp.asarray(f.reshape(sp * lanes_in, hid))


def prepare_params(params, in_hw=32):
    """Precompute every kernel-side weight matrix (runs once, not per forward)."""
    w1, w2, fc1_w, fc2_w, fc3_w = [np.asarray(p, np.float32) for p in params]
    o1, c1 = w1.shape[0], w1.shape[1]                          # 16, 3
    o2, c2 = w2.shape[0], w2.shape[1]                          # 32, 16
    assert w1.shape[2] == w2.shape[2] == KH and c2 == o1

    lanes_x = _round_up(c1 * in_hw, LANE)                      # 128
    h2 = (in_hw - KH + 1) // 2                                 # 14
    lanes_p1 = _round_up(o1 * h2, LANE)                        # 256
    sp2 = (h2 - KH + 1) // 2                                   # 5
    lanes_p2 = _round_up(o2 * sp2, LANE)                       # 256

    m1 = _banded_conv_matrix(w1, in_hw, lanes_x, lanes_p1, CONV_DTYPE)  # (640, 512)
    m2 = _banded_conv_matrix(w2, h2, lanes_p1, lanes_p2, CONV_DTYPE)    # (1280, 512)
    f1 = _fc1_matrix(fc1_w, o2, sp2, lanes_p2)                          # (1280, 64)
    f2 = jnp.asarray(fc2_w.T, jnp.float32)                              # (64, 32)
    out_dim, hid2 = fc3_w.shape
    f3 = np.zeros((hid2, _round_up(out_dim, LANE)), np.float32)         # (32, 128)
    f3[:, :out_dim] = fc3_w.T
    return (m1, m2, f1, f2, jnp.asarray(f3))


# --------------------------------- kernel ------------------------------------

def _fused_cnn_kernel(x_ref, m1_ref, m2_hbm, f1_hbm, f2_ref, f3_ref,
                      out_ref, m2_vmem, f1_vmem, dma_sem):
    f32 = jnp.float32
    n = x_ref.shape[0]

    # Kick off DMA of the late-used conv2 / fc1 weights so their HBM traffic
    # overlaps conv1 compute instead of gating kernel start.
    cp_m2 = pltpu.make_async_copy(m2_hbm, m2_vmem, dma_sem.at[0])
    cp_f1 = pltpu.make_async_copy(f1_hbm, f1_vmem, dma_sem.at[1])
    cp_m2.start()
    cp_f1.start()

    def conv_relu_pool(act, m):
        """5xKW conv + ReLU + 2x2 max-pool as ONE MXU matmul + VPU maxes."""
        n_b, h_in, l_in = act.shape
        kh = m.shape[0] // l_in
        oh = h_in - kh + 1
        # Height-only im2col: lane order (kh, input-lane) matches m's rows.
        lhs = jnp.concatenate([act[:, i:i + oh, :] for i in range(kh)], axis=-1)
        lhs = lhs.reshape(n_b * oh, kh * l_in).astype(m.dtype)
        acc = jnp.dot(lhs, m, preferred_element_type=f32)      # (n*oh, 2*half)
        half = m.shape[1] // 2
        # ReLU + width pool: even/odd output columns live in the two halves.
        y = jnp.maximum(jnp.maximum(acc[:, :half], acc[:, half:]), 0.0)
        # Height pool: VPU max over adjacent row pairs (off the MXU path).
        y = jnp.max(y.reshape(n_b * (oh // 2), 2, half), axis=1)
        return y.reshape(n_b, oh // 2, half)

    p1 = conv_relu_pool(x_ref[...], m1_ref[...])               # (n, 14, 256)
    cp_m2.wait()
    p2 = conv_relu_pool(p1, m2_vmem[...])                      # (n, 5, 256)
    cp_f1.wait()
    h = jnp.dot(p2.reshape(n, -1), f1_vmem[...], preferred_element_type=f32)
    h = jnp.maximum(h, 0.0)                                    # (n, 64)
    h = jnp.maximum(jnp.dot(h, f2_ref[...], preferred_element_type=f32), 0.0)
    out_ref[...] = jnp.dot(h, f3_ref[...], preferred_element_type=f32)


# --------------------------------- wrapper -----------------------------------

@functools.partial(jax.jit, static_argnames=("num_classes",))
def forward(x, prep, *, num_classes):
    m1, m2, f1, f2, f3 = prep
    n, c, h, w = x.shape
    lanes_x = _round_up(c * w, LANE)
    # Single cheap input relayout: rows = H, lanes = (C, W), zero-padded to a
    # full 128-lane vreg so every in-kernel load/matmul is lane-dense.
    xk = jnp.transpose(x, (0, 2, 1, 3)).reshape(n, h, c * w)
    xk = jnp.pad(xk, ((0, 0), (0, 0), (0, lanes_x - c * w)))

    oh1 = h - KH + 1
    oh2 = oh1 // 2 - KH + 1
    flops = 2 * n * (oh1 * m1.shape[0] * m1.shape[1]
                     + oh2 * m2.shape[0] * m2.shape[1]
                     + f1.shape[0] * f1.shape[1]
                     + f2.shape[0] * f2.shape[1]
                     + f3.shape[0] * f3.shape[1])
    bytes_accessed = (sum(a.size * a.dtype.itemsize
                          for a in (xk, m1, m2, f1, f2, f3))
                      + n * f3.shape[1] * 4)

    out = pl.pallas_call(
        _fused_cnn_kernel,
        out_shape=jax.ShapeDtypeStruct((n, f3.shape[1]), jnp.float32),
        in_specs=[
            pl.BlockSpec(memory_space=pltpu.MemorySpace.VMEM),   # x
            pl.BlockSpec(memory_space=pltpu.MemorySpace.VMEM),   # m1 (conv1)
            pl.BlockSpec(memory_space=pl.ANY),                   # m2 (manual DMA)
            pl.BlockSpec(memory_space=pl.ANY),                   # f1 (manual DMA)
            pl.BlockSpec(memory_space=pltpu.MemorySpace.VMEM),   # f2
            pl.BlockSpec(memory_space=pltpu.MemorySpace.VMEM),   # f3
        ],
        out_specs=pl.BlockSpec(memory_space=pltpu.MemorySpace.VMEM),
        scratch_shapes=[
            pltpu.VMEM(m2.shape, m2.dtype),        # conv2 weights land here
            pltpu.VMEM(f1.shape, f1.dtype),        # fc1 weights land here
            pltpu.SemaphoreType.DMA((2,)),
        ],
        cost_estimate=pl.CostEstimate(flops=int(flops), transcendentals=0,
                                      bytes_accessed=int(bytes_accessed)),
    )(xk, m1, m2, f1, f2, f3)
    return out[:, :num_classes]


# ------------------------------ pure-JAX reference ---------------------------

def reference(x, params):
    w1, w2, fc1_w, fc2_w, fc3_w = params
    dn = ('NCHW', 'OIHW', 'NCHW')
    hp = lax.Precision.HIGHEST

    def pool(v):
        return lax.reduce_window(v, -jnp.inf, lax.max,
                                 (1, 1, 2, 2), (1, 1, 2, 2), 'VALID')

    y = lax.conv_general_dilated(x, w1, (1, 1), 'VALID',
                                 dimension_numbers=dn, precision=hp)
    y = pool(jax.nn.relu(y))
    y = lax.conv_general_dilated(y, w2, (1, 1), 'VALID',
                                 dimension_numbers=dn, precision=hp)
    y = pool(jax.nn.relu(y))
    y = y.reshape(x.shape[0], -1)
    y = jax.nn.relu(jnp.dot(y, fc1_w.T, precision=hp))
    y = jax.nn.relu(jnp.dot(y, fc2_w.T, precision=hp))
    return jnp.dot(y, fc3_w.T, precision=hp)


# ---------------------------------- driver -----------------------------------

if __name__ == "__main__":
    # Shapes implied by the module: 3x32x32 -> conv5 -> pool -> conv5 -> pool
    # -> flatten 32*5*5 = 800 -> 64 -> 32 -> 100.
    input_dim = 32 * 5 * 5
    hidden_dims = (64, 32)
    output_dim = 100
    batch = 2

    key = jax.random.PRNGKey(0)
    kx, k1, k2, k3, k4, k5 = jax.random.split(key, 6)

    def init(k, shape, fan_in):
        bound = 1.0 / (fan_in ** 0.5)
        return jax.random.uniform(k, shape, jnp.float32, -bound, bound)

    x = jax.random.normal(kx, (batch, 3, 32, 32), jnp.float32)
    params = (
        init(k1, (16, 3, 5, 5), 3 * 5 * 5),                           # conv1.weight
        init(k2, (32, 16, 5, 5), 16 * 5 * 5),                         # conv2.weight
        init(k3, (hidden_dims[0], input_dim), input_dim),             # fc1.weight
        init(k4, (hidden_dims[1], hidden_dims[0]), hidden_dims[0]),   # fc2.weight
        init(k5, (output_dim, hidden_dims[1]), hidden_dims[1]),       # fc3.weight
    )

    prep = prepare_params(params)              # one-time weight preprocessing
    out = jax.block_until_ready(forward(x, prep, num_classes=output_dim))
    ref = jax.block_until_ready(reference(x, params))

    assert out.shape == (batch, output_dim), out.shape
    err = float(jnp.max(jnp.abs(out - ref)))
    # Conv weights/LHS run in bf16 on the MXU (f32 accumulation), so the
    # tolerance vs. the all-f32 reference is relaxed accordingly.
    assert jnp.allclose(out, ref, rtol=2e-2, atol=2e-3), err
    print("KERNEL_OK")
</pallas_src>

<mosaic_0001>
module attributes {stable_mosaic.version = 11 : i64} {
  func.func @_fused_cnn_kernel(%arg0: memref<2x32x128xf32, #tpu.memory_space<vmem>>, %arg1: memref<640x512xbf16, #tpu.memory_space<vmem>>, %arg2: memref<1280x512xbf16, #tpu.memory_space<any>>, %arg3: memref<1280x64xf32, #tpu.memory_space<any>>, %arg4: memref<64x32xf32, #tpu.memory_space<vmem>>, %arg5: memref<32x128xf32, #tpu.memory_space<vmem>>, %arg6: memref<2x128xf32, #tpu.memory_space<vmem>>, %arg7: memref<1280x512xbf16, #tpu.memory_space<vmem>>, %arg8: memref<1280x64xf32, #tpu.memory_space<vmem>>, %arg9: memref<2x!tpu.dma_semaphore, #tpu.memory_space<semaphore_mem>>) attributes {dimension_semantics = [], scalar_prefetch = 0 : i64, scratch_operands = 3 : i64, tpu.core_type = #tpu.core_type<tc>} {
    %c0_i32 = arith.constant 0 : i32
    %0 = tpu.memref_slice %arg9[%c0_i32] : memref<2x!tpu.dma_semaphore, #tpu.memory_space<semaphore_mem>> -> memref<1x!tpu.dma_semaphore, #tpu.memory_space<semaphore_mem>>
    %1 = tpu.memref_squeeze %0 : memref<1x!tpu.dma_semaphore, #tpu.memory_space<semaphore_mem>> -> memref<!tpu.dma_semaphore, #tpu.memory_space<semaphore_mem>>
    tpu.enqueue_dma source(%arg2 : memref<1280x512xbf16, #tpu.memory_space<any>>) target(%arg7 : memref<1280x512xbf16, #tpu.memory_space<vmem>>) target_semaphore(%1 : memref<!tpu.dma_semaphore, #tpu.memory_space<semaphore_mem>>)
    %c1_i32 = arith.constant 1 : i32
    %2 = tpu.memref_slice %arg9[%c1_i32] : memref<2x!tpu.dma_semaphore, #tpu.memory_space<semaphore_mem>> -> memref<1x!tpu.dma_semaphore, #tpu.memory_space<semaphore_mem>>
    %3 = tpu.memref_squeeze %2 : memref<1x!tpu.dma_semaphore, #tpu.memory_space<semaphore_mem>> -> memref<!tpu.dma_semaphore, #tpu.memory_space<semaphore_mem>>
    tpu.enqueue_dma source(%arg3 : memref<1280x64xf32, #tpu.memory_space<any>>) target(%arg8 : memref<1280x64xf32, #tpu.memory_space<vmem>>) target_semaphore(%3 : memref<!tpu.dma_semaphore, #tpu.memory_space<semaphore_mem>>)
    %c0 = arith.constant 0 : index
    %c0_0 = arith.constant 0 : index
    %c0_1 = arith.constant 0 : index
    %4 = vector.load %arg0[%c0, %c0_0, %c0_1] : memref<2x32x128xf32, #tpu.memory_space<vmem>>, vector<2x32x128xf32>
    %c0_2 = arith.constant 0 : index
    %c0_3 = arith.constant 0 : index
    %5 = vector.load %arg1[%c0_2, %c0_3] : memref<640x512xbf16, #tpu.memory_space<vmem>>, vector<640x512xbf16>
    %6 = vector.extract_strided_slice %4 {offsets = [0, 0, 0], sizes = [2, 28, 128], strides = [1, 1, 1]} : vector<2x32x128xf32> to vector<2x28x128xf32>
    %7 = vector.extract_strided_slice %4 {offsets = [0, 1, 0], sizes = [2, 28, 128], strides = [1, 1, 1]} : vector<2x32x128xf32> to vector<2x28x128xf32>
    %8 = vector.extract_strided_slice %4 {offsets = [0, 2, 0], sizes = [2, 28, 128], strides = [1, 1, 1]} : vector<2x32x128xf32> to vector<2x28x128xf32>
    %9 = vector.extract_strided_slice %4 {offsets = [0, 3, 0], sizes = [2, 28, 128], strides = [1, 1, 1]} : vector<2x32x128xf32> to vector<2x28x128xf32>
    %10 = vector.extract_strided_slice %4 {offsets = [0, 4, 0], sizes = [2, 28, 128], strides = [1, 1, 1]} : vector<2x32x128xf32> to vector<2x28x128xf32>
    %11 = tpu.concatenate %6, %7, %8, %9, %10 in 2 : vector<2x28x128xf32>, vector<2x28x128xf32>, vector<2x28x128xf32>, vector<2x28x128xf32>, vector<2x28x128xf32> -> vector<2x28x640xf32>
    %12 = vector.shape_cast %11 : vector<2x28x640xf32> to vector<56x640xf32>
    %13 = arith.truncf %12 : vector<56x640xf32> to vector<56x640xbf16>
    %cst = arith.constant dense<0.000000e+00> : vector<56x512xf32>
    %14 = tpu.matmul %13, %5, %cst {dimension_numbers = #tpu.dot_dimension_numbers<[1], [0], [0], [1], [0, 0, 1, 1], [], []>} : vector<56x640xbf16>, vector<640x512xbf16>, vector<56x512xf32> -> vector<56x512xf32>
    %15 = vector.extract_strided_slice %14 {offsets = [0, 0], sizes = [56, 256], strides = [1, 1]} : vector<56x512xf32> to vector<56x256xf32>
    %16 = vector.extract_strided_slice %14 {offsets = [0, 256], sizes = [56, 256], strides = [1, 1]} : vector<56x512xf32> to vector<56x256xf32>
    %17 = arith.maximumf %15, %16 : vector<56x256xf32>
    %cst_4 = arith.constant 0.000000e+00 : f32
    %18 = vector.broadcast %cst_4 : f32 to vector<56x256xf32>
    %19 = arith.maximumf %17, %18 : vector<56x256xf32>
    %20 = vector.shape_cast %19 : vector<56x256xf32> to vector<28x2x256xf32>
    %cst_5 = arith.constant dense<0xFF800000> : vector<28x256xf32>
    %21 = vector.multi_reduction <maximumf>, %20, %cst_5 [1] : vector<28x2x256xf32> to vector<28x256xf32>
    %22 = vector.shape_cast %21 : vector<28x256xf32> to vector<2x14x256xf32>
    %c0_i32_6 = arith.constant 0 : i32
    %23 = tpu.memref_slice %arg9[%c0_i32_6] : memref<2x!tpu.dma_semaphore, #tpu.memory_space<semaphore_mem>> -> memref<1x!tpu.dma_semaphore, #tpu.memory_space<semaphore_mem>>
    %24 = tpu.memref_squeeze %23 : memref<1x!tpu.dma_semaphore, #tpu.memory_space<semaphore_mem>> -> memref<!tpu.dma_semaphore, #tpu.memory_space<semaphore_mem>>
    tpu.wait_dma2 semaphore(%24 : memref<!tpu.dma_semaphore, #tpu.memory_space<semaphore_mem>>) src(%arg2 : memref<1280x512xbf16, #tpu.memory_space<any>>) dst(%arg7 : memref<1280x512xbf16, #tpu.memory_space<vmem>>)
    %c0_7 = arith.constant 0 : index
    %c0_8 = arith.constant 0 : index
    %25 = vector.load %arg7[%c0_7, %c0_8] : memref<1280x512xbf16, #tpu.memory_space<vmem>>, vector<1280x512xbf16>
    %26 = vector.extract_strided_slice %22 {offsets = [0, 0, 0], sizes = [2, 10, 256], strides = [1, 1, 1]} : vector<2x14x256xf32> to vector<2x10x256xf32>
    %27 = vector.extract_strided_slice %22 {offsets = [0, 1, 0], sizes = [2, 10, 256], strides = [1, 1, 1]} : vector<2x14x256xf32> to vector<2x10x256xf32>
    %28 = vector.extract_strided_slice %22 {offsets = [0, 2, 0], sizes = [2, 10, 256], strides = [1, 1, 1]} : vector<2x14x256xf32> to vector<2x10x256xf32>
    %29 = vector.extract_strided_slice %22 {offsets = [0, 3, 0], sizes = [2, 10, 256], strides = [1, 1, 1]} : vector<2x14x256xf32> to vector<2x10x256xf32>
    %30 = vector.extract_strided_slice %22 {offsets = [0, 4, 0], sizes = [2, 10, 256], strides = [1, 1, 1]} : vector<2x14x256xf32> to vector<2x10x256xf32>
    %31 = tpu.concatenate %26, %27, %28, %29, %30 in 2 : vector<2x10x256xf32>, vector<2x10x256xf32>, vector<2x10x256xf32>, vector<2x10x256xf32>, vector<2x10x256xf32> -> vector<2x10x1280xf32>
    %32 = vector.shape_cast %31 : vector<2x10x1280xf32> to vector<20x1280xf32>
    %33 = arith.truncf %32 : vector<20x1280xf32> to vector<20x1280xbf16>
    %cst_9 = arith.constant dense<0.000000e+00> : vector<20x512xf32>
    %34 = tpu.matmul %33, %25, %cst_9 {dimension_numbers = #tpu.dot_dimension_numbers<[1], [0], [0], [1], [0, 0, 1, 1], [], []>} : vector<20x1280xbf16>, vector<1280x512xbf16>, vector<20x512xf32> -> vector<20x512xf32>
    %35 = vector.extract_strided_slice %34 {offsets = [0, 0], sizes = [20, 256], strides = [1, 1]} : vector<20x512xf32> to vector<20x256xf32>
    %36 = vector.extract_strided_slice %34 {offsets = [0, 256], sizes = [20, 256], strides = [1, 1]} : vector<20x512xf32> to vector<20x256xf32>
    %37 = arith.maximumf %35, %36 : vector<20x256xf32>
    %cst_10 = arith.constant 0.000000e+00 : f32
    %38 = vector.broadcast %cst_10 : f32 to vector<20x256xf32>
    %39 = arith.maximumf %37, %38 : vector<20x256xf32>
    %40 = vector.shape_cast %39 : vector<20x256xf32> to vector<10x2x256xf32>
    %cst_11 = arith.constant dense<0xFF800000> : vector<10x256xf32>
    %41 = vector.multi_reduction <maximumf>, %40, %cst_11 [1] : vector<10x2x256xf32> to vector<10x256xf32>
    %42 = vector.shape_cast %41 : vector<10x256xf32> to vector<2x5x256xf32>
    %c1_i32_12 = arith.constant 1 : i32
    %43 = tpu.memref_slice %arg9[%c1_i32_12] : memref<2x!tpu.dma_semaphore, #tpu.memory_space<semaphore_mem>> -> memref<1x!tpu.dma_semaphore, #tpu.memory_space<semaphore_mem>>
    %44 = tpu.memref_squeeze %43 : memref<1x!tpu.dma_semaphore, #tpu.memory_space<semaphore_mem>> -> memref<!tpu.dma_semaphore, #tpu.memory_space<semaphore_mem>>
    tpu.wait_dma2 semaphore(%44 : memref<!tpu.dma_semaphore, #tpu.memory_space<semaphore_mem>>) src(%arg3 : memref<1280x64xf32, #tpu.memory_space<any>>) dst(%arg8 : memref<1280x64xf32, #tpu.memory_space<vmem>>)
    %45 = vector.shape_cast %42 : vector<2x5x256xf32> to vector<2x1280xf32>
    %c0_13 = arith.constant 0 : index
    %c0_14 = arith.constant 0 : index
    %46 = vector.load %arg8[%c0_13, %c0_14] : memref<1280x64xf32, #tpu.memory_space<vmem>>, vector<1280x64xf32>
    %cst_15 = arith.constant dense<0.000000e+00> : vector<2x64xf32>
    %47 = tpu.matmul %45, %46, %cst_15 {dimension_numbers = #tpu.dot_dimension_numbers<[1], [0], [0], [1], [0, 0, 1, 1], [], []>} : vector<2x1280xf32>, vector<1280x64xf32>, vector<2x64xf32> -> vector<2x64xf32>
    %cst_16 = arith.constant 0.000000e+00 : f32
    %48 = vector.broadcast %cst_16 : f32 to vector<2x64xf32>
    %49 = arith.maximumf %47, %48 : vector<2x64xf32>
    %c0_17 = arith.constant 0 : index
    %c0_18 = arith.constant 0 : index
    %50 = vector.load %arg4[%c0_17, %c0_18] : memref<64x32xf32, #tpu.memory_space<vmem>>, vector<64x32xf32>
    %cst_19 = arith.constant dense<0.000000e+00> : vector<2x32xf32>
    %51 = tpu.matmul %49, %50, %cst_19 {dimension_numbers = #tpu.dot_dimension_numbers<[1], [0], [0], [1], [0, 0, 1, 1], [], []>} : vector<2x64xf32>, vector<64x32xf32>, vector<2x32xf32> -> vector<2x32xf32>
    %cst_20 = arith.constant 0.000000e+00 : f32
    %52 = vector.broadcast %cst_20 : f32 to vector<2x32xf32>
    %53 = arith.maximumf %51, %52 : vector<2x32xf32>
    %c0_21 = arith.constant 0 : index
    %c0_22 = arith.constant 0 : index
    %54 = vector.load %arg5[%c0_21, %c0_22] : memref<32x128xf32, #tpu.memory_space<vmem>>, vector<32x128xf32>
    %cst_23 = arith.constant dense<0.000000e+00> : vector<2x128xf32>
    %55 = tpu.matmul %53, %54, %cst_23 {dimension_numbers = #tpu.dot_dimension_numbers<[1], [0], [0], [1], [0, 0, 1, 1], [], []>} : vector<2x32xf32>, vector<32x128xf32>, vector<2x128xf32> -> vector<2x128xf32>
    %c0_24 = arith.constant 0 : index
    %c0_25 = arith.constant 0 : index
    %56 = vector.load %arg6[%c0_24, %c0_25] : memref<2x128xf32, #tpu.memory_space<vmem>>, vector<2x128xf32>
    tpu.vector_store %arg6[%c0_24, %c0_25], %55 {strides = array<i32>} : memref<2x128xf32, #tpu.memory_space<vmem>>, vector<2x128xf32>,
    return
  }
}

</mosaic_0001>

<llo_original>
// kernel: forward.1
$region0: #{forward.1}
  #allocation0 [shape = 'u32[]', space=smem, size = 0x4, offset = 0x4, fixed_abs, tag = 'smem constant byte address 0x4 - core index']
  #allocation1 [shape = 'u32[144,128]{1,0:T(1,128)}', space=vmem, size = 0x12000, scoped, tag = 'internal scratch']
  #allocation2 [shape = 'bf16[1280,512]{1,0:T(8,128)(2,1)}', space=vmem, size = 0x140000, scoped, tag = 'scratch operand']
  #allocation3 [shape = 'f32[1280,64]{1,0:T(8,128)}', space=vmem, size = 0xa0000, scoped, tag = 'scratch operand']
  #allocation4 [shape = 's32[2]{0}', space=sflag, size = 0x8, scoped, tag = 'scratch operand']
  #allocation9 [shape = 's32[]', space=sflag, size = 0x4, offset = 0, fixed_abs, tag = 'sflag constant byte address 0x0 - dummy sync flag']
  #allocation10 [shape = 's32[]', space=sflag, size = 0x4, offset = 0, fixed_abs, tag = 'sflag constant byte address 0x0 - dummy sync flag']
  %s0 = inlined_call_operand.vmem [shape: f32[2,32,128], index: 0, kind: input, shape index: {}]
  %s1 = inlined_call_operand.hbm [shape: bf16[640,512], index: 1, kind: input, shape index: {}]
  %s2 = inlined_call_operand.vmem [shape: bf16[1280,512], index: 2, kind: input, shape index: {}]
  %s3 = inlined_call_operand.vmem [shape: f32[1280,64], index: 3, kind: input, shape index: {}]
  %s4 = inlined_call_operand.vmem [shape: f32[64,32], index: 4, kind: input, shape index: {}]
  %s5 = inlined_call_operand.vmem [shape: f32[32,128], index: 5, kind: input, shape index: {}]
  %s6 = inlined_call_operand.hbm [shape: f32[2,128], index: 6, kind: output, shape index: {}]
  %s7 = sld [smem:[#allocation0]]
  $region98: #{forward.1} parent=0
    _
  %s9 = ssub.s32 1, %s7
  %s10 = scalar_select 0, %s9, %s7
  $region1: #{forward.1} parent=0
    #allocation5 [shape = 'u8[655360]{0}', space=vmem, size = 0xa0000, scoped, tag = 'input window, operand 1, single buffered']
    #allocation6 [shape = 's32[1]{0}', space=sflag, size = 0x4, scoped, tag = 'scoped memory for forward.1']
    #allocation7 [shape = 's32[1]{0}', space=sflag, size = 0x4, scoped, tag = 'scoped memory for forward.1']
    #allocation8 [shape = 'u8[1024]{0}', space=vmem, size = 0x400, scoped, tag = 'output window, operand 0, single buffered']
    %11 = vsyncpa [#allocation6], 0
    %12 = vsyncpa [#allocation7], 0
    // Predicated region
    $region2: #{forward.1} parent=1 // pred_check
      _
    $region3: #{forward.1} parent=1 // pred_check_branch
      %14 = sbr.rel (0) target = $region5
    $region4: #{forward.1} parent=1 // pred_region
      _
    $region5: #{forward.1} parent=1 // pred_fallthru
      _
    // Predicated region
    $region6: #{forward.1} parent=1 // pred_check
      _
    $region7: #{forward.1} parent=1 // pred_check_branch
      %16 = sbr.rel (0) target = $region9
    $region8: #{forward.1} parent=1 // pred_region
      %s18 = ssub.s32 20480, 20480
      %19 = vsyncadd [#allocation6], %s18
      %s20 = sshll.u32 [#allocation5], 4
      %s21 = int_to_ptr.vmem [resolvable:$true] %s20
      %26 = dma.hbm_to_vmem [thread:$0]  %s1, 20480, %s21, [#allocation6], 256, 256, 16
    $region9: #{forward.1} parent=1 // pred_fallthru
      _
    // Predicated region
    $region10: #{forward.1} parent=1 // pred_check
      _
    $region11: #{forward.1} parent=1 // pred_check_branch
      %28 = sbr.rel (0) target = $region13
    $region12: #{forward.1} parent=1 // pred_region
      _
    $region13: #{forward.1} parent=1 // pred_fallthru
      _
    // Predicated region
    $region14: #{forward.1} parent=1 // pred_check
      _
    $region15: #{forward.1} parent=1 // pred_check_branch
      %30 = sbr.rel (0) target = $region17
    $region16: #{forward.1} parent=1 // pred_region
      _
    $region17: #{forward.1} parent=1 // pred_fallthru
      _
    // Predicated region
    $region18: #{forward.1} parent=1 // pred_check
      _
    $region19: #{forward.1} parent=1 // pred_check_branch
      %32 = sbr.rel (0) target = $region21
    $region20: #{forward.1} parent=1 // pred_region
      %33 = dma.done [#allocation6], 20480
    $region21: #{forward.1} parent=1 // pred_fallthru
      _
    %p36 = scmp.lt.u32.totalorder 2560, 8
    %p37 = pneg %p36
    // Predicated region
    $region22: #{forward.1} parent=1 // pred_check
      _
    $region23: #{forward.1} parent=1 // pred_check_branch
      %39 = sbr.rel (%p36) target = $region25
    $region24: #{forward.1} parent=1 // pred_region
      %s55 = sand.u32 2560, 7
      %p56 = scmp.eq.s32.totalorder %s55, 0
      // Predicated region
      $region37: #{forward.1} parent=24 // pred_check
        %p57 = pneg %p56
      $region38: #{forward.1} parent=24 // pred_check_branch
        %59 = sbr.rel (%p57) target = $region40
      $region39: #{forward.1} parent=24 // pred_region
        loop: start=0, step=1, limit=1
        $region41: #{forward.1} parent=39 // loop_pre_header
          _
        $region42: #{forward.1} parent=39 // loop_header
          %s61 = sphi 0, %s65
          %p62 = scmp.ge.s32.totalorder %s61, 1
          %s66 = sphi %s2, %s2
          %s67 = sphi [#allocation2], [#allocation2]
        $region43: #{forward.1} parent=39 // loop_header_branch
          %64 = sbr.rel (%p62) target = $region47
        $region44: #{forward.1} parent=39 // loop_body
          %v68 = vld [vmem:[%s66] sm:$0xff]
          %69 = vst [vmem:[%s67] sm:$0xff] %v68
          %v70 = vld [vmem:[%s66 + $0x8] sm:$0xff]
          %71 = vst [vmem:[%s67 + $0x8] sm:$0xff] %v70
          %v72 = vld [vmem:[%s66 + $0x10] sm:$0xff]
          %73 = vst [vmem:[%s67 + $0x10] sm:$0xff] %v72
          %v74 = vld [vmem:[%s66 + $0x18] sm:$0xff]
          %75 = vst [vmem:[%s67 + $0x18] sm:$0xff] %v74
          %v76 = vld [vmem:[%s66 + $0x20] sm:$0xff]
          %77 = vst [vmem:[%s67 + $0x20] sm:$0xff] %v76
          %v78 = vld [vmem:[%s66 + $0x28] sm:$0xff]
          %79 = vst [vmem:[%s67 + $0x28] sm:$0xff] %v78
          %v80 = vld [vmem:[%s66 + $0x30] sm:$0xff]
          %81 = vst [vmem:[%s67 + $0x30] sm:$0xff] %v80
          %v82 = vld [vmem:[%s66 + $0x38] sm:$0xff]
          %83 = vst [vmem:[%s67 + $0x38] sm:$0xff] %v82
          %v84 = vld [vmem:[%s66 + $0x40] sm:$0xff]
          %85 = vst [vmem:[%s67 + $0x40] sm:$0xff] %v84
          %v86 = vld [vmem:[%s66 + $0x48] sm:$0xff]
          %87 = vst [vmem:[%s67 + $0x48] sm:$0xff] %v86
          %v88 = vld [vmem:[%s66 + $0x50] sm:$0xff]
          %89 = vst [vmem:[%s67 + $0x50] sm:$0xff] %v88
          %v90 = vld [vmem:[%s66 + $0x58] sm:$0xff]
          %91 = vst [vmem:[%s67 + $0x58] sm:$0xff] %v90
          %v92 = vld [vmem:[%s66 + $0x60] sm:$0xff]
          %93 = vst [vmem:[%s67 + $0x60] sm:$0xff] %v92
          %v94 = vld [vmem:[%s66 + $0x68] sm:$0xff]
          %95 = vst [vmem:[%s67 + $0x68] sm:$0xff] %v94
          %v96 = vld [vmem:[%s66 + $0x70] sm:$0xff]
          %97 = vst [vmem:[%s67 + $0x70] sm:$0xff] %v96
          %v98 = vld [vmem:[%s66 + $0x78] sm:$0xff]
          %99 = vst [vmem:[%s67 + $0x78] sm:$0xff] %v98
          %v100 = vld [vmem:[%s66 + $0x80] sm:$0xff]
          %101 = vst [vmem:[%s67 + $0x80] sm:$0xff] %v100
          %v102 = vld [vmem:[%s66 + $0x88] sm:$0xff]
          %103 = vst [vmem:[%s67 + $0x88] sm:$0xff] %v102
          %v104 = vld [vmem:[%s66 + $0x90] sm:$0xff]
          %105 = vst [vmem:[%s67 + $0x90] sm:$0xff] %v104
          %v106 = vld [vmem:[%s66 + $0x98] sm:$0xff]
          %107 = vst [vmem:[%s67 + $0x98] sm:$0xff] %v106
          %v108 = vld [vmem:[%s66 + $0xa0] sm:$0xff]
          %109 = vst [vmem:[%s67 + $0xa0] sm:$0xff] %v108
          %v110 = vld [vmem:[%s66 + $0xa8] sm:$0xff]
          %111 = vst [vmem:[%s67 + $0xa8] sm:$0xff] %v110
          %v112 = vld [vmem:[%s66 + $0xb0] sm:$0xff]
          %113 = vst [vmem:[%s67 + $0xb0] sm:$0xff] %v112
          %v114 = vld [vmem:[%s66 + $0xb8] sm:$0xff]
          %115 = vst [vmem:[%s67 + $0xb8] sm:$0xff] %v114
          %v116 = vld [vmem:[%s66 + $0xc0] sm:$0xff]
          %117 = vst [vmem:[%s67 + $0xc0] sm:$0xff] %v116
          %v118 = vld [vmem:[%s66 + $0xc8] sm:$0xff]
          %119 = vst [vmem:[%s67 + $0xc8] sm:$0xff] %v118
          %v120 = vld [vmem:[%s66 + $0xd0] sm:$0xff]
          %121 = vst [vmem:[%s67 + $0xd0] sm:$0xff] %v120
          %v122 = vld [vmem:[%s66 + $0xd8] sm:$0xff]
          %123 = vst [vmem:[%s67 + $0xd8] sm:$0xff] %v122
          %v124 = vld [vmem:[%s66 + $0xe0] sm:$0xff]
          %125 = vst [vmem:[%s67 + $0xe0] sm:$0xff] %v124
          %v126 = vld [vmem:[%s66 + $0xe8] sm:$0xff]
          %127 = vst [vmem:[%s67 + $0xe8] sm:$0xff] %v126
          %v128 = vld [vmem:[%s66 + $0xf0] sm:$0xff]
          %129 = vst [vmem:[%s67 + $0xf0] sm:$0xff] %v128
          %v130 = vld [vmem:[%s66 + $0xf8] sm:$0xff]
          %131 = vst [vmem:[%s67 + $0xf8] sm:$0xff] %v130
          %v132 = vld [vmem:[%s66 + $0x100] sm:$0xff]
          %133 = vst [vmem:[%s67 + $0x100] sm:$0xff] %v132
          %v134 = vld [vmem:[%s66 + $0x108] sm:$0xff]
          %135 = vst [vmem:[%s67 + $0x108] sm:$0xff] %v134
          %v136 = vld [vmem:[%s66 + $0x110] sm:$0xff]
          %137 = vst [vmem:[%s67 + $0x110] sm:$0xff] %v136
          %v138 = vld [vmem:[%s66 + $0x118] sm:$0xff]
          %139 = vst [vmem:[%s67 + $0x118] sm:$0xff] %v138
          %v140 = vld [vmem:[%s66 + $0x120] sm:$0xff]
          %141 = vst [vmem:[%s67 + $0x120] sm:$0xff] %v140
          %v142 = vld [vmem:[%s66 + $0x128] sm:$0xff]
          %143 = vst [vmem:[%s67 + $0x128] sm:$0xff] %v142
          %v144 = vld [vmem:[%s66 + $0x130] sm:$0xff]
          %145 = vst [vmem:[%s67 + $0x130] sm:$0xff] %v144
          %v146 = vld [vmem:[%s66 + $0x138] sm:$0xff]
          %147 = vst [vmem:[%s67 + $0x138] sm:$0xff] %v146
          %v148 = vld [vmem:[%s66 + $0x140] sm:$0xff]
          %149 = vst [vmem:[%s67 + $0x140] sm:$0xff] %v148
          %v150 = vld [vmem:[%s66 + $0x148] sm:$0xff]
          %151 = vst [vmem:[%s67 + $0x148] sm:$0xff] %v150
          %v152 = vld [vmem:[%s66 + $0x150] sm:$0xff]
          %153 = vst [vmem:[%s67 + $0x150] sm:$0xff] %v152
          %v154 = vld [vmem:[%s66 + $0x158] sm:$0xff]
          %155 = vst [vmem:[%s67 + $0x158] sm:$0xff] %v154
          %v156 = vld [vmem:[%s66 + $0x160] sm:$0xff]
          %157 = vst [vmem:[%s67 + $0x160] sm:$0xff] %v156
          %v158 = vld [vmem:[%s66 + $0x168] sm:$0xff]
          %159 = vst [vmem:[%s67 + $0x168] sm:$0xff] %v158
          %v160 = vld [vmem:[%s66 + $0x170] sm:$0xff]
          %161 = vst [vmem:[%s67 + $0x170] sm:$0xff] %v160
          %v162 = vld [vmem:[%s66 + $0x178] sm:$0xff]
          %163 = vst [vmem:[%s67 + $0x178] sm:$0xff] %v162
          %v164 = vld [vmem:[%s66 + $0x180] sm:$0xff]
          %165 = vst [vmem:[%s67 + $0x180] sm:$0xff] %v164
          %v166 = vld [vmem:[%s66 + $0x188] sm:$0xff]
          %167 = vst [vmem:[%s67 + $0x188] sm:$0xff] %v166
          %v168 = vld [vmem:[%s66 + $0x190] sm:$0xff]
          %169 = vst [vmem:[%s67 + $0x190] sm:$0xff] %v168
          %v170 = vld [vmem:[%s66 + $0x198] sm:$0xff]
          %171 = vst [vmem:[%s67 + $0x198] sm:$0xff] %v170
          %v172 = vld [vmem:[%s66 + $0x1a0] sm:$0xff]
          %173 = vst [vmem:[%s67 + $0x1a0] sm:$0xff] %v172
          %v174 = vld [vmem:[%s66 + $0x1a8] sm:$0xff]
          %175 = vst [vmem:[%s67 + $0x1a8] sm:$0xff] %v174
          %v176 = vld [vmem:[%s66 + $0x1b0] sm:$0xff]
          %177 = vst [vmem:[%s67 + $0x1b0] sm:$0xff] %v176
          %v178 = vld [vmem:[%s66 + $0x1b8] sm:$0xff]
          %179 = vst [vmem:[%s67 + $0x1b8] sm:$0xff] %v178
          %v180 = vld [vmem:[%s66 + $0x1c0] sm:$0xff]
          %181 = vst [vmem:[%s67 + $0x1c0] sm:$0xff] %v180
          %v182 = vld [vmem:[%s66 + $0x1c8] sm:$0xff]
          %183 = vst [vmem:[%s67 + $0x1c8] sm:$0xff] %v182
          %v184 = vld [vmem:[%s66 + $0x1d0] sm:$0xff]
          %185 = vst [vmem:[%s67 + $0x1d0] sm:$0xff] %v184
          %v186 = vld [vmem:[%s66 + $0x1d8] sm:$0xff]
          %187 = vst [vmem:[%s67 + $0x1d8] sm:$0xff] %v186
          %v188 = vld [vmem:[%s66 + $0x1e0] sm:$0xff]
          %189 = vst [vmem:[%s67 + $0x1e0] sm:$0xff] %v188
          %v190 = vld [vmem:[%s66 + $0x1e8] sm:$0xff]
          %191 = vst [vmem:[%s67 + $0x1e8] sm:$0xff] %v190
          %v192 = vld [vmem:[%s66 + $0x1f0] sm:$0xff]
          %193 = vst [vmem:[%s67 + $0x1f0] sm:$0xff] %v192
          %v194 = vld [vmem:[%s66 + $0x1f8] sm:$0xff]
          %195 = vst [vmem:[%s67 + $0x1f8] sm:$0xff] %v194
          %v196 = vld [vmem:[%s66 + $0x200] sm:$0xff]
          %197 = vst [vmem:[%s67 + $0x200] sm:$0xff] %v196
          %v198 = vld [vmem:[%s66 + $0x208] sm:$0xff]
          %199 = vst [vmem:[%s67 + $0x208] sm:$0xff] %v198
          %v200 = vld [vmem:[%s66 + $0x210] sm:$0xff]
          %201 = vst [vmem:[%s67 + $0x210] sm:$0xff] %v200
          %v202 = vld [vmem:[%s66 + $0x218] sm:$0xff]
          %203 = vst [vmem:[%s67 + $0x218] sm:$0xff] %v202
          %v204 = vld [vmem:[%s66 + $0x220] sm:$0xff]
          %205 = vst [vmem:[%s67 + $0x220] sm:$0xff] %v204
          %v206 = vld [vmem:[%s66 + $0x228] sm:$0xff]
          %207 = vst [vmem:[%s67 + $0x228] sm:$0xff] %v206
          %v208 = vld [vmem:[%s66 + $0x230] sm:$0xff]
          %209 = vst [vmem:[%s67 + $0x230] sm:$0xff] %v208
          %v210 = vld [vmem:[%s66 + $0x238] sm:$0xff]
          %211 = vst [vmem:[%s67 + $0x238] sm:$0xff] %v210
          %v212 = vld [vmem:[%s66 + $0x240] sm:$0xff]
          %213 = vst [vmem:[%s67 + $0x240] sm:$0xff] %v212
          %v214 = vld [vmem:[%s66 + $0x248] sm:$0xff]
          %215 = vst [vmem:[%s67 + $0x248] sm:$0xff] %v214
          %v216 = vld [vmem:[%s66 + $0x250] sm:$0xff]
          %217 = vst [vmem:[%s67 + $0x250] sm:$0xff] %v216
          %v218 = vld [vmem:[%s66 + $0x258] sm:$0xff]
          %219 = vst [vmem:[%s67 + $0x258] sm:$0xff] %v218
          %v220 = vld [vmem:[%s66 + $0x260] sm:$0xff]
          %221 = vst [vmem:[%s67 + $0x260] sm:$0xff] %v220
          %v222 = vld [vmem:[%s66 + $0x268] sm:$0xff]
          %223 = vst [vmem:[%s67 + $0x268] sm:$0xff] %v222
          %v224 = vld [vmem:[%s66 + $0x270] sm:$0xff]
          %225 = vst [vmem:[%s67 + $0x270] sm:$0xff] %v224
          %v226 = vld [vmem:[%s66 + $0x278] sm:$0xff]
          %227 = vst [vmem:[%s67 + $0x278] sm:$0xff] %v226
          %v228 = vld [vmem:[%s66 + $0x280] sm:$0xff]
          %229 = vst [vmem:[%s67 + $0x280] sm:$0xff] %v228
          %v230 = vld [vmem:[%s66 + $0x288] sm:$0xff]
          %231 = vst [vmem:[%s67 + $0x288] sm:$0xff] %v230
          %v232 = vld [vmem:[%s66 + $0x290] sm:$0xff]
          %233 = vst [vmem:[%s67 + $0x290] sm:$0xff] %v232
          %v234 = vld [vmem:[%s66 + $0x298] sm:$0xff]
          %235 = vst [vmem:[%s67 + $0x298] sm:$0xff] %v234
          %v236 = vld [vmem:[%s66 + $0x2a0] sm:$0xff]
          %237 = vst [vmem:[%s67 + $0x2a0] sm:$0xff] %v236
          %v238 = vld [vmem:[%s66 + $0x2a8] sm:$0xff]
          %239 = vst [vmem:[%s67 + $0x2a8] sm:$0xff] %v238
          %v240 = vld [vmem:[%s66 + $0x2b0] sm:$0xff]
          %241 = vst [vmem:[%s67 + $0x2b0] sm:$0xff] %v240
          %v242 = vld [vmem:[%s66 + $0x2b8] sm:$0xff]
          %243 = vst [vmem:[%s67 + $0x2b8] sm:$0xff] %v242
          %v244 = vld [vmem:[%s66 + $0x2c0] sm:$0xff]
          %245 = vst [vmem:[%s67 + $0x2c0] sm:$0xff] %v244
          %v246 = vld [vmem:[%s66 + $0x2c8] sm:$0xff]
          %247 = vst [vmem:[%s67 + $0x2c8] sm:$0xff] %v246
          %v248 = vld [vmem:[%s66 + $0x2d0] sm:$0xff]
          %249 = vst [vmem:[%s67 + $0x2d0] sm:$0xff] %v248
          %v250 = vld [vmem:[%s66 + $0x2d8] sm:$0xff]
          %251 = vst [vmem:[%s67 + $0x2d8] sm:$0xff] %v250
          %v252 = vld [vmem:[%s66 + $0x2e0] sm:$0xff]
          %253 = vst [vmem:[%s67 + $0x2e0] sm:$0xff] %v252
          %v254 = vld [vmem:[%s66 + $0x2e8] sm:$0xff]
          %255 = vst [vmem:[%s67 + $0x2e8] sm:$0xff] %v254
          %v256 = vld [vmem:[%s66 + $0x2f0] sm:$0xff]
          %257 = vst [vmem:[%s67 + $0x2f0] sm:$0xff] %v256
          %v258 = vld [vmem:[%s66 + $0x2f8] sm:$0xff]
          %259 = vst [vmem:[%s67 + $0x2f8] sm:$0xff] %v258
          %v260 = vld [vmem:[%s66 + $0x300] sm:$0xff]
          %261 = vst [vmem:[%s67 + $0x300] sm:$0xff] %v260
          %v262 = vld [vmem:[%s66 + $0x308] sm:$0xff]
          %263 = vst [vmem:[%s67 + $0x308] sm:$0xff] %v262
          %v264 = vld [vmem:[%s66 + $0x310] sm:$0xff]
          %265 = vst [vmem:[%s67 + $0x310] sm:$0xff] %v264
          %v266 = vld [vmem:[%s66 + $0x318] sm:$0xff]
          %267 = vst [vmem:[%s67 + $0x318] sm:$0xff] %v266
          %v268 = vld [vmem:[%s66 + $0x320] sm:$0xff]
          %269 = vst [vmem:[%s67 + $0x320] sm:$0xff] %v268
          %v270 = vld [vmem:[%s66 + $0x328] sm:$0xff]
          %271 = vst [vmem:[%s67 + $0x328] sm:$0xff] %v270
          %v272 = vld [vmem:[%s66 + $0x330] sm:$0xff]
          %273 = vst [vmem:[%s67 + $0x330] sm:$0xff] %v272
          %v274 = vld [vmem:[%s66 + $0x338] sm:$0xff]
          %275 = vst [vmem:[%s67 + $0x338] sm:$0xff] %v274
          %v276 = vld [vmem:[%s66 + $0x340] sm:$0xff]
          %277 = vst [vmem:[%s67 + $0x340] sm:$0xff] %v276
          %v278 = vld [vmem:[%s66 + $0x348] sm:$0xff]
          %279 = vst [vmem:[%s67 + $0x348] sm:$0xff] %v278
          %v280 = vld [vmem:[%s66 + $0x350] sm:$0xff]
          %281 = vst [vmem:[%s67 + $0x350] sm:$0xff] %v280
          %v282 = vld [vmem:[%s66 + $0x358] sm:$0xff]
          %283 = vst [vmem:[%s67 + $0x358] sm:$0xff] %v282
          %v284 = vld [vmem:[%s66 + $0x360] sm:$0xff]
          %285 = vst [vmem:[%s67 + $0x360] sm:$0xff] %v284
          %v286 = vld [vmem:[%s66 + $0x368] sm:$0xff]
          %287 = vst [vmem:[%s67 + $0x368] sm:$0xff] %v286
          %v288 = vld [vmem:[%s66 + $0x370] sm:$0xff]
          %289 = vst [vmem:[%s67 + $0x370] sm:$0xff] %v288
          %v290 = vld [vmem:[%s66 + $0x378] sm:$0xff]
          %291 = vst [vmem:[%s67 + $0x378] sm:$0xff] %v290
          %v292 = vld [vmem:[%s66 + $0x380] sm:$0xff]
          %293 = vst [vmem:[%s67 + $0x380] sm:$0xff] %v292
          %v294 = vld [vmem:[%s66 + $0x388] sm:$0xff]
          %295 = vst [vmem:[%s67 + $0x388] sm:$0xff] %v294
          %v296 = vld [vmem:[%s66 + $0x390] sm:$0xff]
          %297 = vst [vmem:[%s67 + $0x390] sm:$0xff] %v296
          %v298 = vld [vmem:[%s66 + $0x398] sm:$0xff]
          %299 = vst [vmem:[%s67 + $0x398] sm:$0xff] %v298
          %v300 = vld [vmem:[%s66 + $0x3a0] sm:$0xff]
          %301 = vst [vmem:[%s67 + $0x3a0] sm:$0xff] %v300
          %v302 = vld [vmem:[%s66 + $0x3a8] sm:$0xff]
          %303 = vst [vmem:[%s67 + $0x3a8] sm:$0xff] %v302
          %v304 = vld [vmem:[%s66 + $0x3b0] sm:$0xff]
          %305 = vst [vmem:[%s67 + $0x3b0] sm:$0xff] %v304
          %v306 = vld [vmem:[%s66 + $0x3b8] sm:$0xff]
          %307 = vst [vmem:[%s67 + $0x3b8] sm:$0xff] %v306
          %v308 = vld [vmem:[%s66 + $0x3c0] sm:$0xff]
          %309 = vst [vmem:[%s67 + $0x3c0] sm:$0xff] %v308
          %v310 = vld [vmem:[%s66 + $0x3c8] sm:$0xff]
          %311 = vst [vmem:[%s67 + $0x3c8] sm:$0xff] %v310
          %v312 = vld [vmem:[%s66 + $0x3d0] sm:$0xff]
          %313 = vst [vmem:[%s67 + $0x3d0] sm:$0xff] %v312
          %v314 = vld [vmem:[%s66 + $0x3d8] sm:$0xff]
          %315 = vst [vmem:[%s67 + $0x3d8] sm:$0xff] %v314
          %v316 = vld [vmem:[%s66 + $0x3e0] sm:$0xff]
          %317 = vst [vmem:[%s67 + $0x3e0] sm:$0xff] %v316
          %v318 = vld [vmem:[%s66 + $0x3e8] sm:$0xff]
          %319 = vst [vmem:[%s67 + $0x3e8] sm:$0xff] %v318
          %v320 = vld [vmem:[%s66 + $0x3f0] sm:$0xff]
          %321 = vst [vmem:[%s67 + $0x3f0] sm:$0xff] %v320
          %v322 = vld [vmem:[%s66 + $0x3f8] sm:$0xff]
          %323 = vst [vmem:[%s67 + $0x3f8] sm:$0xff] %v322
          %v324 = vld [vmem:[%s66 + $0x400] sm:$0xff]
          %325 = vst [vmem:[%s67 + $0x400] sm:$0xff] %v324
          %v326 = vld [vmem:[%s66 + $0x408] sm:$0xff]
          %327 = vst [vmem:[%s67 + $0x408] sm:$0xff] %v326
          %v328 = vld [vmem:[%s66 + $0x410] sm:$0xff]
          %329 = vst [vmem:[%s67 + $0x410] sm:$0xff] %v328
          %v330 = vld [vmem:[%s66 + $0x418] sm:$0xff]
          %331 = vst [vmem:[%s67 + $0x418] sm:$0xff] %v330
          %v332 = vld [vmem:[%s66 + $0x420] sm:$0xff]
          %333 = vst [vmem:[%s67 + $0x420] sm:$0xff] %v332
          %v334 = vld [vmem:[%s66 + $0x428] sm:$0xff]
          %335 = vst [vmem:[%s67 + $0x428] sm:$0xff] %v334
          %v336 = vld [vmem:[%s66 + $0x430] sm:$0xff]
          %337 = vst [vmem:[%s67 + $0x430] sm:$0xff] %v336
          %v338 = vld [vmem:[%s66 + $0x438] sm:$0xff]
          %339 = vst [vmem:[%s67 + $0x438] sm:$0xff] %v338
          %v340 = vld [vmem:[%s66 + $0x440] sm:$0xff]
          %341 = vst [vmem:[%s67 + $0x440] sm:$0xff] %v340
          %v342 = vld [vmem:[%s66 + $0x448] sm:$0xff]
          %343 = vst [vmem:[%s67 + $0x448] sm:$0xff] %v342
          %v344 = vld [vmem:[%s66 + $0x450] sm:$0xff]
          %345 = vst [vmem:[%s67 + $0x450] sm:$0xff] %v344
          %v346 = vld [vmem:[%s66 + $0x458] sm:$0xff]
          %347 = vst [vmem:[%s67 + $0x458] sm:$0xff] %v346
          %v348 = vld [vmem:[%s66 + $0x460] sm:$0xff]
          %349 = vst [vmem:[%s67 + $0x460] sm:$0xff] %v348
          %v350 = vld [vmem:[%s66 + $0x468] sm:$0xff]
          %351 = vst [vmem:[%s67 + $0x468] sm:$0xff] %v350
          %v352 = vld [vmem:[%s66 + $0x470] sm:$0xff]
          %353 = vst [vmem:[%s67 + $0x470] sm:$0xff] %v352
          %v354 = vld [vmem:[%s66 + $0x478] sm:$0xff]
          %355 = vst [vmem:[%s67 + $0x478] sm:$0xff] %v354
          %v356 = vld [vmem:[%s66 + $0x480] sm:$0xff]
          %357 = vst [vmem:[%s67 + $0x480] sm:$0xff] %v356
          %v358 = vld [vmem:[%s66 + $0x488] sm:$0xff]
          %359 = vst [vmem:[%s67 + $0x488] sm:$0xff] %v358
          %v360 = vld [vmem:[%s66 + $0x490] sm:$0xff]
          %361 = vst [vmem:[%s67 + $0x490] sm:$0xff] %v360
          %v362 = vld [vmem:[%s66 + $0x498] sm:$0xff]
          %363 = vst [vmem:[%s67 + $0x498] sm:$0xff] %v362
          %v364 = vld [vmem:[%s66 + $0x4a0] sm:$0xff]
          %365 = vst [vmem:[%s67 + $0x4a0] sm:$0xff] %v364
          %v366 = vld [vmem:[%s66 + $0x4a8] sm:$0xff]
          %367 = vst [vmem:[%s67 + $0x4a8] sm:$0xff] %v366
          %v368 = vld [vmem:[%s66 + $0x4b0] sm:$0xff]
          %369 = vst [vmem:[%s67 + $0x4b0] sm:$0xff] %v368
          %v370 = vld [vmem:[%s66 + $0x4b8] sm:$0xff]
          %371 = vst [vmem:[%s67 + $0x4b8] sm:$0xff] %v370
          %v372 = vld [vmem:[%s66 + $0x4c0] sm:$0xff]
          %373 = vst [vmem:[%s67 + $0x4c0] sm:$0xff] %v372
          %v374 = vld [vmem:[%s66 + $0x4c8] sm:$0xff]
          %375 = vst [vmem:[%s67 + $0x4c8] sm:$0xff] %v374
          %v376 = vld [vmem:[%s66 + $0x4d0] sm:$0xff]
          %377 = vst [vmem:[%s67 + $0x4d0] sm:$0xff] %v376
          %v378 = vld [vmem:[%s66 + $0x4d8] sm:$0xff]
          %379 = vst [vmem:[%s67 + $0x4d8] sm:$0xff] %v378
          %v380 = vld [vmem:[%s66 + $0x4e0] sm:$0xff]
          %381 = vst [vmem:[%s67 + $0x4e0] sm:$0xff] %v380
          %v382 = vld [vmem:[%s66 + $0x4e8] sm:$0xff]
          %383 = vst [vmem:[%s67 + $0x4e8] sm:$0xff] %v382
          %v384 = vld [vmem:[%s66 + $0x4f0] sm:$0xff]
          %385 = vst [vmem:[%s67 + $0x4f0] sm:$0xff] %v384
          %v386 = vld [vmem:[%s66 + $0x4f8] sm:$0xff]
          %387 = vst [vmem:[%s67 + $0x4f8] sm:$0xff] %v386
          %v388 = vld [vmem:[%s66 + $0x500] sm:$0xff]
          %389 = vst [vmem:[%s67 + $0x500] sm:$0xff] %v388
          %v390 = vld [vmem:[%s66 + $0x508] sm:$0xff]
          %391 = vst [vmem:[%s67 + $0x508] sm:$0xff] %v390
          %v392 = vld [vmem:[%s66 + $0x510] sm:$0xff]
          %393 = vst [vmem:[%s67 + $0x510] sm:$0xff] %v392
          %v394 = vld [vmem:[%s66 + $0x518] sm:$0xff]
          %395 = vst [vmem:[%s67 + $0x518] sm:$0xff] %v394
          %v396 = vld [vmem:[%s66 + $0x520] sm:$0xff]
          %397 = vst [vmem:[%s67 + $0x520] sm:$0xff] %v396
          %v398 = vld [vmem:[%s66 + $0x528] sm:$0xff]
          %399 = vst [vmem:[%s67 + $0x528] sm:$0xff] %v398
          %v400 = vld [vmem:[%s66 + $0x530] sm:$0xff]
          %401 = vst [vmem:[%s67 + $0x530] sm:$0xff] %v400
          %v402 = vld [vmem:[%s66 + $0x538] sm:$0xff]
          %403 = vst [vmem:[%s67 + $0x538] sm:$0xff] %v402
          %v404 = vld [vmem:[%s66 + $0x540] sm:$0xff]
          %405 = vst [vmem:[%s67 + $0x540] sm:$0xff] %v404
          %v406 = vld [vmem:[%s66 + $0x548] sm:$0xff]
          %407 = vst [vmem:[%s67 + $0x548] sm:$0xff] %v406
          %v408 = vld [vmem:[%s66 + $0x550] sm:$0xff]
          %409 = vst [vmem:[%s67 + $0x550] sm:$0xff] %v408
          %v410 = vld [vmem:[%s66 + $0x558] sm:$0xff]
          %411 = vst [vmem:[%s67 + $0x558] sm:$0xff] %v410
          %v412 = vld [vmem:[%s66 + $0x560] sm:$0xff]
          %413 = vst [vmem:[%s67 + $0x560] sm:$0xff] %v412
          %v414 = vld [vmem:[%s66 + $0x568] sm:$0xff]
          %415 = vst [vmem:[%s67 + $0x568] sm:$0xff] %v414
          %v416 = vld [vmem:[%s66 + $0x570] sm:$0xff]
          %417 = vst [vmem:[%s67 + $0x570] sm:$0xff] %v416
          %v418 = vld [vmem:[%s66 + $0x578] sm:$0xff]
          %419 = vst [vmem:[%s67 + $0x578] sm:$0xff] %v418
          %v420 = vld [vmem:[%s66 + $0x580] sm:$0xff]
          %421 = vst [vmem:[%s67 + $0x580] sm:$0xff] %v420
          %v422 = vld [vmem:[%s66 + $0x588] sm:$0xff]
          %423 = vst [vmem:[%s67 + $0x588] sm:$0xff] %v422
          %v424 = vld [vmem:[%s66 + $0x590] sm:$0xff]
          %425 = vst [vmem:[%s67 + $0x590] sm:$0xff] %v424
          %v426 = vld [vmem:[%s66 + $0x598] sm:$0xff]
          %427 = vst [vmem:[%s67 + $0x598] sm:$0xff] %v426
          %v428 = vld [vmem:[%s66 + $0x5a0] sm:$0xff]
          %429 = vst [vmem:[%s67 + $0x5a0] sm:$0xff] %v428
          %v430 = vld [vmem:[%s66 + $0x5a8] sm:$0xff]
          %431 = vst [vmem:[%s67 + $0x5a8] sm:$0xff] %v430
          %v432 = vld [vmem:[%s66 + $0x5b0] sm:$0xff]
          %433 = vst [vmem:[%s67 + $0x5b0] sm:$0xff] %v432
          %v434 = vld [vmem:[%s66 + $0x5b8] sm:$0xff]
          %435 = vst [vmem:[%s67 + $0x5b8] sm:$0xff] %v434
          %v436 = vld [vmem:[%s66 + $0x5c0] sm:$0xff]
          %437 = vst [vmem:[%s67 + $0x5c0] sm:$0xff] %v436
          %v438 = vld [vmem:[%s66 + $0x5c8] sm:$0xff]
          %439 = vst [vmem:[%s67 + $0x5c8] sm:$0xff] %v438
          %v440 = vld [vmem:[%s66 + $0x5d0] sm:$0xff]
          %441 = vst [vmem:[%s67 + $0x5d0] sm:$0xff] %v440
          %v442 = vld [vmem:[%s66 + $0x5d8] sm:$0xff]
          %443 = vst [vmem:[%s67 + $0x5d8] sm:$0xff] %v442
          %v444 = vld [vmem:[%s66 + $0x5e0] sm:$0xff]
          %445 = vst [vmem:[%s67 + $0x5e0] sm:$0xff] %v444
          %v446 = vld [vmem:[%s66 + $0x5e8] sm:$0xff]
          %447 = vst [vmem:[%s67 + $0x5e8] sm:$0xff] %v446
          %v448 = vld [vmem:[%s66 + $0x5f0] sm:$0xff]
          %449 = vst [vmem:[%s67 + $0x5f0] sm:$0xff] %v448
          %v450 = vld [vmem:[%s66 + $0x5f8] sm:$0xff]
          %451 = vst [vmem:[%s67 + $0x5f8] sm:$0xff] %v450
          %v452 = vld [vmem:[%s66 + $0x600] sm:$0xff]
          %453 = vst [vmem:[%s67 + $0x600] sm:$0xff] %v452
          %v454 = vld [vmem:[%s66 + $0x608] sm:$0xff]
          %455 = vst [vmem:[%s67 + $0x608] sm:$0xff] %v454
          %v456 = vld [vmem:[%s66 + $0x610] sm:$0xff]
          %457 = vst [vmem:[%s67 + $0x610] sm:$0xff] %v456
          %v458 = vld [vmem:[%s66 + $0x618] sm:$0xff]
          %459 = vst [vmem:[%s67 + $0x618] sm:$0xff] %v458
          %v460 = vld [vmem:[%s66 + $0x620] sm:$0xff]
          %461 = vst [vmem:[%s67 + $0x620] sm:$0xff] %v460
          %v462 = vld [vmem:[%s66 + $0x628] sm:$0xff]
          %463 = vst [vmem:[%s67 + $0x628] sm:$0xff] %v462
          %v464 = vld [vmem:[%s66 + $0x630] sm:$0xff]
          %465 = vst [vmem:[%s67 + $0x630] sm:$0xff] %v464
          %v466 = vld [vmem:[%s66 + $0x638] sm:$0xff]
          %467 = vst [vmem:[%s67 + $0x638] sm:$0xff] %v466
          %v468 = vld [vmem:[%s66 + $0x640] sm:$0xff]
          %469 = vst [vmem:[%s67 + $0x640] sm:$0xff] %v468
          %v470 = vld [vmem:[%s66 + $0x648] sm:$0xff]
          %471 = vst [vmem:[%s67 + $0x648] sm:$0xff] %v470
          %v472 = vld [vmem:[%s66 + $0x650] sm:$0xff]
          %473 = vst [vmem:[%s67 + $0x650] sm:$0xff] %v472
          %v474 = vld [vmem:[%s66 + $0x658] sm:$0xff]
          %475 = vst [vmem:[%s67 + $0x658] sm:$0xff] %v474
          %v476 = vld [vmem:[%s66 + $0x660] sm:$0xff]
          %477 = vst [vmem:[%s67 + $0x660] sm:$0xff] %v476
          %v478 = vld [vmem:[%s66 + $0x668] sm:$0xff]
          %479 = vst [vmem:[%s67 + $0x668] sm:$0xff] %v478
          %v480 = vld [vmem:[%s66 + $0x670] sm:$0xff]
          %481 = vst [vmem:[%s67 + $0x670] sm:$0xff] %v480
          %v482 = vld [vmem:[%s66 + $0x678] sm:$0xff]
          %483 = vst [vmem:[%s67 + $0x678] sm:$0xff] %v482
          %v484 = vld [vmem:[%s66 + $0x680] sm:$0xff]
          %485 = vst [vmem:[%s67 + $0x680] sm:$0xff] %v484
          %v486 = vld [vmem:[%s66 + $0x688] sm:$0xff]
          %487 = vst [vmem:[%s67 + $0x688] sm:$0xff] %v486
          %v488 = vld [vmem:[%s66 + $0x690] sm:$0xff]
          %489 = vst [vmem:[%s67 + $0x690] sm:$0xff] %v488
          %v490 = vld [vmem:[%s66 + $0x698] sm:$0xff]
          %491 = vst [vmem:[%s67 + $0x698] sm:$0xff] %v490
          %v492 = vld [vmem:[%s66 + $0x6a0] sm:$0xff]
          %493 = vst [vmem:[%s67 + $0x6a0] sm:$0xff] %v492
          %v494 = vld [vmem:[%s66 + $0x6a8] sm:$0xff]
          %495 = vst [vmem:[%s67 + $0x6a8] sm:$0xff] %v494
          %v496 = vld [vmem:[%s66 + $0x6b0] sm:$0xff]
          %497 = vst [vmem:[%s67 + $0x6b0] sm:$0xff] %v496
          %v498 = vld [vmem:[%s66 + $0x6b8] sm:$0xff]
          %499 = vst [vmem:[%s67 + $0x6b8] sm:$0xff] %v498
          %v500 = vld [vmem:[%s66 + $0x6c0] sm:$0xff]
          %501 = vst [vmem:[%s67 + $0x6c0] sm:$0xff] %v500
          %v502 = vld [vmem:[%s66 + $0x6c8] sm:$0xff]
          %503 = vst [vmem:[%s67 + $0x6c8] sm:$0xff] %v502
          %v504 = vld [vmem:[%s66 + $0x6d0] sm:$0xff]
          %505 = vst [vmem:[%s67 + $0x6d0] sm:$0xff] %v504
          %v506 = vld [vmem:[%s66 + $0x6d8] sm:$0xff]
          %507 = vst [vmem:[%s67 + $0x6d8] sm:$0xff] %v506
          %v508 = vld [vmem:[%s66 + $0x6e0] sm:$0xff]
          %509 = vst [vmem:[%s67 + $0x6e0] sm:$0xff] %v508
          %v510 = vld [vmem:[%s66 + $0x6e8] sm:$0xff]
          %511 = vst [vmem:[%s67 + $0x6e8] sm:$0xff] %v510
          %v512 = vld [vmem:[%s66 + $0x6f0] sm:$0xff]
          %513 = vst [vmem:[%s67 + $0x6f0] sm:$0xff] %v512
          %v514 = vld [vmem:[%s66 + $0x6f8] sm:$0xff]
          %515 = vst [vmem:[%s67 + $0x6f8] sm:$0xff] %v514
          %v516 = vld [vmem:[%s66 + $0x700] sm:$0xff]
          %517 = vst [vmem:[%s67 + $0x700] sm:$0xff] %v516
          %v518 = vld [vmem:[%s66 + $0x708] sm:$0xff]
          %519 = vst [vmem:[%s67 + $0x708] sm:$0xff] %v518
          %v520 = vld [vmem:[%s66 + $0x710] sm:$0xff]
          %521 = vst [vmem:[%s67 + $0x710] sm:$0xff] %v520
          %v522 = vld [vmem:[%s66 + $0x718] sm:$0xff]
          %523 = vst [vmem:[%s67 + $0x718] sm:$0xff] %v522
          %v524 = vld [vmem:[%s66 + $0x720] sm:$0xff]
          %525 = vst [vmem:[%s67 + $0x720] sm:$0xff] %v524
          %v526 = vld [vmem:[%s66 + $0x728] sm:$0xff]
          %527 = vst [vmem:[%s67 + $0x728] sm:$0xff] %v526
          %v528 = vld [vmem:[%s66 + $0x730] sm:$0xff]
          %529 = vst [vmem:[%s67 + $0x730] sm:$0xff] %v528
          %v530 = vld [vmem:[%s66 + $0x738] sm:$0xff]
          %531 = vst [vmem:[%s67 + $0x738] sm:$0xff] %v530
          %v532 = vld [vmem:[%s66 + $0x740] sm:$0xff]
          %533 = vst [vmem:[%s67 + $0x740] sm:$0xff] %v532
          %v534 = vld [vmem:[%s66 + $0x748] sm:$0xff]
          %535 = vst [vmem:[%s67 + $0x748] sm:$0xff] %v534
          %v536 = vld [vmem:[%s66 + $0x750] sm:$0xff]
          %537 = vst [vmem:[%s67 + $0x750] sm:$0xff] %v536
          %v538 = vld [vmem:[%s66 + $0x758] sm:$0xff]
          %539 = vst [vmem:[%s67 + $0x758] sm:$0xff] %v538
          %v540 = vld [vmem:[%s66 + $0x760] sm:$0xff]
          %541 = vst [vmem:[%s67 + $0x760] sm:$0xff] %v540
          %v542 = vld [vmem:[%s66 + $0x768] sm:$0xff]
          %543 = vst [vmem:[%s67 + $0x768] sm:$0xff] %v542
          %v544 = vld [vmem:[%s66 + $0x770] sm:$0xff]
          %545 = vst [vmem:[%s67 + $0x770] sm:$0xff] %v544
          %v546 = vld [vmem:[%s66 + $0x778] sm:$0xff]
          %547 = vst [vmem:[%s67 + $0x778] sm:$0xff] %v546
          %v548 = vld [vmem:[%s66 + $0x780] sm:$0xff]
          %549 = vst [vmem:[%s67 + $0x780] sm:$0xff] %v548
          %v550 = vld [vmem:[%s66 + $0x788] sm:$0xff]
          %551 = vst [vmem:[%s67 + $0x788] sm:$0xff] %v550
          %v552 = vld [vmem:[%s66 + $0x790] sm:$0xff]
          %553 = vst [vmem:[%s67 + $0x790] sm:$0xff] %v552
          %v554 = vld [vmem:[%s66 + $0x798] sm:$0xff]
          %555 = vst [vmem:[%s67 + $0x798] sm:$0xff] %v554
          %v556 = vld [vmem:[%s66 + $0x7a0] sm:$0xff]
          %557 = vst [vmem:[%s67 + $0x7a0] sm:$0xff] %v556
          %v558 = vld [vmem:[%s66 + $0x7a8] sm:$0xff]
          %559 = vst [vmem:[%s67 + $0x7a8] sm:$0xff] %v558
          %v560 = vld [vmem:[%s66 + $0x7b0] sm:$0xff]
          %561 = vst [vmem:[%s67 + $0x7b0] sm:$0xff] %v560
          %v562 = vld [vmem:[%s66 + $0x7b8] sm:$0xff]
          %563 = vst [vmem:[%s67 + $0x7b8] sm:$0xff] %v562
          %v564 = vld [vmem:[%s66 + $0x7c0] sm:$0xff]
          %565 = vst [vmem:[%s67 + $0x7c0] sm:$0xff] %v564
          %v566 = vld [vmem:[%s66 + $0x7c8] sm:$0xff]
          %567 = vst [vmem:[%s67 + $0x7c8] sm:$0xff] %v566
          %v568 = vld [vmem:[%s66 + $0x7d0] sm:$0xff]
          %569 = vst [vmem:[%s67 + $0x7d0] sm:$0xff] %v568
          %v570 = vld [vmem:[%s66 + $0x7d8] sm:$0xff]
          %571 = vst [vmem:[%s67 + $0x7d8] sm:$0xff] %v570
          %v572 = vld [vmem:[%s66 + $0x7e0] sm:$0xff]
          %573 = vst [vmem:[%s67 + $0x7e0] sm:$0xff] %v572
          %v574 = vld [vmem:[%s66 + $0x7e8] sm:$0xff]
          %575 = vst [vmem:[%s67 + $0x7e8] sm:$0xff] %v574
          %v576 = vld [vmem:[%s66 + $0x7f0] sm:$0xff]
          %577 = vst [vmem:[%s67 + $0x7f0] sm:$0xff] %v576
          %v578 = vld [vmem:[%s66 + $0x7f8] sm:$0xff]
          %579 = vst [vmem:[%s67 + $0x7f8] sm:$0xff] %v578
          %v580 = vld [vmem:[%s66 + $0x800] sm:$0xff]
          %581 = vst [vmem:[%s67 + $0x800] sm:$0xff] %v580
          %v582 = vld [vmem:[%s66 + $0x808] sm:$0xff]
          %583 = vst [vmem:[%s67 + $0x808] sm:$0xff] %v582
          %v584 = vld [vmem:[%s66 + $0x810] sm:$0xff]
          %585 = vst [vmem:[%s67 + $0x810] sm:$0xff] %v584
          %v586 = vld [vmem:[%s66 + $0x818] sm:$0xff]
          %587 = vst [vmem:[%s67 + $0x818] sm:$0xff] %v586
          %v588 = vld [vmem:[%s66 + $0x820] sm:$0xff]
          %589 = vst [vmem:[%s67 + $0x820] sm:$0xff] %v588
          %v590 = vld [vmem:[%s66 + $0x828] sm:$0xff]
          %591 = vst [vmem:[%s67 + $0x828] sm:$0xff] %v590
          %v592 = vld [vmem:[%s66 + $0x830] sm:$0xff]
          %593 = vst [vmem:[%s67 + $0x830] sm:$0xff] %v592
          %v594 = vld [vmem:[%s66 + $0x838] sm:$0xff]
          %595 = vst [vmem:[%s67 + $0x838] sm:$0xff] %v594
          %v596 = vld [vmem:[%s66 + $0x840] sm:$0xff]
          %597 = vst [vmem:[%s67 + $0x840] sm:$0xff] %v596
          %v598 = vld [vmem:[%s66 + $0x848] sm:$0xff]
          %599 = vst [vmem:[%s67 + $0x848] sm:$0xff] %v598
          %v600 = vld [vmem:[%s66 + $0x850] sm:$0xff]
          %601 = vst [vmem:[%s67 + $0x850] sm:$0xff] %v600
          %v602 = vld [vmem:[%s66 + $0x858] sm:$0xff]
          %603 = vst [vmem:[%s67 + $0x858] sm:$0xff] %v602
          %v604 = vld [vmem:[%s66 + $0x860] sm:$0xff]
          %605 = vst [vmem:[%s67 + $0x860] sm:$0xff] %v604
          %v606 = vld [vmem:[%s66 + $0x868] sm:$0xff]
          %607 = vst [vmem:[%s67 + $0x868] sm:$0xff] %v606
          %v608 = vld [vmem:[%s66 + $0x870] sm:$0xff]
          %609 = vst [vmem:[%s67 + $0x870] sm:$0xff] %v608
          %v610 = vld [vmem:[%s66 + $0x878] sm:$0xff]
          %611 = vst [vmem:[%s67 + $0x878] sm:$0xff] %v610
          %v612 = vld [vmem:[%s66 + $0x880] sm:$0xff]
          %613 = vst [vmem:[%s67 + $0x880] sm:$0xff] %v612
          %v614 = vld [vmem:[%s66 + $0x888] sm:$0xff]
          %615 = vst [vmem:[%s67 + $0x888] sm:$0xff] %v614
          %v616 = vld [vmem:[%s66 + $0x890] sm:$0xff]
          %617 = vst [vmem:[%s67 + $0x890] sm:$0xff] %v616
          %v618 = vld [vmem:[%s66 + $0x898] sm:$0xff]
          %619 = vst [vmem:[%s67 + $0x898] sm:$0xff] %v618
          %v620 = vld [vmem:[%s66 + $0x8a0] sm:$0xff]
          %621 = vst [vmem:[%s67 + $0x8a0] sm:$0xff] %v620
          %v622 = vld [vmem:[%s66 + $0x8a8] sm:$0xff]
          %623 = vst [vmem:[%s67 + $0x8a8] sm:$0xff] %v622
          %v624 = vld [vmem:[%s66 + $0x8b0] sm:$0xff]
          %625 = vst [vmem:[%s67 + $0x8b0] sm:$0xff] %v624
          %v626 = vld [vmem:[%s66 + $0x8b8] sm:$0xff]
          %627 = vst [vmem:[%s67 + $0x8b8] sm:$0xff] %v626
          %v628 = vld [vmem:[%s66 + $0x8c0] sm:$0xff]
          %629 = vst [vmem:[%s67 + $0x8c0] sm:$0xff] %v628
          %v630 = vld [vmem:[%s66 + $0x8c8] sm:$0xff]
          %631 = vst [vmem:[%s67 + $0x8c8] sm:$0xff] %v630
          %v632 = vld [vmem:[%s66 + $0x8d0] sm:$0xff]
          %633 = vst [vmem:[%s67 + $0x8d0] sm:$0xff] %v632
          %v634 = vld [vmem:[%s66 + $0x8d8] sm:$0xff]
          %635 = vst [vmem:[%s67 + $0x8d8] sm:$0xff] %v634
          %v636 = vld [vmem:[%s66 + $0x8e0] sm:$0xff]
          %637 = vst [vmem:[%s67 + $0x8e0] sm:$0xff] %v636
          %v638 = vld [vmem:[%s66 + $0x8e8] sm:$0xff]
          %639 = vst [vmem:[%s67 + $0x8e8] sm:$0xff] %v638
          %v640 = vld [vmem:[%s66 + $0x8f0] sm:$0xff]
          %641 = vst [vmem:[%s67 + $0x8f0] sm:$0xff] %v640
          %v642 = vld [vmem:[%s66 + $0x8f8] sm:$0xff]
          %643 = vst [vmem:[%s67 + $0x8f8] sm:$0xff] %v642
          %v644 = vld [vmem:[%s66 + $0x900] sm:$0xff]
          %645 = vst [vmem:[%s67 + $0x900] sm:$0xff] %v644
          %v646 = vld [vmem:[%s66 + $0x908] sm:$0xff]
          %647 = vst [vmem:[%s67 + $0x908] sm:$0xff] %v646
          %v648 = vld [vmem:[%s66 + $0x910] sm:$0xff]
          %649 = vst [vmem:[%s67 + $0x910] sm:$0xff] %v648
          %v650 = vld [vmem:[%s66 + $0x918] sm:$0xff]
          %651 = vst [vmem:[%s67 + $0x918] sm:$0xff] %v650
          %v652 = vld [vmem:[%s66 + $0x920] sm:$0xff]
          %653 = vst [vmem:[%s67 + $0x920] sm:$0xff] %v652
          %v654 = vld [vmem:[%s66 + $0x928] sm:$0xff]
          %655 = vst [vmem:[%s67 + $0x928] sm:$0xff] %v654
          %v656 = vld [vmem:[%s66 + $0x930] sm:$0xff]
          %657 = vst [vmem:[%s67 + $0x930] sm:$0xff] %v656
          %v658 = vld [vmem:[%s66 + $0x938] sm:$0xff]
          %659 = vst [vmem:[%s67 + $0x938] sm:$0xff] %v658
          %v660 = vld [vmem:[%s66 + $0x940] sm:$0xff]
          %661 = vst [vmem:[%s67 + $0x940] sm:$0xff] %v660
          %v662 = vld [vmem:[%s66 + $0x948] sm:$0xff]
          %663 = vst [vmem:[%s67 + $0x948] sm:$0xff] %v662
          %v664 = vld [vmem:[%s66 + $0x950] sm:$0xff]
          %665 = vst [vmem:[%s67 + $0x950] sm:$0xff] %v664
          %v666 = vld [vmem:[%s66 + $0x958] sm:$0xff]
          %667 = vst [vmem:[%s67 + $0x958] sm:$0xff] %v666
          %v668 = vld [vmem:[%s66 + $0x960] sm:$0xff]
          %669 = vst [vmem:[%s67 + $0x960] sm:$0xff] %v668
          %v670 = vld [vmem:[%s66 + $0x968] sm:$0xff]
          %671 = vst [vmem:[%s67 + $0x968] sm:$0xff] %v670
          %v672 = vld [vmem:[%s66 + $0x970] sm:$0xff]
          %673 = vst [vmem:[%s67 + $0x970] sm:$0xff] %v672
          %v674 = vld [vmem:[%s66 + $0x978] sm:$0xff]
          %675 = vst [vmem:[%s67 + $0x978] sm:$0xff] %v674
          %v676 = vld [vmem:[%s66 + $0x980] sm:$0xff]
          %677 = vst [vmem:[%s67 + $0x980] sm:$0xff] %v676
          %v678 = vld [vmem:[%s66 + $0x988] sm:$0xff]
          %679 = vst [vmem:[%s67 + $0x988] sm:$0xff] %v678
          %v680 = vld [vmem:[%s66 + $0x990] sm:$0xff]
          %681 = vst [vmem:[%s67 + $0x990] sm:$0xff] %v680
          %v682 = vld [vmem:[%s66 + $0x998] sm:$0xff]
          %683 = vst [vmem:[%s67 + $0x998] sm:$0xff] %v682
          %v684 = vld [vmem:[%s66 + $0x9a0] sm:$0xff]
          %685 = vst [vmem:[%s67 + $0x9a0] sm:$0xff] %v684
          %v686 = vld [vmem:[%s66 + $0x9a8] sm:$0xff]
          %687 = vst [vmem:[%s67 + $0x9a8] sm:$0xff] %v686
          %v688 = vld [vmem:[%s66 + $0x9b0] sm:$0xff]
          %689 = vst [vmem:[%s67 + $0x9b0] sm:$0xff] %v688
          %v690 = vld [vmem:[%s66 + $0x9b8] sm:$0xff]
          %691 = vst [vmem:[%s67 + $0x9b8] sm:$0xff] %v690
          %v692 = vld [vmem:[%s66 + $0x9c0] sm:$0xff]
          %693 = vst [vmem:[%s67 + $0x9c0] sm:$0xff] %v692
          %v694 = vld [vmem:[%s66 + $0x9c8] sm:$0xff]
          %695 = vst [vmem:[%s67 + $0x9c8] sm:$0xff] %v694
          %v696 = vld [vmem:[%s66 + $0x9d0] sm:$0xff]
          %697 = vst [vmem:[%s67 + $0x9d0] sm:$0xff] %v696
          %v698 = vld [vmem:[%s66 + $0x9d8] sm:$0xff]
          %699 = vst [vmem:[%s67 + $0x9d8] sm:$0xff] %v698
          %v700 = vld [vmem:[%s66 + $0x9e0] sm:$0xff]
          %701 = vst [vmem:[%s67 + $0x9e0] sm:$0xff] %v700
          %v702 = vld [vmem:[%s66 + $0x9e8] sm:$0xff]
          %703 = vst [vmem:[%s67 + $0x9e8] sm:$0xff] %v702
          %v704 = vld [vmem:[%s66 + $0x9f0] sm:$0xff]
          %705 = vst [vmem:[%s67 + $0x9f0] sm:$0xff] %v704
          %v706 = vld [vmem:[%s66 + $0x9f8] sm:$0xff]
          %707 = vst [vmem:[%s67 + $0x9f8] sm:$0xff] %v706
        $region45: #{forward.1} parent=39 // loop_footer
          %s65 = sadd.s32 1, %s61
        $region46: #{forward.1} parent=39 // loop_footer_branch
          %60 = sbr.rel target = $region42
        $region47: #{forward.1} parent=39 // loop_exit
          _
      $region40: #{forward.1} parent=24 // pred_fallthru
        _
      %p708 = pneg %p56
      // Predicated region
      $region48: #{forward.1} parent=24 // pred_check
        _
      $region49: #{forward.1} parent=24 // pred_check_branch
        %710 = sbr.rel (%p56) target = $region51
      $region50: #{forward.1} parent=24 // pred_region
        %s711 = sand.u32 2560, 7
      $region51: #{forward.1} parent=24 // pred_fallthru
        _
    $region25: #{forward.1} parent=1 // pred_fallthru
      _
    // Predicated region
    $region26: #{forward.1} parent=1 // pred_check
      %p40 = pneg %p36
    $region27: #{forward.1} parent=1 // pred_check_branch
      %42 = sbr.rel (%p40) target = $region29
    $region28: #{forward.1} parent=1 // pred_region
      %s43 = sshll.u32 1, 2560
      %s44 = ssub.s32 %s43, 1
      loop: start=0, step=1, limit=1
      $region30: #{forward.1} parent=28 // loop_pre_header
        _
      $region31: #{forward.1} parent=28 // loop_header
        %s46 = sphi 0, %s50
        %p47 = scmp.ge.s32.totalorder %s46, 1
        %s51 = sphi %s2, %s2
        %s52 = sphi [#allocation2], [#allocation2]
      $region32: #{forward.1} parent=28 // loop_header_branch
        %49 = sbr.rel (%p47) target = $region36
      $region33: #{forward.1} parent=28 // loop_body
        %v53 = vld [vmem:[%s51] sm:%s44]
        %54 = vst [vmem:[%s52] sm:%s44] %v53
      $region34: #{forward.1} parent=28 // loop_footer
        %s50 = sadd.s32 1, %s46
      $region35: #{forward.1} parent=28 // loop_footer_branch
        %45 = sbr.rel target = $region31
      $region36: #{forward.1} parent=28 // loop_exit
        _
    $region29: #{forward.1} parent=1 // pred_fallthru
      _
    // Predicated region
    $region52: #{forward.1} parent=1 // pred_check
      _
    $region53: #{forward.1} parent=1 // pred_check_branch
      %714 = sbr.rel (0) target = $region55
    $region54: #{forward.1} parent=1 // pred_region
      %715 = vsyncadd [#allocation4], 40960
    $region55: #{forward.1} parent=1 // pred_fallthru
      _
    %s716 = scalar_lea.sflag [#allocation4], 1
    %p718 = scmp.lt.u32.totalorder 1280, 8
    %p719 = pneg %p718
    // Predicated region
    $region56: #{forward.1} parent=1 // pred_check
      _
    $region57: #{forward.1} parent=1 // pred_check_branch
      %721 = sbr.rel (%p718) target = $region59
    $region58: #{forward.1} parent=1 // pred_region
      %s737 = sand.u32 1280, 7
      %p738 = scmp.eq.s32.totalorder %s737, 0
      // Predicated region
      $region71: #{forward.1} parent=58 // pred_check
        %p739 = pneg %p738
      $region72: #{forward.1} parent=58 // pred_check_branch
        %741 = sbr.rel (%p739) target = $region74
      $region73: #{forward.1} parent=58 // pred_region
        loop: start=0, step=1, limit=1
        $region75: #{forward.1} parent=73 // loop_pre_header
          _
        $region76: #{forward.1} parent=73 // loop_header
          %s743 = sphi 0, %s747
          %p744 = scmp.ge.s32.totalorder %s743, 1
          %s748 = sphi %s3, %s3
          %s749 = sphi [#allocation3], [#allocation3]
        $region77: #{forward.1} parent=73 // loop_header_branch
          %746 = sbr.rel (%p744) target = $region81
        $region78: #{forward.1} parent=73 // loop_body
          %v750 = vld [vmem:[%s748] sm:$0xff]
          %751 = vst [vmem:[%s749] sm:$0xff] %v750
          %v752 = vld [vmem:[%s748 + $0x8] sm:$0xff]
          %753 = vst [vmem:[%s749 + $0x8] sm:$0xff] %v752
          %v754 = vld [vmem:[%s748 + $0x10] sm:$0xff]
          %755 = vst [vmem:[%s749 + $0x10] sm:$0xff] %v754
          %v756 = vld [vmem:[%s748 + $0x18] sm:$0xff]
          %757 = vst [vmem:[%s749 + $0x18] sm:$0xff] %v756
          %v758 = vld [vmem:[%s748 + $0x20] sm:$0xff]
          %759 = vst [vmem:[%s749 + $0x20] sm:$0xff] %v758
          %v760 = vld [vmem:[%s748 + $0x28] sm:$0xff]
          %761 = vst [vmem:[%s749 + $0x28] sm:$0xff] %v760
          %v762 = vld [vmem:[%s748 + $0x30] sm:$0xff]
          %763 = vst [vmem:[%s749 + $0x30] sm:$0xff] %v762
          %v764 = vld [vmem:[%s748 + $0x38] sm:$0xff]
          %765 = vst [vmem:[%s749 + $0x38] sm:$0xff] %v764
          %v766 = vld [vmem:[%s748 + $0x40] sm:$0xff]
          %767 = vst [vmem:[%s749 + $0x40] sm:$0xff] %v766
          %v768 = vld [vmem:[%s748 + $0x48] sm:$0xff]
          %769 = vst [vmem:[%s749 + $0x48] sm:$0xff] %v768
          %v770 = vld [vmem:[%s748 + $0x50] sm:$0xff]
          %771 = vst [vmem:[%s749 + $0x50] sm:$0xff] %v770
          %v772 = vld [vmem:[%s748 + $0x58] sm:$0xff]
          %773 = vst [vmem:[%s749 + $0x58] sm:$0xff] %v772
          %v774 = vld [vmem:[%s748 + $0x60] sm:$0xff]
          %775 = vst [vmem:[%s749 + $0x60] sm:$0xff] %v774
          %v776 = vld [vmem:[%s748 + $0x68] sm:$0xff]
          %777 = vst [vmem:[%s749 + $0x68] sm:$0xff] %v776
          %v778 = vld [vmem:[%s748 + $0x70] sm:$0xff]
          %779 = vst [vmem:[%s749 + $0x70] sm:$0xff] %v778
          %v780 = vld [vmem:[%s748 + $0x78] sm:$0xff]
          %781 = vst [vmem:[%s749 + $0x78] sm:$0xff] %v780
          %v782 = vld [vmem:[%s748 + $0x80] sm:$0xff]
          %783 = vst [vmem:[%s749 + $0x80] sm:$0xff] %v782
          %v784 = vld [vmem:[%s748 + $0x88] sm:$0xff]
          %785 = vst [vmem:[%s749 + $0x88] sm:$0xff] %v784
          %v786 = vld [vmem:[%s748 + $0x90] sm:$0xff]
          %787 = vst [vmem:[%s749 + $0x90] sm:$0xff] %v786
          %v788 = vld [vmem:[%s748 + $0x98] sm:$0xff]
          %789 = vst [vmem:[%s749 + $0x98] sm:$0xff] %v788
          %v790 = vld [vmem:[%s748 + $0xa0] sm:$0xff]
          %791 = vst [vmem:[%s749 + $0xa0] sm:$0xff] %v790
          %v792 = vld [vmem:[%s748 + $0xa8] sm:$0xff]
          %793 = vst [vmem:[%s749 + $0xa8] sm:$0xff] %v792
          %v794 = vld [vmem:[%s748 + $0xb0] sm:$0xff]
          %795 = vst [vmem:[%s749 + $0xb0] sm:$0xff] %v794
          %v796 = vld [vmem:[%s748 + $0xb8] sm:$0xff]
          %797 = vst [vmem:[%s749 + $0xb8] sm:$0xff] %v796
          %v798 = vld [vmem:[%s748 + $0xc0] sm:$0xff]
          %799 = vst [vmem:[%s749 + $0xc0] sm:$0xff] %v798
          %v800 = vld [vmem:[%s748 + $0xc8] sm:$0xff]
          %801 = vst [vmem:[%s749 + $0xc8] sm:$0xff] %v800
          %v802 = vld [vmem:[%s748 + $0xd0] sm:$0xff]
          %803 = vst [vmem:[%s749 + $0xd0] sm:$0xff] %v802
          %v804 = vld [vmem:[%s748 + $0xd8] sm:$0xff]
          %805 = vst [vmem:[%s749 + $0xd8] sm:$0xff] %v804
          %v806 = vld [vmem:[%s748 + $0xe0] sm:$0xff]
          %807 = vst [vmem:[%s749 + $0xe0] sm:$0xff] %v806
          %v808 = vld [vmem:[%s748 + $0xe8] sm:$0xff]
          %809 = vst [vmem:[%s749 + $0xe8] sm:$0xff] %v808
          %v810 = vld [vmem:[%s748 + $0xf0] sm:$0xff]
          %811 = vst [vmem:[%s749 + $0xf0] sm:$0xff] %v810
          %v812 = vld [vmem:[%s748 + $0xf8] sm:$0xff]
          %813 = vst [vmem:[%s749 + $0xf8] sm:$0xff] %v812
          %v814 = vld [vmem:[%s748 + $0x100] sm:$0xff]
          %815 = vst [vmem:[%s749 + $0x100] sm:$0xff] %v814
          %v816 = vld [vmem:[%s748 + $0x108] sm:$0xff]
          %817 = vst [vmem:[%s749 + $0x108] sm:$0xff] %v816
          %v818 = vld [vmem:[%s748 + $0x110] sm:$0xff]
          %819 = vst [vmem:[%s749 + $0x110] sm:$0xff] %v818
          %v820 = vld [vmem:[%s748 + $0x118] sm:$0xff]
          %821 = vst [vmem:[%s749 + $0x118] sm:$0xff] %v820
          %v822 = vld [vmem:[%s748 + $0x120] sm:$0xff]
          %823 = vst [vmem:[%s749 + $0x120] sm:$0xff] %v822
          %v824 = vld [vmem:[%s748 + $0x128] sm:$0xff]
          %825 = vst [vmem:[%s749 + $0x128] sm:$0xff] %v824
          %v826 = vld [vmem:[%s748 + $0x130] sm:$0xff]
          %827 = vst [vmem:[%s749 + $0x130] sm:$0xff] %v826
          %v828 = vld [vmem:[%s748 + $0x138] sm:$0xff]
          %829 = vst [vmem:[%s749 + $0x138] sm:$0xff] %v828
          %v830 = vld [vmem:[%s748 + $0x140] sm:$0xff]
          %831 = vst [vmem:[%s749 + $0x140] sm:$0xff] %v830
          %v832 = vld [vmem:[%s748 + $0x148] sm:$0xff]
          %833 = vst [vmem:[%s749 + $0x148] sm:$0xff] %v832
          %v834 = vld [vmem:[%s748 + $0x150] sm:$0xff]
          %835 = vst [vmem:[%s749 + $0x150] sm:$0xff] %v834
          %v836 = vld [vmem:[%s748 + $0x158] sm:$0xff]
          %837 = vst [vmem:[%s749 + $0x158] sm:$0xff] %v836
          %v838 = vld [vmem:[%s748 + $0x160] sm:$0xff]
          %839 = vst [vmem:[%s749 + $0x160] sm:$0xff] %v838
          %v840 = vld [vmem:[%s748 + $0x168] sm:$0xff]
          %841 = vst [vmem:[%s749 + $0x168] sm:$0xff] %v840
          %v842 = vld [vmem:[%s748 + $0x170] sm:$0xff]
          %843 = vst [vmem:[%s749 + $0x170] sm:$0xff] %v842
          %v844 = vld [vmem:[%s748 + $0x178] sm:$0xff]
          %845 = vst [vmem:[%s749 + $0x178] sm:$0xff] %v844
          %v846 = vld [vmem:[%s748 + $0x180] sm:$0xff]
          %847 = vst [vmem:[%s749 + $0x180] sm:$0xff] %v846
          %v848 = vld [vmem:[%s748 + $0x188] sm:$0xff]
          %849 = vst [vmem:[%s749 + $0x188] sm:$0xff] %v848
          %v850 = vld [vmem:[%s748 + $0x190] sm:$0xff]
          %851 = vst [vmem:[%s749 + $0x190] sm:$0xff] %v850
          %v852 = vld [vmem:[%s748 + $0x198] sm:$0xff]
          %853 = vst [vmem:[%s749 + $0x198] sm:$0xff] %v852
          %v854 = vld [vmem:[%s748 + $0x1a0] sm:$0xff]
          %855 = vst [vmem:[%s749 + $0x1a0] sm:$0xff] %v854
          %v856 = vld [vmem:[%s748 + $0x1a8] sm:$0xff]
          %857 = vst [vmem:[%s749 + $0x1a8] sm:$0xff] %v856
          %v858 = vld [vmem:[%s748 + $0x1b0] sm:$0xff]
          %859 = vst [vmem:[%s749 + $0x1b0] sm:$0xff] %v858
          %v860 = vld [vmem:[%s748 + $0x1b8] sm:$0xff]
          %861 = vst [vmem:[%s749 + $0x1b8] sm:$0xff] %v860
          %v862 = vld [vmem:[%s748 + $0x1c0] sm:$0xff]
          %863 = vst [vmem:[%s749 + $0x1c0] sm:$0xff] %v862
          %v864 = vld [vmem:[%s748 + $0x1c8] sm:$0xff]
          %865 = vst [vmem:[%s749 + $0x1c8] sm:$0xff] %v864
          %v866 = vld [vmem:[%s748 + $0x1d0] sm:$0xff]
          %867 = vst [vmem:[%s749 + $0x1d0] sm:$0xff] %v866
          %v868 = vld [vmem:[%s748 + $0x1d8] sm:$0xff]
          %869 = vst [vmem:[%s749 + $0x1d8] sm:$0xff] %v868
          %v870 = vld [vmem:[%s748 + $0x1e0] sm:$0xff]
          %871 = vst [vmem:[%s749 + $0x1e0] sm:$0xff] %v870
          %v872 = vld [vmem:[%s748 + $0x1e8] sm:$0xff]
          %873 = vst [vmem:[%s749 + $0x1e8] sm:$0xff] %v872
          %v874 = vld [vmem:[%s748 + $0x1f0] sm:$0xff]
          %875 = vst [vmem:[%s749 + $0x1f0] sm:$0xff] %v874
          %v876 = vld [vmem:[%s748 + $0x1f8] sm:$0xff]
          %877 = vst [vmem:[%s749 + $0x1f8] sm:$0xff] %v876
          %v878 = vld [vmem:[%s748 + $0x200] sm:$0xff]
          %879 = vst [vmem:[%s749 + $0x200] sm:$0xff] %v878
          %v880 = vld [vmem:[%s748 + $0x208] sm:$0xff]
          %881 = vst [vmem:[%s749 + $0x208] sm:$0xff] %v880
          %v882 = vld [vmem:[%s748 + $0x210] sm:$0xff]
          %883 = vst [vmem:[%s749 + $0x210] sm:$0xff] %v882
          %v884 = vld [vmem:[%s748 + $0x218] sm:$0xff]
          %885 = vst [vmem:[%s749 + $0x218] sm:$0xff] %v884
          %v886 = vld [vmem:[%s748 + $0x220] sm:$0xff]
          %887 = vst [vmem:[%s749 + $0x220] sm:$0xff] %v886
          %v888 = vld [vmem:[%s748 + $0x228] sm:$0xff]
          %889 = vst [vmem:[%s749 + $0x228] sm:$0xff] %v888
          %v890 = vld [vmem:[%s748 + $0x230] sm:$0xff]
          %891 = vst [vmem:[%s749 + $0x230] sm:$0xff] %v890
          %v892 = vld [vmem:[%s748 + $0x238] sm:$0xff]
          %893 = vst [vmem:[%s749 + $0x238] sm:$0xff] %v892
          %v894 = vld [vmem:[%s748 + $0x240] sm:$0xff]
          %895 = vst [vmem:[%s749 + $0x240] sm:$0xff] %v894
          %v896 = vld [vmem:[%s748 + $0x248] sm:$0xff]
          %897 = vst [vmem:[%s749 + $0x248] sm:$0xff] %v896
          %v898 = vld [vmem:[%s748 + $0x250] sm:$0xff]
          %899 = vst [vmem:[%s749 + $0x250] sm:$0xff] %v898
          %v900 = vld [vmem:[%s748 + $0x258] sm:$0xff]
          %901 = vst [vmem:[%s749 + $0x258] sm:$0xff] %v900
          %v902 = vld [vmem:[%s748 + $0x260] sm:$0xff]
          %903 = vst [vmem:[%s749 + $0x260] sm:$0xff] %v902
          %v904 = vld [vmem:[%s748 + $0x268] sm:$0xff]
          %905 = vst [vmem:[%s749 + $0x268] sm:$0xff] %v904
          %v906 = vld [vmem:[%s748 + $0x270] sm:$0xff]
          %907 = vst [vmem:[%s749 + $0x270] sm:$0xff] %v906
          %v908 = vld [vmem:[%s748 + $0x278] sm:$0xff]
          %909 = vst [vmem:[%s749 + $0x278] sm:$0xff] %v908
          %v910 = vld [vmem:[%s748 + $0x280] sm:$0xff]
          %911 = vst [vmem:[%s749 + $0x280] sm:$0xff] %v910
          %v912 = vld [vmem:[%s748 + $0x288] sm:$0xff]
          %913 = vst [vmem:[%s749 + $0x288] sm:$0xff] %v912
          %v914 = vld [vmem:[%s748 + $0x290] sm:$0xff]
          %915 = vst [vmem:[%s749 + $0x290] sm:$0xff] %v914
          %v916 = vld [vmem:[%s748 + $0x298] sm:$0xff]
          %917 = vst [vmem:[%s749 + $0x298] sm:$0xff] %v916
          %v918 = vld [vmem:[%s748 + $0x2a0] sm:$0xff]
          %919 = vst [vmem:[%s749 + $0x2a0] sm:$0xff] %v918
          %v920 = vld [vmem:[%s748 + $0x2a8] sm:$0xff]
          %921 = vst [vmem:[%s749 + $0x2a8] sm:$0xff] %v920
          %v922 = vld [vmem:[%s748 + $0x2b0] sm:$0xff]
          %923 = vst [vmem:[%s749 + $0x2b0] sm:$0xff] %v922
          %v924 = vld [vmem:[%s748 + $0x2b8] sm:$0xff]
          %925 = vst [vmem:[%s749 + $0x2b8] sm:$0xff] %v924
          %v926 = vld [vmem:[%s748 + $0x2c0] sm:$0xff]
          %927 = vst [vmem:[%s749 + $0x2c0] sm:$0xff] %v926
          %v928 = vld [vmem:[%s748 + $0x2c8] sm:$0xff]
          %929 = vst [vmem:[%s749 + $0x2c8] sm:$0xff] %v928
          %v930 = vld [vmem:[%s748 + $0x2d0] sm:$0xff]
          %931 = vst [vmem:[%s749 + $0x2d0] sm:$0xff] %v930
          %v932 = vld [vmem:[%s748 + $0x2d8] sm:$0xff]
          %933 = vst [vmem:[%s749 + $0x2d8] sm:$0xff] %v932
          %v934 = vld [vmem:[%s748 + $0x2e0] sm:$0xff]
          %935 = vst [vmem:[%s749 + $0x2e0] sm:$0xff] %v934
          %v936 = vld [vmem:[%s748 + $0x2e8] sm:$0xff]
          %937 = vst [vmem:[%s749 + $0x2e8] sm:$0xff] %v936
          %v938 = vld [vmem:[%s748 + $0x2f0] sm:$0xff]
          %939 = vst [vmem:[%s749 + $0x2f0] sm:$0xff] %v938
          %v940 = vld [vmem:[%s748 + $0x2f8] sm:$0xff]
          %941 = vst [vmem:[%s749 + $0x2f8] sm:$0xff] %v940
          %v942 = vld [vmem:[%s748 + $0x300] sm:$0xff]
          %943 = vst [vmem:[%s749 + $0x300] sm:$0xff] %v942
          %v944 = vld [vmem:[%s748 + $0x308] sm:$0xff]
          %945 = vst [vmem:[%s749 + $0x308] sm:$0xff] %v944
          %v946 = vld [vmem:[%s748 + $0x310] sm:$0xff]
          %947 = vst [vmem:[%s749 + $0x310] sm:$0xff] %v946
          %v948 = vld [vmem:[%s748 + $0x318] sm:$0xff]
          %949 = vst [vmem:[%s749 + $0x318] sm:$0xff] %v948
          %v950 = vld [vmem:[%s748 + $0x320] sm:$0xff]
          %951 = vst [vmem:[%s749 + $0x320] sm:$0xff] %v950
          %v952 = vld [vmem:[%s748 + $0x328] sm:$0xff]
          %953 = vst [vmem:[%s749 + $0x328] sm:$0xff] %v952
          %v954 = vld [vmem:[%s748 + $0x330] sm:$0xff]
          %955 = vst [vmem:[%s749 + $0x330] sm:$0xff] %v954
          %v956 = vld [vmem:[%s748 + $0x338] sm:$0xff]
          %957 = vst [vmem:[%s749 + $0x338] sm:$0xff] %v956
          %v958 = vld [vmem:[%s748 + $0x340] sm:$0xff]
          %959 = vst [vmem:[%s749 + $0x340] sm:$0xff] %v958
          %v960 = vld [vmem:[%s748 + $0x348] sm:$0xff]
          %961 = vst [vmem:[%s749 + $0x348] sm:$0xff] %v960
          %v962 = vld [vmem:[%s748 + $0x350] sm:$0xff]
          %963 = vst [vmem:[%s749 + $0x350] sm:$0xff] %v962
          %v964 = vld [vmem:[%s748 + $0x358] sm:$0xff]
          %965 = vst [vmem:[%s749 + $0x358] sm:$0xff] %v964
          %v966 = vld [vmem:[%s748 + $0x360] sm:$0xff]
          %967 = vst [vmem:[%s749 + $0x360] sm:$0xff] %v966
          %v968 = vld [vmem:[%s748 + $0x368] sm:$0xff]
          %969 = vst [vmem:[%s749 + $0x368] sm:$0xff] %v968
          %v970 = vld [vmem:[%s748 + $0x370] sm:$0xff]
          %971 = vst [vmem:[%s749 + $0x370] sm:$0xff] %v970
          %v972 = vld [vmem:[%s748 + $0x378] sm:$0xff]
          %973 = vst [vmem:[%s749 + $0x378] sm:$0xff] %v972
          %v974 = vld [vmem:[%s748 + $0x380] sm:$0xff]
          %975 = vst [vmem:[%s749 + $0x380] sm:$0xff] %v974
          %v976 = vld [vmem:[%s748 + $0x388] sm:$0xff]
          %977 = vst [vmem:[%s749 + $0x388] sm:$0xff] %v976
          %v978 = vld [vmem:[%s748 + $0x390] sm:$0xff]
          %979 = vst [vmem:[%s749 + $0x390] sm:$0xff] %v978
          %v980 = vld [vmem:[%s748 + $0x398] sm:$0xff]
          %981 = vst [vmem:[%s749 + $0x398] sm:$0xff] %v980
          %v982 = vld [vmem:[%s748 + $0x3a0] sm:$0xff]
          %983 = vst [vmem:[%s749 + $0x3a0] sm:$0xff] %v982
          %v984 = vld [vmem:[%s748 + $0x3a8] sm:$0xff]
          %985 = vst [vmem:[%s749 + $0x3a8] sm:$0xff] %v984
          %v986 = vld [vmem:[%s748 + $0x3b0] sm:$0xff]
          %987 = vst [vmem:[%s749 + $0x3b0] sm:$0xff] %v986
          %v988 = vld [vmem:[%s748 + $0x3b8] sm:$0xff]
          %989 = vst [vmem:[%s749 + $0x3b8] sm:$0xff] %v988
          %v990 = vld [vmem:[%s748 + $0x3c0] sm:$0xff]
          %991 = vst [vmem:[%s749 + $0x3c0] sm:$0xff] %v990
          %v992 = vld [vmem:[%s748 + $0x3c8] sm:$0xff]
          %993 = vst [vmem:[%s749 + $0x3c8] sm:$0xff] %v992
          %v994 = vld [vmem:[%s748 + $0x3d0] sm:$0xff]
          %995 = vst [vmem:[%s749 + $0x3d0] sm:$0xff] %v994
          %v996 = vld [vmem:[%s748 + $0x3d8] sm:$0xff]
          %997 = vst [vmem:[%s749 + $0x3d8] sm:$0xff] %v996
          %v998 = vld [vmem:[%s748 + $0x3e0] sm:$0xff]
          %999 = vst [vmem:[%s749 + $0x3e0] sm:$0xff] %v998
          %v1000 = vld [vmem:[%s748 + $0x3e8] sm:$0xff]
          %1001 = vst [vmem:[%s749 + $0x3e8] sm:$0xff] %v1000
          %v1002 = vld [vmem:[%s748 + $0x3f0] sm:$0xff]
          %1003 = vst [vmem:[%s749 + $0x3f0] sm:$0xff] %v1002
          %v1004 = vld [vmem:[%s748 + $0x3f8] sm:$0xff]
          %1005 = vst [vmem:[%s749 + $0x3f8] sm:$0xff] %v1004
          %v1006 = vld [vmem:[%s748 + $0x400] sm:$0xff]
          %1007 = vst [vmem:[%s749 + $0x400] sm:$0xff] %v1006
          %v1008 = vld [vmem:[%s748 + $0x408] sm:$0xff]
          %1009 = vst [vmem:[%s749 + $0x408] sm:$0xff] %v1008
          %v1010 = vld [vmem:[%s748 + $0x410] sm:$0xff]
          %1011 = vst [vmem:[%s749 + $0x410] sm:$0xff] %v1010
          %v1012 = vld [vmem:[%s748 + $0x418] sm:$0xff]
          %1013 = vst [vmem:[%s749 + $0x418] sm:$0xff] %v1012
          %v1014 = vld [vmem:[%s748 + $0x420] sm:$0xff]
          %1015 = vst [vmem:[%s749 + $0x420] sm:$0xff] %v1014
          %v1016 = vld [vmem:[%s748 + $0x428] sm:$0xff]
          %1017 = vst [vmem:[%s749 + $0x428] sm:$0xff] %v1016
          %v1018 = vld [vmem:[%s748 + $0x430] sm:$0xff]
          %1019 = vst [vmem:[%s749 + $0x430] sm:$0xff] %v1018
          %v1020 = vld [vmem:[%s748 + $0x438] sm:$0xff]
          %1021 = vst [vmem:[%s749 + $0x438] sm:$0xff] %v1020
          %v1022 = vld [vmem:[%s748 + $0x440] sm:$0xff]
          %1023 = vst [vmem:[%s749 + $0x440] sm:$0xff] %v1022
          %v1024 = vld [vmem:[%s748 + $0x448] sm:$0xff]
          %1025 = vst [vmem:[%s749 + $0x448] sm:$0xff] %v1024
          %v1026 = vld [vmem:[%s748 + $0x450] sm:$0xff]
          %1027 = vst [vmem:[%s749 + $0x450] sm:$0xff] %v1026
          %v1028 = vld [vmem:[%s748 + $0x458] sm:$0xff]
          %1029 = vst [vmem:[%s749 + $0x458] sm:$0xff] %v1028
          %v1030 = vld [vmem:[%s748 + $0x460] sm:$0xff]
          %1031 = vst [vmem:[%s749 + $0x460] sm:$0xff] %v1030
          %v1032 = vld [vmem:[%s748 + $0x468] sm:$0xff]
          %1033 = vst [vmem:[%s749 + $0x468] sm:$0xff] %v1032
          %v1034 = vld [vmem:[%s748 + $0x470] sm:$0xff]
          %1035 = vst [vmem:[%s749 + $0x470] sm:$0xff] %v1034
          %v1036 = vld [vmem:[%s748 + $0x478] sm:$0xff]
          %1037 = vst [vmem:[%s749 + $0x478] sm:$0xff] %v1036
          %v1038 = vld [vmem:[%s748 + $0x480] sm:$0xff]
          %1039 = vst [vmem:[%s749 + $0x480] sm:$0xff] %v1038
          %v1040 = vld [vmem:[%s748 + $0x488] sm:$0xff]
          %1041 = vst [vmem:[%s749 + $0x488] sm:$0xff] %v1040
          %v1042 = vld [vmem:[%s748 + $0x490] sm:$0xff]
          %1043 = vst [vmem:[%s749 + $0x490] sm:$0xff] %v1042
          %v1044 = vld [vmem:[%s748 + $0x498] sm:$0xff]
          %1045 = vst [vmem:[%s749 + $0x498] sm:$0xff] %v1044
          %v1046 = vld [vmem:[%s748 + $0x4a0] sm:$0xff]
          %1047 = vst [vmem:[%s749 + $0x4a0] sm:$0xff] %v1046
          %v1048 = vld [vmem:[%s748 + $0x4a8] sm:$0xff]
          %1049 = vst [vmem:[%s749 + $0x4a8] sm:$0xff] %v1048
          %v1050 = vld [vmem:[%s748 + $0x4b0] sm:$0xff]
          %1051 = vst [vmem:[%s749 + $0x4b0] sm:$0xff] %v1050
          %v1052 = vld [vmem:[%s748 + $0x4b8] sm:$0xff]
          %1053 = vst [vmem:[%s749 + $0x4b8] sm:$0xff] %v1052
          %v1054 = vld [vmem:[%s748 + $0x4c0] sm:$0xff]
          %1055 = vst [vmem:[%s749 + $0x4c0] sm:$0xff] %v1054
          %v1056 = vld [vmem:[%s748 + $0x4c8] sm:$0xff]
          %1057 = vst [vmem:[%s749 + $0x4c8] sm:$0xff] %v1056
          %v1058 = vld [vmem:[%s748 + $0x4d0] sm:$0xff]
          %1059 = vst [vmem:[%s749 + $0x4d0] sm:$0xff] %v1058
          %v1060 = vld [vmem:[%s748 + $0x4d8] sm:$0xff]
          %1061 = vst [vmem:[%s749 + $0x4d8] sm:$0xff] %v1060
          %v1062 = vld [vmem:[%s748 + $0x4e0] sm:$0xff]
          %1063 = vst [vmem:[%s749 + $0x4e0] sm:$0xff] %v1062
          %v1064 = vld [vmem:[%s748 + $0x4e8] sm:$0xff]
          %1065 = vst [vmem:[%s749 + $0x4e8] sm:$0xff] %v1064
          %v1066 = vld [vmem:[%s748 + $0x4f0] sm:$0xff]
          %1067 = vst [vmem:[%s749 + $0x4f0] sm:$0xff] %v1066
          %v1068 = vld [vmem:[%s748 + $0x4f8] sm:$0xff]
          %1069 = vst [vmem:[%s749 + $0x4f8] sm:$0xff] %v1068
        $region79: #{forward.1} parent=73 // loop_footer
          %s747 = sadd.s32 1, %s743
        $region80: #{forward.1} parent=73 // loop_footer_branch
          %742 = sbr.rel target = $region76
        $region81: #{forward.1} parent=73 // loop_exit
          _
      $region74: #{forward.1} parent=58 // pred_fallthru
        _
      %p1070 = pneg %p738
      // Predicated region
      $region82: #{forward.1} parent=58 // pred_check
        _
      $region83: #{forward.1} parent=58 // pred_check_branch
        %1072 = sbr.rel (%p738) target = $region85
      $region84: #{forward.1} parent=58 // pred_region
        %s1073 = sand.u32 1280, 7
      $region85: #{forward.1} parent=58 // pred_fallthru
        _
    $region59: #{forward.1} parent=1 // pred_fallthru
      _
    // Predicated region
    $region60: #{forward.1} parent=1 // pred_check
      %p722 = pneg %p718
    $region61: #{forward.1} parent=1 // pred_check_branch
      %724 = sbr.rel (%p722) target = $region63
    $region62: #{forward.1} parent=1 // pred_region
      %s725 = sshll.u32 1, 1280
      %s726 = ssub.s32 %s725, 1
      loop: start=0, step=1, limit=1
      $region64: #{forward.1} parent=62 // loop_pre_header
        _
      $region65: #{forward.1} parent=62 // loop_header
        %s728 = sphi 0, %s732
        %p729 = scmp.ge.s32.totalorder %s728, 1
        %s733 = sphi %s3, %s3
        %s734 = sphi [#allocation3], [#allocation3]
      $region66: #{forward.1} parent=62 // loop_header_branch
        %731 = sbr.rel (%p729) target = $region70
      $region67: #{forward.1} parent=62 // loop_body
        %v735 = vld [vmem:[%s733] sm:%s726]
        %736 = vst [vmem:[%s734] sm:%s726] %v735
      $region68: #{forward.1} parent=62 // loop_footer
        %s732 = sadd.s32 1, %s728
      $region69: #{forward.1} parent=62 // loop_footer_branch
        %727 = sbr.rel target = $region65
      $region70: #{forward.1} parent=62 // loop_exit
        _
    $region63: #{forward.1} parent=1 // pred_fallthru
      _
    // Predicated region
    $region86: #{forward.1} parent=1 // pred_check
      _
    $region87: #{forward.1} parent=1 // pred_check_branch
      %1076 = sbr.rel (0) target = $region89
    $region88: #{forward.1} parent=1 // pred_region
      %1077 = vsyncadd %s716, 20480
    $region89: #{forward.1} parent=1 // pred_fallthru
      _
    %v1078 = vld [vmem:[%s0] sm:$0xff]
    %v1079 = vld [vmem:[%s0 + $0x8] sm:$0xff]
    %v1080 = vld [vmem:[%s0 + $0x10] sm:$0xff]
    %v1081 = vld [vmem:[%s0 + $0x18] sm:$0xff]
    %v1082 = vld [vmem:[%s0 + $0x20] sm:$0xff]
    %v1083 = vld [vmem:[%s0 + $0x28] sm:$0xff]
    %v1084 = vld [vmem:[%s0 + $0x30] sm:$0xff]
    %v1085 = vld [vmem:[%s0 + $0x38] sm:$0xff]
    %v1086 = vld [vmem:[#allocation5] sm:$0xff]
    %v1087 = vld [vmem:[#allocation5 + $0x8] sm:$0xff]
    %v1088 = vld [vmem:[#allocation5 + $0x10] sm:$0xff]
    %v1089 = vld [vmem:[#allocation5 + $0x18] sm:$0xff]
    %v1090 = vld [vmem:[#allocation5 + $0x20] sm:$0xff]
    %v1091 = vld [vmem:[#allocation5 + $0x28] sm:$0xff]
    %v1092 = vld [vmem:[#allocation5 + $0x30] sm:$0xff]
    %v1093 = vld [vmem:[#allocation5 + $0x38] sm:$0xff]
    %v1094 = vld [vmem:[#allocation5 + $0x40] sm:$0xff]
    %v1095 = vld [vmem:[#allocation5 + $0x48] sm:$0xff]
    %v1096 = vld [vmem:[#allocation5 + $0x50] sm:$0xff]
    %v1097 = vld [vmem:[#allocation5 + $0x58] sm:$0xff]
    %v1098 = vld [vmem:[#allocation5 + $0x60] sm:$0xff]
    %v1099 = vld [vmem:[#allocation5 + $0x68] sm:$0xff]
    %v1100 = vld [vmem:[#allocation5 + $0x70] sm:$0xff]
    %v1101 = vld [vmem:[#allocation5 + $0x78] sm:$0xff]
    %v1102 = vld [vmem:[#allocation5 + $0x80] sm:$0xff]
    %v1103 = vld [vmem:[#allocation5 + $0x88] sm:$0xff]
    %v1104 = vld [vmem:[#allocation5 + $0x90] sm:$0xff]
    %v1105 = vld [vmem:[#allocation5 + $0x98] sm:$0xff]
    %v1106 = vld [vmem:[#allocation5 + $0xa0] sm:$0xff]
    %v1107 = vld [vmem:[#allocation5 + $0xa8] sm:$0xff]
    %v1108 = vld [vmem:[#allocation5 + $0xb0] sm:$0xff]
    %v1109 = vld [vmem:[#allocation5 + $0xb8] sm:$0xff]
    %v1110 = vld [vmem:[#allocation5 + $0xc0] sm:$0xff]
    %v1111 = vld [vmem:[#allocation5 + $0xc8] sm:$0xff]
    %v1112 = vld [vmem:[#allocation5 + $0xd0] sm:$0xff]
    %v1113 = vld [vmem:[#allocation5 + $0xd8] sm:$0xff]
    %v1114 = vld [vmem:[#allocation5 + $0xe0] sm:$0xff]
    %v1115 = vld [vmem:[#allocation5 + $0xe8] sm:$0xff]
    %v1116 = vld [vmem:[#allocation5 + $0xf0] sm:$0xff]
    %v1117 = vld [vmem:[#allocation5 + $0xf8] sm:$0xff]
    %v1118 = vld [vmem:[#allocation5 + $0x100] sm:$0xff]
    %v1119 = vld [vmem:[#allocation5 + $0x108] sm:$0xff]
    %v1120 = vld [vmem:[#allocation5 + $0x110] sm:$0xff]
    %v1121 = vld [vmem:[#allocation5 + $0x118] sm:$0xff]
    %v1122 = vld [vmem:[#allocation5 + $0x120] sm:$0xff]
    %v1123 = vld [vmem:[#allocation5 + $0x128] sm:$0xff]
    %v1124 = vld [vmem:[#allocation5 + $0x130] sm:$0xff]
    %v1125 = vld [vmem:[#allocation5 + $0x138] sm:$0xff]
    %v1126 = vld [vmem:[#allocation5 + $0x140] sm:$0xff]
    %v1127 = vld [vmem:[#allocation5 + $0x148] sm:$0xff]
    %v1128 = vld [vmem:[#allocation5 + $0x150] sm:$0xff]
    %v1129 = vld [vmem:[#allocation5 + $0x158] sm:$0xff]
    %v1130 = vld [vmem:[#allocation5 + $0x160] sm:$0xff]
    %v1131 = vld [vmem:[#allocation5 + $0x168] sm:$0xff]
    %v1132 = vld [vmem:[#allocation5 + $0x170] sm:$0xff]
    %v1133 = vld [vmem:[#allocation5 + $0x178] sm:$0xff]
    %v1134 = vld [vmem:[#allocation5 + $0x180] sm:$0xff]
    %v1135 = vld [vmem:[#allocation5 + $0x188] sm:$0xff]
    %v1136 = vld [vmem:[#allocation5 + $0x190] sm:$0xff]
    %v1137 = vld [vmem:[#allocation5 + $0x198] sm:$0xff]
    %v1138 = vld [vmem:[#allocation5 + $0x1a0] sm:$0xff]
    %v1139 = vld [vmem:[#allocation5 + $0x1a8] sm:$0xff]
    %v1140 = vld [vmem:[#allocation5 + $0x1b0] sm:$0xff]
    %v1141 = vld [vmem:[#allocation5 + $0x1b8] sm:$0xff]
    %v1142 = vld [vmem:[#allocation5 + $0x1c0] sm:$0xff]
    %v1143 = vld [vmem:[#allocation5 + $0x1c8] sm:$0xff]
    %v1144 = vld [vmem:[#allocation5 + $0x1d0] sm:$0xff]
    %v1145 = vld [vmem:[#allocation5 + $0x1d8] sm:$0xff]
    %v1146 = vld [vmem:[#allocation5 + $0x1e0] sm:$0xff]
    %v1147 = vld [vmem:[#allocation5 + $0x1e8] sm:$0xff]
    %v1148 = vld [vmem:[#allocation5 + $0x1f0] sm:$0xff]
    %v1149 = vld [vmem:[#allocation5 + $0x1f8] sm:$0xff]
    %v1150 = vld [vmem:[#allocation5 + $0x200] sm:$0xff]
    %v1151 = vld [vmem:[#allocation5 + $0x208] sm:$0xff]
    %v1152 = vld [vmem:[#allocation5 + $0x210] sm:$0xff]
    %v1153 = vld [vmem:[#allocation5 + $0x218] sm:$0xff]
    %v1154 = vld [vmem:[#allocation5 + $0x220] sm:$0xff]
    %v1155 = vld [vmem:[#allocation5 + $0x228] sm:$0xff]
    %v1156 = vld [vmem:[#allocation5 + $0x230] sm:$0xff]
    %v1157 = vld [vmem:[#allocation5 + $0x238] sm:$0xff]
    %v1158 = vld [vmem:[#allocation5 + $0x240] sm:$0xff]
    %v1159 = vld [vmem:[#allocation5 + $0x248] sm:$0xff]
    %v1160 = vld [vmem:[#allocation5 + $0x250] sm:$0xff]
    %v1161 = vld [vmem:[#allocation5 + $0x258] sm:$0xff]
    %v1162 = vld [vmem:[#allocation5 + $0x260] sm:$0xff]
    %v1163 = vld [vmem:[#allocation5 + $0x268] sm:$0xff]
    %v1164 = vld [vmem:[#allocation5 + $0x270] sm:$0xff]
    %v1165 = vld [vmem:[#allocation5 + $0x278] sm:$0xff]
    %v1166 = vld [vmem:[#allocation5 + $0x280] sm:$0xff]
    %v1167 = vld [vmem:[#allocation5 + $0x288] sm:$0xff]
    %v1168 = vld [vmem:[#allocation5 + $0x290] sm:$0xff]
    %v1169 = vld [vmem:[#allocation5 + $0x298] sm:$0xff]
    %v1170 = vld [vmem:[#allocation5 + $0x2a0] sm:$0xff]
    %v1171 = vld [vmem:[#allocation5 + $0x2a8] sm:$0xff]
    %v1172 = vld [vmem:[#allocation5 + $0x2b0] sm:$0xff]
    %v1173 = vld [vmem:[#allocation5 + $0x2b8] sm:$0xff]
    %v1174 = vld [vmem:[#allocation5 + $0x2c0] sm:$0xff]
    %v1175 = vld [vmem:[#allocation5 + $0x2c8] sm:$0xff]
    %v1176 = vld [vmem:[#allocation5 + $0x2d0] sm:$0xff]
    %v1177 = vld [vmem:[#allocation5 + $0x2d8] sm:$0xff]
    %v1178 = vld [vmem:[#allocation5 + $0x2e0] sm:$0xff]
    %v1179 = vld [vmem:[#allocation5 + $0x2e8] sm:$0xff]
    %v1180 = vld [vmem:[#allocation5 + $0x2f0] sm:$0xff]
    %v1181 = vld [vmem:[#allocation5 + $0x2f8] sm:$0xff]
    %v1182 = vld [vmem:[#allocation5 + $0x300] sm:$0xff]
    %v1183 = vld [vmem:[#allocation5 + $0x308] sm:$0xff]
    %v1184 = vld [vmem:[#allocation5 + $0x310] sm:$0xff]
    %v1185 = vld [vmem:[#allocation5 + $0x318] sm:$0xff]
    %v1186 = vld [vmem:[#allocation5 + $0x320] sm:$0xff]
    %v1187 = vld [vmem:[#allocation5 + $0x328] sm:$0xff]
    %v1188 = vld [vmem:[#allocation5 + $0x330] sm:$0xff]
    %v1189 = vld [vmem:[#allocation5 + $0x338] sm:$0xff]
    %v1190 = vld [vmem:[#allocation5 + $0x340] sm:$0xff]
    %v1191 = vld [vmem:[#allocation5 + $0x348] sm:$0xff]
    %v1192 = vld [vmem:[#allocation5 + $0x350] sm:$0xff]
    %v1193 = vld [vmem:[#allocation5 + $0x358] sm:$0xff]
    %v1194 = vld [vmem:[#allocation5 + $0x360] sm:$0xff]
    %v1195 = vld [vmem:[#allocation5 + $0x368] sm:$0xff]
    %v1196 = vld [vmem:[#allocation5 + $0x370] sm:$0xff]
    %v1197 = vld [vmem:[#allocation5 + $0x378] sm:$0xff]
    %v1198 = vld [vmem:[#allocation5 + $0x380] sm:$0xff]
    %v1199 = vld [vmem:[#allocation5 + $0x388] sm:$0xff]
    %v1200 = vld [vmem:[#allocation5 + $0x390] sm:$0xff]
    %v1201 = vld [vmem:[#allocation5 + $0x398] sm:$0xff]
    %v1202 = vld [vmem:[#allocation5 + $0x3a0] sm:$0xff]
    %v1203 = vld [vmem:[#allocation5 + $0x3a8] sm:$0xff]
    %v1204 = vld [vmem:[#allocation5 + $0x3b0] sm:$0xff]
    %v1205 = vld [vmem:[#allocation5 + $0x3b8] sm:$0xff]
    %v1206 = vld [vmem:[#allocation5 + $0x3c0] sm:$0xff]
    %v1207 = vld [vmem:[#allocation5 + $0x3c8] sm:$0xff]
    %v1208 = vld [vmem:[#allocation5 + $0x3d0] sm:$0xff]
    %v1209 = vld [vmem:[#allocation5 + $0x3d8] sm:$0xff]
    %v1210 = vld [vmem:[#allocation5 + $0x3e0] sm:$0xff]
    %v1211 = vld [vmem:[#allocation5 + $0x3e8] sm:$0xff]
    %v1212 = vld [vmem:[#allocation5 + $0x3f0] sm:$0xff]
    %v1213 = vld [vmem:[#allocation5 + $0x3f8] sm:$0xff]
    %v1214 = vld [vmem:[#allocation5 + $0x400] sm:$0xff]
    %v1215 = vld [vmem:[#allocation5 + $0x408] sm:$0xff]
    %v1216 = vld [vmem:[#allocation5 + $0x410] sm:$0xff]
    %v1217 = vld [vmem:[#allocation5 + $0x418] sm:$0xff]
    %v1218 = vld [vmem:[#allocation5 + $0x420] sm:$0xff]
    %v1219 = vld [vmem:[#allocation5 + $0x428] sm:$0xff]
    %v1220 = vld [vmem:[#allocation5 + $0x430] sm:$0xff]
    %v1221 = vld [vmem:[#allocation5 + $0x438] sm:$0xff]
    %v1222 = vld [vmem:[#allocation5 + $0x440] sm:$0xff]
    %v1223 = vld [vmem:[#allocation5 + $0x448] sm:$0xff]
    %v1224 = vld [vmem:[#allocation5 + $0x450] sm:$0xff]
    %v1225 = vld [vmem:[#allocation5 + $0x458] sm:$0xff]
    %v1226 = vld [vmem:[#allocation5 + $0x460] sm:$0xff]
    %v1227 = vld [vmem:[#allocation5 + $0x468] sm:$0xff]
    %v1228 = vld [vmem:[#allocation5 + $0x470] sm:$0xff]
    %v1229 = vld [vmem:[#allocation5 + $0x478] sm:$0xff]
    %v1230 = vld [vmem:[#allocation5 + $0x480] sm:$0xff]
    %v1231 = vld [vmem:[#allocation5 + $0x488] sm:$0xff]
    %v1232 = vld [vmem:[#allocation5 + $0x490] sm:$0xff]
    %v1233 = vld [vmem:[#allocation5 + $0x498] sm:$0xff]
    %v1234 = vld [vmem:[#allocation5 + $0x4a0] sm:$0xff]
    %v1235 = vld [vmem:[#allocation5 + $0x4a8] sm:$0xff]
    %v1236 = vld [vmem:[#allocation5 + $0x4b0] sm:$0xff]
    %v1237 = vld [vmem:[#allocation5 + $0x4b8] sm:$0xff]
    %v1238 = vld [vmem:[#allocation5 + $0x4c0] sm:$0xff]
    %v1239 = vld [vmem:[#allocation5 + $0x4c8] sm:$0xff]
    %v1240 = vld [vmem:[#allocation5 + $0x4d0] sm:$0xff]
    %v1241 = vld [vmem:[#allocation5 + $0x4d8] sm:$0xff]
    %v1242 = vld [vmem:[#allocation5 + $0x4e0] sm:$0xff]
    %v1243 = vld [vmem:[#allocation5 + $0x4e8] sm:$0xff]
    %v1244 = vld [vmem:[#allocation5 + $0x4f0] sm:$0xff]
    %v1245 = vld [vmem:[#allocation5 + $0x4f8] sm:$0xff]
    %vm1254 = vcmask 1046528
    %v1255 = vrot.slane %v1078, 1
    %v1256 = vrot.slane %v1079, 1
    %v1257 = vsel %vm1254, %v1255, %v1256
    %v1258 = vrot.slane %v1080, 1
    %v1259 = vsel %vm1254, %v1256, %v1258
    %v1260 = vrot.slane %v1081, 1
    %v1261 = vsel %vm1254, %v1258, %v1260
    %v1262 = vrot.slane %v1082, 1
    %v1263 = vrot.slane %v1083, 1
    %v1264 = vsel %vm1254, %v1262, %v1263
    %v1265 = vrot.slane %v1084, 1
    %v1266 = vsel %vm1254, %v1263, %v1265
    %v1267 = vrot.slane %v1085, 1
    %v1268 = vsel %vm1254, %v1265, %v1267
    %vm1269 = vcmask 1045504
    %v1270 = vrot.slane %v1078, 2
    %v1271 = vrot.slane %v1079, 2
    %v1272 = vsel %vm1269, %v1270, %v1271
    %v1273 = vrot.slane %v1080, 2
    %v1274 = vsel %vm1269, %v1271, %v1273
    %v1275 = vrot.slane %v1081, 2
    %v1276 = vsel %vm1269, %v1273, %v1275
    %v1277 = vrot.slane %v1082, 2
    %v1278 = vrot.slane %v1083, 2
    %v1279 = vsel %vm1269, %v1277, %v1278
    %v1280 = vrot.slane %v1084, 2
    %v1281 = vsel %vm1269, %v1278, %v1280
    %v1282 = vrot.slane %v1085, 2
    %v1283 = vsel %vm1269, %v1280, %v1282
    %vm1284 = vcmask 1044480
    %v1285 = vrot.slane %v1078, 3
    %v1286 = vrot.slane %v1079, 3
    %v1287 = vsel %vm1284, %v1285, %v1286
    %v1288 = vrot.slane %v1080, 3
    %v1289 = vsel %vm1284, %v1286, %v1288
    %v1290 = vrot.slane %v1081, 3
    %v1291 = vsel %vm1284, %v1288, %v1290
    %v1292 = vrot.slane %v1082, 3
    %v1293 = vrot.slane %v1083, 3
    %v1294 = vsel %vm1284, %v1292, %v1293
    %v1295 = vrot.slane %v1084, 3
    %v1296 = vsel %vm1284, %v1293, %v1295
    %v1297 = vrot.slane %v1085, 3
    %v1298 = vsel %vm1284, %v1295, %v1297
    %vm1299 = vcmask 1043456
    %v1300 = vrot.slane %v1078, 4
    %v1301 = vrot.slane %v1079, 4
    %v1302 = vsel %vm1299, %v1300, %v1301
    %v1303 = vrot.slane %v1080, 4
    %v1304 = vsel %vm1299, %v1301, %v1303
    %v1305 = vrot.slane %v1081, 4
    %v1306 = vsel %vm1299, %v1303, %v1305
    %v1307 = vrot.slane %v1082, 4
    %v1308 = vrot.slane %v1083, 4
    %v1309 = vsel %vm1299, %v1307, %v1308
    %v1310 = vrot.slane %v1084, 4
    %v1311 = vsel %vm1299, %v1308, %v1310
    %v1312 = vrot.slane %v1085, 4
    %v1313 = vsel %vm1299, %v1310, %v1312
    %v1314 = vcombine.low %v1078, %v1257
    %v1315 = vcombine.high %v1078, %v1257
    %v1316 = vcombine.low %v1272, %v1287
    %v1317 = vcombine.high %v1272, %v1287
    %v1318 = vcombine.high %v1302, %v1302
    %v1319 = vcombine.low %v1079, %v1259
    %v1320 = vcombine.high %v1079, %v1259
    %v1321 = vcombine.low %v1274, %v1289
    %v1322 = vcombine.high %v1274, %v1289
    %v1323 = vcombine.high %v1304, %v1304
    %v1324 = vcombine.low %v1080, %v1261
    %v1325 = vcombine.high %v1080, %v1261
    %v1326 = vcombine.low %v1276, %v1291
    %v1327 = vcombine.high %v1276, %v1291
    %v1328 = vcombine.high %v1306, %v1306
    %v1329 = vcombine.low %v1081, %v1260
    %v1330 = vcombine.low %v1275, %v1290
    %v1331 = vcombine.low %v1082, %v1264
    %v1332 = vcombine.high %v1082, %v1264
    %v1333 = vcombine.low %v1279, %v1294
    %v1334 = vcombine.high %v1279, %v1294
    %v1335 = vcombine.high %v1309, %v1309
    %v1336 = vcombine.low %v1083, %v1266
    %v1337 = vcombine.high %v1083, %v1266
    %v1338 = vcombine.low %v1281, %v1296
    %v1339 = vcombine.high %v1281, %v1296
    %v1340 = vcombine.high %v1311, %v1311
    %v1341 = vcombine.low %v1084, %v1268
    %v1342 = vcombine.high %v1084, %v1268
    %v1343 = vcombine.low %v1283, %v1298
    %v1344 = vcombine.high %v1283, %v1298
    %v1345 = vcombine.high %v1313, %v1313
    %v1346 = vcombine.low %v1085, %v1267
    %v1347 = vcombine.low %v1282, %v1297
    %v1348 = vcombine.low %v1314, %v1315
    %v1349 = vcombine.high %v1314, %v1315
    %v1350 = vcombine.low %v1316, %v1317
    %v1351 = vcombine.high %v1316, %v1317
    %v1352 = vcombine.low %v1302, %v1318
    %v1353 = vcombine.low %v1319, %v1320
    %v1354 = vcombine.high %v1319, %v1320
    %v1355 = vcombine.low %v1321, %v1322
    %v1356 = vcombine.high %v1321, %v1322
    %v1357 = vcombine.low %v1304, %v1323
    %v1358 = vcombine.low %v1324, %v1325
    %v1359 = vcombine.high %v1324, %v1325
    %v1360 = vcombine.low %v1326, %v1327
    %v1361 = vcombine.high %v1326, %v1327
    %v1362 = vcombine.low %v1306, %v1328
    %v1363 = vcombine.low %v1329, %v1331
    %v1364 = vcombine.high %v1329, %v1331
    %v1365 = vcombine.low %v1330, %v1333
    %v1366 = vcombine.high %v1330, %v1333
    %v1367 = vcombine.low %v1305, %v1309
    %v1368 = vcombine.low %v1332, %v1336
    %v1369 = vcombine.high %v1332, %v1336
    %v1370 = vcombine.low %v1334, %v1338
    %v1371 = vcombine.high %v1334, %v1338
    %v1372 = vcombine.low %v1335, %v1311
    %v1373 = vcombine.low %v1337, %v1341
    %v1374 = vcombine.high %v1337, %v1341
    %v1375 = vcombine.low %v1339, %v1343
    %v1376 = vcombine.high %v1339, %v1343
    %v1377 = vcombine.low %v1340, %v1313
    %v1378 = vcombine.low %v1342, %v1346
    %v1379 = vcombine.high %v1342, %v1346
    %v1380 = vcombine.low %v1344, %v1347
    %v1381 = vcombine.high %v1344, %v1347
    %v1382 = vcombine.low %v1345, %v1312
    %v1418 = vpack.c.bf16 %v1353, %v1348
    %v1419 = vpack.c.bf16 %v1354, %v1349
    %v1420 = vpack.c.bf16 %v1355, %v1350
    %v1421 = vpack.c.bf16 %v1356, %v1351
    %v1422 = vpack.c.bf16 %v1357, %v1352
    %v1423 = vpack.c.bf16 %v1363, %v1358
    %v1424 = vpack.c.bf16 %v1364, %v1359
    %v1425 = vpack.c.bf16 %v1365, %v1360
    %v1426 = vpack.c.bf16 %v1366, %v1361
    %v1427 = vpack.c.bf16 %v1367, %v1362
    %v1428 = vpack.c.bf16 %v1373, %v1368
    %v1429 = vpack.c.bf16 %v1374, %v1369
    %v1430 = vpack.c.bf16 %v1375, %v1370
    %v1431 = vpack.c.bf16 %v1376, %v1371
    %v1432 = vpack.c.bf16 %v1377, %v1372
    %v1433 = vpack.c.bf16 %v1378, %v1378
    %v1434 = vpack.c.bf16 %v1379, %v1379
    %v1435 = vpack.c.bf16 %v1380, %v1380
    %v1436 = vpack.c.bf16 %v1381, %v1381
    %v1437 = vpack.c.bf16 %v1382, %v1382
    %v1598 = vunpack.c.l.b16 %v1086
    %v1599 = vunpack.c.h.b16 %v1086
    %v1600 = vunpack.c.l.b16 %v1087
    %v1601 = vunpack.c.h.b16 %v1087
    %v1602 = vunpack.c.l.b16 %v1088
    %v1603 = vunpack.c.h.b16 %v1088
    %v1604 = vunpack.c.l.b16 %v1089
    %v1605 = vunpack.c.h.b16 %v1089
    %v1606 = vunpack.c.l.b16 %v1090
    %v1607 = vunpack.c.h.b16 %v1090
    %v1608 = vunpack.c.l.b16 %v1091
    %v1609 = vunpack.c.h.b16 %v1091
    %v1610 = vunpack.c.l.b16 %v1092
    %v1611 = vunpack.c.h.b16 %v1092
    %v1612 = vunpack.c.l.b16 %v1093
    %v1613 = vunpack.c.h.b16 %v1093
    %v1614 = vunpack.c.l.b16 %v1094
    %v1615 = vunpack.c.h.b16 %v1094
    %v1616 = vunpack.c.l.b16 %v1095
    %v1617 = vunpack.c.h.b16 %v1095
    %v1618 = vunpack.c.l.b16 %v1096
    %v1619 = vunpack.c.h.b16 %v1096
    %v1620 = vunpack.c.l.b16 %v1097
    %v1621 = vunpack.c.h.b16 %v1097
    %v1622 = vunpack.c.l.b16 %v1098
    %v1623 = vunpack.c.h.b16 %v1098
    %v1624 = vunpack.c.l.b16 %v1099
    %v1625 = vunpack.c.h.b16 %v1099
    %v1626 = vunpack.c.l.b16 %v1100
    %v1627 = vunpack.c.h.b16 %v1100
    %v1628 = vunpack.c.l.b16 %v1101
    %v1629 = vunpack.c.h.b16 %v1101
    %v1630 = vunpack.c.l.b16 %v1102
    %v1631 = vunpack.c.h.b16 %v1102
    %v1632 = vunpack.c.l.b16 %v1103
    %v1633 = vunpack.c.h.b16 %v1103
    %v1634 = vunpack.c.l.b16 %v1104
    %v1635 = vunpack.c.h.b16 %v1104
    %v1636 = vunpack.c.l.b16 %v1105
    %v1637 = vunpack.c.h.b16 %v1105
    %v1638 = vunpack.c.l.b16 %v1106
    %v1639 = vunpack.c.h.b16 %v1106
    %v1640 = vunpack.c.l.b16 %v1107
    %v1641 = vunpack.c.h.b16 %v1107
    %v1642 = vunpack.c.l.b16 %v1108
    %v1643 = vunpack.c.h.b16 %v1108
    %v1644 = vunpack.c.l.b16 %v1109
    %v1645 = vunpack.c.h.b16 %v1109
    %v1646 = vunpack.c.l.b16 %v1110
    %v1647 = vunpack.c.h.b16 %v1110
    %v1648 = vunpack.c.l.b16 %v1111
    %v1649 = vunpack.c.h.b16 %v1111
    %v1650 = vunpack.c.l.b16 %v1112
    %v1651 = vunpack.c.h.b16 %v1112
    %v1652 = vunpack.c.l.b16 %v1113
    %v1653 = vunpack.c.h.b16 %v1113
    %v1654 = vunpack.c.l.b16 %v1114
    %v1655 = vunpack.c.h.b16 %v1114
    %v1656 = vunpack.c.l.b16 %v1115
    %v1657 = vunpack.c.h.b16 %v1115
    %v1658 = vunpack.c.l.b16 %v1116
    %v1659 = vunpack.c.h.b16 %v1116
    %v1660 = vunpack.c.l.b16 %v1117
    %v1661 = vunpack.c.h.b16 %v1117
    %v1662 = vunpack.c.l.b16 %v1118
    %v1663 = vunpack.c.h.b16 %v1118
    %v1664 = vunpack.c.l.b16 %v1119
    %v1665 = vunpack.c.h.b16 %v1119
    %v1666 = vunpack.c.l.b16 %v1120
    %v1667 = vunpack.c.h.b16 %v1120
    %v1668 = vunpack.c.l.b16 %v1121
    %v1669 = vunpack.c.h.b16 %v1121
    %v1670 = vunpack.c.l.b16 %v1122
    %v1671 = vunpack.c.h.b16 %v1122
    %v1672 = vunpack.c.l.b16 %v1123
    %v1673 = vunpack.c.h.b16 %v1123
    %v1674 = vunpack.c.l.b16 %v1124
    %v1675 = vunpack.c.h.b16 %v1124
    %v1676 = vunpack.c.l.b16 %v1125
    %v1677 = vunpack.c.h.b16 %v1125
    %v1678 = vunpack.c.l.b16 %v1126
    %v1679 = vunpack.c.h.b16 %v1126
    %v1680 = vunpack.c.l.b16 %v1127
    %v1681 = vunpack.c.h.b16 %v1127
    %v1682 = vunpack.c.l.b16 %v1128
    %v1683 = vunpack.c.h.b16 %v1128
    %v1684 = vunpack.c.l.b16 %v1129
    %v1685 = vunpack.c.h.b16 %v1129
    %v1686 = vunpack.c.l.b16 %v1130
    %v1687 = vunpack.c.h.b16 %v1130
    %v1688 = vunpack.c.l.b16 %v1131
    %v1689 = vunpack.c.h.b16 %v1131
    %v1690 = vunpack.c.l.b16 %v1132
    %v1691 = vunpack.c.h.b16 %v1132
    %v1692 = vunpack.c.l.b16 %v1133
    %v1693 = vunpack.c.h.b16 %v1133
    %v1694 = vunpack.c.l.b16 %v1134
    %v1695 = vunpack.c.h.b16 %v1134
    %v1696 = vunpack.c.l.b16 %v1135
    %v1697 = vunpack.c.h.b16 %v1135
    %v1698 = vunpack.c.l.b16 %v1136
    %v1699 = vunpack.c.h.b16 %v1136
    %v1700 = vunpack.c.l.b16 %v1137
    %v1701 = vunpack.c.h.b16 %v1137
    %v1702 = vunpack.c.l.b16 %v1138
    %v1703 = vunpack.c.h.b16 %v1138
    %v1704 = vunpack.c.l.b16 %v1139
    %v1705 = vunpack.c.h.b16 %v1139
    %v1706 = vunpack.c.l.b16 %v1140
    %v1707 = vunpack.c.h.b16 %v1140
    %v1708 = vunpack.c.l.b16 %v1141
    %v1709 = vunpack.c.h.b16 %v1141
    %v1710 = vunpack.c.l.b16 %v1142
    %v1711 = vunpack.c.h.b16 %v1142
    %v1712 = vunpack.c.l.b16 %v1143
    %v1713 = vunpack.c.h.b16 %v1143
    %v1714 = vunpack.c.l.b16 %v1144
    %v1715 = vunpack.c.h.b16 %v1144
    %v1716 = vunpack.c.l.b16 %v1145
    %v1717 = vunpack.c.h.b16 %v1145
    %v1718 = vunpack.c.l.b16 %v1146
    %v1719 = vunpack.c.h.b16 %v1146
    %v1720 = vunpack.c.l.b16 %v1147
    %v1721 = vunpack.c.h.b16 %v1147
    %v1722 = vunpack.c.l.b16 %v1148
    %v1723 = vunpack.c.h.b16 %v1148
    %v1724 = vunpack.c.l.b16 %v1149
    %v1725 = vunpack.c.h.b16 %v1149
    %v1726 = vunpack.c.l.b16 %v1150
    %v1727 = vunpack.c.h.b16 %v1150
    %v1728 = vunpack.c.l.b16 %v1151
    %v1729 = vunpack.c.h.b16 %v1151
    %v1730 = vunpack.c.l.b16 %v1152
    %v1731 = vunpack.c.h.b16 %v1152
    %v1732 = vunpack.c.l.b16 %v1153
    %v1733 = vunpack.c.h.b16 %v1153
    %v1734 = vunpack.c.l.b16 %v1154
    %v1735 = vunpack.c.h.b16 %v1154
    %v1736 = vunpack.c.l.b16 %v1155
    %v1737 = vunpack.c.h.b16 %v1155
    %v1738 = vunpack.c.l.b16 %v1156
    %v1739 = vunpack.c.h.b16 %v1156
    %v1740 = vunpack.c.l.b16 %v1157
    %v1741 = vunpack.c.h.b16 %v1157
    %v1742 = vunpack.c.l.b16 %v1158
    %v1743 = vunpack.c.h.b16 %v1158
    %v1744 = vunpack.c.l.b16 %v1159
    %v1745 = vunpack.c.h.b16 %v1159
    %v1746 = vunpack.c.l.b16 %v1160
    %v1747 = vunpack.c.h.b16 %v1160
    %v1748 = vunpack.c.l.b16 %v1161
    %v1749 = vunpack.c.h.b16 %v1161
    %v1750 = vunpack.c.l.b16 %v1162
    %v1751 = vunpack.c.h.b16 %v1162
    %v1752 = vunpack.c.l.b16 %v1163
    %v1753 = vunpack.c.h.b16 %v1163
    %v1754 = vunpack.c.l.b16 %v1164
    %v1755 = vunpack.c.h.b16 %v1164
    %v1756 = vunpack.c.l.b16 %v1165
    %v1757 = vunpack.c.h.b16 %v1165
    %v1758 = vunpack.c.l.b16 %v1166
    %v1759 = vunpack.c.h.b16 %v1166
    %v1760 = vunpack.c.l.b16 %v1167
    %v1761 = vunpack.c.h.b16 %v1167
    %v1762 = vunpack.c.l.b16 %v1168
    %v1763 = vunpack.c.h.b16 %v1168
    %v1764 = vunpack.c.l.b16 %v1169
    %v1765 = vunpack.c.h.b16 %v1169
    %v1766 = vunpack.c.l.b16 %v1170
    %v1767 = vunpack.c.h.b16 %v1170
    %v1768 = vunpack.c.l.b16 %v1171
    %v1769 = vunpack.c.h.b16 %v1171
    %v1770 = vunpack.c.l.b16 %v1172
    %v1771 = vunpack.c.h.b16 %v1172
    %v1772 = vunpack.c.l.b16 %v1173
    %v1773 = vunpack.c.h.b16 %v1173
    %v1774 = vunpack.c.l.b16 %v1174
    %v1775 = vunpack.c.h.b16 %v1174
    %v1776 = vunpack.c.l.b16 %v1175
    %v1777 = vunpack.c.h.b16 %v1175
    %v1778 = vunpack.c.l.b16 %v1176
    %v1779 = vunpack.c.h.b16 %v1176
    %v1780 = vunpack.c.l.b16 %v1177
    %v1781 = vunpack.c.h.b16 %v1177
    %v1782 = vunpack.c.l.b16 %v1178
    %v1783 = vunpack.c.h.b16 %v1178
    %v1784 = vunpack.c.l.b16 %v1179
    %v1785 = vunpack.c.h.b16 %v1179
    %v1786 = vunpack.c.l.b16 %v1180
    %v1787 = vunpack.c.h.b16 %v1180
    %v1788 = vunpack.c.l.b16 %v1181
    %v1789 = vunpack.c.h.b16 %v1181
    %v1790 = vunpack.c.l.b16 %v1182
    %v1791 = vunpack.c.h.b16 %v1182
    %v1792 = vunpack.c.l.b16 %v1183
    %v1793 = vunpack.c.h.b16 %v1183
    %v1794 = vunpack.c.l.b16 %v1184
    %v1795 = vunpack.c.h.b16 %v1184
    %v1796 = vunpack.c.l.b16 %v1185
    %v1797 = vunpack.c.h.b16 %v1185
    %v1798 = vunpack.c.l.b16 %v1186
    %v1799 = vunpack.c.h.b16 %v1186
    %v1800 = vunpack.c.l.b16 %v1187
    %v1801 = vunpack.c.h.b16 %v1187
    %v1802 = vunpack.c.l.b16 %v1188
    %v1803 = vunpack.c.h.b16 %v1188
    %v1804 = vunpack.c.l.b16 %v1189
    %v1805 = vunpack.c.h.b16 %v1189
    %v1806 = vunpack.c.l.b16 %v1190
    %v1807 = vunpack.c.h.b16 %v1190
    %v1808 = vunpack.c.l.b16 %v1191
    %v1809 = vunpack.c.h.b16 %v1191
    %v1810 = vunpack.c.l.b16 %v1192
    %v1811 = vunpack.c.h.b16 %v1192
    %v1812 = vunpack.c.l.b16 %v1193
    %v1813 = vunpack.c.h.b16 %v1193
    %v1814 = vunpack.c.l.b16 %v1194
    %v1815 = vunpack.c.h.b16 %v1194
    %v1816 = vunpack.c.l.b16 %v1195
    %v1817 = vunpack.c.h.b16 %v1195
    %v1818 = vunpack.c.l.b16 %v1196
    %v1819 = vunpack.c.h.b16 %v1196
    %v1820 = vunpack.c.l.b16 %v1197
    %v1821 = vunpack.c.h.b16 %v1197
    %v1822 = vunpack.c.l.b16 %v1198
    %v1823 = vunpack.c.h.b16 %v1198
    %v1824 = vunpack.c.l.b16 %v1199
    %v1825 = vunpack.c.h.b16 %v1199
    %v1826 = vunpack.c.l.b16 %v1200
    %v1827 = vunpack.c.h.b16 %v1200
    %v1828 = vunpack.c.l.b16 %v1201
    %v1829 = vunpack.c.h.b16 %v1201
    %v1830 = vunpack.c.l.b16 %v1202
    %v1831 = vunpack.c.h.b16 %v1202
    %v1832 = vunpack.c.l.b16 %v1203
    %v1833 = vunpack.c.h.b16 %v1203
    %v1834 = vunpack.c.l.b16 %v1204
    %v1835 = vunpack.c.h.b16 %v1204
    %v1836 = vunpack.c.l.b16 %v1205
    %v1837 = vunpack.c.h.b16 %v1205
    %v1838 = vunpack.c.l.b16 %v1206
    %v1839 = vunpack.c.h.b16 %v1206
    %v1840 = vunpack.c.l.b16 %v1207
    %v1841 = vunpack.c.h.b16 %v1207
    %v1842 = vunpack.c.l.b16 %v1208
    %v1843 = vunpack.c.h.b16 %v1208
    %v1844 = vunpack.c.l.b16 %v1209
    %v1845 = vunpack.c.h.b16 %v1209
    %v1846 = vunpack.c.l.b16 %v1210
    %v1847 = vunpack.c.h.b16 %v1210
    %v1848 = vunpack.c.l.b16 %v1211
    %v1849 = vunpack.c.h.b16 %v1211
    %v1850 = vunpack.c.l.b16 %v1212
    %v1851 = vunpack.c.h.b16 %v1212
    %v1852 = vunpack.c.l.b16 %v1213
    %v1853 = vunpack.c.h.b16 %v1213
    %v1854 = vunpack.c.l.b16 %v1214
    %v1855 = vunpack.c.h.b16 %v1214
    %v1856 = vunpack.c.l.b16 %v1215
    %v1857 = vunpack.c.h.b16 %v1215
    %v1858 = vunpack.c.l.b16 %v1216
    %v1859 = vunpack.c.h.b16 %v1216
    %v1860 = vunpack.c.l.b16 %v1217
    %v1861 = vunpack.c.h.b16 %v1217
    %v1862 = vunpack.c.l.b16 %v1218
    %v1863 = vunpack.c.h.b16 %v1218
    %v1864 = vunpack.c.l.b16 %v1219
    %v1865 = vunpack.c.h.b16 %v1219
    %v1866 = vunpack.c.l.b16 %v1220
    %v1867 = vunpack.c.h.b16 %v1220
    %v1868 = vunpack.c.l.b16 %v1221
    %v1869 = vunpack.c.h.b16 %v1221
    %v1870 = vunpack.c.l.b16 %v1222
    %v1871 = vunpack.c.h.b16 %v1222
    %v1872 = vunpack.c.l.b16 %v1223
    %v1873 = vunpack.c.h.b16 %v1223
    %v1874 = vunpack.c.l.b16 %v1224
    %v1875 = vunpack.c.h.b16 %v1224
    %v1876 = vunpack.c.l.b16 %v1225
    %v1877 = vunpack.c.h.b16 %v1225
    %v1878 = vunpack.c.l.b16 %v1226
    %v1879 = vunpack.c.h.b16 %v1226
    %v1880 = vunpack.c.l.b16 %v1227
    %v1881 = vunpack.c.h.b16 %v1227
    %v1882 = vunpack.c.l.b16 %v1228
    %v1883 = vunpack.c.h.b16 %v1228
    %v1884 = vunpack.c.l.b16 %v1229
    %v1885 = vunpack.c.h.b16 %v1229
    %v1886 = vunpack.c.l.b16 %v1230
    %v1887 = vunpack.c.h.b16 %v1230
    %v1888 = vunpack.c.l.b16 %v1231
    %v1889 = vunpack.c.h.b16 %v1231
    %v1890 = vunpack.c.l.b16 %v1232
    %v1891 = vunpack.c.h.b16 %v1232
    %v1892 = vunpack.c.l.b16 %v1233
    %v1893 = vunpack.c.h.b16 %v1233
    %v1894 = vunpack.c.l.b16 %v1234
    %v1895 = vunpack.c.h.b16 %v1234
    %v1896 = vunpack.c.l.b16 %v1235
    %v1897 = vunpack.c.h.b16 %v1235
    %v1898 = vunpack.c.l.b16 %v1236
    %v1899 = vunpack.c.h.b16 %v1236
    %v1900 = vunpack.c.l.b16 %v1237
    %v1901 = vunpack.c.h.b16 %v1237
    %v1902 = vunpack.c.l.b16 %v1238
    %v1903 = vunpack.c.h.b16 %v1238
    %v1904 = vunpack.c.l.b16 %v1239
    %v1905 = vunpack.c.h.b16 %v1239
    %v1906 = vunpack.c.l.b16 %v1240
    %v1907 = vunpack.c.h.b16 %v1240
    %v1908 = vunpack.c.l.b16 %v1241
    %v1909 = vunpack.c.h.b16 %v1241
    %v1910 = vunpack.c.l.b16 %v1242
    %v1911 = vunpack.c.h.b16 %v1242
    %v1912 = vunpack.c.l.b16 %v1243
    %v1913 = vunpack.c.h.b16 %v1243
    %v1914 = vunpack.c.l.b16 %v1244
    %v1915 = vunpack.c.h.b16 %v1244
    %v1916 = vunpack.c.l.b16 %v1245
    %v1917 = vunpack.c.h.b16 %v1245
    %v1918 = vpack.c.b16 %v1602, %v1598
    %v1919 = vpack.c.b16 %v1603, %v1599
    %v1920 = vpack.c.b16 %v1604, %v1600
    %v1921 = vpack.c.b16 %v1605, %v1601
    %v1922 = vpack.c.b16 %v1610, %v1606
    %v1923 = vpack.c.b16 %v1611, %v1607
    %v1924 = vpack.c.b16 %v1612, %v1608
    %v1925 = vpack.c.b16 %v1613, %v1609
    %v1926 = vpack.c.b16 %v1618, %v1614
    %v1927 = vpack.c.b16 %v1619, %v1615
    %v1928 = vpack.c.b16 %v1620, %v1616
    %v1929 = vpack.c.b16 %v1621, %v1617
    %v1930 = vpack.c.b16 %v1626, %v1622
    %v1931 = vpack.c.b16 %v1627, %v1623
    %v1932 = vpack.c.b16 %v1628, %v1624
    %v1933 = vpack.c.b16 %v1629, %v1625
    %v1934 = vpack.c.b16 %v1634, %v1630
    %v1935 = vpack.c.b16 %v1635, %v1631
    %v1936 = vpack.c.b16 %v1636, %v1632
    %v1937 = vpack.c.b16 %v1637, %v1633
    %v1938 = vpack.c.b16 %v1642, %v1638
    %v1939 = vpack.c.b16 %v1643, %v1639
    %v1940 = vpack.c.b16 %v1644, %v1640
    %v1941 = vpack.c.b16 %v1645, %v1641
    %v1942 = vpack.c.b16 %v1650, %v1646
    %v1943 = vpack.c.b16 %v1651, %v1647
    %v1944 = vpack.c.b16 %v1652, %v1648
    %v1945 = vpack.c.b16 %v1653, %v1649
    %v1946 = vpack.c.b16 %v1658, %v1654
    %v1947 = vpack.c.b16 %v1659, %v1655
    %v1948 = vpack.c.b16 %v1660, %v1656
    %v1949 = vpack.c.b16 %v1661, %v1657
    %v1950 = vpack.c.b16 %v1666, %v1662
    %v1951 = vpack.c.b16 %v1667, %v1663
    %v1952 = vpack.c.b16 %v1668, %v1664
    %v1953 = vpack.c.b16 %v1669, %v1665
    %v1954 = vpack.c.b16 %v1674, %v1670
    %v1955 = vpack.c.b16 %v1675, %v1671
    %v1956 = vpack.c.b16 %v1676, %v1672
    %v1957 = vpack.c.b16 %v1677, %v1673
    %v1958 = vpack.c.b16 %v1682, %v1678
    %v1959 = vpack.c.b16 %v1683, %v1679
    %v1960 = vpack.c.b16 %v1684, %v1680
    %v1961 = vpack.c.b16 %v1685, %v1681
    %v1962 = vpack.c.b16 %v1690, %v1686
    %v1963 = vpack.c.b16 %v1691, %v1687
    %v1964 = vpack.c.b16 %v1692, %v1688
    %v1965 = vpack.c.b16 %v1693, %v1689
    %v1966 = vpack.c.b16 %v1698, %v1694
    %v1967 = vpack.c.b16 %v1699, %v1695
    %v1968 = vpack.c.b16 %v1700, %v1696
    %v1969 = vpack.c.b16 %v1701, %v1697
    %v1970 = vpack.c.b16 %v1706, %v1702
    %v1971 = vpack.c.b16 %v1707, %v1703
    %v1972 = vpack.c.b16 %v1708, %v1704
    %v1973 = vpack.c.b16 %v1709, %v1705
    %v1974 = vpack.c.b16 %v1714, %v1710
    %v1975 = vpack.c.b16 %v1715, %v1711
    %v1976 = vpack.c.b16 %v1716, %v1712
    %v1977 = vpack.c.b16 %v1717, %v1713
    %v1978 = vpack.c.b16 %v1722, %v1718
    %v1979 = vpack.c.b16 %v1723, %v1719
    %v1980 = vpack.c.b16 %v1724, %v1720
    %v1981 = vpack.c.b16 %v1725, %v1721
    %v1982 = vpack.c.b16 %v1730, %v1726
    %v1983 = vpack.c.b16 %v1731, %v1727
    %v1984 = vpack.c.b16 %v1732, %v1728
    %v1985 = vpack.c.b16 %v1733, %v1729
    %v1986 = vpack.c.b16 %v1738, %v1734
    %v1987 = vpack.c.b16 %v1739, %v1735
    %v1988 = vpack.c.b16 %v1740, %v1736
    %v1989 = vpack.c.b16 %v1741, %v1737
    %v1990 = vpack.c.b16 %v1746, %v1742
    %v1991 = vpack.c.b16 %v1747, %v1743
    %v1992 = vpack.c.b16 %v1748, %v1744
    %v1993 = vpack.c.b16 %v1749, %v1745
    %v1994 = vpack.c.b16 %v1754, %v1750
    %v1995 = vpack.c.b16 %v1755, %v1751
    %v1996 = vpack.c.b16 %v1756, %v1752
    %v1997 = vpack.c.b16 %v1757, %v1753
    %v1998 = vpack.c.b16 %v1762, %v1758
    %v1999 = vpack.c.b16 %v1763, %v1759
    %v2000 = vpack.c.b16 %v1764, %v1760
    %v2001 = vpack.c.b16 %v1765, %v1761
    %v2002 = vpack.c.b16 %v1770, %v1766
    %v2003 = vpack.c.b16 %v1771, %v1767
    %v2004 = vpack.c.b16 %v1772, %v1768
    %v2005 = vpack.c.b16 %v1773, %v1769
    %v2006 = vpack.c.b16 %v1778, %v1774
    %v2007 = vpack.c.b16 %v1779, %v1775
    %v2008 = vpack.c.b16 %v1780, %v1776
    %v2009 = vpack.c.b16 %v1781, %v1777
    %v2010 = vpack.c.b16 %v1786, %v1782
    %v2011 = vpack.c.b16 %v1787, %v1783
    %v2012 = vpack.c.b16 %v1788, %v1784
    %v2013 = vpack.c.b16 %v1789, %v1785
    %v2014 = vpack.c.b16 %v1794, %v1790
    %v2015 = vpack.c.b16 %v1795, %v1791
    %v2016 = vpack.c.b16 %v1796, %v1792
    %v2017 = vpack.c.b16 %v1797, %v1793
    %v2018 = vpack.c.b16 %v1802, %v1798
    %v2019 = vpack.c.b16 %v1803, %v1799
    %v2020 = vpack.c.b16 %v1804, %v1800
    %v2021 = vpack.c.b16 %v1805, %v1801
    %v2022 = vpack.c.b16 %v1810, %v1806
    %v2023 = vpack.c.b16 %v1811, %v1807
    %v2024 = vpack.c.b16 %v1812, %v1808
    %v2025 = vpack.c.b16 %v1813, %v1809
    %v2026 = vpack.c.b16 %v1818, %v1814
    %v2027 = vpack.c.b16 %v1819, %v1815
    %v2028 = vpack.c.b16 %v1820, %v1816
    %v2029 = vpack.c.b16 %v1821, %v1817
    %v2030 = vpack.c.b16 %v1826, %v1822
    %v2031 = vpack.c.b16 %v1827, %v1823
    %v2032 = vpack.c.b16 %v1828, %v1824
    %v2033 = vpack.c.b16 %v1829, %v1825
    %v2034 = vpack.c.b16 %v1834, %v1830
    %v2035 = vpack.c.b16 %v1835, %v1831
    %v2036 = vpack.c.b16 %v1836, %v1832
    %v2037 = vpack.c.b16 %v1837, %v1833
    %v2038 = vpack.c.b16 %v1842, %v1838
    %v2039 = vpack.c.b16 %v1843, %v1839
    %v2040 = vpack.c.b16 %v1844, %v1840
    %v2041 = vpack.c.b16 %v1845, %v1841
    %v2042 = vpack.c.b16 %v1850, %v1846
    %v2043 = vpack.c.b16 %v1851, %v1847
    %v2044 = vpack.c.b16 %v1852, %v1848
    %v2045 = vpack.c.b16 %v1853, %v1849
    %v2046 = vpack.c.b16 %v1858, %v1854
    %v2047 = vpack.c.b16 %v1859, %v1855
    %v2048 = vpack.c.b16 %v1860, %v1856
    %v2049 = vpack.c.b16 %v1861, %v1857
    %v2050 = vpack.c.b16 %v1866, %v1862
    %v2051 = vpack.c.b16 %v1867, %v1863
    %v2052 = vpack.c.b16 %v1868, %v1864
    %v2053 = vpack.c.b16 %v1869, %v1865
    %v2054 = vpack.c.b16 %v1874, %v1870
    %v2055 = vpack.c.b16 %v1875, %v1871
    %v2056 = vpack.c.b16 %v1876, %v1872
    %v2057 = vpack.c.b16 %v1877, %v1873
    %v2058 = vpack.c.b16 %v1882, %v1878
    %v2059 = vpack.c.b16 %v1883, %v1879
    %v2060 = vpack.c.b16 %v1884, %v1880
    %v2061 = vpack.c.b16 %v1885, %v1881
    %v2062 = vpack.c.b16 %v1890, %v1886
    %v2063 = vpack.c.b16 %v1891, %v1887
    %v2064 = vpack.c.b16 %v1892, %v1888
    %v2065 = vpack.c.b16 %v1893, %v1889
    %v2066 = vpack.c.b16 %v1898, %v1894
    %v2067 = vpack.c.b16 %v1899, %v1895
    %v2068 = vpack.c.b16 %v1900, %v1896
    %v2069 = vpack.c.b16 %v1901, %v1897
    %v2070 = vpack.c.b16 %v1906, %v1902
    %v2071 = vpack.c.b16 %v1907, %v1903
    %v2072 = vpack.c.b16 %v1908, %v1904
    %v2073 = vpack.c.b16 %v1909, %v1905
    %v2074 = vpack.c.b16 %v1914, %v1910
    %v2075 = vpack.c.b16 %v1915, %v1911
    %v2076 = vpack.c.b16 %v1916, %v1912
    %v2077 = vpack.c.b16 %v1917, %v1913
    %2238 = vmatprep.subr.bf16.mxu0 %v1947
    %2239 = vmatpush1.bf16.msra.mxu0 %v1946
    %2240 = vmatprep.subr.bf16.mxu0 %v1943
    %2241 = vmatpush1.bf16.msra.mxu0 %v1942
    %2242 = vmatprep.subr.bf16.mxu0 %v1939
    %2243 = vmatpush1.bf16.msra.mxu0 %v1938
    %2244 = vmatprep.subr.bf16.mxu0 %v1935
    %2245 = vmatpush1.bf16.msra.mxu0 %v1934
    %2246 = vmatprep.subr.bf16.mxu0 %v1931
    %2247 = vmatpush1.bf16.msra.mxu0 %v1930
    %2248 = vmatprep.subr.bf16.mxu0 %v1927
    %2249 = vmatpush1.bf16.msra.mxu0 %v1926
    %2250 = vmatprep.subr.bf16.mxu0 %v1923
    %2251 = vmatpush1.bf16.msra.mxu0 %v1922
    %2252 = vmatprep.subr.bf16.mxu0 %v1919
    %2253 = vmatpush1.bf16.msra.mxu0 %v1918
    %2254 = vmatprep.subr.bf16.mxu0 %v1979
    %2255 = vmatpush2.bf16.msra.mxu0 %v1978
    %2256 = vmatprep.subr.bf16.mxu0 %v1975
    %2257 = vmatpush2.bf16.msra.mxu0 %v1974
    %2258 = vmatprep.subr.bf16.mxu0 %v1971
    %2259 = vmatpush2.bf16.msra.mxu0 %v1970
    %2260 = vmatprep.subr.bf16.mxu0 %v1967
    %2261 = vmatpush2.bf16.msra.mxu0 %v1966
    %2262 = vmatprep.subr.bf16.mxu0 %v1963
    %2263 = vmatpush2.bf16.msra.mxu0 %v1962
    %2264 = vmatprep.subr.bf16.mxu0 %v1959
    %2265 = vmatpush2.bf16.msra.mxu0 %v1958
    %2266 = vmatprep.subr.bf16.mxu0 %v1955
    %2267 = vmatpush2.bf16.msra.mxu0 %v1954
    %2268 = vmatprep.subr.bf16.mxu0 %v1951
    %2269 = vmatpush2.bf16.msra.mxu0 %v1950
    %2270 = vmatprep.mubr.bf16.mxu0 %v1419
    %2271 = vmatmul.mubr.bf16.gmra.mxu0 %v1418
    %v2272 = vpop.f32.mrf.mxu0
    %v2273 = vadd.f32 0.0, %v2272
    %v2274 = vpop.f32.mrf.mxu0
    %v2275 = vadd.f32 0.0, %v2274
    %v2276 = vpop.f32.mrf.mxu0
    %v2277 = vadd.f32 0.0, %v2276
    %v2278 = vpop.f32.mrf.mxu0
    %v2279 = vadd.f32 0.0, %v2278
    %2280 = vmatprep.mubr.bf16.mxu0 %v1424
    %2281 = vmatmul.mubr.bf16.gmra.mxu0 %v1423
    %v2282 = vpop.f32.mrf.mxu0
    %v2283 = vadd.f32 0.0, %v2282
    %v2284 = vpop.f32.mrf.mxu0
    %v2285 = vadd.f32 0.0, %v2284
    %v2286 = vpop.f32.mrf.mxu0
    %v2287 = vadd.f32 0.0, %v2286
    %v2288 = vpop.f32.mrf.mxu0
    %v2289 = vadd.f32 0.0, %v2288
    %2290 = vmatprep.mubr.bf16.mxu0 %v1429
    %2291 = vmatmul.mubr.bf16.gmra.mxu0 %v1428
    %v2292 = vpop.f32.mrf.mxu0
    %v2293 = vadd.f32 0.0, %v2292
    %v2294 = vpop.f32.mrf.mxu0
    %v2295 = vadd.f32 0.0, %v2294
    %v2296 = vpop.f32.mrf.mxu0
    %v2297 = vadd.f32 0.0, %v2296
    %v2298 = vpop.f32.mrf.mxu0
    %v2299 = vadd.f32 0.0, %v2298
    %2300 = vmatprep.mubr.bf16.mxu0 %v1434
    %2301 = vmatmul.mubr.bf16.gmra.mxu0 %v1433
    %v2302 = vpop.f32.mrf.mxu0
    %v2303 = vadd.f32 0.0, %v2302
    %v2304 = vpop.f32.mrf.mxu0
    %v2305 = vadd.f32 0.0, %v2304
    %v2306 = vpop.f32.mrf.mxu0
    %v2307 = vpop.f32.mrf.mxu0
    %2308 = vdwg.mxu0
    %2309 = vmatprep.subr.bf16.mxu0 %v2011
    %2310 = vmatpush1.bf16.msra.mxu0 %v2010
    %2311 = vmatprep.subr.bf16.mxu0 %v2007
    %2312 = vmatpush1.bf16.msra.mxu0 %v2006
    %2313 = vmatprep.subr.bf16.mxu0 %v2003
    %2314 = vmatpush1.bf16.msra.mxu0 %v2002
    %2315 = vmatprep.subr.bf16.mxu0 %v1999
    %2316 = vmatpush1.bf16.msra.mxu0 %v1998
    %2317 = vmatprep.subr.bf16.mxu0 %v1995
    %2318 = vmatpush1.bf16.msra.mxu0 %v1994
    %2319 = vmatprep.subr.bf16.mxu0 %v1991
    %2320 = vmatpush1.bf16.msra.mxu0 %v1990
    %2321 = vmatprep.subr.bf16.mxu0 %v1987
    %2322 = vmatpush1.bf16.msra.mxu0 %v1986
    %2323 = vmatprep.subr.bf16.mxu0 %v1983
    %2324 = vmatpush1.bf16.msra.mxu0 %v1982
    %2325 = vmatprep.subr.bf16.mxu0 %v2043
    %2326 = vmatpush2.bf16.msra.mxu0 %v2042
    %2327 = vmatprep.subr.bf16.mxu0 %v2039
    %2328 = vmatpush2.bf16.msra.mxu0 %v2038
    %2329 = vmatprep.subr.bf16.mxu0 %v2035
    %2330 = vmatpush2.bf16.msra.mxu0 %v2034
    %2331 = vmatprep.subr.bf16.mxu0 %v2031
    %2332 = vmatpush2.bf16.msra.mxu0 %v2030
    %2333 = vmatprep.subr.bf16.mxu0 %v2027
    %2334 = vmatpush2.bf16.msra.mxu0 %v2026
    %2335 = vmatprep.subr.bf16.mxu0 %v2023
    %2336 = vmatpush2.bf16.msra.mxu0 %v2022
    %2337 = vmatprep.subr.bf16.mxu0 %v2019
    %2338 = vmatpush2.bf16.msra.mxu0 %v2018
    %2339 = vmatprep.subr.bf16.mxu0 %v2015
    %2340 = vmatpush2.bf16.msra.mxu0 %v2014
    %2341 = vmatprep.mubr.bf16.mxu0 %v1421
    %2342 = vmatmul.mubr.bf16.gmra.mxu0 %v1420
    %v2343 = vpop.f32.mrf.mxu0
    %v2344 = vadd.f32 %v2273, %v2343
    %v2345 = vpop.f32.mrf.mxu0
    %v2346 = vadd.f32 %v2275, %v2345
    %v2347 = vpop.f32.mrf.mxu0
    %v2348 = vadd.f32 %v2277, %v2347
    %v2349 = vpop.f32.mrf.mxu0
    %v2350 = vadd.f32 %v2279, %v2349
    %2351 = vmatprep.mubr.bf16.mxu0 %v1426
    %2352 = vmatmul.mubr.bf16.gmra.mxu0 %v1425
    %v2353 = vpop.f32.mrf.mxu0
    %v2354 = vadd.f32 %v2283, %v2353
    %v2355 = vpop.f32.mrf.mxu0
    %v2356 = vadd.f32 %v2285, %v2355
    %v2357 = vpop.f32.mrf.mxu0
    %v2358 = vadd.f32 %v2287, %v2357
    %v2359 = vpop.f32.mrf.mxu0
    %v2360 = vadd.f32 %v2289, %v2359
    %2361 = vmatprep.mubr.bf16.mxu0 %v1431
    %2362 = vmatmul.mubr.bf16.gmra.mxu0 %v1430
    %v2363 = vpop.f32.mrf.mxu0
    %v2364 = vadd.f32 %v2293, %v2363
    %v2365 = vpop.f32.mrf.mxu0
    %v2366 = vadd.f32 %v2295, %v2365
    %v2367 = vpop.f32.mrf.mxu0
    %v2368 = vadd.f32 %v2297, %v2367
    %v2369 = vpop.f32.mrf.mxu0
    %v2370 = vadd.f32 %v2299, %v2369
    %2371 = vmatprep.mubr.bf16.mxu0 %v1436
    %2372 = vmatmul.mubr.bf16.gmra.mxu0 %v1435
    %v2373 = vpop.f32.mrf.mxu0
    %v2374 = vadd.f32 %v2303, %v2373
    %v2375 = vpop.f32.mrf.mxu0
    %v2376 = vadd.f32 %v2305, %v2375
    %v2377 = vpop.f32.mrf.mxu0
    %v2378 = vpop.f32.mrf.mxu0
    %2379 = vdwg.mxu0
    %2380 = vmatprep.subr.bf16.mxu0 %v2075
    %2381 = vmatpush1.bf16.msra.mxu0 %v2074
    %2382 = vmatprep.subr.bf16.mxu0 %v2071
    %2383 = vmatpush1.bf16.msra.mxu0 %v2070
    %2384 = vmatprep.subr.bf16.mxu0 %v2067
    %2385 = vmatpush1.bf16.msra.mxu0 %v2066
    %2386 = vmatprep.subr.bf16.mxu0 %v2063
    %2387 = vmatpush1.bf16.msra.mxu0 %v2062
    %2388 = vmatprep.subr.bf16.mxu0 %v2059
    %2389 = vmatpush1.bf16.msra.mxu0 %v2058
    %2390 = vmatprep.subr.bf16.mxu0 %v2055
    %2391 = vmatpush1.bf16.msra.mxu0 %v2054
    %2392 = vmatprep.subr.bf16.mxu0 %v2051
    %2393 = vmatpush1.bf16.msra.mxu0 %v2050
    %2394 = vmatprep.subr.bf16.mxu0 %v2047
    %2395 = vmatpush1.bf16.msra.mxu0 %v2046
    %2396 = vmatprep.subr.bf16.mxu0 0
    %2397 = vmatpush2.bf16.msra.mxu0 0
    %2398 = vmatprep.subr.bf16.mxu0 0
    %2399 = vmatpush2.bf16.msra.mxu0 0
    %2400 = vmatprep.subr.bf16.mxu0 0
    %2401 = vmatpush2.bf16.msra.mxu0 0
    %2402 = vmatprep.subr.bf16.mxu0 0
    %2403 = vmatpush2.bf16.msra.mxu0 0
    %2404 = vmatprep.subr.bf16.mxu0 0
    %2405 = vmatpush2.bf16.msra.mxu0 0
    %2406 = vmatprep.subr.bf16.mxu0 0
    %2407 = vmatpush2.bf16.msra.mxu0 0
    %2408 = vmatprep.subr.bf16.mxu0 0
    %2409 = vmatpush2.bf16.msra.mxu0 0
    %2410 = vmatprep.subr.bf16.mxu0 0
    %2411 = vmatpush2.bf16.msra.mxu0 0
    %2412 = vmatprep.mubr.bf16.mxu0 0
    %2413 = vmatmul.mubr.bf16.gmra.mxu0 %v1422
    %v2414 = vpop.f32.mrf.mxu0
    %v2415 = vadd.f32 %v2344, %v2414
    %v2416 = vpop.f32.mrf.mxu0
    %v2417 = vadd.f32 %v2346, %v2416
    %v2418 = vpop.f32.mrf.mxu0
    %v2419 = vadd.f32 %v2348, %v2418
    %v2420 = vpop.f32.mrf.mxu0
    %v2421 = vadd.f32 %v2350, %v2420
    %2422 = vmatprep.mubr.bf16.mxu0 0
    %2423 = vmatmul.mubr.bf16.gmra.mxu0 %v1427
    %v2424 = vpop.f32.mrf.mxu0
    %v2425 = vadd.f32 %v2354, %v2424
    %v2426 = vpop.f32.mrf.mxu0
    %v2427 = vadd.f32 %v2356, %v2426
    %v2428 = vpop.f32.mrf.mxu0
    %v2429 = vadd.f32 %v2358, %v2428
    %v2430 = vpop.f32.mrf.mxu0
    %v2431 = vadd.f32 %v2360, %v2430
    %2432 = vmatprep.mubr.bf16.mxu0 0
    %2433 = vmatmul.mubr.bf16.gmra.mxu0 %v1432
    %v2434 = vpop.f32.mrf.mxu0
    %v2435 = vadd.f32 %v2364, %v2434
    %v2436 = vpop.f32.mrf.mxu0
    %v2437 = vadd.f32 %v2366, %v2436
    %v2438 = vpop.f32.mrf.mxu0
    %v2439 = vadd.f32 %v2368, %v2438
    %v2440 = vpop.f32.mrf.mxu0
    %v2441 = vadd.f32 %v2370, %v2440
    %2442 = vmatprep.mubr.bf16.mxu0 0
    %2443 = vmatmul.mubr.bf16.gmra.mxu0 %v1437
    %v2444 = vpop.f32.mrf.mxu0
    %v2445 = vadd.f32 %v2374, %v2444
    %v2446 = vpop.f32.mrf.mxu0
    %v2447 = vadd.f32 %v2376, %v2446
    %v2448 = vpop.f32.mrf.mxu0
    %v2449 = vpop.f32.mrf.mxu0
    %2450 = vdwg.mxu0
    %2451 = vmatprep.subr.bf16.mxu0 %v1949
    %2452 = vmatpush1.bf16.msra.mxu0 %v1948
    %2453 = vmatprep.subr.bf16.mxu0 %v1945
    %2454 = vmatpush1.bf16.msra.mxu0 %v1944
    %2455 = vmatprep.subr.bf16.mxu0 %v1941
    %2456 = vmatpush1.bf16.msra.mxu0 %v1940
    %2457 = vmatprep.subr.bf16.mxu0 %v1937
    %2458 = vmatpush1.bf16.msra.mxu0 %v1936
    %2459 = vmatprep.subr.bf16.mxu0 %v1933
    %2460 = vmatpush1.bf16.msra.mxu0 %v1932
    %2461 = vmatprep.subr.bf16.mxu0 %v1929
    %2462 = vmatpush1.bf16.msra.mxu0 %v1928
    %2463 = vmatprep.subr.bf16.mxu0 %v1925
    %2464 = vmatpush1.bf16.msra.mxu0 %v1924
    %2465 = vmatprep.subr.bf16.mxu0 %v1921
    %2466 = vmatpush1.bf16.msra.mxu0 %v1920
    %2467 = vmatprep.subr.bf16.mxu0 %v1981
    %2468 = vmatpush2.bf16.msra.mxu0 %v1980
    %2469 = vmatprep.subr.bf16.mxu0 %v1977
    %2470 = vmatpush2.bf16.msra.mxu0 %v1976
    %2471 = vmatprep.subr.bf16.mxu0 %v1973
    %2472 = vmatpush2.bf16.msra.mxu0 %v1972
    %2473 = vmatprep.subr.bf16.mxu0 %v1969
    %2474 = vmatpush2.bf16.msra.mxu0 %v1968
    %2475 = vmatprep.subr.bf16.mxu0 %v1965
    %2476 = vmatpush2.bf16.msra.mxu0 %v1964
    %2477 = vmatprep.subr.bf16.mxu0 %v1961
    %2478 = vmatpush2.bf16.msra.mxu0 %v1960
    %2479 = vmatprep.subr.bf16.mxu0 %v1957
    %2480 = vmatpush2.bf16.msra.mxu0 %v1956
    %2481 = vmatprep.subr.bf16.mxu0 %v1953
    %2482 = vmatpush2.bf16.msra.mxu0 %v1952
    %2483 = vmatprep.mubr.bf16.mxu0 %v1419
    %2484 = vmatmul.mubr.bf16.gmra.mxu0 %v1418
    %v2485 = vpop.f32.mrf.mxu0
    %v2486 = vadd.f32 0.0, %v2485
    %v2487 = vpop.f32.mrf.mxu0
    %v2488 = vadd.f32 0.0, %v2487
    %v2489 = vpop.f32.mrf.mxu0
    %v2490 = vadd.f32 0.0, %v2489
    %v2491 = vpop.f32.mrf.mxu0
    %v2492 = vadd.f32 0.0, %v2491
    %2493 = vmatprep.mubr.bf16.mxu0 %v1424
    %2494 = vmatmul.mubr.bf16.gmra.mxu0 %v1423
    %v2495 = vpop.f32.mrf.mxu0
    %v2496 = vadd.f32 0.0, %v2495
    %v2497 = vpop.f32.mrf.mxu0
    %v2498 = vadd.f32 0.0, %v2497
    %v2499 = vpop.f32.mrf.mxu0
    %v2500 = vadd.f32 0.0, %v2499
    %v2501 = vpop.f32.mrf.mxu0
    %v2502 = vadd.f32 0.0, %v2501
    %2503 = vmatprep.mubr.bf16.mxu0 %v1429
    %2504 = vmatmul.mubr.bf16.gmra.mxu0 %v1428
    %v2505 = vpop.f32.mrf.mxu0
    %v2506 = vadd.f32 0.0, %v2505
    %v2507 = vpop.f32.mrf.mxu0
    %v2508 = vadd.f32 0.0, %v2507
    %v2509 = vpop.f32.mrf.mxu0
    %v2510 = vadd.f32 0.0, %v2509
    %v2511 = vpop.f32.mrf.mxu0
    %v2512 = vadd.f32 0.0, %v2511
    %2513 = vmatprep.mubr.bf16.mxu0 %v1434
    %2514 = vmatmul.mubr.bf16.gmra.mxu0 %v1433
    %v2515 = vpop.f32.mrf.mxu0
    %v2516 = vadd.f32 0.0, %v2515
    %v2517 = vpop.f32.mrf.mxu0
    %v2518 = vadd.f32 0.0, %v2517
    %v2519 = vpop.f32.mrf.mxu0
    %v2520 = vpop.f32.mrf.mxu0
    %2521 = vdwg.mxu0
    %2522 = vmatprep.subr.bf16.mxu0 %v2013
    %2523 = vmatpush1.bf16.msra.mxu0 %v2012
    %2524 = vmatprep.subr.bf16.mxu0 %v2009
    %2525 = vmatpush1.bf16.msra.mxu0 %v2008
    %2526 = vmatprep.subr.bf16.mxu0 %v2005
    %2527 = vmatpush1.bf16.msra.mxu0 %v2004
    %2528 = vmatprep.subr.bf16.mxu0 %v2001
    %2529 = vmatpush1.bf16.msra.mxu0 %v2000
    %2530 = vmatprep.subr.bf16.mxu0 %v1997
    %2531 = vmatpush1.bf16.msra.mxu0 %v1996
    %2532 = vmatprep.subr.bf16.mxu0 %v1993
    %2533 = vmatpush1.bf16.msra.mxu0 %v1992
    %2534 = vmatprep.subr.bf16.mxu0 %v1989
    %2535 = vmatpush1.bf16.msra.mxu0 %v1988
    %2536 = vmatprep.subr.bf16.mxu0 %v1985
    %2537 = vmatpush1.bf16.msra.mxu0 %v1984
    %2538 = vmatprep.subr.bf16.mxu0 %v2045
    %2539 = vmatpush2.bf16.msra.mxu0 %v2044
    %2540 = vmatprep.subr.bf16.mxu0 %v2041
    %2541 = vmatpush2.bf16.msra.mxu0 %v2040
    %2542 = vmatprep.subr.bf16.mxu0 %v2037
    %2543 = vmatpush2.bf16.msra.mxu0 %v2036
    %2544 = vmatprep.subr.bf16.mxu0 %v2033
    %2545 = vmatpush2.bf16.msra.mxu0 %v2032
    %2546 = vmatprep.subr.bf16.mxu0 %v2029
    %2547 = vmatpush2.bf16.msra.mxu0 %v2028
    %2548 = vmatprep.subr.bf16.mxu0 %v2025
    %2549 = vmatpush2.bf16.msra.mxu0 %v2024
    %2550 = vmatprep.subr.bf16.mxu0 %v2021
    %2551 = vmatpush2.bf16.msra.mxu0 %v2020
    %2552 = vmatprep.subr.bf16.mxu0 %v2017
    %2553 = vmatpush2.bf16.msra.mxu0 %v2016
    %2554 = vmatprep.mubr.bf16.mxu0 %v1421
    %2555 = vmatmul.mubr.bf16.gmra.mxu0 %v1420
    %v2556 = vpop.f32.mrf.mxu0
    %v2557 = vadd.f32 %v2486, %v2556
    %v2558 = vpop.f32.mrf.mxu0
    %v2559 = vadd.f32 %v2488, %v2558
    %v2560 = vpop.f32.mrf.mxu0
    %v2561 = vadd.f32 %v2490, %v2560
    %v2562 = vpop.f32.mrf.mxu0
    %v2563 = vadd.f32 %v2492, %v2562
    %2564 = vmatprep.mubr.bf16.mxu0 %v1426
    %2565 = vmatmul.mubr.bf16.gmra.mxu0 %v1425
    %v2566 = vpop.f32.mrf.mxu0
    %v2567 = vadd.f32 %v2496, %v2566
    %v2568 = vpop.f32.mrf.mxu0
    %v2569 = vadd.f32 %v2498, %v2568
    %v2570 = vpop.f32.mrf.mxu0
    %v2571 = vadd.f32 %v2500, %v2570
    %v2572 = vpop.f32.mrf.mxu0
    %v2573 = vadd.f32 %v2502, %v2572
    %2574 = vmatprep.mubr.bf16.mxu0 %v1431
    %2575 = vmatmul.mubr.bf16.gmra.mxu0 %v1430
    %v2576 = vpop.f32.mrf.mxu0
    %v2577 = vadd.f32 %v2506, %v2576
    %v2578 = vpop.f32.mrf.mxu0
    %v2579 = vadd.f32 %v2508, %v2578
    %v2580 = vpop.f32.mrf.mxu0
    %v2581 = vadd.f32 %v2510, %v2580
    %v2582 = vpop.f32.mrf.mxu0
    %v2583 = vadd.f32 %v2512, %v2582
    %2584 = vmatprep.mubr.bf16.mxu0 %v1436
    %2585 = vmatmul.mubr.bf16.gmra.mxu0 %v1435
    %v2586 = vpop.f32.mrf.mxu0
    %v2587 = vadd.f32 %v2516, %v2586
    %v2588 = vpop.f32.mrf.mxu0
    %v2589 = vadd.f32 %v2518, %v2588
    %v2590 = vpop.f32.mrf.mxu0
    %v2591 = vpop.f32.mrf.mxu0
    %2592 = vdwg.mxu0
    %2593 = vmatprep.subr.bf16.mxu0 %v2077
    %2594 = vmatpush1.bf16.msra.mxu0 %v2076
    %2595 = vmatprep.subr.bf16.mxu0 %v2073
    %2596 = vmatpush1.bf16.msra.mxu0 %v2072
    %2597 = vmatprep.subr.bf16.mxu0 %v2069
    %2598 = vmatpush1.bf16.msra.mxu0 %v2068
    %2599 = vmatprep.subr.bf16.mxu0 %v2065
    %2600 = vmatpush1.bf16.msra.mxu0 %v2064
    %2601 = vmatprep.subr.bf16.mxu0 %v2061
    %2602 = vmatpush1.bf16.msra.mxu0 %v2060
    %2603 = vmatprep.subr.bf16.mxu0 %v2057
    %2604 = vmatpush1.bf16.msra.mxu0 %v2056
    %2605 = vmatprep.subr.bf16.mxu0 %v2053
    %2606 = vmatpush1.bf16.msra.mxu0 %v2052
    %2607 = vmatprep.subr.bf16.mxu0 %v2049
    %2608 = vmatpush1.bf16.msra.mxu0 %v2048
    %2609 = vmatprep.subr.bf16.mxu0 0
    %2610 = vmatpush2.bf16.msra.mxu0 0
    %2611 = vmatprep.subr.bf16.mxu0 0
    %2612 = vmatpush2.bf16.msra.mxu0 0
    %2613 = vmatprep.subr.bf16.mxu0 0
    %2614 = vmatpush2.bf16.msra.mxu0 0
    %2615 = vmatprep.subr.bf16.mxu0 0
    %2616 = vmatpush2.bf16.msra.mxu0 0
    %2617 = vmatprep.subr.bf16.mxu0 0
    %2618 = vmatpush2.bf16.msra.mxu0 0
    %2619 = vmatprep.subr.bf16.mxu0 0
    %2620 = vmatpush2.bf16.msra.mxu0 0
    %2621 = vmatprep.subr.bf16.mxu0 0
    %2622 = vmatpush2.bf16.msra.mxu0 0
    %2623 = vmatprep.subr.bf16.mxu0 0
    %2624 = vmatpush2.bf16.msra.mxu0 0
    %2625 = vmatprep.mubr.bf16.mxu0 0
    %2626 = vmatmul.mubr.bf16.gmra.mxu0 %v1422
    %v2627 = vpop.f32.mrf.mxu0
    %v2628 = vadd.f32 %v2557, %v2627
    %v2629 = vpop.f32.mrf.mxu0
    %v2630 = vadd.f32 %v2559, %v2629
    %v2631 = vpop.f32.mrf.mxu0
    %v2632 = vadd.f32 %v2561, %v2631
    %v2633 = vpop.f32.mrf.mxu0
    %v2634 = vadd.f32 %v2563, %v2633
    %2635 = vmatprep.mubr.bf16.mxu0 0
    %2636 = vmatmul.mubr.bf16.gmra.mxu0 %v1427
    %v2637 = vpop.f32.mrf.mxu0
    %v2638 = vadd.f32 %v2567, %v2637
    %v2639 = vpop.f32.mrf.mxu0
    %v2640 = vadd.f32 %v2569, %v2639
    %v2641 = vpop.f32.mrf.mxu0
    %v2642 = vadd.f32 %v2571, %v2641
    %v2643 = vpop.f32.mrf.mxu0
    %v2644 = vadd.f32 %v2573, %v2643
    %2645 = vmatprep.mubr.bf16.mxu0 0
    %2646 = vmatmul.mubr.bf16.gmra.mxu0 %v1432
    %v2647 = vpop.f32.mrf.mxu0
    %v2648 = vadd.f32 %v2577, %v2647
    %v2649 = vpop.f32.mrf.mxu0
    %v2650 = vadd.f32 %v2579, %v2649
    %v2651 = vpop.f32.mrf.mxu0
    %v2652 = vadd.f32 %v2581, %v2651
    %v2653 = vpop.f32.mrf.mxu0
    %v2654 = vadd.f32 %v2583, %v2653
    %2655 = vmatprep.mubr.bf16.mxu0 0
    %2656 = vmatmul.mubr.bf16.gmra.mxu0 %v1437
    %v2657 = vpop.f32.mrf.mxu0
    %v2658 = vadd.f32 %v2587, %v2657
    %v2659 = vpop.f32.mrf.mxu0
    %v2660 = vadd.f32 %v2589, %v2659
    %v2661 = vpop.f32.mrf.mxu0
    %v2662 = vpop.f32.mrf.mxu0
    %2663 = vdwg.mxu0
    %v2664 = vmax.f32 %v2415, %v2628
    %v2665 = vmax.f32 %v2417, %v2630
    %v2666 = vmax.f32 %v2419, %v2632
    %v2667 = vmax.f32 %v2421, %v2634
    %v2668 = vmax.f32 %v2425, %v2638
    %v2669 = vmax.f32 %v2427, %v2640
    %v2670 = vmax.f32 %v2429, %v2642
    %v2671 = vmax.f32 %v2431, %v2644
    %v2672 = vmax.f32 %v2435, %v2648
    %v2673 = vmax.f32 %v2437, %v2650
    %v2674 = vmax.f32 %v2439, %v2652
    %v2675 = vmax.f32 %v2441, %v2654
    %v2676 = vmax.f32 %v2445, %v2658
    %v2677 = vmax.f32 %v2447, %v2660
    %v2678 = vmax.f32 %v2664, 0.0
    %v2679 = vmax.f32 %v2665, 0.0
    %v2680 = vmax.f32 %v2666, 0.0
    %v2681 = vmax.f32 %v2667, 0.0
    %v2682 = vmax.f32 %v2668, 0.0
    %v2683 = vmax.f32 %v2669, 0.0
    %v2684 = vmax.f32 %v2670, 0.0
    %v2685 = vmax.f32 %v2671, 0.0
    %v2686 = vmax.f32 %v2672, 0.0
    %v2687 = vmax.f32 %v2673, 0.0
    %v2688 = vmax.f32 %v2674, 0.0
    %v2689 = vmax.f32 %v2675, 0.0
    %v2690 = vmax.f32 %v2676, 0.0
    %v2691 = vmax.f32 %v2677, 0.0
    %v2706 = vcombine.low %v2678, %v2679
    %v2707 = vcombine.high %v2678, %v2679
    %v2709 = vunpack.c.l.s4 1983009808
    %v2710 = vunpack.c.0.s8 %v2709
    %v2711 = vlaneseq
    %v2712 = vshrl.u32 %v2711, 7
    %v2713 = vsub.s32 %v2710, %v2712
    %v2714 = vrot.slane %v2706, %v2713
    %v2716 = vunpack.c.l.s4 1983009808
    %v2717 = vunpack.c.0.s8 %v2716
    %v2718 = vlaneseq
    %v2719 = vshrl.u32 %v2718, 7
    %v2720 = vsub.s32 %v2717, %v2719
    %v2721 = vrot.slane %v2707, %v2720
    %v2722 = vcombine.high %v2714, %v2714
    %v2723 = vcombine.high %v2721, %v2721
    %v2724 = vcombine.low %v2680, %v2681
    %v2725 = vcombine.high %v2680, %v2681
    %v2727 = vunpack.c.l.s4 1983009808
    %v2728 = vunpack.c.0.s8 %v2727
    %v2729 = vlaneseq
    %v2730 = vshrl.u32 %v2729, 7
    %v2731 = vsub.s32 %v2728, %v2730
    %v2732 = vrot.slane %v2724, %v2731
    %v2734 = vunpack.c.l.s4 1983009808
    %v2735 = vunpack.c.0.s8 %v2734
    %v2736 = vlaneseq
    %v2737 = vshrl.u32 %v2736, 7
    %v2738 = vsub.s32 %v2735, %v2737
    %v2739 = vrot.slane %v2725, %v2738
    %v2740 = vcombine.high %v2732, %v2732
    %v2741 = vcombine.high %v2739, %v2739
    %v2742 = vcombine.low %v2682, %v2683
    %v2743 = vcombine.high %v2682, %v2683
    %v2745 = vunpack.c.l.s4 1983009808
    %v2746 = vunpack.c.0.s8 %v2745
    %v2747 = vlaneseq
    %v2748 = vshrl.u32 %v2747, 7
    %v2749 = vsub.s32 %v2746, %v2748
    %v2750 = vrot.slane %v2742, %v2749
    %v2752 = vunpack.c.l.s4 1983009808
    %v2753 = vunpack.c.0.s8 %v2752
    %v2754 = vlaneseq
    %v2755 = vshrl.u32 %v2754, 7
    %v2756 = vsub.s32 %v2753, %v2755
    %v2757 = vrot.slane %v2743, %v2756
    %v2758 = vcombine.high %v2750, %v2750
    %v2759 = vcombine.high %v2757, %v2757
    %v2760 = vcombine.low %v2684, %v2685
    %v2761 = vcombine.high %v2684, %v2685
    %v2763 = vunpack.c.l.s4 1983009808
    %v2764 = vunpack.c.0.s8 %v2763
    %v2765 = vlaneseq
    %v2766 = vshrl.u32 %v2765, 7
    %v2767 = vsub.s32 %v2764, %v2766
    %v2768 = vrot.slane %v2760, %v2767
    %v2770 = vunpack.c.l.s4 1983009808
    %v2771 = vunpack.c.0.s8 %v2770
    %v2772 = vlaneseq
    %v2773 = vshrl.u32 %v2772, 7
    %v2774 = vsub.s32 %v2771, %v2773
    %v2775 = vrot.slane %v2761, %v2774
    %v2776 = vcombine.high %v2768, %v2768
    %v2777 = vcombine.high %v2775, %v2775
    %v2778 = vcombine.low %v2686, %v2687
    %v2779 = vcombine.high %v2686, %v2687
    %v2781 = vunpack.c.l.s4 1983009808
    %v2782 = vunpack.c.0.s8 %v2781
    %v2783 = vlaneseq
    %v2784 = vshrl.u32 %v2783, 7
    %v2785 = vsub.s32 %v2782, %v2784
    %v2786 = vrot.slane %v2778, %v2785
    %v2788 = vunpack.c.l.s4 1983009808
    %v2789 = vunpack.c.0.s8 %v2788
    %v2790 = vlaneseq
    %v2791 = vshrl.u32 %v2790, 7
    %v2792 = vsub.s32 %v2789, %v2791
    %v2793 = vrot.slane %v2779, %v2792
    %v2794 = vcombine.high %v2786, %v2786
    %v2795 = vcombine.high %v2793, %v2793
    %v2796 = vcombine.low %v2688, %v2689
    %v2797 = vcombine.high %v2688, %v2689
    %v2799 = vunpack.c.l.s4 1983009808
    %v2800 = vunpack.c.0.s8 %v2799
    %v2801 = vlaneseq
    %v2802 = vshrl.u32 %v2801, 7
    %v2803 = vsub.s32 %v2800, %v2802
    %v2804 = vrot.slane %v2796, %v2803
    %v2806 = vunpack.c.l.s4 1983009808
    %v2807 = vunpack.c.0.s8 %v2806
    %v2808 = vlaneseq
    %v2809 = vshrl.u32 %v2808, 7
    %v2810 = vsub.s32 %v2807, %v2809
    %v2811 = vrot.slane %v2797, %v2810
    %v2812 = vcombine.high %v2804, %v2804
    %v2813 = vcombine.high %v2811, %v2811
    %v2814 = vcombine.low %v2690, %v2691
    %v2815 = vcombine.high %v2690, %v2691
    %v2817 = vunpack.c.l.s4 1983009808
    %v2818 = vunpack.c.0.s8 %v2817
    %v2819 = vlaneseq
    %v2820 = vshrl.u32 %v2819, 7
    %v2821 = vsub.s32 %v2818, %v2820
    %v2822 = vrot.slane %v2814, %v2821
    %v2824 = vunpack.c.l.s4 1983009808
    %v2825 = vunpack.c.0.s8 %v2824
    %v2826 = vlaneseq
    %v2827 = vshrl.u32 %v2826, 7
    %v2828 = vsub.s32 %v2825, %v2827
    %v2829 = vrot.slane %v2815, %v2828
    %v2830 = vcombine.high %v2822, %v2822
    %v2831 = vcombine.high %v2829, %v2829
    %v2833 = vunpack.c.l.s4 1983009808
    %v2834 = vunpack.c.0.s8 %v2833
    %v2835 = vlaneseq
    %v2836 = vshrl.u32 %v2835, 7
    %v2837 = vsub.s32 %v2834, %v2836
    %v2838 = vrot.slane %v2714, %v2837
    %v2839 = vcombine.high %v2838, %v2838
    %v2841 = vunpack.c.l.s4 1983009808
    %v2842 = vunpack.c.0.s8 %v2841
    %v2843 = vlaneseq
    %v2844 = vshrl.u32 %v2843, 7
    %v2845 = vsub.s32 %v2842, %v2844
    %v2846 = vrot.slane %v2722, %v2845
    %v2847 = vcombine.high %v2846, %v2846
    %v2849 = vunpack.c.l.s4 1983009808
    %v2850 = vunpack.c.0.s8 %v2849
    %v2851 = vlaneseq
    %v2852 = vshrl.u32 %v2851, 7
    %v2853 = vsub.s32 %v2850, %v2852
    %v2854 = vrot.slane %v2721, %v2853
    %v2855 = vcombine.high %v2854, %v2854
    %v2857 = vunpack.c.l.s4 1983009808
    %v2858 = vunpack.c.0.s8 %v2857
    %v2859 = vlaneseq
    %v2860 = vshrl.u32 %v2859, 7
    %v2861 = vsub.s32 %v2858, %v2860
    %v2862 = vrot.slane %v2723, %v2861
    %v2863 = vcombine.high %v2862, %v2862
    %v2865 = vunpack.c.l.s4 1983009808
    %v2866 = vunpack.c.0.s8 %v2865
    %v2867 = vlaneseq
    %v2868 = vshrl.u32 %v2867, 7
    %v2869 = vsub.s32 %v2866, %v2868
    %v2870 = vrot.slane %v2732, %v2869
    %v2871 = vcombine.high %v2870, %v2870
    %v2873 = vunpack.c.l.s4 1983009808
    %v2874 = vunpack.c.0.s8 %v2873
    %v2875 = vlaneseq
    %v2876 = vshrl.u32 %v2875, 7
    %v2877 = vsub.s32 %v2874, %v2876
    %v2878 = vrot.slane %v2740, %v2877
    %v2879 = vcombine.high %v2878, %v2878
    %v2881 = vunpack.c.l.s4 1983009808
    %v2882 = vunpack.c.0.s8 %v2881
    %v2883 = vlaneseq
    %v2884 = vshrl.u32 %v2883, 7
    %v2885 = vsub.s32 %v2882, %v2884
    %v2886 = vrot.slane %v2739, %v2885
    %v2887 = vcombine.high %v2886, %v2886
    %v2889 = vunpack.c.l.s4 1983009808
    %v2890 = vunpack.c.0.s8 %v2889
    %v2891 = vlaneseq
    %v2892 = vshrl.u32 %v2891, 7
    %v2893 = vsub.s32 %v2890, %v2892
    %v2894 = vrot.slane %v2741, %v2893
    %v2895 = vcombine.high %v2894, %v2894
    %v2897 = vunpack.c.l.s4 1983009808
    %v2898 = vunpack.c.0.s8 %v2897
    %v2899 = vlaneseq
    %v2900 = vshrl.u32 %v2899, 7
    %v2901 = vsub.s32 %v2898, %v2900
    %v2902 = vrot.slane %v2750, %v2901
    %v2903 = vcombine.high %v2902, %v2902
    %v2905 = vunpack.c.l.s4 1983009808
    %v2906 = vunpack.c.0.s8 %v2905
    %v2907 = vlaneseq
    %v2908 = vshrl.u32 %v2907, 7
    %v2909 = vsub.s32 %v2906, %v2908
    %v2910 = vrot.slane %v2758, %v2909
    %v2911 = vcombine.high %v2910, %v2910
    %v2913 = vunpack.c.l.s4 1983009808
    %v2914 = vunpack.c.0.s8 %v2913
    %v2915 = vlaneseq
    %v2916 = vshrl.u32 %v2915, 7
    %v2917 = vsub.s32 %v2914, %v2916
    %v2918 = vrot.slane %v2757, %v2917
    %v2919 = vcombine.high %v2918, %v2918
    %v2921 = vunpack.c.l.s4 1983009808
    %v2922 = vunpack.c.0.s8 %v2921
    %v2923 = vlaneseq
    %v2924 = vshrl.u32 %v2923, 7
    %v2925 = vsub.s32 %v2922, %v2924
    %v2926 = vrot.slane %v2759, %v2925
    %v2927 = vcombine.high %v2926, %v2926
    %v2929 = vunpack.c.l.s4 1983009808
    %v2930 = vunpack.c.0.s8 %v2929
    %v2931 = vlaneseq
    %v2932 = vshrl.u32 %v2931, 7
    %v2933 = vsub.s32 %v2930, %v2932
    %v2934 = vrot.slane %v2768, %v2933
    %v2935 = vcombine.high %v2934, %v2934
    %v2937 = vunpack.c.l.s4 1983009808
    %v2938 = vunpack.c.0.s8 %v2937
    %v2939 = vlaneseq
    %v2940 = vshrl.u32 %v2939, 7
    %v2941 = vsub.s32 %v2938, %v2940
    %v2942 = vrot.slane %v2776, %v2941
    %v2943 = vcombine.high %v2942, %v2942
    %v2945 = vunpack.c.l.s4 1983009808
    %v2946 = vunpack.c.0.s8 %v2945
    %v2947 = vlaneseq
    %v2948 = vshrl.u32 %v2947, 7
    %v2949 = vsub.s32 %v2946, %v2948
    %v2950 = vrot.slane %v2775, %v2949
    %v2951 = vcombine.high %v2950, %v2950
    %v2953 = vunpack.c.l.s4 1983009808
    %v2954 = vunpack.c.0.s8 %v2953
    %v2955 = vlaneseq
    %v2956 = vshrl.u32 %v2955, 7
    %v2957 = vsub.s32 %v2954, %v2956
    %v2958 = vrot.slane %v2777, %v2957
    %v2959 = vcombine.high %v2958, %v2958
    %v2961 = vunpack.c.l.s4 1983009808
    %v2962 = vunpack.c.0.s8 %v2961
    %v2963 = vlaneseq
    %v2964 = vshrl.u32 %v2963, 7
    %v2965 = vsub.s32 %v2962, %v2964
    %v2966 = vrot.slane %v2786, %v2965
    %v2967 = vcombine.high %v2966, %v2966
    %v2969 = vunpack.c.l.s4 1983009808
    %v2970 = vunpack.c.0.s8 %v2969
    %v2971 = vlaneseq
    %v2972 = vshrl.u32 %v2971, 7
    %v2973 = vsub.s32 %v2970, %v2972
    %v2974 = vrot.slane %v2794, %v2973
    %v2975 = vcombine.high %v2974, %v2974
    %v2977 = vunpack.c.l.s4 1983009808
    %v2978 = vunpack.c.0.s8 %v2977
    %v2979 = vlaneseq
    %v2980 = vshrl.u32 %v2979, 7
    %v2981 = vsub.s32 %v2978, %v2980
    %v2982 = vrot.slane %v2793, %v2981
    %v2983 = vcombine.high %v2982, %v2982
    %v2985 = vunpack.c.l.s4 1983009808
    %v2986 = vunpack.c.0.s8 %v2985
    %v2987 = vlaneseq
    %v2988 = vshrl.u32 %v2987, 7
    %v2989 = vsub.s32 %v2986, %v2988
    %v2990 = vrot.slane %v2795, %v2989
    %v2991 = vcombine.high %v2990, %v2990
    %v2993 = vunpack.c.l.s4 1983009808
    %v2994 = vunpack.c.0.s8 %v2993
    %v2995 = vlaneseq
    %v2996 = vshrl.u32 %v2995, 7
    %v2997 = vsub.s32 %v2994, %v2996
    %v2998 = vrot.slane %v2804, %v2997
    %v2999 = vcombine.high %v2998, %v2998
    %v3001 = vunpack.c.l.s4 1983009808
    %v3002 = vunpack.c.0.s8 %v3001
    %v3003 = vlaneseq
    %v3004 = vshrl.u32 %v3003, 7
    %v3005 = vsub.s32 %v3002, %v3004
    %v3006 = vrot.slane %v2812, %v3005
    %v3007 = vcombine.high %v3006, %v3006
    %v3009 = vunpack.c.l.s4 1983009808
    %v3010 = vunpack.c.0.s8 %v3009
    %v3011 = vlaneseq
    %v3012 = vshrl.u32 %v3011, 7
    %v3013 = vsub.s32 %v3010, %v3012
    %v3014 = vrot.slane %v2811, %v3013
    %v3015 = vcombine.high %v3014, %v3014
    %v3017 = vunpack.c.l.s4 1983009808
    %v3018 = vunpack.c.0.s8 %v3017
    %v3019 = vlaneseq
    %v3020 = vshrl.u32 %v3019, 7
    %v3021 = vsub.s32 %v3018, %v3020
    %v3022 = vrot.slane %v2813, %v3021
    %v3023 = vcombine.high %v3022, %v3022
    %v3025 = vunpack.c.l.s4 1983009808
    %v3026 = vunpack.c.0.s8 %v3025
    %v3027 = vlaneseq
    %v3028 = vshrl.u32 %v3027, 7
    %v3029 = vsub.s32 %v3026, %v3028
    %v3030 = vrot.slane %v2822, %v3029
    %v3031 = vcombine.high %v3030, %v3030
    %v3033 = vunpack.c.l.s4 1983009808
    %v3034 = vunpack.c.0.s8 %v3033
    %v3035 = vlaneseq
    %v3036 = vshrl.u32 %v3035, 7
    %v3037 = vsub.s32 %v3034, %v3036
    %v3038 = vrot.slane %v2830, %v3037
    %v3039 = vcombine.high %v3038, %v3038
    %v3041 = vunpack.c.l.s4 1983009808
    %v3042 = vunpack.c.0.s8 %v3041
    %v3043 = vlaneseq
    %v3044 = vshrl.u32 %v3043, 7
    %v3045 = vsub.s32 %v3042, %v3044
    %v3046 = vrot.slane %v2829, %v3045
    %v3047 = vcombine.high %v3046, %v3046
    %v3049 = vunpack.c.l.s4 1983009808
    %v3050 = vunpack.c.0.s8 %v3049
    %v3051 = vlaneseq
    %v3052 = vshrl.u32 %v3051, 7
    %v3053 = vsub.s32 %v3050, %v3052
    %v3054 = vrot.slane %v2831, %v3053
    %v3055 = vcombine.high %v3054, %v3054
    %vm3112 = vcmask 1041408
    %v3113 = vsel %vm3112, %v2838, -inf
    %v3114 = vrot.slane %v3113, 4
    %v3115 = vmax.f32 %v3113, %v3114
    %v3116 = vrot.slane %v3115, 2
    %v3117 = vmax.f32 %v3115, %v3116
    %v3118 = vrot.slane %v3117, 1
    %v3119 = vmax.f32 %v3117, %v3118
    %v3120 = vsel %vm3112, %v2839, -inf
    %v3121 = vrot.slane %v3120, 4
    %v3122 = vmax.f32 %v3120, %v3121
    %v3123 = vrot.slane %v3122, 2
    %v3124 = vmax.f32 %v3122, %v3123
    %v3125 = vrot.slane %v3124, 1
    %v3126 = vmax.f32 %v3124, %v3125
    %v3127 = vsel %vm3112, %v2846, -inf
    %v3128 = vrot.slane %v3127, 4
    %v3129 = vmax.f32 %v3127, %v3128
    %v3130 = vrot.slane %v3129, 2
    %v3131 = vmax.f32 %v3129, %v3130
    %v3132 = vrot.slane %v3131, 1
    %v3133 = vmax.f32 %v3131, %v3132
    %v3134 = vsel %vm3112, %v2847, -inf
    %v3135 = vrot.slane %v3134, 4
    %v3136 = vmax.f32 %v3134, %v3135
    %v3137 = vrot.slane %v3136, 2
    %v3138 = vmax.f32 %v3136, %v3137
    %v3139 = vrot.slane %v3138, 1
    %v3140 = vmax.f32 %v3138, %v3139
    %v3141 = vsel %vm3112, %v2854, -inf
    %v3142 = vrot.slane %v3141, 4
    %v3143 = vmax.f32 %v3141, %v3142
    %v3144 = vrot.slane %v3143, 2
    %v3145 = vmax.f32 %v3143, %v3144
    %v3146 = vrot.slane %v3145, 1
    %v3147 = vmax.f32 %v3145, %v3146
    %v3148 = vsel %vm3112, %v2855, -inf
    %v3149 = vrot.slane %v3148, 4
    %v3150 = vmax.f32 %v3148, %v3149
    %v3151 = vrot.slane %v3150, 2
    %v3152 = vmax.f32 %v3150, %v3151
    %v3153 = vrot.slane %v3152, 1
    %v3154 = vmax.f32 %v3152, %v3153
    %v3155 = vsel %vm3112, %v2862, -inf
    %v3156 = vrot.slane %v3155, 4
    %v3157 = vmax.f32 %v3155, %v3156
    %v3158 = vrot.slane %v3157, 2
    %v3159 = vmax.f32 %v3157, %v3158
    %v3160 = vrot.slane %v3159, 1
    %v3161 = vmax.f32 %v3159, %v3160
    %v3162 = vsel %vm3112, %v2863, -inf
    %v3163 = vrot.slane %v3162, 4
    %v3164 = vmax.f32 %v3162, %v3163
    %v3165 = vrot.slane %v3164, 2
    %v3166 = vmax.f32 %v3164, %v3165
    %v3167 = vrot.slane %v3166, 1
    %v3168 = vmax.f32 %v3166, %v3167
    %v3169 = vsel %vm3112, %v2870, -inf
    %v3170 = vrot.slane %v3169, 4
    %v3171 = vmax.f32 %v3169, %v3170
    %v3172 = vrot.slane %v3171, 2
    %v3173 = vmax.f32 %v3171, %v3172
    %v3174 = vrot.slane %v3173, 1
    %v3175 = vmax.f32 %v3173, %v3174
    %v3176 = vsel %vm3112, %v2871, -inf
    %v3177 = vrot.slane %v3176, 4
    %v3178 = vmax.f32 %v3176, %v3177
    %v3179 = vrot.slane %v3178, 2
    %v3180 = vmax.f32 %v3178, %v3179
    %v3181 = vrot.slane %v3180, 1
    %v3182 = vmax.f32 %v3180, %v3181
    %v3183 = vsel %vm3112, %v2878, -inf
    %v3184 = vrot.slane %v3183, 4
    %v3185 = vmax.f32 %v3183, %v3184
    %v3186 = vrot.slane %v3185, 2
    %v3187 = vmax.f32 %v3185, %v3186
    %v3188 = vrot.slane %v3187, 1
    %v3189 = vmax.f32 %v3187, %v3188
    %v3190 = vsel %vm3112, %v2879, -inf
    %v3191 = vrot.slane %v3190, 4
    %v3192 = vmax.f32 %v3190, %v3191
    %v3193 = vrot.slane %v3192, 2
    %v3194 = vmax.f32 %v3192, %v3193
    %v3195 = vrot.slane %v3194, 1
    %v3196 = vmax.f32 %v3194, %v3195
    %v3197 = vsel %vm3112, %v2886, -inf
    %v3198 = vrot.slane %v3197, 4
    %v3199 = vmax.f32 %v3197, %v3198
    %v3200 = vrot.slane %v3199, 2
    %v3201 = vmax.f32 %v3199, %v3200
    %v3202 = vrot.slane %v3201, 1
    %v3203 = vmax.f32 %v3201, %v3202
    %v3204 = vsel %vm3112, %v2887, -inf
    %v3205 = vrot.slane %v3204, 4
    %v3206 = vmax.f32 %v3204, %v3205
    %v3207 = vrot.slane %v3206, 2
    %v3208 = vmax.f32 %v3206, %v3207
    %v3209 = vrot.slane %v3208, 1
    %v3210 = vmax.f32 %v3208, %v3209
    %v3211 = vsel %vm3112, %v2894, -inf
    %v3212 = vrot.slane %v3211, 4
    %v3213 = vmax.f32 %v3211, %v3212
    %v3214 = vrot.slane %v3213, 2
    %v3215 = vmax.f32 %v3213, %v3214
    %v3216 = vrot.slane %v3215, 1
    %v3217 = vmax.f32 %v3215, %v3216
    %v3218 = vsel %vm3112, %v2895, -inf
    %v3219 = vrot.slane %v3218, 4
    %v3220 = vmax.f32 %v3218, %v3219
    %v3221 = vrot.slane %v3220, 2
    %v3222 = vmax.f32 %v3220, %v3221
    %v3223 = vrot.slane %v3222, 1
    %v3224 = vmax.f32 %v3222, %v3223
    %v3225 = vsel %vm3112, %v2902, -inf
    %v3226 = vrot.slane %v3225, 4
    %v3227 = vmax.f32 %v3225, %v3226
    %v3228 = vrot.slane %v3227, 2
    %v3229 = vmax.f32 %v3227, %v3228
    %v3230 = vrot.slane %v3229, 1
    %v3231 = vmax.f32 %v3229, %v3230
    %v3232 = vsel %vm3112, %v2903, -inf
    %v3233 = vrot.slane %v3232, 4
    %v3234 = vmax.f32 %v3232, %v3233
    %v3235 = vrot.slane %v3234, 2
    %v3236 = vmax.f32 %v3234, %v3235
    %v3237 = vrot.slane %v3236, 1
    %v3238 = vmax.f32 %v3236, %v3237
    %v3239 = vsel %vm3112, %v2910, -inf
    %v3240 = vrot.slane %v3239, 4
    %v3241 = vmax.f32 %v3239, %v3240
    %v3242 = vrot.slane %v3241, 2
    %v3243 = vmax.f32 %v3241, %v3242
    %v3244 = vrot.slane %v3243, 1
    %v3245 = vmax.f32 %v3243, %v3244
    %v3246 = vsel %vm3112, %v2911, -inf
    %v3247 = vrot.slane %v3246, 4
    %v3248 = vmax.f32 %v3246, %v3247
    %v3249 = vrot.slane %v3248, 2
    %v3250 = vmax.f32 %v3248, %v3249
    %v3251 = vrot.slane %v3250, 1
    %v3252 = vmax.f32 %v3250, %v3251
    %v3253 = vsel %vm3112, %v2918, -inf
    %v3254 = vrot.slane %v3253, 4
    %v3255 = vmax.f32 %v3253, %v3254
    %v3256 = vrot.slane %v3255, 2
    %v3257 = vmax.f32 %v3255, %v3256
    %v3258 = vrot.slane %v3257, 1
    %v3259 = vmax.f32 %v3257, %v3258
    %v3260 = vsel %vm3112, %v2919, -inf
    %v3261 = vrot.slane %v3260, 4
    %v3262 = vmax.f32 %v3260, %v3261
    %v3263 = vrot.slane %v3262, 2
    %v3264 = vmax.f32 %v3262, %v3263
    %v3265 = vrot.slane %v3264, 1
    %v3266 = vmax.f32 %v3264, %v3265
    %v3267 = vsel %vm3112, %v2926, -inf
    %v3268 = vrot.slane %v3267, 4
    %v3269 = vmax.f32 %v3267, %v3268
    %v3270 = vrot.slane %v3269, 2
    %v3271 = vmax.f32 %v3269, %v3270
    %v3272 = vrot.slane %v3271, 1
    %v3273 = vmax.f32 %v3271, %v3272
    %v3274 = vsel %vm3112, %v2927, -inf
    %v3275 = vrot.slane %v3274, 4
    %v3276 = vmax.f32 %v3274, %v3275
    %v3277 = vrot.slane %v3276, 2
    %v3278 = vmax.f32 %v3276, %v3277
    %v3279 = vrot.slane %v3278, 1
    %v3280 = vmax.f32 %v3278, %v3279
    %v3281 = vsel %vm3112, %v2934, -inf
    %v3282 = vrot.slane %v3281, 4
    %v3283 = vmax.f32 %v3281, %v3282
    %v3284 = vrot.slane %v3283, 2
    %v3285 = vmax.f32 %v3283, %v3284
    %v3286 = vrot.slane %v3285, 1
    %v3287 = vmax.f32 %v3285, %v3286
    %v3288 = vsel %vm3112, %v2935, -inf
    %v3289 = vrot.slane %v3288, 4
    %v3290 = vmax.f32 %v3288, %v3289
    %v3291 = vrot.slane %v3290, 2
    %v3292 = vmax.f32 %v3290, %v3291
    %v3293 = vrot.slane %v3292, 1
    %v3294 = vmax.f32 %v3292, %v3293
    %v3295 = vsel %vm3112, %v2942, -inf
    %v3296 = vrot.slane %v3295, 4
    %v3297 = vmax.f32 %v3295, %v3296
    %v3298 = vrot.slane %v3297, 2
    %v3299 = vmax.f32 %v3297, %v3298
    %v3300 = vrot.slane %v3299, 1
    %v3301 = vmax.f32 %v3299, %v3300
    %v3302 = vsel %vm3112, %v2943, -inf
    %v3303 = vrot.slane %v3302, 4
    %v3304 = vmax.f32 %v3302, %v3303
    %v3305 = vrot.slane %v3304, 2
    %v3306 = vmax.f32 %v3304, %v3305
    %v3307 = vrot.slane %v3306, 1
    %v3308 = vmax.f32 %v3306, %v3307
    %v3309 = vsel %vm3112, %v2950, -inf
    %v3310 = vrot.slane %v3309, 4
    %v3311 = vmax.f32 %v3309, %v3310
    %v3312 = vrot.slane %v3311, 2
    %v3313 = vmax.f32 %v3311, %v3312
    %v3314 = vrot.slane %v3313, 1
    %v3315 = vmax.f32 %v3313, %v3314
    %v3316 = vsel %vm3112, %v2951, -inf
    %v3317 = vrot.slane %v3316, 4
    %v3318 = vmax.f32 %v3316, %v3317
    %v3319 = vrot.slane %v3318, 2
    %v3320 = vmax.f32 %v3318, %v3319
    %v3321 = vrot.slane %v3320, 1
    %v3322 = vmax.f32 %v3320, %v3321
    %v3323 = vsel %vm3112, %v2958, -inf
    %v3324 = vrot.slane %v3323, 4
    %v3325 = vmax.f32 %v3323, %v3324
    %v3326 = vrot.slane %v3325, 2
    %v3327 = vmax.f32 %v3325, %v3326
    %v3328 = vrot.slane %v3327, 1
    %v3329 = vmax.f32 %v3327, %v3328
    %v3330 = vsel %vm3112, %v2959, -inf
    %v3331 = vrot.slane %v3330, 4
    %v3332 = vmax.f32 %v3330, %v3331
    %v3333 = vrot.slane %v3332, 2
    %v3334 = vmax.f32 %v3332, %v3333
    %v3335 = vrot.slane %v3334, 1
    %v3336 = vmax.f32 %v3334, %v3335
    %v3337 = vsel %vm3112, %v2966, -inf
    %v3338 = vrot.slane %v3337, 4
    %v3339 = vmax.f32 %v3337, %v3338
    %v3340 = vrot.slane %v3339, 2
    %v3341 = vmax.f32 %v3339, %v3340
    %v3342 = vrot.slane %v3341, 1
    %v3343 = vmax.f32 %v3341, %v3342
    %v3344 = vsel %vm3112, %v2967, -inf
    %v3345 = vrot.slane %v3344, 4
    %v3346 = vmax.f32 %v3344, %v3345
    %v3347 = vrot.slane %v3346, 2
    %v3348 = vmax.f32 %v3346, %v3347
    %v3349 = vrot.slane %v3348, 1
    %v3350 = vmax.f32 %v3348, %v3349
    %v3351 = vsel %vm3112, %v2974, -inf
    %v3352 = vrot.slane %v3351, 4
    %v3353 = vmax.f32 %v3351, %v3352
    %v3354 = vrot.slane %v3353, 2
    %v3355 = vmax.f32 %v3353, %v3354
    %v3356 = vrot.slane %v3355, 1
    %v3357 = vmax.f32 %v3355, %v3356
    %v3358 = vsel %vm3112, %v2975, -inf
    %v3359 = vrot.slane %v3358, 4
    %v3360 = vmax.f32 %v3358, %v3359
    %v3361 = vrot.slane %v3360, 2
    %v3362 = vmax.f32 %v3360, %v3361
    %v3363 = vrot.slane %v3362, 1
    %v3364 = vmax.f32 %v3362, %v3363
    %v3365 = vsel %vm3112, %v2982, -inf
    %v3366 = vrot.slane %v3365, 4
    %v3367 = vmax.f32 %v3365, %v3366
    %v3368 = vrot.slane %v3367, 2
    %v3369 = vmax.f32 %v3367, %v3368
    %v3370 = vrot.slane %v3369, 1
    %v3371 = vmax.f32 %v3369, %v3370
    %v3372 = vsel %vm3112, %v2983, -inf
    %v3373 = vrot.slane %v3372, 4
    %v3374 = vmax.f32 %v3372, %v3373
    %v3375 = vrot.slane %v3374, 2
    %v3376 = vmax.f32 %v3374, %v3375
    %v3377 = vrot.slane %v3376, 1
    %v3378 = vmax.f32 %v3376, %v3377
    %v3379 = vsel %vm3112, %v2990, -inf
    %v3380 = vrot.slane %v3379, 4
    %v3381 = vmax.f32 %v3379, %v3380
    %v3382 = vrot.slane %v3381, 2
    %v3383 = vmax.f32 %v3381, %v3382
    %v3384 = vrot.slane %v3383, 1
    %v3385 = vmax.f32 %v3383, %v3384
    %v3386 = vsel %vm3112, %v2991, -inf
    %v3387 = vrot.slane %v3386, 4
    %v3388 = vmax.f32 %v3386, %v3387
    %v3389 = vrot.slane %v3388, 2
    %v3390 = vmax.f32 %v3388, %v3389
    %v3391 = vrot.slane %v3390, 1
    %v3392 = vmax.f32 %v3390, %v3391
    %v3393 = vsel %vm3112, %v2998, -inf
    %v3394 = vrot.slane %v3393, 4
    %v3395 = vmax.f32 %v3393, %v3394
    %v3396 = vrot.slane %v3395, 2
    %v3397 = vmax.f32 %v3395, %v3396
    %v3398 = vrot.slane %v3397, 1
    %v3399 = vmax.f32 %v3397, %v3398
    %v3400 = vsel %vm3112, %v2999, -inf
    %v3401 = vrot.slane %v3400, 4
    %v3402 = vmax.f32 %v3400, %v3401
    %v3403 = vrot.slane %v3402, 2
    %v3404 = vmax.f32 %v3402, %v3403
    %v3405 = vrot.slane %v3404, 1
    %v3406 = vmax.f32 %v3404, %v3405
    %v3407 = vsel %vm3112, %v3006, -inf
    %v3408 = vrot.slane %v3407, 4
    %v3409 = vmax.f32 %v3407, %v3408
    %v3410 = vrot.slane %v3409, 2
    %v3411 = vmax.f32 %v3409, %v3410
    %v3412 = vrot.slane %v3411, 1
    %v3413 = vmax.f32 %v3411, %v3412
    %v3414 = vsel %vm3112, %v3007, -inf
    %v3415 = vrot.slane %v3414, 4
    %v3416 = vmax.f32 %v3414, %v3415
    %v3417 = vrot.slane %v3416, 2
    %v3418 = vmax.f32 %v3416, %v3417
    %v3419 = vrot.slane %v3418, 1
    %v3420 = vmax.f32 %v3418, %v3419
    %v3421 = vsel %vm3112, %v3014, -inf
    %v3422 = vrot.slane %v3421, 4
    %v3423 = vmax.f32 %v3421, %v3422
    %v3424 = vrot.slane %v3423, 2
    %v3425 = vmax.f32 %v3423, %v3424
    %v3426 = vrot.slane %v3425, 1
    %v3427 = vmax.f32 %v3425, %v3426
    %v3428 = vsel %vm3112, %v3015, -inf
    %v3429 = vrot.slane %v3428, 4
    %v3430 = vmax.f32 %v3428, %v3429
    %v3431 = vrot.slane %v3430, 2
    %v3432 = vmax.f32 %v3430, %v3431
    %v3433 = vrot.slane %v3432, 1
    %v3434 = vmax.f32 %v3432, %v3433
    %v3435 = vsel %vm3112, %v3022, -inf
    %v3436 = vrot.slane %v3435, 4
    %v3437 = vmax.f32 %v3435, %v3436
    %v3438 = vrot.slane %v3437, 2
    %v3439 = vmax.f32 %v3437, %v3438
    %v3440 = vrot.slane %v3439, 1
    %v3441 = vmax.f32 %v3439, %v3440
    %v3442 = vsel %vm3112, %v3023, -inf
    %v3443 = vrot.slane %v3442, 4
    %v3444 = vmax.f32 %v3442, %v3443
    %v3445 = vrot.slane %v3444, 2
    %v3446 = vmax.f32 %v3444, %v3445
    %v3447 = vrot.slane %v3446, 1
    %v3448 = vmax.f32 %v3446, %v3447
    %v3449 = vsel %vm3112, %v3030, -inf
    %v3450 = vrot.slane %v3449, 4
    %v3451 = vmax.f32 %v3449, %v3450
    %v3452 = vrot.slane %v3451, 2
    %v3453 = vmax.f32 %v3451, %v3452
    %v3454 = vrot.slane %v3453, 1
    %v3455 = vmax.f32 %v3453, %v3454
    %v3456 = vsel %vm3112, %v3031, -inf
    %v3457 = vrot.slane %v3456, 4
    %v3458 = vmax.f32 %v3456, %v3457
    %v3459 = vrot.slane %v3458, 2
    %v3460 = vmax.f32 %v3458, %v3459
    %v3461 = vrot.slane %v3460, 1
    %v3462 = vmax.f32 %v3460, %v3461
    %v3463 = vsel %vm3112, %v3038, -inf
    %v3464 = vrot.slane %v3463, 4
    %v3465 = vmax.f32 %v3463, %v3464
    %v3466 = vrot.slane %v3465, 2
    %v3467 = vmax.f32 %v3465, %v3466
    %v3468 = vrot.slane %v3467, 1
    %v3469 = vmax.f32 %v3467, %v3468
    %v3470 = vsel %vm3112, %v3039, -inf
    %v3471 = vrot.slane %v3470, 4
    %v3472 = vmax.f32 %v3470, %v3471
    %v3473 = vrot.slane %v3472, 2
    %v3474 = vmax.f32 %v3472, %v3473
    %v3475 = vrot.slane %v3474, 1
    %v3476 = vmax.f32 %v3474, %v3475
    %v3477 = vsel %vm3112, %v3046, -inf
    %v3478 = vrot.slane %v3477, 4
    %v3479 = vmax.f32 %v3477, %v3478
    %v3480 = vrot.slane %v3479, 2
    %v3481 = vmax.f32 %v3479, %v3480
    %v3482 = vrot.slane %v3481, 1
    %v3483 = vmax.f32 %v3481, %v3482
    %v3484 = vsel %vm3112, %v3047, -inf
    %v3485 = vrot.slane %v3484, 4
    %v3486 = vmax.f32 %v3484, %v3485
    %v3487 = vrot.slane %v3486, 2
    %v3488 = vmax.f32 %v3486, %v3487
    %v3489 = vrot.slane %v3488, 1
    %v3490 = vmax.f32 %v3488, %v3489
    %v3491 = vsel %vm3112, %v3054, -inf
    %v3492 = vrot.slane %v3491, 4
    %v3493 = vmax.f32 %v3491, %v3492
    %v3494 = vrot.slane %v3493, 2
    %v3495 = vmax.f32 %v3493, %v3494
    %v3496 = vrot.slane %v3495, 1
    %v3497 = vmax.f32 %v3495, %v3496
    %v3498 = vsel %vm3112, %v3055, -inf
    %v3499 = vrot.slane %v3498, 4
    %v3500 = vmax.f32 %v3498, %v3499
    %v3501 = vrot.slane %v3500, 2
    %v3502 = vmax.f32 %v3500, %v3501
    %v3503 = vrot.slane %v3502, 1
    %v3504 = vmax.f32 %v3502, %v3503
    %s3505 = smul.u32 4, 160
    %s3506 = smul.u32 %s3505, 4
    %s3507 = sshll.u32 %s3506, 4
    %3508 = dma.done [#allocation4], %s3507
    %v3509 = vld [vmem:[#allocation2] sm:$0xff]
    %v3510 = vld [vmem:[#allocation2 + $0x8] sm:$0xff]
    %v3511 = vld [vmem:[#allocation2 + $0x10] sm:$0xff]
    %v3512 = vld [vmem:[#allocation2 + $0x18] sm:$0xff]
    %v3513 = vld [vmem:[#allocation2 + $0x20] sm:$0xff]
    %v3514 = vld [vmem:[#allocation2 + $0x28] sm:$0xff]
    %v3515 = vld [vmem:[#allocation2 + $0x30] sm:$0xff]
    %v3516 = vld [vmem:[#allocation2 + $0x38] sm:$0xff]
    %v3517 = vld [vmem:[#allocation2 + $0x40] sm:$0xff]
    %v3518 = vld [vmem:[#allocation2 + $0x48] sm:$0xff]
    %v3519 = vld [vmem:[#allocation2 + $0x50] sm:$0xff]
    %v3520 = vld [vmem:[#allocation2 + $0x58] sm:$0xff]
    %v3521 = vld [vmem:[#allocation2 + $0x60] sm:$0xff]
    %v3522 = vld [vmem:[#allocation2 + $0x68] sm:$0xff]
    %v3523 = vld [vmem:[#allocation2 + $0x70] sm:$0xff]
    %v3524 = vld [vmem:[#allocation2 + $0x78] sm:$0xff]
    %v3525 = vld [vmem:[#allocation2 + $0x80] sm:$0xff]
    %v3526 = vld [vmem:[#allocation2 + $0x88] sm:$0xff]
    %v3527 = vld [vmem:[#allocation2 + $0x90] sm:$0xff]
    %v3528 = vld [vmem:[#allocation2 + $0x98] sm:$0xff]
    %v3529 = vld [vmem:[#allocation2 + $0xa0] sm:$0xff]
    %v3530 = vld [vmem:[#allocation2 + $0xa8] sm:$0xff]
    %v3531 = vld [vmem:[#allocation2 + $0xb0] sm:$0xff]
    %v3532 = vld [vmem:[#allocation2 + $0xb8] sm:$0xff]
    %v3533 = vld [vmem:[#allocation2 + $0xc0] sm:$0xff]
    %v3534 = vld [vmem:[#allocation2 + $0xc8] sm:$0xff]
    %v3535 = vld [vmem:[#allocation2 + $0xd0] sm:$0xff]
    %v3536 = vld [vmem:[#allocation2 + $0xd8] sm:$0xff]
    %v3537 = vld [vmem:[#allocation2 + $0xe0] sm:$0xff]
    %v3538 = vld [vmem:[#allocation2 + $0xe8] sm:$0xff]
    %v3539 = vld [vmem:[#allocation2 + $0xf0] sm:$0xff]
    %v3540 = vld [vmem:[#allocation2 + $0xf8] sm:$0xff]
    %v3541 = vld [vmem:[#allocation2 + $0x100] sm:$0xff]
    %v3542 = vld [vmem:[#allocation2 + $0x108] sm:$0xff]
    %v3543 = vld [vmem:[#allocation2 + $0x110] sm:$0xff]
    %v3544 = vld [vmem:[#allocation2 + $0x118] sm:$0xff]
    %v3545 = vld [vmem:[#allocation2 + $0x120] sm:$0xff]
    %v3546 = vld [vmem:[#allocation2 + $0x128] sm:$0xff]
    %v3547 = vld [vmem:[#allocation2 + $0x130] sm:$0xff]
    %v3548 = vld [vmem:[#allocation2 + $0x138] sm:$0xff]
    %v3549 = vld [vmem:[#allocation2 + $0x140] sm:$0xff]
    %v3550 = vld [vmem:[#allocation2 + $0x148] sm:$0xff]
    %v3551 = vld [vmem:[#allocation2 + $0x150] sm:$0xff]
    %v3552 = vld [vmem:[#allocation2 + $0x158] sm:$0xff]
    %v3553 = vld [vmem:[#allocation2 + $0x160] sm:$0xff]
    %v3554 = vld [vmem:[#allocation2 + $0x168] sm:$0xff]
    %v3555 = vld [vmem:[#allocation2 + $0x170] sm:$0xff]
    %v3556 = vld [vmem:[#allocation2 + $0x178] sm:$0xff]
    %v3557 = vld [vmem:[#allocation2 + $0x180] sm:$0xff]
    %v3558 = vld [vmem:[#allocation2 + $0x188] sm:$0xff]
    %v3559 = vld [vmem:[#allocation2 + $0x190] sm:$0xff]
    %v3560 = vld [vmem:[#allocation2 + $0x198] sm:$0xff]
    %v3561 = vld [vmem:[#allocation2 + $0x1a0] sm:$0xff]
    %v3562 = vld [vmem:[#allocation2 + $0x1a8] sm:$0xff]
    %v3563 = vld [vmem:[#allocation2 + $0x1b0] sm:$0xff]
    %v3564 = vld [vmem:[#allocation2 + $0x1b8] sm:$0xff]
    %v3565 = vld [vmem:[#allocation2 + $0x1c0] sm:$0xff]
    %v3566 = vld [vmem:[#allocation2 + $0x1c8] sm:$0xff]
    %v3567 = vld [vmem:[#allocation2 + $0x1d0] sm:$0xff]
    %v3568 = vld [vmem:[#allocation2 + $0x1d8] sm:$0xff]
    %v3569 = vld [vmem:[#allocation2 + $0x1e0] sm:$0xff]
    %v3570 = vld [vmem:[#allocation2 + $0x1e8] sm:$0xff]
    %v3571 = vld [vmem:[#allocation2 + $0x1f0] sm:$0xff]
    %v3572 = vld [vmem:[#allocation2 + $0x1f8] sm:$0xff]
    %v3573 = vld [vmem:[#allocation2 + $0x200] sm:$0xff]
    %v3574 = vld [vmem:[#allocation2 + $0x208] sm:$0xff]
    %v3575 = vld [vmem:[#allocation2 + $0x210] sm:$0xff]
    %v3576 = vld [vmem:[#allocation2 + $0x218] sm:$0xff]
    %v3577 = vld [vmem:[#allocation2 + $0x220] sm:$0xff]
    %v3578 = vld [vmem:[#allocation2 + $0x228] sm:$0xff]
    %v3579 = vld [vmem:[#allocation2 + $0x230] sm:$0xff]
    %v3580 = vld [vmem:[#allocation2 + $0x238] sm:$0xff]
    %v3581 = vld [vmem:[#allocation2 + $0x240] sm:$0xff]
    %v3582 = vld [vmem:[#allocation2 + $0x248] sm:$0xff]
    %v3583 = vld [vmem:[#allocation2 + $0x250] sm:$0xff]
    %v3584 = vld [vmem:[#allocation2 + $0x258] sm:$0xff]
    %v3585 = vld [vmem:[#allocation2 + $0x260] sm:$0xff]
    %v3586 = vld [vmem:[#allocation2 + $0x268] sm:$0xff]
    %v3587 = vld [vmem:[#allocation2 + $0x270] sm:$0xff]
    %v3588 = vld [vmem:[#allocation2 + $0x278] sm:$0xff]
    %v3589 = vld [vmem:[#allocation2 + $0x280] sm:$0xff]
    %v3590 = vld [vmem:[#allocation2 + $0x288] sm:$0xff]
    %v3591 = vld [vmem:[#allocation2 + $0x290] sm:$0xff]
    %v3592 = vld [vmem:[#allocation2 + $0x298] sm:$0xff]
    %v3593 = vld [vmem:[#allocation2 + $0x2a0] sm:$0xff]
    %v3594 = vld [vmem:[#allocation2 + $0x2a8] sm:$0xff]
    %v3595 = vld [vmem:[#allocation2 + $0x2b0] sm:$0xff]
    %v3596 = vld [vmem:[#allocation2 + $0x2b8] sm:$0xff]
    %v3597 = vld [vmem:[#allocation2 + $0x2c0] sm:$0xff]
    %v3598 = vld [vmem:[#allocation2 + $0x2c8] sm:$0xff]
    %v3599 = vld [vmem:[#allocation2 + $0x2d0] sm:$0xff]
    %v3600 = vld [vmem:[#allocation2 + $0x2d8] sm:$0xff]
    %v3601 = vld [vmem:[#allocation2 + $0x2e0] sm:$0xff]
    %v3602 = vld [vmem:[#allocation2 + $0x2e8] sm:$0xff]
    %v3603 = vld [vmem:[#allocation2 + $0x2f0] sm:$0xff]
    %v3604 = vld [vmem:[#allocation2 + $0x2f8] sm:$0xff]
    %v3605 = vld [vmem:[#allocation2 + $0x300] sm:$0xff]
    %v3606 = vld [vmem:[#allocation2 + $0x308] sm:$0xff]
    %v3607 = vld [vmem:[#allocation2 + $0x310] sm:$0xff]
    %v3608 = vld [vmem:[#allocation2 + $0x318] sm:$0xff]
    %v3609 = vld [vmem:[#allocation2 + $0x320] sm:$0xff]
    %v3610 = vld [vmem:[#allocation2 + $0x328] sm:$0xff]
    %v3611 = vld [vmem:[#allocation2 + $0x330] sm:$0xff]
    %v3612 = vld [vmem:[#allocation2 + $0x338] sm:$0xff]
    %v3613 = vld [vmem:[#allocation2 + $0x340] sm:$0xff]
    %v3614 = vld [vmem:[#allocation2 + $0x348] sm:$0xff]
    %v3615 = vld [vmem:[#allocation2 + $0x350] sm:$0xff]
    %v3616 = vld [vmem:[#allocation2 + $0x358] sm:$0xff]
    %v3617 = vld [vmem:[#allocation2 + $0x360] sm:$0xff]
    %v3618 = vld [vmem:[#allocation2 + $0x368] sm:$0xff]
    %v3619 = vld [vmem:[#allocation2 + $0x370] sm:$0xff]
    %v3620 = vld [vmem:[#allocation2 + $0x378] sm:$0xff]
    %v3621 = vld [vmem:[#allocation2 + $0x380] sm:$0xff]
    %v3622 = vld [vmem:[#allocation2 + $0x388] sm:$0xff]
    %v3623 = vld [vmem:[#allocation2 + $0x390] sm:$0xff]
    %v3624 = vld [vmem:[#allocation2 + $0x398] sm:$0xff]
    %v3625 = vld [vmem:[#allocation2 + $0x3a0] sm:$0xff]
    %v3626 = vld [vmem:[#allocation2 + $0x3a8] sm:$0xff]
    %v3627 = vld [vmem:[#allocation2 + $0x3b0] sm:$0xff]
    %v3628 = vld [vmem:[#allocation2 + $0x3b8] sm:$0xff]
    %v3629 = vld [vmem:[#allocation2 + $0x3c0] sm:$0xff]
    %v3630 = vld [vmem:[#allocation2 + $0x3c8] sm:$0xff]
    %v3631 = vld [vmem:[#allocation2 + $0x3d0] sm:$0xff]
    %v3632 = vld [vmem:[#allocation2 + $0x3d8] sm:$0xff]
    %v3633 = vld [vmem:[#allocation2 + $0x3e0] sm:$0xff]
    %v3634 = vld [vmem:[#allocation2 + $0x3e8] sm:$0xff]
    %v3635 = vld [vmem:[#allocation2 + $0x3f0] sm:$0xff]
    %v3636 = vld [vmem:[#allocation2 + $0x3f8] sm:$0xff]
    %v3637 = vld [vmem:[#allocation2 + $0x400] sm:$0xff]
    %v3638 = vld [vmem:[#allocation2 + $0x408] sm:$0xff]
    %v3639 = vld [vmem:[#allocation2 + $0x410] sm:$0xff]
    %v3640 = vld [vmem:[#allocation2 + $0x418] sm:$0xff]
    %v3641 = vld [vmem:[#allocation2 + $0x420] sm:$0xff]
    %v3642 = vld [vmem:[#allocation2 + $0x428] sm:$0xff]
    %v3643 = vld [vmem:[#allocation2 + $0x430] sm:$0xff]
    %v3644 = vld [vmem:[#allocation2 + $0x438] sm:$0xff]
    %v3645 = vld [vmem:[#allocation2 + $0x440] sm:$0xff]
    %v3646 = vld [vmem:[#allocation2 + $0x448] sm:$0xff]
    %v3647 = vld [vmem:[#allocation2 + $0x450] sm:$0xff]
    %v3648 = vld [vmem:[#allocation2 + $0x458] sm:$0xff]
    %v3649 = vld [vmem:[#allocation2 + $0x460] sm:$0xff]
    %v3650 = vld [vmem:[#allocation2 + $0x468] sm:$0xff]
    %v3651 = vld [vmem:[#allocation2 + $0x470] sm:$0xff]
    %v3652 = vld [vmem:[#allocation2 + $0x478] sm:$0xff]
    %v3653 = vld [vmem:[#allocation2 + $0x480] sm:$0xff]
    %v3654 = vld [vmem:[#allocation2 + $0x488] sm:$0xff]
    %v3655 = vld [vmem:[#allocation2 + $0x490] sm:$0xff]
    %v3656 = vld [vmem:[#allocation2 + $0x498] sm:$0xff]
    %v3657 = vld [vmem:[#allocation2 + $0x4a0] sm:$0xff]
    %v3658 = vld [vmem:[#allocation2 + $0x4a8] sm:$0xff]
    %v3659 = vld [vmem:[#allocation2 + $0x4b0] sm:$0xff]
    %v3660 = vld [vmem:[#allocation2 + $0x4b8] sm:$0xff]
    %v3661 = vld [vmem:[#allocation2 + $0x4c0] sm:$0xff]
    %v3662 = vld [vmem:[#allocation2 + $0x4c8] sm:$0xff]
    %v3663 = vld [vmem:[#allocation2 + $0x4d0] sm:$0xff]
    %v3664 = vld [vmem:[#allocation2 + $0x4d8] sm:$0xff]
    %v3665 = vld [vmem:[#allocation2 + $0x4e0] sm:$0xff]
    %v3666 = vld [vmem:[#allocation2 + $0x4e8] sm:$0xff]
    %v3667 = vld [vmem:[#allocation2 + $0x4f0] sm:$0xff]
    %v3668 = vld [vmem:[#allocation2 + $0x4f8] sm:$0xff]
    %v3669 = vld [vmem:[#allocation2 + $0x500] sm:$0xff]
    %v3670 = vld [vmem:[#allocation2 + $0x508] sm:$0xff]
    %v3671 = vld [vmem:[#allocation2 + $0x510] sm:$0xff]
    %v3672 = vld [vmem:[#allocation2 + $0x518] sm:$0xff]
    %v3673 = vld [vmem:[#allocation2 + $0x520] sm:$0xff]
    %v3674 = vld [vmem:[#allocation2 + $0x528] sm:$0xff]
    %v3675 = vld [vmem:[#allocation2 + $0x530] sm:$0xff]
    %v3676 = vld [vmem:[#allocation2 + $0x538] sm:$0xff]
    %v3677 = vld [vmem:[#allocation2 + $0x540] sm:$0xff]
    %v3678 = vld [vmem:[#allocation2 + $0x548] sm:$0xff]
    %v3679 = vld [vmem:[#allocation2 + $0x550] sm:$0xff]
    %v3680 = vld [vmem:[#allocation2 + $0x558] sm:$0xff]
    %v3681 = vld [vmem:[#allocation2 + $0x560] sm:$0xff]
    %v3682 = vld [vmem:[#allocation2 + $0x568] sm:$0xff]
    %v3683 = vld [vmem:[#allocation2 + $0x570] sm:$0xff]
    %v3684 = vld [vmem:[#allocation2 + $0x578] sm:$0xff]
    %v3685 = vld [vmem:[#allocation2 + $0x580] sm:$0xff]
    %v3686 = vld [vmem:[#allocation2 + $0x588] sm:$0xff]
    %v3687 = vld [vmem:[#allocation2 + $0x590] sm:$0xff]
    %v3688 = vld [vmem:[#allocation2 + $0x598] sm:$0xff]
    %v3689 = vld [vmem:[#allocation2 + $0x5a0] sm:$0xff]
    %v3690 = vld [vmem:[#allocation2 + $0x5a8] sm:$0xff]
    %v3691 = vld [vmem:[#allocation2 + $0x5b0] sm:$0xff]
    %v3692 = vld [vmem:[#allocation2 + $0x5b8] sm:$0xff]
    %v3693 = vld [vmem:[#allocation2 + $0x5c0] sm:$0xff]
    %v3694 = vld [vmem:[#allocation2 + $0x5c8] sm:$0xff]
    %v3695 = vld [vmem:[#allocation2 + $0x5d0] sm:$0xff]
    %v3696 = vld [vmem:[#allocation2 + $0x5d8] sm:$0xff]
    %v3697 = vld [vmem:[#allocation2 + $0x5e0] sm:$0xff]
    %v3698 = vld [vmem:[#allocation2 + $0x5e8] sm:$0xff]
    %v3699 = vld [vmem:[#allocation2 + $0x5f0] sm:$0xff]
    %v3700 = vld [vmem:[#allocation2 + $0x5f8] sm:$0xff]
    %v3701 = vld [vmem:[#allocation2 + $0x600] sm:$0xff]
    %v3702 = vld [vmem:[#allocation2 + $0x608] sm:$0xff]
    %v3703 = vld [vmem:[#allocation2 + $0x610] sm:$0xff]
    %v3704 = vld [vmem:[#allocation2 + $0x618] sm:$0xff]
    %v3705 = vld [vmem:[#allocation2 + $0x620] sm:$0xff]
    %v3706 = vld [vmem:[#allocation2 + $0x628] sm:$0xff]
    %v3707 = vld [vmem:[#allocation2 + $0x630] sm:$0xff]
    %v3708 = vld [vmem:[#allocation2 + $0x638] sm:$0xff]
    %v3709 = vld [vmem:[#allocation2 + $0x640] sm:$0xff]
    %v3710 = vld [vmem:[#allocation2 + $0x648] sm:$0xff]
    %v3711 = vld [vmem:[#allocation2 + $0x650] sm:$0xff]
    %v3712 = vld [vmem:[#allocation2 + $0x658] sm:$0xff]
    %v3713 = vld [vmem:[#allocation2 + $0x660] sm:$0xff]
    %v3714 = vld [vmem:[#allocation2 + $0x668] sm:$0xff]
    %v3715 = vld [vmem:[#allocation2 + $0x670] sm:$0xff]
    %v3716 = vld [vmem:[#allocation2 + $0x678] sm:$0xff]
    %v3717 = vld [vmem:[#allocation2 + $0x680] sm:$0xff]
    %v3718 = vld [vmem:[#allocation2 + $0x688] sm:$0xff]
    %v3719 = vld [vmem:[#allocation2 + $0x690] sm:$0xff]
    %v3720 = vld [vmem:[#allocation2 + $0x698] sm:$0xff]
    %v3721 = vld [vmem:[#allocation2 + $0x6a0] sm:$0xff]
    %v3722 = vld [vmem:[#allocation2 + $0x6a8] sm:$0xff]
    %v3723 = vld [vmem:[#allocation2 + $0x6b0] sm:$0xff]
    %v3724 = vld [vmem:[#allocation2 + $0x6b8] sm:$0xff]
    %v3725 = vld [vmem:[#allocation2 + $0x6c0] sm:$0xff]
    %v3726 = vld [vmem:[#allocation2 + $0x6c8] sm:$0xff]
    %v3727 = vld [vmem:[#allocation2 + $0x6d0] sm:$0xff]
    %v3728 = vld [vmem:[#allocation2 + $0x6d8] sm:$0xff]
    %v3729 = vld [vmem:[#allocation2 + $0x6e0] sm:$0xff]
    %v3730 = vld [vmem:[#allocation2 + $0x6e8] sm:$0xff]
    %v3731 = vld [vmem:[#allocation2 + $0x6f0] sm:$0xff]
    %v3732 = vld [vmem:[#allocation2 + $0x6f8] sm:$0xff]
    %v3733 = vld [vmem:[#allocation2 + $0x700] sm:$0xff]
    %v3734 = vld [vmem:[#allocation2 + $0x708] sm:$0xff]
    %v3735 = vld [vmem:[#allocation2 + $0x710] sm:$0xff]
    %v3736 = vld [vmem:[#allocation2 + $0x718] sm:$0xff]
    %v3737 = vld [vmem:[#allocation2 + $0x720] sm:$0xff]
    %v3738 = vld [vmem:[#allocation2 + $0x728] sm:$0xff]
    %v3739 = vld [vmem:[#allocation2 + $0x730] sm:$0xff]
    %v3740 = vld [vmem:[#allocation2 + $0x738] sm:$0xff]
    %v3741 = vld [vmem:[#allocation2 + $0x740] sm:$0xff]
    %v3742 = vld [vmem:[#allocation2 + $0x748] sm:$0xff]
    %v3743 = vld [vmem:[#allocation2 + $0x750] sm:$0xff]
    %v3744 = vld [vmem:[#allocation2 + $0x758] sm:$0xff]
    %v3745 = vld [vmem:[#allocation2 + $0x760] sm:$0xff]
    %v3746 = vld [vmem:[#allocation2 + $0x768] sm:$0xff]
    %v3747 = vld [vmem:[#allocation2 + $0x770] sm:$0xff]
    %v3748 = vld [vmem:[#allocation2 + $0x778] sm:$0xff]
    %v3749 = vld [vmem:[#allocation2 + $0x780] sm:$0xff]
    %v3750 = vld [vmem:[#allocation2 + $0x788] sm:$0xff]
    %v3751 = vld [vmem:[#allocation2 + $0x790] sm:$0xff]
    %v3752 = vld [vmem:[#allocation2 + $0x798] sm:$0xff]
    %v3753 = vld [vmem:[#allocation2 + $0x7a0] sm:$0xff]
    %v3754 = vld [vmem:[#allocation2 + $0x7a8] sm:$0xff]
    %v3755 = vld [vmem:[#allocation2 + $0x7b0] sm:$0xff]
    %v3756 = vld [vmem:[#allocation2 + $0x7b8] sm:$0xff]
    %v3757 = vld [vmem:[#allocation2 + $0x7c0] sm:$0xff]
    %v3758 = vld [vmem:[#allocation2 + $0x7c8] sm:$0xff]
    %v3759 = vld [vmem:[#allocation2 + $0x7d0] sm:$0xff]
    %v3760 = vld [vmem:[#allocation2 + $0x7d8] sm:$0xff]
    %v3761 = vld [vmem:[#allocation2 + $0x7e0] sm:$0xff]
    %v3762 = vld [vmem:[#allocation2 + $0x7e8] sm:$0xff]
    %v3763 = vld [vmem:[#allocation2 + $0x7f0] sm:$0xff]
    %v3764 = vld [vmem:[#allocation2 + $0x7f8] sm:$0xff]
    %v3765 = vld [vmem:[#allocation2 + $0x800] sm:$0xff]
    %v3766 = vld [vmem:[#allocation2 + $0x808] sm:$0xff]
    %v3767 = vld [vmem:[#allocation2 + $0x810] sm:$0xff]
    %v3768 = vld [vmem:[#allocation2 + $0x818] sm:$0xff]
    %v3769 = vld [vmem:[#allocation2 + $0x820] sm:$0xff]
    %v3770 = vld [vmem:[#allocation2 + $0x828] sm:$0xff]
    %v3771 = vld [vmem:[#allocation2 + $0x830] sm:$0xff]
    %v3772 = vld [vmem:[#allocation2 + $0x838] sm:$0xff]
    %v3773 = vld [vmem:[#allocation2 + $0x840] sm:$0xff]
    %v3774 = vld [vmem:[#allocation2 + $0x848] sm:$0xff]
    %v3775 = vld [vmem:[#allocation2 + $0x850] sm:$0xff]
    %v3776 = vld [vmem:[#allocation2 + $0x858] sm:$0xff]
    %v3777 = vld [vmem:[#allocation2 + $0x860] sm:$0xff]
    %v3778 = vld [vmem:[#allocation2 + $0x868] sm:$0xff]
    %v3779 = vld [vmem:[#allocation2 + $0x870] sm:$0xff]
    %v3780 = vld [vmem:[#allocation2 + $0x878] sm:$0xff]
    %v3781 = vld [vmem:[#allocation2 + $0x880] sm:$0xff]
    %v3782 = vld [vmem:[#allocation2 + $0x888] sm:$0xff]
    %v3783 = vld [vmem:[#allocation2 + $0x890] sm:$0xff]
    %v3784 = vld [vmem:[#allocation2 + $0x898] sm:$0xff]
    %v3785 = vld [vmem:[#allocation2 + $0x8a0] sm:$0xff]
    %v3786 = vld [vmem:[#allocation2 + $0x8a8] sm:$0xff]
    %v3787 = vld [vmem:[#allocation2 + $0x8b0] sm:$0xff]
    %v3788 = vld [vmem:[#allocation2 + $0x8b8] sm:$0xff]
    %v3789 = vld [vmem:[#allocation2 + $0x8c0] sm:$0xff]
    %v3790 = vld [vmem:[#allocation2 + $0x8c8] sm:$0xff]
    %v3791 = vld [vmem:[#allocation2 + $0x8d0] sm:$0xff]
    %v3792 = vld [vmem:[#allocation2 + $0x8d8] sm:$0xff]
    %v3793 = vld [vmem:[#allocation2 + $0x8e0] sm:$0xff]
    %v3794 = vld [vmem:[#allocation2 + $0x8e8] sm:$0xff]
    %v3795 = vld [vmem:[#allocation2 + $0x8f0] sm:$0xff]
    %v3796 = vld [vmem:[#allocation2 + $0x8f8] sm:$0xff]
    %v3797 = vld [vmem:[#allocation2 + $0x900] sm:$0xff]
    %v3798 = vld [vmem:[#allocation2 + $0x908] sm:$0xff]
    %v3799 = vld [vmem:[#allocation2 + $0x910] sm:$0xff]
    %v3800 = vld [vmem:[#allocation2 + $0x918] sm:$0xff]
    %v3801 = vld [vmem:[#allocation2 + $0x920] sm:$0xff]
    %v3802 = vld [vmem:[#allocation2 + $0x928] sm:$0xff]
    %v3803 = vld [vmem:[#allocation2 + $0x930] sm:$0xff]
    %v3804 = vld [vmem:[#allocation2 + $0x938] sm:$0xff]
    %v3805 = vld [vmem:[#allocation2 + $0x940] sm:$0xff]
    %v3806 = vld [vmem:[#allocation2 + $0x948] sm:$0xff]
    %v3807 = vld [vmem:[#allocation2 + $0x950] sm:$0xff]
    %v3808 = vld [vmem:[#allocation2 + $0x958] sm:$0xff]
    %v3809 = vld [vmem:[#allocation2 + $0x960] sm:$0xff]
    %v3810 = vld [vmem:[#allocation2 + $0x968] sm:$0xff]
    %v3811 = vld [vmem:[#allocation2 + $0x970] sm:$0xff]
    %v3812 = vld [vmem:[#allocation2 + $0x978] sm:$0xff]
    %v3813 = vld [vmem:[#allocation2 + $0x980] sm:$0xff]
    %v3814 = vld [vmem:[#allocation2 + $0x988] sm:$0xff]
    %v3815 = vld [vmem:[#allocation2 + $0x990] sm:$0xff]
    %v3816 = vld [vmem:[#allocation2 + $0x998] sm:$0xff]
    %v3817 = vld [vmem:[#allocation2 + $0x9a0] sm:$0xff]
    %v3818 = vld [vmem:[#allocation2 + $0x9a8] sm:$0xff]
    %v3819 = vld [vmem:[#allocation2 + $0x9b0] sm:$0xff]
    %v3820 = vld [vmem:[#allocation2 + $0x9b8] sm:$0xff]
    %v3821 = vld [vmem:[#allocation2 + $0x9c0] sm:$0xff]
    %v3822 = vld [vmem:[#allocation2 + $0x9c8] sm:$0xff]
    %v3823 = vld [vmem:[#allocation2 + $0x9d0] sm:$0xff]
    %v3824 = vld [vmem:[#allocation2 + $0x9d8] sm:$0xff]
    %v3825 = vld [vmem:[#allocation2 + $0x9e0] sm:$0xff]
    %v3826 = vld [vmem:[#allocation2 + $0x9e8] sm:$0xff]
    %v3827 = vld [vmem:[#allocation2 + $0x9f0] sm:$0xff]
    %v3828 = vld [vmem:[#allocation2 + $0x9f8] sm:$0xff]
    %vm3869 = vcmask 1041409
    %v3870 = vsel %vm3869, %v3133, %v3119
    %vm3871 = vcmask 1042434
    %v3872 = vsel %vm3871, %v3147, %v3870
    %vm3873 = vcmask 1043459
    %v3874 = vsel %vm3873, %v3161, %v3872
    %vm3875 = vcmask 1044484
    %v3876 = vsel %vm3875, %v3175, %v3874
    %vm3877 = vcmask 1045509
    %v3878 = vsel %vm3877, %v3189, %v3876
    %vm3879 = vcmask 1046534
    %v3880 = vsel %vm3879, %v3203, %v3878
    %vm3881 = vcmask 1047559
    %v3882 = vsel %vm3881, %v3217, %v3880
    %v3883 = vsel %vm3869, %v3140, %v3126
    %v3884 = vsel %vm3871, %v3154, %v3883
    %v3885 = vsel %vm3873, %v3168, %v3884
    %v3886 = vsel %vm3875, %v3182, %v3885
    %v3887 = vsel %vm3877, %v3196, %v3886
    %v3888 = vsel %vm3879, %v3210, %v3887
    %v3889 = vsel %vm3881, %v3224, %v3888
    %v3890 = vsel %vm3869, %v3245, %v3231
    %v3891 = vsel %vm3869, %v3252, %v3238
    %v3892 = vsel %vm3869, %v3329, %v3315
    %v3893 = vsel %vm3871, %v3343, %v3892
    %v3894 = vsel %vm3873, %v3357, %v3893
    %v3895 = vsel %vm3875, %v3371, %v3894
    %v3896 = vsel %vm3877, %v3385, %v3895
    %v3897 = vsel %vm3879, %v3399, %v3896
    %v3898 = vsel %vm3881, %v3413, %v3897
    %v3899 = vsel %vm3869, %v3336, %v3322
    %v3900 = vsel %vm3871, %v3350, %v3899
    %v3901 = vsel %vm3873, %v3364, %v3900
    %v3902 = vsel %vm3875, %v3378, %v3901
    %v3903 = vsel %vm3877, %v3392, %v3902
    %v3904 = vsel %vm3879, %v3406, %v3903
    %v3905 = vsel %vm3881, %v3420, %v3904
    %v3906 = vsel %vm3869, %v3441, %v3427
    %v3907 = vsel %vm3869, %v3448, %v3434
    %v3912 = vsel %vm3869, %v3147, %v3133
    %v3913 = vsel %vm3871, %v3161, %v3912
    %v3914 = vsel %vm3873, %v3175, %v3913
    %v3915 = vsel %vm3875, %v3189, %v3914
    %v3916 = vsel %vm3877, %v3203, %v3915
    %v3917 = vsel %vm3879, %v3217, %v3916
    %v3918 = vsel %vm3881, %v3231, %v3917
    %v3919 = vsel %vm3869, %v3154, %v3140
    %v3920 = vsel %vm3871, %v3168, %v3919
    %v3921 = vsel %vm3873, %v3182, %v3920
    %v3922 = vsel %vm3875, %v3196, %v3921
    %v3923 = vsel %vm3877, %v3210, %v3922
    %v3924 = vsel %vm3879, %v3224, %v3923
    %v3925 = vsel %vm3881, %v3238, %v3924
    %v3926 = vsel %vm3869, %v3259, %v3245
    %v3927 = vsel %vm3869, %v3266, %v3252
    %v3928 = vsel %vm3869, %v3343, %v3329
    %v3929 = vsel %vm3871, %v3357, %v3928
    %v3930 = vsel %vm3873, %v3371, %v3929
    %v3931 = vsel %vm3875, %v3385, %v3930
    %v3932 = vsel %vm3877, %v3399, %v3931
    %v3933 = vsel %vm3879, %v3413, %v3932
    %v3934 = vsel %vm3881, %v3427, %v3933
    %v3935 = vsel %vm3869, %v3350, %v3336
    %v3936 = vsel %vm3871, %v3364, %v3935
    %v3937 = vsel %vm3873, %v3378, %v3936
    %v3938 = vsel %vm3875, %v3392, %v3937
    %v3939 = vsel %vm3877, %v3406, %v3938
    %v3940 = vsel %vm3879, %v3420, %v3939
    %v3941 = vsel %vm3881, %v3434, %v3940
    %v3942 = vsel %vm3869, %v3455, %v3441
    %v3943 = vsel %vm3869, %v3462, %v3448
    %v3948 = vsel %vm3869, %v3161, %v3147
    %v3949 = vsel %vm3871, %v3175, %v3948
    %v3950 = vsel %vm3873, %v3189, %v3949
    %v3951 = vsel %vm3875, %v3203, %v3950
    %v3952 = vsel %vm3877, %v3217, %v3951
    %v3953 = vsel %vm3879, %v3231, %v3952
    %v3954 = vsel %vm3881, %v3245, %v3953
    %v3955 = vsel %vm3869, %v3168, %v3154
    %v3956 = vsel %vm3871, %v3182, %v3955
    %v3957 = vsel %vm3873, %v3196, %v3956
    %v3958 = vsel %vm3875, %v3210, %v3957
    %v3959 = vsel %vm3877, %v3224, %v3958
    %v3960 = vsel %vm3879, %v3238, %v3959
    %v3961 = vsel %vm3881, %v3252, %v3960
    %v3962 = vsel %vm3869, %v3273, %v3259
    %v3963 = vsel %vm3869, %v3280, %v3266
    %v3964 = vsel %vm3869, %v3357, %v3343
    %v3965 = vsel %vm3871, %v3371, %v3964
    %v3966 = vsel %vm3873, %v3385, %v3965
    %v3967 = vsel %vm3875, %v3399, %v3966
    %v3968 = vsel %vm3877, %v3413, %v3967
    %v3969 = vsel %vm3879, %v3427, %v3968
    %v3970 = vsel %vm3881, %v3441, %v3969
    %v3971 = vsel %vm3869, %v3364, %v3350
    %v3972 = vsel %vm3871, %v3378, %v3971
    %v3973 = vsel %vm3873, %v3392, %v3972
    %v3974 = vsel %vm3875, %v3406, %v3973
    %v3975 = vsel %vm3877, %v3420, %v3974
    %v3976 = vsel %vm3879, %v3434, %v3975
    %v3977 = vsel %vm3881, %v3448, %v3976
    %v3978 = vsel %vm3869, %v3469, %v3455
    %v3979 = vsel %vm3869, %v3476, %v3462
    %v3984 = vsel %vm3869, %v3175, %v3161
    %v3985 = vsel %vm3871, %v3189, %v3984
    %v3986 = vsel %vm3873, %v3203, %v3985
    %v3987 = vsel %vm3875, %v3217, %v3986
    %v3988 = vsel %vm3877, %v3231, %v3987
    %v3989 = vsel %vm3879, %v3245, %v3988
    %v3990 = vsel %vm3881, %v3259, %v3989
    %v3991 = vsel %vm3869, %v3182, %v3168
    %v3992 = vsel %vm3871, %v3196, %v3991
    %v3993 = vsel %vm3873, %v3210, %v3992
    %v3994 = vsel %vm3875, %v3224, %v3993
    %v3995 = vsel %vm3877, %v3238, %v3994
    %v3996 = vsel %vm3879, %v3252, %v3995
    %v3997 = vsel %vm3881, %v3266, %v3996
    %v3998 = vsel %vm3869, %v3287, %v3273
    %v3999 = vsel %vm3869, %v3294, %v3280
    %v4000 = vsel %vm3869, %v3371, %v3357
    %v4001 = vsel %vm3871, %v3385, %v4000
    %v4002 = vsel %vm3873, %v3399, %v4001
    %v4003 = vsel %vm3875, %v3413, %v4002
    %v4004 = vsel %vm3877, %v3427, %v4003
    %v4005 = vsel %vm3879, %v3441, %v4004
    %v4006 = vsel %vm3881, %v3455, %v4005
    %v4007 = vsel %vm3869, %v3378, %v3364
    %v4008 = vsel %vm3871, %v3392, %v4007
    %v4009 = vsel %vm3873, %v3406, %v4008
    %v4010 = vsel %vm3875, %v3420, %v4009
    %v4011 = vsel %vm3877, %v3434, %v4010
    %v4012 = vsel %vm3879, %v3448, %v4011
    %v4013 = vsel %vm3881, %v3462, %v4012
    %v4014 = vsel %vm3869, %v3483, %v3469
    %v4015 = vsel %vm3869, %v3490, %v3476
    %v4020 = vsel %vm3869, %v3189, %v3175
    %v4021 = vsel %vm3871, %v3203, %v4020
    %v4022 = vsel %vm3873, %v3217, %v4021
    %v4023 = vsel %vm3875, %v3231, %v4022
    %v4024 = vsel %vm3877, %v3245, %v4023
    %v4025 = vsel %vm3879, %v3259, %v4024
    %v4026 = vsel %vm3881, %v3273, %v4025
    %v4027 = vsel %vm3869, %v3196, %v3182
    %v4028 = vsel %vm3871, %v3210, %v4027
    %v4029 = vsel %vm3873, %v3224, %v4028
    %v4030 = vsel %vm3875, %v3238, %v4029
    %v4031 = vsel %vm3877, %v3252, %v4030
    %v4032 = vsel %vm3879, %v3266, %v4031
    %v4033 = vsel %vm3881, %v3280, %v4032
    %v4034 = vsel %vm3869, %v3301, %v3287
    %v4035 = vsel %vm3869, %v3308, %v3294
    %v4036 = vsel %vm3869, %v3385, %v3371
    %v4037 = vsel %vm3871, %v3399, %v4036
    %v4038 = vsel %vm3873, %v3413, %v4037
    %v4039 = vsel %vm3875, %v3427, %v4038
    %v4040 = vsel %vm3877, %v3441, %v4039
    %v4041 = vsel %vm3879, %v3455, %v4040
    %v4042 = vsel %vm3881, %v3469, %v4041
    %v4043 = vsel %vm3869, %v3392, %v3378
    %v4044 = vsel %vm3871, %v3406, %v4043
    %v4045 = vsel %vm3873, %v3420, %v4044
    %v4046 = vsel %vm3875, %v3434, %v4045
    %v4047 = vsel %vm3877, %v3448, %v4046
    %v4048 = vsel %vm3879, %v3462, %v4047
    %v4049 = vsel %vm3881, %v3476, %v4048
    %v4050 = vsel %vm3869, %v3497, %v3483
    %v4051 = vsel %vm3869, %v3504, %v3490
    %v4052 = vcombine.low %v3882, %v3889
    %v4053 = vcombine.high %v3882, %v3889
    %v4054 = vcombine.low %v3918, %v3925
    %v4055 = vcombine.high %v3918, %v3925
    %v4057 = vunpack.c.l.s4 1983009808
    %v4058 = vunpack.c.0.s8 %v4057
    %v4059 = vlaneseq
    %v4060 = vshrl.u32 %v4059, 7
    %v4061 = vsub.s32 %v4058, %v4060
    %v4062 = vrot.slane %v4052, %v4061
    %v4064 = vunpack.c.l.s4 1983009808
    %v4065 = vunpack.c.0.s8 %v4064
    %v4066 = vlaneseq
    %v4067 = vshrl.u32 %v4066, 7
    %v4068 = vsub.s32 %v4065, %v4067
    %v4069 = vrot.slane %v4053, %v4068
    %v4071 = vunpack.c.l.s4 1983009808
    %v4072 = vunpack.c.0.s8 %v4071
    %v4073 = vlaneseq
    %v4074 = vshrl.u32 %v4073, 7
    %v4075 = vsub.s32 %v4072, %v4074
    %v4076 = vrot.slane %v4054, %v4075
    %v4078 = vunpack.c.l.s4 1983009808
    %v4079 = vunpack.c.0.s8 %v4078
    %v4080 = vlaneseq
    %v4081 = vshrl.u32 %v4080, 7
    %v4082 = vsub.s32 %v4079, %v4081
    %v4083 = vrot.slane %v4055, %v4082
    %v4084 = vcombine.low %v4062, %v4076
    %v4085 = vcombine.high %v4062, %v4076
    %v4086 = vcombine.low %v4069, %v4083
    %v4087 = vcombine.high %v4069, %v4083
    %v4088 = vcombine.low %v3954, %v3961
    %v4089 = vcombine.high %v3954, %v3961
    %v4090 = vcombine.low %v3990, %v3997
    %v4091 = vcombine.high %v3990, %v3997
    %v4093 = vunpack.c.l.s4 1983009808
    %v4094 = vunpack.c.0.s8 %v4093
    %v4095 = vlaneseq
    %v4096 = vshrl.u32 %v4095, 7
    %v4097 = vsub.s32 %v4094, %v4096
    %v4098 = vrot.slane %v4088, %v4097
    %v4100 = vunpack.c.l.s4 1983009808
    %v4101 = vunpack.c.0.s8 %v4100
    %v4102 = vlaneseq
    %v4103 = vshrl.u32 %v4102, 7
    %v4104 = vsub.s32 %v4101, %v4103
    %v4105 = vrot.slane %v4089, %v4104
    %v4107 = vunpack.c.l.s4 1983009808
    %v4108 = vunpack.c.0.s8 %v4107
    %v4109 = vlaneseq
    %v4110 = vshrl.u32 %v4109, 7
    %v4111 = vsub.s32 %v4108, %v4110
    %v4112 = vrot.slane %v4090, %v4111
    %v4114 = vunpack.c.l.s4 1983009808
    %v4115 = vunpack.c.0.s8 %v4114
    %v4116 = vlaneseq
    %v4117 = vshrl.u32 %v4116, 7
    %v4118 = vsub.s32 %v4115, %v4117
    %v4119 = vrot.slane %v4091, %v4118
    %v4120 = vcombine.low %v4098, %v4112
    %v4121 = vcombine.high %v4098, %v4112
    %v4122 = vcombine.low %v4105, %v4119
    %v4123 = vcombine.high %v4105, %v4119
    %v4124 = vcombine.low %v4026, %v4033
    %v4125 = vcombine.high %v4026, %v4033
    %v4127 = vunpack.c.l.s4 1983009808
    %v4128 = vunpack.c.0.s8 %v4127
    %v4129 = vlaneseq
    %v4130 = vshrl.u32 %v4129, 7
    %v4131 = vsub.s32 %v4128, %v4130
    %v4132 = vrot.slane %v4124, %v4131
    %v4134 = vunpack.c.l.s4 1983009808
    %v4135 = vunpack.c.0.s8 %v4134
    %v4136 = vlaneseq
    %v4137 = vshrl.u32 %v4136, 7
    %v4138 = vsub.s32 %v4135, %v4137
    %v4139 = vrot.slane %v4125, %v4138
    %v4140 = vcombine.high %v4132, %v4132
    %v4141 = vcombine.high %v4139, %v4139
    %v4142 = vcombine.low %v3890, %v3891
    %v4143 = vcombine.low %v3926, %v3927
    %v4145 = vunpack.c.l.s4 1983009808
    %v4146 = vunpack.c.0.s8 %v4145
    %v4147 = vlaneseq
    %v4148 = vshrl.u32 %v4147, 7
    %v4149 = vsub.s32 %v4146, %v4148
    %v4150 = vrot.slane %v4142, %v4149
    %v4152 = vunpack.c.l.s4 1983009808
    %v4153 = vunpack.c.0.s8 %v4152
    %v4154 = vlaneseq
    %v4155 = vshrl.u32 %v4154, 7
    %v4156 = vsub.s32 %v4153, %v4155
    %v4157 = vrot.slane %v4143, %v4156
    %v4158 = vcombine.low %v4150, %v4157
    %v4159 = vcombine.low %v3962, %v3963
    %v4160 = vcombine.low %v3998, %v3999
    %v4162 = vunpack.c.l.s4 1983009808
    %v4163 = vunpack.c.0.s8 %v4162
    %v4164 = vlaneseq
    %v4165 = vshrl.u32 %v4164, 7
    %v4166 = vsub.s32 %v4163, %v4165
    %v4167 = vrot.slane %v4159, %v4166
    %v4169 = vunpack.c.l.s4 1983009808
    %v4170 = vunpack.c.0.s8 %v4169
    %v4171 = vlaneseq
    %v4172 = vshrl.u32 %v4171, 7
    %v4173 = vsub.s32 %v4170, %v4172
    %v4174 = vrot.slane %v4160, %v4173
    %v4175 = vcombine.low %v4167, %v4174
    %v4176 = vcombine.low %v4034, %v4035
    %v4178 = vunpack.c.l.s4 1983009808
    %v4179 = vunpack.c.0.s8 %v4178
    %v4180 = vlaneseq
    %v4181 = vshrl.u32 %v4180, 7
    %v4182 = vsub.s32 %v4179, %v4181
    %v4183 = vrot.slane %v4176, %v4182
    %v4184 = vcombine.low %v3898, %v3905
    %v4185 = vcombine.high %v3898, %v3905
    %v4186 = vcombine.low %v3934, %v3941
    %v4187 = vcombine.high %v3934, %v3941
    %v4189 = vunpack.c.l.s4 1983009808
    %v4190 = vunpack.c.0.s8 %v4189
    %v4191 = vlaneseq
    %v4192 = vshrl.u32 %v4191, 7
    %v4193 = vsub.s32 %v4190, %v4192
    %v4194 = vrot.slane %v4184, %v4193
    %v4196 = vunpack.c.l.s4 1983009808
    %v4197 = vunpack.c.0.s8 %v4196
    %v4198 = vlaneseq
    %v4199 = vshrl.u32 %v4198, 7
    %v4200 = vsub.s32 %v4197, %v4199
    %v4201 = vrot.slane %v4185, %v4200
    %v4203 = vunpack.c.l.s4 1983009808
    %v4204 = vunpack.c.0.s8 %v4203
    %v4205 = vlaneseq
    %v4206 = vshrl.u32 %v4205, 7
    %v4207 = vsub.s32 %v4204, %v4206
    %v4208 = vrot.slane %v4186, %v4207
    %v4210 = vunpack.c.l.s4 1983009808
    %v4211 = vunpack.c.0.s8 %v4210
    %v4212 = vlaneseq
    %v4213 = vshrl.u32 %v4212, 7
    %v4214 = vsub.s32 %v4211, %v4213
    %v4215 = vrot.slane %v4187, %v4214
    %v4216 = vcombine.low %v4194, %v4208
    %v4217 = vcombine.high %v4194, %v4208
    %v4218 = vcombine.low %v4201, %v4215
    %v4219 = vcombine.high %v4201, %v4215
    %v4220 = vcombine.low %v3970, %v3977
    %v4221 = vcombine.high %v3970, %v3977
    %v4222 = vcombine.low %v4006, %v4013
    %v4223 = vcombine.high %v4006, %v4013
    %v4225 = vunpack.c.l.s4 1983009808
    %v4226 = vunpack.c.0.s8 %v4225
    %v4227 = vlaneseq
    %v4228 = vshrl.u32 %v4227, 7
    %v4229 = vsub.s32 %v4226, %v4228
    %v4230 = vrot.slane %v4220, %v4229
    %v4232 = vunpack.c.l.s4 1983009808
    %v4233 = vunpack.c.0.s8 %v4232
    %v4234 = vlaneseq
    %v4235 = vshrl.u32 %v4234, 7
    %v4236 = vsub.s32 %v4233, %v4235
    %v4237 = vrot.slane %v4221, %v4236
    %v4239 = vunpack.c.l.s4 1983009808
    %v4240 = vunpack.c.0.s8 %v4239
    %v4241 = vlaneseq
    %v4242 = vshrl.u32 %v4241, 7
    %v4243 = vsub.s32 %v4240, %v4242
    %v4244 = vrot.slane %v4222, %v4243
    %v4246 = vunpack.c.l.s4 1983009808
    %v4247 = vunpack.c.0.s8 %v4246
    %v4248 = vlaneseq
    %v4249 = vshrl.u32 %v4248, 7
    %v4250 = vsub.s32 %v4247, %v4249
    %v4251 = vrot.slane %v4223, %v4250
    %v4252 = vcombine.low %v4230, %v4244
    %v4253 = vcombine.high %v4230, %v4244
    %v4254 = vcombine.low %v4237, %v4251
    %v4255 = vcombine.high %v4237, %v4251
    %v4256 = vcombine.low %v4042, %v4049
    %v4257 = vcombine.high %v4042, %v4049
    %v4259 = vunpack.c.l.s4 1983009808
    %v4260 = vunpack.c.0.s8 %v4259
    %v4261 = vlaneseq
    %v4262 = vshrl.u32 %v4261, 7
    %v4263 = vsub.s32 %v4260, %v4262
    %v4264 = vrot.slane %v4256, %v4263
    %v4266 = vunpack.c.l.s4 1983009808
    %v4267 = vunpack.c.0.s8 %v4266
    %v4268 = vlaneseq
    %v4269 = vshrl.u32 %v4268, 7
    %v4270 = vsub.s32 %v4267, %v4269
    %v4271 = vrot.slane %v4257, %v4270
    %v4272 = vcombine.high %v4264, %v4264
    %v4273 = vcombine.high %v4271, %v4271
    %v4274 = vcombine.low %v3906, %v3907
    %v4275 = vcombine.low %v3942, %v3943
    %v4277 = vunpack.c.l.s4 1983009808
    %v4278 = vunpack.c.0.s8 %v4277
    %v4279 = vlaneseq
    %v4280 = vshrl.u32 %v4279, 7
    %v4281 = vsub.s32 %v4278, %v4280
    %v4282 = vrot.slane %v4274, %v4281
    %v4284 = vunpack.c.l.s4 1983009808
    %v4285 = vunpack.c.0.s8 %v4284
    %v4286 = vlaneseq
    %v4287 = vshrl.u32 %v4286, 7
    %v4288 = vsub.s32 %v4285, %v4287
    %v4289 = vrot.slane %v4275, %v4288
    %v4290 = vcombine.low %v4282, %v4289
    %v4291 = vcombine.low %v3978, %v3979
    %v4292 = vcombine.low %v4014, %v4015
    %v4294 = vunpack.c.l.s4 1983009808
    %v4295 = vunpack.c.0.s8 %v4294
    %v4296 = vlaneseq
    %v4297 = vshrl.u32 %v4296, 7
    %v4298 = vsub.s32 %v4295, %v4297
    %v4299 = vrot.slane %v4291, %v4298
    %v4301 = vunpack.c.l.s4 1983009808
    %v4302 = vunpack.c.0.s8 %v4301
    %v4303 = vlaneseq
    %v4304 = vshrl.u32 %v4303, 7
    %v4305 = vsub.s32 %v4302, %v4304
    %v4306 = vrot.slane %v4292, %v4305
    %v4307 = vcombine.low %v4299, %v4306
    %v4308 = vcombine.low %v4050, %v4051
    %v4310 = vunpack.c.l.s4 1983009808
    %v4311 = vunpack.c.0.s8 %v4310
    %v4312 = vlaneseq
    %v4313 = vshrl.u32 %v4312, 7
    %v4314 = vsub.s32 %v4311, %v4313
    %v4315 = vrot.slane %v4308, %v4314
    %v4316 = vcombine.low %v4084, %v4085
    %v4317 = vcombine.high %v4084, %v4085
    %v4318 = vcombine.low %v4086, %v4087
    %v4319 = vcombine.high %v4086, %v4087
    %v4321 = vunpack.c.l.s4 1983009808
    %v4322 = vunpack.c.0.s8 %v4321
    %v4323 = vlaneseq
    %v4324 = vshrl.u32 %v4323, 7
    %v4325 = vsub.s32 %v4322, %v4324
    %v4326 = vrot.slane %v4316, %v4325
    %v4328 = vunpack.c.l.s4 1983009808
    %v4329 = vunpack.c.0.s8 %v4328
    %v4330 = vlaneseq
    %v4331 = vshrl.u32 %v4330, 7
    %v4332 = vsub.s32 %v4329, %v4331
    %v4333 = vrot.slane %v4317, %v4332
    %v4335 = vunpack.c.l.s4 1983009808
    %v4336 = vunpack.c.0.s8 %v4335
    %v4337 = vlaneseq
    %v4338 = vshrl.u32 %v4337, 7
    %v4339 = vsub.s32 %v4336, %v4338
    %v4340 = vrot.slane %v4318, %v4339
    %v4342 = vunpack.c.l.s4 1983009808
    %v4343 = vunpack.c.0.s8 %v4342
    %v4344 = vlaneseq
    %v4345 = vshrl.u32 %v4344, 7
    %v4346 = vsub.s32 %v4343, %v4345
    %v4347 = vrot.slane %v4319, %v4346
    %v4348 = vcombine.low %v4326, %v4340
    %v4349 = vcombine.high %v4326, %v4340
    %v4350 = vcombine.low %v4333, %v4347
    %v4351 = vcombine.high %v4333, %v4347
    %v4352 = vcombine.low %v4120, %v4121
    %v4353 = vcombine.high %v4120, %v4121
    %v4354 = vcombine.low %v4122, %v4123
    %v4355 = vcombine.high %v4122, %v4123
    %v4357 = vunpack.c.l.s4 1983009808
    %v4358 = vunpack.c.0.s8 %v4357
    %v4359 = vlaneseq
    %v4360 = vshrl.u32 %v4359, 7
    %v4361 = vsub.s32 %v4358, %v4360
    %v4362 = vrot.slane %v4352, %v4361
    %v4364 = vunpack.c.l.s4 1983009808
    %v4365 = vunpack.c.0.s8 %v4364
    %v4366 = vlaneseq
    %v4367 = vshrl.u32 %v4366, 7
    %v4368 = vsub.s32 %v4365, %v4367
    %v4369 = vrot.slane %v4353, %v4368
    %v4371 = vunpack.c.l.s4 1983009808
    %v4372 = vunpack.c.0.s8 %v4371
    %v4373 = vlaneseq
    %v4374 = vshrl.u32 %v4373, 7
    %v4375 = vsub.s32 %v4372, %v4374
    %v4376 = vrot.slane %v4354, %v4375
    %v4378 = vunpack.c.l.s4 1983009808
    %v4379 = vunpack.c.0.s8 %v4378
    %v4380 = vlaneseq
    %v4381 = vshrl.u32 %v4380, 7
    %v4382 = vsub.s32 %v4379, %v4381
    %v4383 = vrot.slane %v4355, %v4382
    %v4384 = vcombine.low %v4362, %v4376
    %v4385 = vcombine.high %v4362, %v4376
    %v4386 = vcombine.low %v4369, %v4383
    %v4387 = vcombine.high %v4369, %v4383
    %v4388 = vcombine.low %v4132, %v4140
    %v4389 = vcombine.low %v4139, %v4141
    %v4391 = vunpack.c.l.s4 1983009808
    %v4392 = vunpack.c.0.s8 %v4391
    %v4393 = vlaneseq
    %v4394 = vshrl.u32 %v4393, 7
    %v4395 = vsub.s32 %v4392, %v4394
    %v4396 = vrot.slane %v4388, %v4395
    %v4398 = vunpack.c.l.s4 1983009808
    %v4399 = vunpack.c.0.s8 %v4398
    %v4400 = vlaneseq
    %v4401 = vshrl.u32 %v4400, 7
    %v4402 = vsub.s32 %v4399, %v4401
    %v4403 = vrot.slane %v4389, %v4402
    %v4404 = vcombine.low %v4396, %v4403
    %v4405 = vcombine.high %v4396, %v4403
    %v4406 = vcombine.low %v4158, %v4216
    %v4407 = vcombine.high %v4158, %v4216
    %v4408 = vcombine.low %v4217, %v4218
    %v4409 = vcombine.high %v4217, %v4218
    %v4411 = vunpack.c.l.s4 1983009808
    %v4412 = vunpack.c.0.s8 %v4411
    %v4413 = vlaneseq
    %v4414 = vshrl.u32 %v4413, 7
    %v4415 = vsub.s32 %v4412, %v4414
    %v4416 = vrot.slane %v4406, %v4415
    %v4418 = vunpack.c.l.s4 1983009808
    %v4419 = vunpack.c.0.s8 %v4418
    %v4420 = vlaneseq
    %v4421 = vshrl.u32 %v4420, 7
    %v4422 = vsub.s32 %v4419, %v4421
    %v4423 = vrot.slane %v4407, %v4422
    %v4425 = vunpack.c.l.s4 1983009808
    %v4426 = vunpack.c.0.s8 %v4425
    %v4427 = vlaneseq
    %v4428 = vshrl.u32 %v4427, 7
    %v4429 = vsub.s32 %v4426, %v4428
    %v4430 = vrot.slane %v4408, %v4429
    %v4432 = vunpack.c.l.s4 1983009808
    %v4433 = vunpack.c.0.s8 %v4432
    %v4434 = vlaneseq
    %v4435 = vshrl.u32 %v4434, 7
    %v4436 = vsub.s32 %v4433, %v4435
    %v4437 = vrot.slane %v4409, %v4436
    %v4438 = vcombine.low %v4416, %v4430
    %v4439 = vcombine.high %v4416, %v4430
    %v4440 = vcombine.low %v4423, %v4437
    %v4441 = vcombine.high %v4423, %v4437
    %v4442 = vcombine.low %v4175, %v4252
    %v4443 = vcombine.high %v4175, %v4252
    %v4444 = vcombine.low %v4253, %v4254
    %v4445 = vcombine.high %v4253, %v4254
    %v4447 = vunpack.c.l.s4 1983009808
    %v4448 = vunpack.c.0.s8 %v4447
    %v4449 = vlaneseq
    %v4450 = vshrl.u32 %v4449, 7
    %v4451 = vsub.s32 %v4448, %v4450
    %v4452 = vrot.slane %v4442, %v4451
    %v4454 = vunpack.c.l.s4 1983009808
    %v4455 = vunpack.c.0.s8 %v4454
    %v4456 = vlaneseq
    %v4457 = vshrl.u32 %v4456, 7
    %v4458 = vsub.s32 %v4455, %v4457
    %v4459 = vrot.slane %v4443, %v4458
    %v4461 = vunpack.c.l.s4 1983009808
    %v4462 = vunpack.c.0.s8 %v4461
    %v4463 = vlaneseq
    %v4464 = vshrl.u32 %v4463, 7
    %v4465 = vsub.s32 %v4462, %v4464
    %v4466 = vrot.slane %v4444, %v4465
    %v4468 = vunpack.c.l.s4 1983009808
    %v4469 = vunpack.c.0.s8 %v4468
    %v4470 = vlaneseq
    %v4471 = vshrl.u32 %v4470, 7
    %v4472 = vsub.s32 %v4469, %v4471
    %v4473 = vrot.slane %v4445, %v4472
    %v4474 = vcombine.low %v4452, %v4466
    %v4475 = vcombine.high %v4452, %v4466
    %v4476 = vcombine.low %v4459, %v4473
    %v4477 = vcombine.high %v4459, %v4473
    %v4478 = vcombine.low %v4183, %v4264
    %v4479 = vcombine.low %v4272, %v4271
    %v4481 = vunpack.c.l.s4 1983009808
    %v4482 = vunpack.c.0.s8 %v4481
    %v4483 = vlaneseq
    %v4484 = vshrl.u32 %v4483, 7
    %v4485 = vsub.s32 %v4482, %v4484
    %v4486 = vrot.slane %v4478, %v4485
    %v4488 = vunpack.c.l.s4 1983009808
    %v4489 = vunpack.c.0.s8 %v4488
    %v4490 = vlaneseq
    %v4491 = vshrl.u32 %v4490, 7
    %v4492 = vsub.s32 %v4489, %v4491
    %v4493 = vrot.slane %v4479, %v4492
    %v4494 = vcombine.low %v4486, %v4493
    %v4495 = vcombine.high %v4486, %v4493
    %v4496 = vcombine.low %v4219, %v4290
    %v4497 = vcombine.high %v4219, %v4290
    %v4499 = vunpack.c.l.s4 1983009808
    %v4500 = vunpack.c.0.s8 %v4499
    %v4501 = vlaneseq
    %v4502 = vshrl.u32 %v4501, 7
    %v4503 = vsub.s32 %v4500, %v4502
    %v4504 = vrot.slane %v4496, %v4503
    %v4506 = vunpack.c.l.s4 1983009808
    %v4507 = vunpack.c.0.s8 %v4506
    %v4508 = vlaneseq
    %v4509 = vshrl.u32 %v4508, 7
    %v4510 = vsub.s32 %v4507, %v4509
    %v4511 = vrot.slane %v4497, %v4510
    %v4512 = vcombine.high %v4504, %v4504
    %v4513 = vcombine.high %v4511, %v4511
    %v4514 = vcombine.low %v4255, %v4307
    %v4515 = vcombine.high %v4255, %v4307
    %v4517 = vunpack.c.l.s4 1983009808
    %v4518 = vunpack.c.0.s8 %v4517
    %v4519 = vlaneseq
    %v4520 = vshrl.u32 %v4519, 7
    %v4521 = vsub.s32 %v4518, %v4520
    %v4522 = vrot.slane %v4514, %v4521
    %v4524 = vunpack.c.l.s4 1983009808
    %v4525 = vunpack.c.0.s8 %v4524
    %v4526 = vlaneseq
    %v4527 = vshrl.u32 %v4526, 7
    %v4528 = vsub.s32 %v4525, %v4527
    %v4529 = vrot.slane %v4515, %v4528
    %v4530 = vcombine.high %v4522, %v4522
    %v4531 = vcombine.high %v4529, %v4529
    %v4532 = vcombine.low %v4273, %v4315
    %v4534 = vunpack.c.l.s4 1983009808
    %v4535 = vunpack.c.0.s8 %v4534
    %v4536 = vlaneseq
    %v4537 = vshrl.u32 %v4536, 7
    %v4538 = vsub.s32 %v4535, %v4537
    %v4539 = vrot.slane %v4532, %v4538
    %v4540 = vcombine.high %v4539, %v4539
    %v4571 = vpack.c.bf16 %v4438, %v4348
    %v4572 = vpack.c.bf16 %v4439, %v4349
    %v4573 = vpack.c.bf16 %v4440, %v4350
    %v4574 = vpack.c.bf16 %v4441, %v4351
    %v4575 = vpack.c.bf16 %v4474, %v4384
    %v4576 = vpack.c.bf16 %v4475, %v4385
    %v4577 = vpack.c.bf16 %v4476, %v4386
    %v4578 = vpack.c.bf16 %v4477, %v4387
    %v4579 = vpack.c.bf16 %v4494, %v4404
    %v4580 = vpack.c.bf16 %v4495, %v4405
    %v4581 = vpack.c.bf16 %v4504, %v4504
    %v4582 = vpack.c.bf16 %v4512, %v4512
    %v4583 = vpack.c.bf16 %v4511, %v4511
    %v4584 = vpack.c.bf16 %v4513, %v4513
    %v4585 = vpack.c.bf16 %v4522, %v4522
    %v4586 = vpack.c.bf16 %v4530, %v4530
    %v4587 = vpack.c.bf16 %v4529, %v4529
    %v4588 = vpack.c.bf16 %v4531, %v4531
    %v4589 = vpack.c.bf16 %v4539, %v4539
    %v4590 = vpack.c.bf16 %v4540, %v4540
    %v4911 = vunpack.c.l.b16 %v3509
    %v4912 = vunpack.c.h.b16 %v3509
    %v4913 = vunpack.c.l.b16 %v3510
    %v4914 = vunpack.c.h.b16 %v3510
    %v4915 = vunpack.c.l.b16 %v3511
    %v4916 = vunpack.c.h.b16 %v3511
    %v4917 = vunpack.c.l.b16 %v3512
    %v4918 = vunpack.c.h.b16 %v3512
    %v4919 = vunpack.c.l.b16 %v3513
    %v4920 = vunpack.c.h.b16 %v3513
    %v4921 = vunpack.c.l.b16 %v3514
    %v4922 = vunpack.c.h.b16 %v3514
    %v4923 = vunpack.c.l.b16 %v3515
    %v4924 = vunpack.c.h.b16 %v3515
    %v4925 = vunpack.c.l.b16 %v3516
    %v4926 = vunpack.c.h.b16 %v3516
    %v4927 = vunpack.c.l.b16 %v3517
    %v4928 = vunpack.c.h.b16 %v3517
    %v4929 = vunpack.c.l.b16 %v3518
    %v4930 = vunpack.c.h.b16 %v3518
    %v4931 = vunpack.c.l.b16 %v3519
    %v4932 = vunpack.c.h.b16 %v3519
    %v4933 = vunpack.c.l.b16 %v3520
    %v4934 = vunpack.c.h.b16 %v3520
    %v4935 = vunpack.c.l.b16 %v3521
    %v4936 = vunpack.c.h.b16 %v3521
    %v4937 = vunpack.c.l.b16 %v3522
    %v4938 = vunpack.c.h.b16 %v3522
    %v4939 = vunpack.c.l.b16 %v3523
    %v4940 = vunpack.c.h.b16 %v3523
    %v4941 = vunpack.c.l.b16 %v3524
    %v4942 = vunpack.c.h.b16 %v3524
    %v4943 = vunpack.c.l.b16 %v3525
    %v4944 = vunpack.c.h.b16 %v3525
    %v4945 = vunpack.c.l.b16 %v3526
    %v4946 = vunpack.c.h.b16 %v3526
    %v4947 = vunpack.c.l.b16 %v3527
    %v4948 = vunpack.c.h.b16 %v3527
    %v4949 = vunpack.c.l.b16 %v3528
    %v4950 = vunpack.c.h.b16 %v3528
    %v4951 = vunpack.c.l.b16 %v3529
    %v4952 = vunpack.c.h.b16 %v3529
    %v4953 = vunpack.c.l.b16 %v3530
    %v4954 = vunpack.c.h.b16 %v3530
    %v4955 = vunpack.c.l.b16 %v3531
    %v4956 = vunpack.c.h.b16 %v3531
    %v4957 = vunpack.c.l.b16 %v3532
    %v4958 = vunpack.c.h.b16 %v3532
    %v4959 = vunpack.c.l.b16 %v3533
    %v4960 = vunpack.c.h.b16 %v3533
    %v4961 = vunpack.c.l.b16 %v3534
    %v4962 = vunpack.c.h.b16 %v3534
    %v4963 = vunpack.c.l.b16 %v3535
    %v4964 = vunpack.c.h.b16 %v3535
    %v4965 = vunpack.c.l.b16 %v3536
    %v4966 = vunpack.c.h.b16 %v3536
    %v4967 = vunpack.c.l.b16 %v3537
    %v4968 = vunpack.c.h.b16 %v3537
    %v4969 = vunpack.c.l.b16 %v3538
    %v4970 = vunpack.c.h.b16 %v3538
    %v4971 = vunpack.c.l.b16 %v3539
    %v4972 = vunpack.c.h.b16 %v3539
    %v4973 = vunpack.c.l.b16 %v3540
    %v4974 = vunpack.c.h.b16 %v3540
    %v4975 = vunpack.c.l.b16 %v3541
    %v4976 = vunpack.c.h.b16 %v3541
    %v4977 = vunpack.c.l.b16 %v3542
    %v4978 = vunpack.c.h.b16 %v3542
    %v4979 = vunpack.c.l.b16 %v3543
    %v4980 = vunpack.c.h.b16 %v3543
    %v4981 = vunpack.c.l.b16 %v3544
    %v4982 = vunpack.c.h.b16 %v3544
    %v4983 = vunpack.c.l.b16 %v3545
    %v4984 = vunpack.c.h.b16 %v3545
    %v4985 = vunpack.c.l.b16 %v3546
    %v4986 = vunpack.c.h.b16 %v3546
    %v4987 = vunpack.c.l.b16 %v3547
    %v4988 = vunpack.c.h.b16 %v3547
    %v4989 = vunpack.c.l.b16 %v3548
    %v4990 = vunpack.c.h.b16 %v3548
    %v4991 = vunpack.c.l.b16 %v3549
    %v4992 = vunpack.c.h.b16 %v3549
    %v4993 = vunpack.c.l.b16 %v3550
    %v4994 = vunpack.c.h.b16 %v3550
    %v4995 = vunpack.c.l.b16 %v3551
    %v4996 = vunpack.c.h.b16 %v3551
    %v4997 = vunpack.c.l.b16 %v3552
    %v4998 = vunpack.c.h.b16 %v3552
    %v4999 = vunpack.c.l.b16 %v3553
    %v5000 = vunpack.c.h.b16 %v3553
    %v5001 = vunpack.c.l.b16 %v3554
    %v5002 = vunpack.c.h.b16 %v3554
    %v5003 = vunpack.c.l.b16 %v3555
    %v5004 = vunpack.c.h.b16 %v3555
    %v5005 = vunpack.c.l.b16 %v3556
    %v5006 = vunpack.c.h.b16 %v3556
    %v5007 = vunpack.c.l.b16 %v3557
    %v5008 = vunpack.c.h.b16 %v3557
    %v5009 = vunpack.c.l.b16 %v3558
    %v5010 = vunpack.c.h.b16 %v3558
    %v5011 = vunpack.c.l.b16 %v3559
    %v5012 = vunpack.c.h.b16 %v3559
    %v5013 = vunpack.c.l.b16 %v3560
    %v5014 = vunpack.c.h.b16 %v3560
    %v5015 = vunpack.c.l.b16 %v3561
    %v5016 = vunpack.c.h.b16 %v3561
    %v5017 = vunpack.c.l.b16 %v3562
    %v5018 = vunpack.c.h.b16 %v3562
    %v5019 = vunpack.c.l.b16 %v3563
    %v5020 = vunpack.c.h.b16 %v3563
    %v5021 = vunpack.c.l.b16 %v3564
    %v5022 = vunpack.c.h.b16 %v3564
    %v5023 = vunpack.c.l.b16 %v3565
    %v5024 = vunpack.c.h.b16 %v3565
    %v5025 = vunpack.c.l.b16 %v3566
    %v5026 = vunpack.c.h.b16 %v3566
    %v5027 = vunpack.c.l.b16 %v3567
    %v5028 = vunpack.c.h.b16 %v3567
    %v5029 = vunpack.c.l.b16 %v3568
    %v5030 = vunpack.c.h.b16 %v3568
    %v5031 = vunpack.c.l.b16 %v3569
    %v5032 = vunpack.c.h.b16 %v3569
    %v5033 = vunpack.c.l.b16 %v3570
    %v5034 = vunpack.c.h.b16 %v3570
    %v5035 = vunpack.c.l.b16 %v3571
    %v5036 = vunpack.c.h.b16 %v3571
    %v5037 = vunpack.c.l.b16 %v3572
    %v5038 = vunpack.c.h.b16 %v3572
    %v5039 = vunpack.c.l.b16 %v3573
    %v5040 = vunpack.c.h.b16 %v3573
    %v5041 = vunpack.c.l.b16 %v3574
    %v5042 = vunpack.c.h.b16 %v3574
    %v5043 = vunpack.c.l.b16 %v3575
    %v5044 = vunpack.c.h.b16 %v3575
    %v5045 = vunpack.c.l.b16 %v3576
    %v5046 = vunpack.c.h.b16 %v3576
    %v5047 = vunpack.c.l.b16 %v3577
    %v5048 = vunpack.c.h.b16 %v3577
    %v5049 = vunpack.c.l.b16 %v3578
    %v5050 = vunpack.c.h.b16 %v3578
    %v5051 = vunpack.c.l.b16 %v3579
    %v5052 = vunpack.c.h.b16 %v3579
    %v5053 = vunpack.c.l.b16 %v3580
    %v5054 = vunpack.c.h.b16 %v3580
    %v5055 = vunpack.c.l.b16 %v3581
    %v5056 = vunpack.c.h.b16 %v3581
    %v5057 = vunpack.c.l.b16 %v3582
    %v5058 = vunpack.c.h.b16 %v3582
    %v5059 = vunpack.c.l.b16 %v3583
    %v5060 = vunpack.c.h.b16 %v3583
    %v5061 = vunpack.c.l.b16 %v3584
    %v5062 = vunpack.c.h.b16 %v3584
    %v5063 = vunpack.c.l.b16 %v3585
    %v5064 = vunpack.c.h.b16 %v3585
    %v5065 = vunpack.c.l.b16 %v3586
    %v5066 = vunpack.c.h.b16 %v3586
    %v5067 = vunpack.c.l.b16 %v3587
    %v5068 = vunpack.c.h.b16 %v3587
    %v5069 = vunpack.c.l.b16 %v3588
    %v5070 = vunpack.c.h.b16 %v3588
    %v5071 = vunpack.c.l.b16 %v3589
    %v5072 = vunpack.c.h.b16 %v3589
    %v5073 = vunpack.c.l.b16 %v3590
    %v5074 = vunpack.c.h.b16 %v3590
    %v5075 = vunpack.c.l.b16 %v3591
    %v5076 = vunpack.c.h.b16 %v3591
    %v5077 = vunpack.c.l.b16 %v3592
    %v5078 = vunpack.c.h.b16 %v3592
    %v5079 = vunpack.c.l.b16 %v3593
    %v5080 = vunpack.c.h.b16 %v3593
    %v5081 = vunpack.c.l.b16 %v3594
    %v5082 = vunpack.c.h.b16 %v3594
    %v5083 = vunpack.c.l.b16 %v3595
    %v5084 = vunpack.c.h.b16 %v3595
    %v5085 = vunpack.c.l.b16 %v3596
    %v5086 = vunpack.c.h.b16 %v3596
    %v5087 = vunpack.c.l.b16 %v3597
    %v5088 = vunpack.c.h.b16 %v3597
    %v5089 = vunpack.c.l.b16 %v3598
    %v5090 = vunpack.c.h.b16 %v3598
    %v5091 = vunpack.c.l.b16 %v3599
    %v5092 = vunpack.c.h.b16 %v3599
    %v5093 = vunpack.c.l.b16 %v3600
    %v5094 = vunpack.c.h.b16 %v3600
    %v5095 = vunpack.c.l.b16 %v3601
    %v5096 = vunpack.c.h.b16 %v3601
    %v5097 = vunpack.c.l.b16 %v3602
    %v5098 = vunpack.c.h.b16 %v3602
    %v5099 = vunpack.c.l.b16 %v3603
    %v5100 = vunpack.c.h.b16 %v3603
    %v5101 = vunpack.c.l.b16 %v3604
    %v5102 = vunpack.c.h.b16 %v3604
    %v5103 = vunpack.c.l.b16 %v3605
    %v5104 = vunpack.c.h.b16 %v3605
    %v5105 = vunpack.c.l.b16 %v3606
    %v5106 = vunpack.c.h.b16 %v3606
    %v5107 = vunpack.c.l.b16 %v3607
    %v5108 = vunpack.c.h.b16 %v3607
    %v5109 = vunpack.c.l.b16 %v3608
    %v5110 = vunpack.c.h.b16 %v3608
    %v5111 = vunpack.c.l.b16 %v3609
    %v5112 = vunpack.c.h.b16 %v3609
    %v5113 = vunpack.c.l.b16 %v3610
    %v5114 = vunpack.c.h.b16 %v3610
    %v5115 = vunpack.c.l.b16 %v3611
    %v5116 = vunpack.c.h.b16 %v3611
    %v5117 = vunpack.c.l.b16 %v3612
    %v5118 = vunpack.c.h.b16 %v3612
    %v5119 = vunpack.c.l.b16 %v3613
    %v5120 = vunpack.c.h.b16 %v3613
    %v5121 = vunpack.c.l.b16 %v3614
    %v5122 = vunpack.c.h.b16 %v3614
    %v5123 = vunpack.c.l.b16 %v3615
    %v5124 = vunpack.c.h.b16 %v3615
    %v5125 = vunpack.c.l.b16 %v3616
    %v5126 = vunpack.c.h.b16 %v3616
    %v5127 = vunpack.c.l.b16 %v3617
    %v5128 = vunpack.c.h.b16 %v3617
    %v5129 = vunpack.c.l.b16 %v3618
    %v5130 = vunpack.c.h.b16 %v3618
    %v5131 = vunpack.c.l.b16 %v3619
    %v5132 = vunpack.c.h.b16 %v3619
    %v5133 = vunpack.c.l.b16 %v3620
    %v5134 = vunpack.c.h.b16 %v3620
    %v5135 = vunpack.c.l.b16 %v3621
    %v5136 = vunpack.c.h.b16 %v3621
    %v5137 = vunpack.c.l.b16 %v3622
    %v5138 = vunpack.c.h.b16 %v3622
    %v5139 = vunpack.c.l.b16 %v3623
    %v5140 = vunpack.c.h.b16 %v3623
    %v5141 = vunpack.c.l.b16 %v3624
    %v5142 = vunpack.c.h.b16 %v3624
    %v5143 = vunpack.c.l.b16 %v3625
    %v5144 = vunpack.c.h.b16 %v3625
    %v5145 = vunpack.c.l.b16 %v3626
    %v5146 = vunpack.c.h.b16 %v3626
    %v5147 = vunpack.c.l.b16 %v3627
    %v5148 = vunpack.c.h.b16 %v3627
    %v5149 = vunpack.c.l.b16 %v3628
    %v5150 = vunpack.c.h.b16 %v3628
    %v5151 = vunpack.c.l.b16 %v3629
    %v5152 = vunpack.c.h.b16 %v3629
    %v5153 = vunpack.c.l.b16 %v3630
    %v5154 = vunpack.c.h.b16 %v3630
    %v5155 = vunpack.c.l.b16 %v3631
    %v5156 = vunpack.c.h.b16 %v3631
    %v5157 = vunpack.c.l.b16 %v3632
    %v5158 = vunpack.c.h.b16 %v3632
    %v5159 = vunpack.c.l.b16 %v3633
    %v5160 = vunpack.c.h.b16 %v3633
    %v5161 = vunpack.c.l.b16 %v3634
    %v5162 = vunpack.c.h.b16 %v3634
    %v5163 = vunpack.c.l.b16 %v3635
    %v5164 = vunpack.c.h.b16 %v3635
    %v5165 = vunpack.c.l.b16 %v3636
    %v5166 = vunpack.c.h.b16 %v3636
    %v5167 = vunpack.c.l.b16 %v3637
    %v5168 = vunpack.c.h.b16 %v3637
    %v5169 = vunpack.c.l.b16 %v3638
    %v5170 = vunpack.c.h.b16 %v3638
    %v5171 = vunpack.c.l.b16 %v3639
    %v5172 = vunpack.c.h.b16 %v3639
    %v5173 = vunpack.c.l.b16 %v3640
    %v5174 = vunpack.c.h.b16 %v3640
    %v5175 = vunpack.c.l.b16 %v3641
    %v5176 = vunpack.c.h.b16 %v3641
    %v5177 = vunpack.c.l.b16 %v3642
    %v5178 = vunpack.c.h.b16 %v3642
    %v5179 = vunpack.c.l.b16 %v3643
    %v5180 = vunpack.c.h.b16 %v3643
    %v5181 = vunpack.c.l.b16 %v3644
    %v5182 = vunpack.c.h.b16 %v3644
    %v5183 = vunpack.c.l.b16 %v3645
    %v5184 = vunpack.c.h.b16 %v3645
    %v5185 = vunpack.c.l.b16 %v3646
    %v5186 = vunpack.c.h.b16 %v3646
    %v5187 = vunpack.c.l.b16 %v3647
    %v5188 = vunpack.c.h.b16 %v3647
    %v5189 = vunpack.c.l.b16 %v3648
    %v5190 = vunpack.c.h.b16 %v3648
    %v5191 = vunpack.c.l.b16 %v3649
    %v5192 = vunpack.c.h.b16 %v3649
    %v5193 = vunpack.c.l.b16 %v3650
    %v5194 = vunpack.c.h.b16 %v3650
    %v5195 = vunpack.c.l.b16 %v3651
    %v5196 = vunpack.c.h.b16 %v3651
    %v5197 = vunpack.c.l.b16 %v3652
    %v5198 = vunpack.c.h.b16 %v3652
    %v5199 = vunpack.c.l.b16 %v3653
    %v5200 = vunpack.c.h.b16 %v3653
    %v5201 = vunpack.c.l.b16 %v3654
    %v5202 = vunpack.c.h.b16 %v3654
    %v5203 = vunpack.c.l.b16 %v3655
    %v5204 = vunpack.c.h.b16 %v3655
    %v5205 = vunpack.c.l.b16 %v3656
    %v5206 = vunpack.c.h.b16 %v3656
    %v5207 = vunpack.c.l.b16 %v3657
    %v5208 = vunpack.c.h.b16 %v3657
    %v5209 = vunpack.c.l.b16 %v3658
    %v5210 = vunpack.c.h.b16 %v3658
    %v5211 = vunpack.c.l.b16 %v3659
    %v5212 = vunpack.c.h.b16 %v3659
    %v5213 = vunpack.c.l.b16 %v3660
    %v5214 = vunpack.c.h.b16 %v3660
    %v5215 = vunpack.c.l.b16 %v3661
    %v5216 = vunpack.c.h.b16 %v3661
    %v5217 = vunpack.c.l.b16 %v3662
    %v5218 = vunpack.c.h.b16 %v3662
    %v5219 = vunpack.c.l.b16 %v3663
    %v5220 = vunpack.c.h.b16 %v3663
    %v5221 = vunpack.c.l.b16 %v3664
    %v5222 = vunpack.c.h.b16 %v3664
    %v5223 = vunpack.c.l.b16 %v3665
    %v5224 = vunpack.c.h.b16 %v3665
    %v5225 = vunpack.c.l.b16 %v3666
    %v5226 = vunpack.c.h.b16 %v3666
    %v5227 = vunpack.c.l.b16 %v3667
    %v5228 = vunpack.c.h.b16 %v3667
    %v5229 = vunpack.c.l.b16 %v3668
    %v5230 = vunpack.c.h.b16 %v3668
    %v5231 = vunpack.c.l.b16 %v3669
    %v5232 = vunpack.c.h.b16 %v3669
    %v5233 = vunpack.c.l.b16 %v3670
    %v5234 = vunpack.c.h.b16 %v3670
    %v5235 = vunpack.c.l.b16 %v3671
    %v5236 = vunpack.c.h.b16 %v3671
    %v5237 = vunpack.c.l.b16 %v3672
    %v5238 = vunpack.c.h.b16 %v3672
    %v5239 = vunpack.c.l.b16 %v3673
    %v5240 = vunpack.c.h.b16 %v3673
    %v5241 = vunpack.c.l.b16 %v3674
    %v5242 = vunpack.c.h.b16 %v3674
    %v5243 = vunpack.c.l.b16 %v3675
    %v5244 = vunpack.c.h.b16 %v3675
    %v5245 = vunpack.c.l.b16 %v3676
    %v5246 = vunpack.c.h.b16 %v3676
    %v5247 = vunpack.c.l.b16 %v3677
    %v5248 = vunpack.c.h.b16 %v3677
    %v5249 = vunpack.c.l.b16 %v3678
    %v5250 = vunpack.c.h.b16 %v3678
    %v5251 = vunpack.c.l.b16 %v3679
    %v5252 = vunpack.c.h.b16 %v3679
    %v5253 = vunpack.c.l.b16 %v3680
    %v5254 = vunpack.c.h.b16 %v3680
    %v5255 = vunpack.c.l.b16 %v3681
    %v5256 = vunpack.c.h.b16 %v3681
    %v5257 = vunpack.c.l.b16 %v3682
    %v5258 = vunpack.c.h.b16 %v3682
    %v5259 = vunpack.c.l.b16 %v3683
    %v5260 = vunpack.c.h.b16 %v3683
    %v5261 = vunpack.c.l.b16 %v3684
    %v5262 = vunpack.c.h.b16 %v3684
    %v5263 = vunpack.c.l.b16 %v3685
    %v5264 = vunpack.c.h.b16 %v3685
    %v5265 = vunpack.c.l.b16 %v3686
    %v5266 = vunpack.c.h.b16 %v3686
    %v5267 = vunpack.c.l.b16 %v3687
    %v5268 = vunpack.c.h.b16 %v3687
    %v5269 = vunpack.c.l.b16 %v3688
    %v5270 = vunpack.c.h.b16 %v3688
    %v5271 = vunpack.c.l.b16 %v3689
    %v5272 = vunpack.c.h.b16 %v3689
    %v5273 = vunpack.c.l.b16 %v3690
    %v5274 = vunpack.c.h.b16 %v3690
    %v5275 = vunpack.c.l.b16 %v3691
    %v5276 = vunpack.c.h.b16 %v3691
    %v5277 = vunpack.c.l.b16 %v3692
    %v5278 = vunpack.c.h.b16 %v3692
    %v5279 = vunpack.c.l.b16 %v3693
    %v5280 = vunpack.c.h.b16 %v3693
    %v5281 = vunpack.c.l.b16 %v3694
    %v5282 = vunpack.c.h.b16 %v3694
    %v5283 = vunpack.c.l.b16 %v3695
    %v5284 = vunpack.c.h.b16 %v3695
    %v5285 = vunpack.c.l.b16 %v3696
    %v5286 = vunpack.c.h.b16 %v3696
    %v5287 = vunpack.c.l.b16 %v3697
    %v5288 = vunpack.c.h.b16 %v3697
    %v5289 = vunpack.c.l.b16 %v3698
    %v5290 = vunpack.c.h.b16 %v3698
    %v5291 = vunpack.c.l.b16 %v3699
    %v5292 = vunpack.c.h.b16 %v3699
    %v5293 = vunpack.c.l.b16 %v3700
    %v5294 = vunpack.c.h.b16 %v3700
    %v5295 = vunpack.c.l.b16 %v3701
    %v5296 = vunpack.c.h.b16 %v3701
    %v5297 = vunpack.c.l.b16 %v3702
    %v5298 = vunpack.c.h.b16 %v3702
    %v5299 = vunpack.c.l.b16 %v3703
    %v5300 = vunpack.c.h.b16 %v3703
    %v5301 = vunpack.c.l.b16 %v3704
    %v5302 = vunpack.c.h.b16 %v3704
    %v5303 = vunpack.c.l.b16 %v3705
    %v5304 = vunpack.c.h.b16 %v3705
    %v5305 = vunpack.c.l.b16 %v3706
    %v5306 = vunpack.c.h.b16 %v3706
    %v5307 = vunpack.c.l.b16 %v3707
    %v5308 = vunpack.c.h.b16 %v3707
    %v5309 = vunpack.c.l.b16 %v3708
    %v5310 = vunpack.c.h.b16 %v3708
    %v5311 = vunpack.c.l.b16 %v3709
    %v5312 = vunpack.c.h.b16 %v3709
    %v5313 = vunpack.c.l.b16 %v3710
    %v5314 = vunpack.c.h.b16 %v3710
    %v5315 = vunpack.c.l.b16 %v3711
    %v5316 = vunpack.c.h.b16 %v3711
    %v5317 = vunpack.c.l.b16 %v3712
    %v5318 = vunpack.c.h.b16 %v3712
    %v5319 = vunpack.c.l.b16 %v3713
    %v5320 = vunpack.c.h.b16 %v3713
    %v5321 = vunpack.c.l.b16 %v3714
    %v5322 = vunpack.c.h.b16 %v3714
    %v5323 = vunpack.c.l.b16 %v3715
    %v5324 = vunpack.c.h.b16 %v3715
    %v5325 = vunpack.c.l.b16 %v3716
    %v5326 = vunpack.c.h.b16 %v3716
    %v5327 = vunpack.c.l.b16 %v3717
    %v5328 = vunpack.c.h.b16 %v3717
    %v5329 = vunpack.c.l.b16 %v3718
    %v5330 = vunpack.c.h.b16 %v3718
    %v5331 = vunpack.c.l.b16 %v3719
    %v5332 = vunpack.c.h.b16 %v3719
    %v5333 = vunpack.c.l.b16 %v3720
    %v5334 = vunpack.c.h.b16 %v3720
    %v5335 = vunpack.c.l.b16 %v3721
    %v5336 = vunpack.c.h.b16 %v3721
    %v5337 = vunpack.c.l.b16 %v3722
    %v5338 = vunpack.c.h.b16 %v3722
    %v5339 = vunpack.c.l.b16 %v3723
    %v5340 = vunpack.c.h.b16 %v3723
    %v5341 = vunpack.c.l.b16 %v3724
    %v5342 = vunpack.c.h.b16 %v3724
    %v5343 = vunpack.c.l.b16 %v3725
    %v5344 = vunpack.c.h.b16 %v3725
    %v5345 = vunpack.c.l.b16 %v3726
    %v5346 = vunpack.c.h.b16 %v3726
    %v5347 = vunpack.c.l.b16 %v3727
    %v5348 = vunpack.c.h.b16 %v3727
    %v5349 = vunpack.c.l.b16 %v3728
    %v5350 = vunpack.c.h.b16 %v3728
    %v5351 = vunpack.c.l.b16 %v3729
    %v5352 = vunpack.c.h.b16 %v3729
    %v5353 = vunpack.c.l.b16 %v3730
    %v5354 = vunpack.c.h.b16 %v3730
    %v5355 = vunpack.c.l.b16 %v3731
    %v5356 = vunpack.c.h.b16 %v3731
    %v5357 = vunpack.c.l.b16 %v3732
    %v5358 = vunpack.c.h.b16 %v3732
    %v5359 = vunpack.c.l.b16 %v3733
    %v5360 = vunpack.c.h.b16 %v3733
    %v5361 = vunpack.c.l.b16 %v3734
    %v5362 = vunpack.c.h.b16 %v3734
    %v5363 = vunpack.c.l.b16 %v3735
    %v5364 = vunpack.c.h.b16 %v3735
    %v5365 = vunpack.c.l.b16 %v3736
    %v5366 = vunpack.c.h.b16 %v3736
    %v5367 = vunpack.c.l.b16 %v3737
    %v5368 = vunpack.c.h.b16 %v3737
    %v5369 = vunpack.c.l.b16 %v3738
    %v5370 = vunpack.c.h.b16 %v3738
    %v5371 = vunpack.c.l.b16 %v3739
    %v5372 = vunpack.c.h.b16 %v3739
    %v5373 = vunpack.c.l.b16 %v3740
    %v5374 = vunpack.c.h.b16 %v3740
    %v5375 = vunpack.c.l.b16 %v3741
    %v5376 = vunpack.c.h.b16 %v3741
    %v5377 = vunpack.c.l.b16 %v3742
    %v5378 = vunpack.c.h.b16 %v3742
    %v5379 = vunpack.c.l.b16 %v3743
    %v5380 = vunpack.c.h.b16 %v3743
    %v5381 = vunpack.c.l.b16 %v3744
    %v5382 = vunpack.c.h.b16 %v3744
    %v5383 = vunpack.c.l.b16 %v3745
    %v5384 = vunpack.c.h.b16 %v3745
    %v5385 = vunpack.c.l.b16 %v3746
    %v5386 = vunpack.c.h.b16 %v3746
    %v5387 = vunpack.c.l.b16 %v3747
    %v5388 = vunpack.c.h.b16 %v3747
    %v5389 = vunpack.c.l.b16 %v3748
    %v5390 = vunpack.c.h.b16 %v3748
    %v5391 = vunpack.c.l.b16 %v3749
    %v5392 = vunpack.c.h.b16 %v3749
    %v5393 = vunpack.c.l.b16 %v3750
    %v5394 = vunpack.c.h.b16 %v3750
    %v5395 = vunpack.c.l.b16 %v3751
    %v5396 = vunpack.c.h.b16 %v3751
    %v5397 = vunpack.c.l.b16 %v3752
    %v5398 = vunpack.c.h.b16 %v3752
    %v5399 = vunpack.c.l.b16 %v3753
    %v5400 = vunpack.c.h.b16 %v3753
    %v5401 = vunpack.c.l.b16 %v3754
    %v5402 = vunpack.c.h.b16 %v3754
    %v5403 = vunpack.c.l.b16 %v3755
    %v5404 = vunpack.c.h.b16 %v3755
    %v5405 = vunpack.c.l.b16 %v3756
    %v5406 = vunpack.c.h.b16 %v3756
    %v5407 = vunpack.c.l.b16 %v3757
    %v5408 = vunpack.c.h.b16 %v3757
    %v5409 = vunpack.c.l.b16 %v3758
    %v5410 = vunpack.c.h.b16 %v3758
    %v5411 = vunpack.c.l.b16 %v3759
    %v5412 = vunpack.c.h.b16 %v3759
    %v5413 = vunpack.c.l.b16 %v3760
    %v5414 = vunpack.c.h.b16 %v3760
    %v5415 = vunpack.c.l.b16 %v3761
    %v5416 = vunpack.c.h.b16 %v3761
    %v5417 = vunpack.c.l.b16 %v3762
    %v5418 = vunpack.c.h.b16 %v3762
    %v5419 = vunpack.c.l.b16 %v3763
    %v5420 = vunpack.c.h.b16 %v3763
    %v5421 = vunpack.c.l.b16 %v3764
    %v5422 = vunpack.c.h.b16 %v3764
    %v5423 = vunpack.c.l.b16 %v3765
    %v5424 = vunpack.c.h.b16 %v3765
    %v5425 = vunpack.c.l.b16 %v3766
    %v5426 = vunpack.c.h.b16 %v3766
    %v5427 = vunpack.c.l.b16 %v3767
    %v5428 = vunpack.c.h.b16 %v3767
    %v5429 = vunpack.c.l.b16 %v3768
    %v5430 = vunpack.c.h.b16 %v3768
    %v5431 = vunpack.c.l.b16 %v3769
    %v5432 = vunpack.c.h.b16 %v3769
    %v5433 = vunpack.c.l.b16 %v3770
    %v5434 = vunpack.c.h.b16 %v3770
    %v5435 = vunpack.c.l.b16 %v3771
    %v5436 = vunpack.c.h.b16 %v3771
    %v5437 = vunpack.c.l.b16 %v3772
    %v5438 = vunpack.c.h.b16 %v3772
    %v5439 = vunpack.c.l.b16 %v3773
    %v5440 = vunpack.c.h.b16 %v3773
    %v5441 = vunpack.c.l.b16 %v3774
    %v5442 = vunpack.c.h.b16 %v3774
    %v5443 = vunpack.c.l.b16 %v3775
    %v5444 = vunpack.c.h.b16 %v3775
    %v5445 = vunpack.c.l.b16 %v3776
    %v5446 = vunpack.c.h.b16 %v3776
    %v5447 = vunpack.c.l.b16 %v3777
    %v5448 = vunpack.c.h.b16 %v3777
    %v5449 = vunpack.c.l.b16 %v3778
    %v5450 = vunpack.c.h.b16 %v3778
    %v5451 = vunpack.c.l.b16 %v3779
    %v5452 = vunpack.c.h.b16 %v3779
    %v5453 = vunpack.c.l.b16 %v3780
    %v5454 = vunpack.c.h.b16 %v3780
    %v5455 = vunpack.c.l.b16 %v3781
    %v5456 = vunpack.c.h.b16 %v3781
    %v5457 = vunpack.c.l.b16 %v3782
    %v5458 = vunpack.c.h.b16 %v3782
    %v5459 = vunpack.c.l.b16 %v3783
    %v5460 = vunpack.c.h.b16 %v3783
    %v5461 = vunpack.c.l.b16 %v3784
    %v5462 = vunpack.c.h.b16 %v3784
    %v5463 = vunpack.c.l.b16 %v3785
    %v5464 = vunpack.c.h.b16 %v3785
    %v5465 = vunpack.c.l.b16 %v3786
    %v5466 = vunpack.c.h.b16 %v3786
    %v5467 = vunpack.c.l.b16 %v3787
    %v5468 = vunpack.c.h.b16 %v3787
    %v5469 = vunpack.c.l.b16 %v3788
    %v5470 = vunpack.c.h.b16 %v3788
    %v5471 = vunpack.c.l.b16 %v3789
    %v5472 = vunpack.c.h.b16 %v3789
    %v5473 = vunpack.c.l.b16 %v3790
    %v5474 = vunpack.c.h.b16 %v3790
    %v5475 = vunpack.c.l.b16 %v3791
    %v5476 = vunpack.c.h.b16 %v3791
    %v5477 = vunpack.c.l.b16 %v3792
    %v5478 = vunpack.c.h.b16 %v3792
    %v5479 = vunpack.c.l.b16 %v3793
    %v5480 = vunpack.c.h.b16 %v3793
    %v5481 = vunpack.c.l.b16 %v3794
    %v5482 = vunpack.c.h.b16 %v3794
    %v5483 = vunpack.c.l.b16 %v3795
    %v5484 = vunpack.c.h.b16 %v3795
    %v5485 = vunpack.c.l.b16 %v3796
    %v5486 = vunpack.c.h.b16 %v3796
    %v5487 = vunpack.c.l.b16 %v3797
    %v5488 = vunpack.c.h.b16 %v3797
    %v5489 = vunpack.c.l.b16 %v3798
    %v5490 = vunpack.c.h.b16 %v3798
    %v5491 = vunpack.c.l.b16 %v3799
    %v5492 = vunpack.c.h.b16 %v3799
    %v5493 = vunpack.c.l.b16 %v3800
    %v5494 = vunpack.c.h.b16 %v3800
    %v5495 = vunpack.c.l.b16 %v3801
    %v5496 = vunpack.c.h.b16 %v3801
    %v5497 = vunpack.c.l.b16 %v3802
    %v5498 = vunpack.c.h.b16 %v3802
    %v5499 = vunpack.c.l.b16 %v3803
    %v5500 = vunpack.c.h.b16 %v3803
    %v5501 = vunpack.c.l.b16 %v3804
    %v5502 = vunpack.c.h.b16 %v3804
    %v5503 = vunpack.c.l.b16 %v3805
    %v5504 = vunpack.c.h.b16 %v3805
    %v5505 = vunpack.c.l.b16 %v3806
    %v5506 = vunpack.c.h.b16 %v3806
    %v5507 = vunpack.c.l.b16 %v3807
    %v5508 = vunpack.c.h.b16 %v3807
    %v5509 = vunpack.c.l.b16 %v3808
    %v5510 = vunpack.c.h.b16 %v3808
    %v5511 = vunpack.c.l.b16 %v3809
    %v5512 = vunpack.c.h.b16 %v3809
    %v5513 = vunpack.c.l.b16 %v3810
    %v5514 = vunpack.c.h.b16 %v3810
    %v5515 = vunpack.c.l.b16 %v3811
    %v5516 = vunpack.c.h.b16 %v3811
    %v5517 = vunpack.c.l.b16 %v3812
    %v5518 = vunpack.c.h.b16 %v3812
    %v5519 = vunpack.c.l.b16 %v3813
    %v5520 = vunpack.c.h.b16 %v3813
    %v5521 = vunpack.c.l.b16 %v3814
    %v5522 = vunpack.c.h.b16 %v3814
    %v5523 = vunpack.c.l.b16 %v3815
    %v5524 = vunpack.c.h.b16 %v3815
    %v5525 = vunpack.c.l.b16 %v3816
    %v5526 = vunpack.c.h.b16 %v3816
    %v5527 = vunpack.c.l.b16 %v3817
    %v5528 = vunpack.c.h.b16 %v3817
    %v5529 = vunpack.c.l.b16 %v3818
    %v5530 = vunpack.c.h.b16 %v3818
    %v5531 = vunpack.c.l.b16 %v3819
    %v5532 = vunpack.c.h.b16 %v3819
    %v5533 = vunpack.c.l.b16 %v3820
    %v5534 = vunpack.c.h.b16 %v3820
    %v5535 = vunpack.c.l.b16 %v3821
    %v5536 = vunpack.c.h.b16 %v3821
    %v5537 = vunpack.c.l.b16 %v3822
    %v5538 = vunpack.c.h.b16 %v3822
    %v5539 = vunpack.c.l.b16 %v3823
    %v5540 = vunpack.c.h.b16 %v3823
    %v5541 = vunpack.c.l.b16 %v3824
    %v5542 = vunpack.c.h.b16 %v3824
    %v5543 = vunpack.c.l.b16 %v3825
    %v5544 = vunpack.c.h.b16 %v3825
    %v5545 = vunpack.c.l.b16 %v3826
    %v5546 = vunpack.c.h.b16 %v3826
    %v5547 = vunpack.c.l.b16 %v3827
    %v5548 = vunpack.c.h.b16 %v3827
    %v5549 = vunpack.c.l.b16 %v3828
    %v5550 = vunpack.c.h.b16 %v3828
    %v5551 = vpack.c.b16 %v4915, %v4911
    %v5552 = vpack.c.b16 %v4916, %v4912
    %v5553 = vpack.c.b16 %v4917, %v4913
    %v5554 = vpack.c.b16 %v4918, %v4914
    %v5555 = vpack.c.b16 %v4923, %v4919
    %v5556 = vpack.c.b16 %v4924, %v4920
    %v5557 = vpack.c.b16 %v4925, %v4921
    %v5558 = vpack.c.b16 %v4926, %v4922
    %v5559 = vpack.c.b16 %v4931, %v4927
    %v5560 = vpack.c.b16 %v4932, %v4928
    %v5561 = vpack.c.b16 %v4933, %v4929
    %v5562 = vpack.c.b16 %v4934, %v4930
    %v5563 = vpack.c.b16 %v4939, %v4935
    %v5564 = vpack.c.b16 %v4940, %v4936
    %v5565 = vpack.c.b16 %v4941, %v4937
    %v5566 = vpack.c.b16 %v4942, %v4938
    %v5567 = vpack.c.b16 %v4947, %v4943
    %v5568 = vpack.c.b16 %v4948, %v4944
    %v5569 = vpack.c.b16 %v4949, %v4945
    %v5570 = vpack.c.b16 %v4950, %v4946
    %v5571 = vpack.c.b16 %v4955, %v4951
    %v5572 = vpack.c.b16 %v4956, %v4952
    %v5573 = vpack.c.b16 %v4957, %v4953
    %v5574 = vpack.c.b16 %v4958, %v4954
    %v5575 = vpack.c.b16 %v4963, %v4959
    %v5576 = vpack.c.b16 %v4964, %v4960
    %v5577 = vpack.c.b16 %v4965, %v4961
    %v5578 = vpack.c.b16 %v4966, %v4962
    %v5579 = vpack.c.b16 %v4971, %v4967
    %v5580 = vpack.c.b16 %v4972, %v4968
    %v5581 = vpack.c.b16 %v4973, %v4969
    %v5582 = vpack.c.b16 %v4974, %v4970
    %v5583 = vpack.c.b16 %v4979, %v4975
    %v5584 = vpack.c.b16 %v4980, %v4976
    %v5585 = vpack.c.b16 %v4981, %v4977
    %v5586 = vpack.c.b16 %v4982, %v4978
    %v5587 = vpack.c.b16 %v4987, %v4983
    %v5588 = vpack.c.b16 %v4988, %v4984
    %v5589 = vpack.c.b16 %v4989, %v4985
    %v5590 = vpack.c.b16 %v4990, %v4986
    %v5591 = vpack.c.b16 %v4995, %v4991
    %v5592 = vpack.c.b16 %v4996, %v4992
    %v5593 = vpack.c.b16 %v4997, %v4993
    %v5594 = vpack.c.b16 %v4998, %v4994
    %v5595 = vpack.c.b16 %v5003, %v4999
    %v5596 = vpack.c.b16 %v5004, %v5000
    %v5597 = vpack.c.b16 %v5005, %v5001
    %v5598 = vpack.c.b16 %v5006, %v5002
    %v5599 = vpack.c.b16 %v5011, %v5007
    %v5600 = vpack.c.b16 %v5012, %v5008
    %v5601 = vpack.c.b16 %v5013, %v5009
    %v5602 = vpack.c.b16 %v5014, %v5010
    %v5603 = vpack.c.b16 %v5019, %v5015
    %v5604 = vpack.c.b16 %v5020, %v5016
    %v5605 = vpack.c.b16 %v5021, %v5017
    %v5606 = vpack.c.b16 %v5022, %v5018
    %v5607 = vpack.c.b16 %v5027, %v5023
    %v5608 = vpack.c.b16 %v5028, %v5024
    %v5609 = vpack.c.b16 %v5029, %v5025
    %v5610 = vpack.c.b16 %v5030, %v5026
    %v5611 = vpack.c.b16 %v5035, %v5031
    %v5612 = vpack.c.b16 %v5036, %v5032
    %v5613 = vpack.c.b16 %v5037, %v5033
    %v5614 = vpack.c.b16 %v5038, %v5034
    %v5615 = vpack.c.b16 %v5043, %v5039
    %v5616 = vpack.c.b16 %v5044, %v5040
    %v5617 = vpack.c.b16 %v5045, %v5041
    %v5618 = vpack.c.b16 %v5046, %v5042
    %v5619 = vpack.c.b16 %v5051, %v5047
    %v5620 = vpack.c.b16 %v5052, %v5048
    %v5621 = vpack.c.b16 %v5053, %v5049
    %v5622 = vpack.c.b16 %v5054, %v5050
    %v5623 = vpack.c.b16 %v5059, %v5055
    %v5624 = vpack.c.b16 %v5060, %v5056
    %v5625 = vpack.c.b16 %v5061, %v5057
    %v5626 = vpack.c.b16 %v5062, %v5058
    %v5627 = vpack.c.b16 %v5067, %v5063
    %v5628 = vpack.c.b16 %v5068, %v5064
    %v5629 = vpack.c.b16 %v5069, %v5065
    %v5630 = vpack.c.b16 %v5070, %v5066
    %v5631 = vpack.c.b16 %v5075, %v5071
    %v5632 = vpack.c.b16 %v5076, %v5072
    %v5633 = vpack.c.b16 %v5077, %v5073
    %v5634 = vpack.c.b16 %v5078, %v5074
    %v5635 = vpack.c.b16 %v5083, %v5079
    %v5636 = vpack.c.b16 %v5084, %v5080
    %v5637 = vpack.c.b16 %v5085, %v5081
    %v5638 = vpack.c.b16 %v5086, %v5082
    %v5639 = vpack.c.b16 %v5091, %v5087
    %v5640 = vpack.c.b16 %v5092, %v5088
    %v5641 = vpack.c.b16 %v5093, %v5089
    %v5642 = vpack.c.b16 %v5094, %v5090
    %v5643 = vpack.c.b16 %v5099, %v5095
    %v5644 = vpack.c.b16 %v5100, %v5096
    %v5645 = vpack.c.b16 %v5101, %v5097
    %v5646 = vpack.c.b16 %v5102, %v5098
    %v5647 = vpack.c.b16 %v5107, %v5103
    %v5648 = vpack.c.b16 %v5108, %v5104
    %v5649 = vpack.c.b16 %v5109, %v5105
    %v5650 = vpack.c.b16 %v5110, %v5106
    %v5651 = vpack.c.b16 %v5115, %v5111
    %v5652 = vpack.c.b16 %v5116, %v5112
    %v5653 = vpack.c.b16 %v5117, %v5113
    %v5654 = vpack.c.b16 %v5118, %v5114
    %v5655 = vpack.c.b16 %v5123, %v5119
    %v5656 = vpack.c.b16 %v5124, %v5120
    %v5657 = vpack.c.b16 %v5125, %v5121
    %v5658 = vpack.c.b16 %v5126, %v5122
    %v5659 = vpack.c.b16 %v5131, %v5127
    %v5660 = vpack.c.b16 %v5132, %v5128
    %v5661 = vpack.c.b16 %v5133, %v5129
    %v5662 = vpack.c.b16 %v5134, %v5130
    %v5663 = vpack.c.b16 %v5139, %v5135
    %v5664 = vpack.c.b16 %v5140, %v5136
    %v5665 = vpack.c.b16 %v5141, %v5137
    %v5666 = vpack.c.b16 %v5142, %v5138
    %v5667 = vpack.c.b16 %v5147, %v5143
    %v5668 = vpack.c.b16 %v5148, %v5144
    %v5669 = vpack.c.b16 %v5149, %v5145
    %v5670 = vpack.c.b16 %v5150, %v5146
    %v5671 = vpack.c.b16 %v5155, %v5151
    %v5672 = vpack.c.b16 %v5156, %v5152
    %v5673 = vpack.c.b16 %v5157, %v5153
    %v5674 = vpack.c.b16 %v5158, %v5154
    %v5675 = vpack.c.b16 %v5163, %v5159
    %v5676 = vpack.c.b16 %v5164, %v5160
    %v5677 = vpack.c.b16 %v5165, %v5161
    %v5678 = vpack.c.b16 %v5166, %v5162
    %v5679 = vpack.c.b16 %v5171, %v5167
    %v5680 = vpack.c.b16 %v5172, %v5168
    %v5681 = vpack.c.b16 %v5173, %v5169
    %v5682 = vpack.c.b16 %v5174, %v5170
    %v5683 = vpack.c.b16 %v5179, %v5175
    %v5684 = vpack.c.b16 %v5180, %v5176
    %v5685 = vpack.c.b16 %v5181, %v5177
    %v5686 = vpack.c.b16 %v5182, %v5178
    %v5687 = vpack.c.b16 %v5187, %v5183
    %v5688 = vpack.c.b16 %v5188, %v5184
    %v5689 = vpack.c.b16 %v5189, %v5185
    %v5690 = vpack.c.b16 %v5190, %v5186
    %v5691 = vpack.c.b16 %v5195, %v5191
    %v5692 = vpack.c.b16 %v5196, %v5192
    %v5693 = vpack.c.b16 %v5197, %v5193
    %v5694 = vpack.c.b16 %v5198, %v5194
    %v5695 = vpack.c.b16 %v5203, %v5199
    %v5696 = vpack.c.b16 %v5204, %v5200
    %v5697 = vpack.c.b16 %v5205, %v5201
    %v5698 = vpack.c.b16 %v5206, %v5202
    %v5699 = vpack.c.b16 %v5211, %v5207
    %v5700 = vpack.c.b16 %v5212, %v5208
    %v5701 = vpack.c.b16 %v5213, %v5209
    %v5702 = vpack.c.b16 %v5214, %v5210
    %v5703 = vpack.c.b16 %v5219, %v5215
    %v5704 = vpack.c.b16 %v5220, %v5216
    %v5705 = vpack.c.b16 %v5221, %v5217
    %v5706 = vpack.c.b16 %v5222, %v5218
    %v5707 = vpack.c.b16 %v5227, %v5223
    %v5708 = vpack.c.b16 %v5228, %v5224
    %v5709 = vpack.c.b16 %v5229, %v5225
    %v5710 = vpack.c.b16 %v5230, %v5226
    %v5711 = vpack.c.b16 %v5235, %v5231
    %v5712 = vpack.c.b16 %v5236, %v5232
    %v5713 = vpack.c.b16 %v5237, %v5233
    %v5714 = vpack.c.b16 %v5238, %v5234
    %v5715 = vpack.c.b16 %v5243, %v5239
    %v5716 = vpack.c.b16 %v5244, %v5240
    %v5717 = vpack.c.b16 %v5245, %v5241
    %v5718 = vpack.c.b16 %v5246, %v5242
    %v5719 = vpack.c.b16 %v5251, %v5247
    %v5720 = vpack.c.b16 %v5252, %v5248
    %v5721 = vpack.c.b16 %v5253, %v5249
    %v5722 = vpack.c.b16 %v5254, %v5250
    %v5723 = vpack.c.b16 %v5259, %v5255
    %v5724 = vpack.c.b16 %v5260, %v5256
    %v5725 = vpack.c.b16 %v5261, %v5257
    %v5726 = vpack.c.b16 %v5262, %v5258
    %v5727 = vpack.c.b16 %v5267, %v5263
    %v5728 = vpack.c.b16 %v5268, %v5264
    %v5729 = vpack.c.b16 %v5269, %v5265
    %v5730 = vpack.c.b16 %v5270, %v5266
    %v5731 = vpack.c.b16 %v5275, %v5271
    %v5732 = vpack.c.b16 %v5276, %v5272
    %v5733 = vpack.c.b16 %v5277, %v5273
    %v5734 = vpack.c.b16 %v5278, %v5274
    %v5735 = vpack.c.b16 %v5283, %v5279
    %v5736 = vpack.c.b16 %v5284, %v5280
    %v5737 = vpack.c.b16 %v5285, %v5281
    %v5738 = vpack.c.b16 %v5286, %v5282
    %v5739 = vpack.c.b16 %v5291, %v5287
    %v5740 = vpack.c.b16 %v5292, %v5288
    %v5741 = vpack.c.b16 %v5293, %v5289
    %v5742 = vpack.c.b16 %v5294, %v5290
    %v5743 = vpack.c.b16 %v5299, %v5295
    %v5744 = vpack.c.b16 %v5300, %v5296
    %v5745 = vpack.c.b16 %v5301, %v5297
    %v5746 = vpack.c.b16 %v5302, %v5298
    %v5747 = vpack.c.b16 %v5307, %v5303
    %v5748 = vpack.c.b16 %v5308, %v5304
    %v5749 = vpack.c.b16 %v5309, %v5305
    %v5750 = vpack.c.b16 %v5310, %v5306
    %v5751 = vpack.c.b16 %v5315, %v5311
    %v5752 = vpack.c.b16 %v5316, %v5312
    %v5753 = vpack.c.b16 %v5317, %v5313
    %v5754 = vpack.c.b16 %v5318, %v5314
    %v5755 = vpack.c.b16 %v5323, %v5319
    %v5756 = vpack.c.b16 %v5324, %v5320
    %v5757 = vpack.c.b16 %v5325, %v5321
    %v5758 = vpack.c.b16 %v5326, %v5322
    %v5759 = vpack.c.b16 %v5331, %v5327
    %v5760 = vpack.c.b16 %v5332, %v5328
    %v5761 = vpack.c.b16 %v5333, %v5329
    %v5762 = vpack.c.b16 %v5334, %v5330
    %v5763 = vpack.c.b16 %v5339, %v5335
    %v5764 = vpack.c.b16 %v5340, %v5336
    %v5765 = vpack.c.b16 %v5341, %v5337
    %v5766 = vpack.c.b16 %v5342, %v5338
    %v5767 = vpack.c.b16 %v5347, %v5343
    %v5768 = vpack.c.b16 %v5348, %v5344
    %v5769 = vpack.c.b16 %v5349, %v5345
    %v5770 = vpack.c.b16 %v5350, %v5346
    %v5771 = vpack.c.b16 %v5355, %v5351
    %v5772 = vpack.c.b16 %v5356, %v5352
    %v5773 = vpack.c.b16 %v5357, %v5353
    %v5774 = vpack.c.b16 %v5358, %v5354
    %v5775 = vpack.c.b16 %v5363, %v5359
    %v5776 = vpack.c.b16 %v5364, %v5360
    %v5777 = vpack.c.b16 %v5365, %v5361
    %v5778 = vpack.c.b16 %v5366, %v5362
    %v5779 = vpack.c.b16 %v5371, %v5367
    %v5780 = vpack.c.b16 %v5372, %v5368
    %v5781 = vpack.c.b16 %v5373, %v5369
    %v5782 = vpack.c.b16 %v5374, %v5370
    %v5783 = vpack.c.b16 %v5379, %v5375
    %v5784 = vpack.c.b16 %v5380, %v5376
    %v5785 = vpack.c.b16 %v5381, %v5377
    %v5786 = vpack.c.b16 %v5382, %v5378
    %v5787 = vpack.c.b16 %v5387, %v5383
    %v5788 = vpack.c.b16 %v5388, %v5384
    %v5789 = vpack.c.b16 %v5389, %v5385
    %v5790 = vpack.c.b16 %v5390, %v5386
    %v5791 = vpack.c.b16 %v5395, %v5391
    %v5792 = vpack.c.b16 %v5396, %v5392
    %v5793 = vpack.c.b16 %v5397, %v5393
    %v5794 = vpack.c.b16 %v5398, %v5394
    %v5795 = vpack.c.b16 %v5403, %v5399
    %v5796 = vpack.c.b16 %v5404, %v5400
    %v5797 = vpack.c.b16 %v5405, %v5401
    %v5798 = vpack.c.b16 %v5406, %v5402
    %v5799 = vpack.c.b16 %v5411, %v5407
    %v5800 = vpack.c.b16 %v5412, %v5408
    %v5801 = vpack.c.b16 %v5413, %v5409
    %v5802 = vpack.c.b16 %v5414, %v5410
    %v5803 = vpack.c.b16 %v5419, %v5415
    %v5804 = vpack.c.b16 %v5420, %v5416
    %v5805 = vpack.c.b16 %v5421, %v5417
    %v5806 = vpack.c.b16 %v5422, %v5418
    %v5807 = vpack.c.b16 %v5427, %v5423
    %v5808 = vpack.c.b16 %v5428, %v5424
    %v5809 = vpack.c.b16 %v5429, %v5425
    %v5810 = vpack.c.b16 %v5430, %v5426
    %v5811 = vpack.c.b16 %v5435, %v5431
    %v5812 = vpack.c.b16 %v5436, %v5432
    %v5813 = vpack.c.b16 %v5437, %v5433
    %v5814 = vpack.c.b16 %v5438, %v5434
    %v5815 = vpack.c.b16 %v5443, %v5439
    %v5816 = vpack.c.b16 %v5444, %v5440
    %v5817 = vpack.c.b16 %v5445, %v5441
    %v5818 = vpack.c.b16 %v5446, %v5442
    %v5819 = vpack.c.b16 %v5451, %v5447
    %v5820 = vpack.c.b16 %v5452, %v5448
    %v5821 = vpack.c.b16 %v5453, %v5449
    %v5822 = vpack.c.b16 %v5454, %v5450
    %v5823 = vpack.c.b16 %v5459, %v5455
    %v5824 = vpack.c.b16 %v5460, %v5456
    %v5825 = vpack.c.b16 %v5461, %v5457
    %v5826 = vpack.c.b16 %v5462, %v5458
    %v5827 = vpack.c.b16 %v5467, %v5463
    %v5828 = vpack.c.b16 %v5468, %v5464
    %v5829 = vpack.c.b16 %v5469, %v5465
    %v5830 = vpack.c.b16 %v5470, %v5466
    %v5831 = vpack.c.b16 %v5475, %v5471
    %v5832 = vpack.c.b16 %v5476, %v5472
    %v5833 = vpack.c.b16 %v5477, %v5473
    %v5834 = vpack.c.b16 %v5478, %v5474
    %v5835 = vpack.c.b16 %v5483, %v5479
    %v5836 = vpack.c.b16 %v5484, %v5480
    %v5837 = vpack.c.b16 %v5485, %v5481
    %v5838 = vpack.c.b16 %v5486, %v5482
    %v5839 = vpack.c.b16 %v5491, %v5487
    %v5840 = vpack.c.b16 %v5492, %v5488
    %v5841 = vpack.c.b16 %v5493, %v5489
    %v5842 = vpack.c.b16 %v5494, %v5490
    %v5843 = vpack.c.b16 %v5499, %v5495
    %v5844 = vpack.c.b16 %v5500, %v5496
    %v5845 = vpack.c.b16 %v5501, %v5497
    %v5846 = vpack.c.b16 %v5502, %v5498
    %v5847 = vpack.c.b16 %v5507, %v5503
    %v5848 = vpack.c.b16 %v5508, %v5504
    %v5849 = vpack.c.b16 %v5509, %v5505
    %v5850 = vpack.c.b16 %v5510, %v5506
    %v5851 = vpack.c.b16 %v5515, %v5511
    %v5852 = vpack.c.b16 %v5516, %v5512
    %v5853 = vpack.c.b16 %v5517, %v5513
    %v5854 = vpack.c.b16 %v5518, %v5514
    %v5855 = vpack.c.b16 %v5523, %v5519
    %v5856 = vpack.c.b16 %v5524, %v5520
    %v5857 = vpack.c.b16 %v5525, %v5521
    %v5858 = vpack.c.b16 %v5526, %v5522
    %v5859 = vpack.c.b16 %v5531, %v5527
    %v5860 = vpack.c.b16 %v5532, %v5528
    %v5861 = vpack.c.b16 %v5533, %v5529
    %v5862 = vpack.c.b16 %v5534, %v5530
    %v5863 = vpack.c.b16 %v5539, %v5535
    %v5864 = vpack.c.b16 %v5540, %v5536
    %v5865 = vpack.c.b16 %v5541, %v5537
    %v5866 = vpack.c.b16 %v5542, %v5538
    %v5867 = vpack.c.b16 %v5547, %v5543
    %v5868 = vpack.c.b16 %v5548, %v5544
    %v5869 = vpack.c.b16 %v5549, %v5545
    %v5870 = vpack.c.b16 %v5550, %v5546
    %6191 = vmatprep.subr.bf16.mxu0 %v5580
    %6192 = vmatpush1.bf16.msra.mxu0 %v5579
    %6193 = vmatprep.subr.bf16.mxu0 %v5576
    %6194 = vmatpush1.bf16.msra.mxu0 %v5575
    %6195 = vmatprep.subr.bf16.mxu0 %v5572
    %6196 = vmatpush1.bf16.msra.mxu0 %v5571
    %6197 = vmatprep.subr.bf16.mxu0 %v5568
    %6198 = vmatpush1.bf16.msra.mxu0 %v5567
    %6199 = vmatprep.subr.bf16.mxu0 %v5564
    %6200 = vmatpush1.bf16.msra.mxu0 %v5563
    %6201 = vmatprep.subr.bf16.mxu0 %v5560
    %6202 = vmatpush1.bf16.msra.mxu0 %v5559
    %6203 = vmatprep.subr.bf16.mxu0 %v5556
    %6204 = vmatpush1.bf16.msra.mxu0 %v5555
    %6205 = vmatprep.subr.bf16.mxu0 %v5552
    %6206 = vmatpush1.bf16.msra.mxu0 %v5551
    %6207 = vmatprep.subr.bf16.mxu0 %v5612
    %6208 = vmatpush2.bf16.msra.mxu0 %v5611
    %6209 = vmatprep.subr.bf16.mxu0 %v5608
    %6210 = vmatpush2.bf16.msra.mxu0 %v5607
    %6211 = vmatprep.subr.bf16.mxu0 %v5604
    %6212 = vmatpush2.bf16.msra.mxu0 %v5603
    %6213 = vmatprep.subr.bf16.mxu0 %v5600
    %6214 = vmatpush2.bf16.msra.mxu0 %v5599
    %6215 = vmatprep.subr.bf16.mxu0 %v5596
    %6216 = vmatpush2.bf16.msra.mxu0 %v5595
    %6217 = vmatprep.subr.bf16.mxu0 %v5592
    %6218 = vmatpush2.bf16.msra.mxu0 %v5591
    %6219 = vmatprep.subr.bf16.mxu0 %v5588
    %6220 = vmatpush2.bf16.msra.mxu0 %v5587
    %6221 = vmatprep.subr.bf16.mxu0 %v5584
    %6222 = vmatpush2.bf16.msra.mxu0 %v5583
    %6223 = vmatprep.mubr.bf16.mxu0 %v4572
    %6224 = vmatmul.mubr.bf16.gmra.mxu0 %v4571
    %v6225 = vpop.f32.mrf.mxu0
    %v6226 = vadd.f32 0.0, %v6225
    %v6227 = vpop.f32.mrf.mxu0
    %v6228 = vadd.f32 0.0, %v6227
    %v6229 = vpop.f32.mrf.mxu0
    %v6230 = vadd.f32 0.0, %v6229
    %v6231 = vpop.f32.mrf.mxu0
    %v6232 = vadd.f32 0.0, %v6231
    %6233 = vmatprep.mubr.bf16.mxu0 %v4582
    %6234 = vmatmul.mubr.bf16.gmra.mxu0 %v4581
    %v6235 = vpop.f32.mrf.mxu0
    %v6236 = vadd.f32 0.0, %v6235
    %v6237 = vpop.f32.mrf.mxu0
    %v6238 = vadd.f32 0.0, %v6237
    %v6239 = vpop.f32.mrf.mxu0
    %v6240 = vpop.f32.mrf.mxu0
    %6241 = vdwg.mxu0
    %6242 = vmatprep.subr.bf16.mxu0 %v5644
    %6243 = vmatpush1.bf16.msra.mxu0 %v5643
    %6244 = vmatprep.subr.bf16.mxu0 %v5640
    %6245 = vmatpush1.bf16.msra.mxu0 %v5639
    %6246 = vmatprep.subr.bf16.mxu0 %v5636
    %6247 = vmatpush1.bf16.msra.mxu0 %v5635
    %6248 = vmatprep.subr.bf16.mxu0 %v5632
    %6249 = vmatpush1.bf16.msra.mxu0 %v5631
    %6250 = vmatprep.subr.bf16.mxu0 %v5628
    %6251 = vmatpush1.bf16.msra.mxu0 %v5627
    %6252 = vmatprep.subr.bf16.mxu0 %v5624
    %6253 = vmatpush1.bf16.msra.mxu0 %v5623
    %6254 = vmatprep.subr.bf16.mxu0 %v5620
    %6255 = vmatpush1.bf16.msra.mxu0 %v5619
    %6256 = vmatprep.subr.bf16.mxu0 %v5616
    %6257 = vmatpush1.bf16.msra.mxu0 %v5615
    %6258 = vmatprep.subr.bf16.mxu0 %v5676
    %6259 = vmatpush2.bf16.msra.mxu0 %v5675
    %6260 = vmatprep.subr.bf16.mxu0 %v5672
    %6261 = vmatpush2.bf16.msra.mxu0 %v5671
    %6262 = vmatprep.subr.bf16.mxu0 %v5668
    %6263 = vmatpush2.bf16.msra.mxu0 %v5667
    %6264 = vmatprep.subr.bf16.mxu0 %v5664
    %6265 = vmatpush2.bf16.msra.mxu0 %v5663
    %6266 = vmatprep.subr.bf16.mxu0 %v5660
    %6267 = vmatpush2.bf16.msra.mxu0 %v5659
    %6268 = vmatprep.subr.bf16.mxu0 %v5656
    %6269 = vmatpush2.bf16.msra.mxu0 %v5655
    %6270 = vmatprep.subr.bf16.mxu0 %v5652
    %6271 = vmatpush2.bf16.msra.mxu0 %v5651
    %6272 = vmatprep.subr.bf16.mxu0 %v5648
    %6273 = vmatpush2.bf16.msra.mxu0 %v5647
    %6274 = vmatprep.mubr.bf16.mxu0 %v4574
    %6275 = vmatmul.mubr.bf16.gmra.mxu0 %v4573
    %v6276 = vpop.f32.mrf.mxu0
    %v6277 = vadd.f32 %v6226, %v6276
    %v6278 = vpop.f32.mrf.mxu0
    %v6279 = vadd.f32 %v6228, %v6278
    %v6280 = vpop.f32.mrf.mxu0
    %v6281 = vadd.f32 %v6230, %v6280
    %v6282 = vpop.f32.mrf.mxu0
    %v6283 = vadd.f32 %v6232, %v6282
    %6284 = vmatprep.mubr.bf16.mxu0 %v4584
    %6285 = vmatmul.mubr.bf16.gmra.mxu0 %v4583
    %v6286 = vpop.f32.mrf.mxu0
    %v6287 = vadd.f32 %v6236, %v6286
    %v6288 = vpop.f32.mrf.mxu0
    %v6289 = vadd.f32 %v6238, %v6288
    %v6290 = vpop.f32.mrf.mxu0
    %v6291 = vpop.f32.mrf.mxu0
    %6292 = vdwg.mxu0
    %6293 = vmatprep.subr.bf16.mxu0 %v5708
    %6294 = vmatpush1.bf16.msra.mxu0 %v5707
    %6295 = vmatprep.subr.bf16.mxu0 %v5704
    %6296 = vmatpush1.bf16.msra.mxu0 %v5703
    %6297 = vmatprep.subr.bf16.mxu0 %v5700
    %6298 = vmatpush1.bf16.msra.mxu0 %v5699
    %6299 = vmatprep.subr.bf16.mxu0 %v5696
    %6300 = vmatpush1.bf16.msra.mxu0 %v5695
    %6301 = vmatprep.subr.bf16.mxu0 %v5692
    %6302 = vmatpush1.bf16.msra.mxu0 %v5691
    %6303 = vmatprep.subr.bf16.mxu0 %v5688
    %6304 = vmatpush1.bf16.msra.mxu0 %v5687
    %6305 = vmatprep.subr.bf16.mxu0 %v5684
    %6306 = vmatpush1.bf16.msra.mxu0 %v5683
    %6307 = vmatprep.subr.bf16.mxu0 %v5680
    %6308 = vmatpush1.bf16.msra.mxu0 %v5679
    %6309 = vmatprep.subr.bf16.mxu0 %v5740
    %6310 = vmatpush2.bf16.msra.mxu0 %v5739
    %6311 = vmatprep.subr.bf16.mxu0 %v5736
    %6312 = vmatpush2.bf16.msra.mxu0 %v5735
    %6313 = vmatprep.subr.bf16.mxu0 %v5732
    %6314 = vmatpush2.bf16.msra.mxu0 %v5731
    %6315 = vmatprep.subr.bf16.mxu0 %v5728
    %6316 = vmatpush2.bf16.msra.mxu0 %v5727
    %6317 = vmatprep.subr.bf16.mxu0 %v5724
    %6318 = vmatpush2.bf16.msra.mxu0 %v5723
    %6319 = vmatprep.subr.bf16.mxu0 %v5720
    %6320 = vmatpush2.bf16.msra.mxu0 %v5719
    %6321 = vmatprep.subr.bf16.mxu0 %v5716
    %6322 = vmatpush2.bf16.msra.mxu0 %v5715
    %6323 = vmatprep.subr.bf16.mxu0 %v5712
    %6324 = vmatpush2.bf16.msra.mxu0 %v5711
    %6325 = vmatprep.mubr.bf16.mxu0 %v4576
    %6326 = vmatmul.mubr.bf16.gmra.mxu0 %v4575
    %v6327 = vpop.f32.mrf.mxu0
    %v6328 = vadd.f32 %v6277, %v6327
    %v6329 = vpop.f32.mrf.mxu0
    %v6330 = vadd.f32 %v6279, %v6329
    %v6331 = vpop.f32.mrf.mxu0
    %v6332 = vadd.f32 %v6281, %v6331
    %v6333 = vpop.f32.mrf.mxu0
    %v6334 = vadd.f32 %v6283, %v6333
    %6335 = vmatprep.mubr.bf16.mxu0 %v4586
    %6336 = vmatmul.mubr.bf16.gmra.mxu0 %v4585
    %v6337 = vpop.f32.mrf.mxu0
    %v6338 = vadd.f32 %v6287, %v6337
    %v6339 = vpop.f32.mrf.mxu0
    %v6340 = vadd.f32 %v6289, %v6339
    %v6341 = vpop.f32.mrf.mxu0
    %v6342 = vpop.f32.mrf.mxu0
    %6343 = vdwg.mxu0
    %6344 = vmatprep.subr.bf16.mxu0 %v5772
    %6345 = vmatpush1.bf16.msra.mxu0 %v5771
    %6346 = vmatprep.subr.bf16.mxu0 %v5768
    %6347 = vmatpush1.bf16.msra.mxu0 %v5767
    %6348 = vmatprep.subr.bf16.mxu0 %v5764
    %6349 = vmatpush1.bf16.msra.mxu0 %v5763
    %6350 = vmatprep.subr.bf16.mxu0 %v5760
    %6351 = vmatpush1.bf16.msra.mxu0 %v5759
    %6352 = vmatprep.subr.bf16.mxu0 %v5756
    %6353 = vmatpush1.bf16.msra.mxu0 %v5755
    %6354 = vmatprep.subr.bf16.mxu0 %v5752
    %6355 = vmatpush1.bf16.msra.mxu0 %v5751
    %6356 = vmatprep.subr.bf16.mxu0 %v5748
    %6357 = vmatpush1.bf16.msra.mxu0 %v5747
    %6358 = vmatprep.subr.bf16.mxu0 %v5744
    %6359 = vmatpush1.bf16.msra.mxu0 %v5743
    %6360 = vmatprep.subr.bf16.mxu0 %v5804
    %6361 = vmatpush2.bf16.msra.mxu0 %v5803
    %6362 = vmatprep.subr.bf16.mxu0 %v5800
    %6363 = vmatpush2.bf16.msra.mxu0 %v5799
    %6364 = vmatprep.subr.bf16.mxu0 %v5796
    %6365 = vmatpush2.bf16.msra.mxu0 %v5795
    %6366 = vmatprep.subr.bf16.mxu0 %v5792
    %6367 = vmatpush2.bf16.msra.mxu0 %v5791
    %6368 = vmatprep.subr.bf16.mxu0 %v5788
    %6369 = vmatpush2.bf16.msra.mxu0 %v5787
    %6370 = vmatprep.subr.bf16.mxu0 %v5784
    %6371 = vmatpush2.bf16.msra.mxu0 %v5783
    %6372 = vmatprep.subr.bf16.mxu0 %v5780
    %6373 = vmatpush2.bf16.msra.mxu0 %v5779
    %6374 = vmatprep.subr.bf16.mxu0 %v5776
    %6375 = vmatpush2.bf16.msra.mxu0 %v5775
    %6376 = vmatprep.mubr.bf16.mxu0 %v4578
    %6377 = vmatmul.mubr.bf16.gmra.mxu0 %v4577
    %v6378 = vpop.f32.mrf.mxu0
    %v6379 = vadd.f32 %v6328, %v6378
    %v6380 = vpop.f32.mrf.mxu0
    %v6381 = vadd.f32 %v6330, %v6380
    %v6382 = vpop.f32.mrf.mxu0
    %v6383 = vadd.f32 %v6332, %v6382
    %v6384 = vpop.f32.mrf.mxu0
    %v6385 = vadd.f32 %v6334, %v6384
    %6386 = vmatprep.mubr.bf16.mxu0 %v4588
    %6387 = vmatmul.mubr.bf16.gmra.mxu0 %v4587
    %v6388 = vpop.f32.mrf.mxu0
    %v6389 = vadd.f32 %v6338, %v6388
    %v6390 = vpop.f32.mrf.mxu0
    %v6391 = vadd.f32 %v6340, %v6390
    %v6392 = vpop.f32.mrf.mxu0
    %v6393 = vpop.f32.mrf.mxu0
    %6394 = vdwg.mxu0
    %6395 = vmatprep.subr.bf16.mxu0 %v5836
    %6396 = vmatpush1.bf16.msra.mxu0 %v5835
    %6397 = vmatprep.subr.bf16.mxu0 %v5832
    %6398 = vmatpush1.bf16.msra.mxu0 %v5831
    %6399 = vmatprep.subr.bf16.mxu0 %v5828
    %6400 = vmatpush1.bf16.msra.mxu0 %v5827
    %6401 = vmatprep.subr.bf16.mxu0 %v5824
    %6402 = vmatpush1.bf16.msra.mxu0 %v5823
    %6403 = vmatprep.subr.bf16.mxu0 %v5820
    %6404 = vmatpush1.bf16.msra.mxu0 %v5819
    %6405 = vmatprep.subr.bf16.mxu0 %v5816
    %6406 = vmatpush1.bf16.msra.mxu0 %v5815
    %6407 = vmatprep.subr.bf16.mxu0 %v5812
    %6408 = vmatpush1.bf16.msra.mxu0 %v5811
    %6409 = vmatprep.subr.bf16.mxu0 %v5808
    %6410 = vmatpush1.bf16.msra.mxu0 %v5807
    %6411 = vmatprep.subr.bf16.mxu0 %v5868
    %6412 = vmatpush2.bf16.msra.mxu0 %v5867
    %6413 = vmatprep.subr.bf16.mxu0 %v5864
    %6414 = vmatpush2.bf16.msra.mxu0 %v5863
    %6415 = vmatprep.subr.bf16.mxu0 %v5860
    %6416 = vmatpush2.bf16.msra.mxu0 %v5859
    %6417 = vmatprep.subr.bf16.mxu0 %v5856
    %6418 = vmatpush2.bf16.msra.mxu0 %v5855
    %6419 = vmatprep.subr.bf16.mxu0 %v5852
    %6420 = vmatpush2.bf16.msra.mxu0 %v5851
    %6421 = vmatprep.subr.bf16.mxu0 %v5848
    %6422 = vmatpush2.bf16.msra.mxu0 %v5847
    %6423 = vmatprep.subr.bf16.mxu0 %v5844
    %6424 = vmatpush2.bf16.msra.mxu0 %v5843
    %6425 = vmatprep.subr.bf16.mxu0 %v5840
    %6426 = vmatpush2.bf16.msra.mxu0 %v5839
    %6427 = vmatprep.mubr.bf16.mxu0 %v4580
    %6428 = vmatmul.mubr.bf16.gmra.mxu0 %v4579
    %v6429 = vpop.f32.mrf.mxu0
    %v6430 = vadd.f32 %v6379, %v6429
    %v6431 = vpop.f32.mrf.mxu0
    %v6432 = vadd.f32 %v6381, %v6431
    %v6433 = vpop.f32.mrf.mxu0
    %v6434 = vadd.f32 %v6383, %v6433
    %v6435 = vpop.f32.mrf.mxu0
    %v6436 = vadd.f32 %v6385, %v6435
    %6437 = vmatprep.mubr.bf16.mxu0 %v4590
    %6438 = vmatmul.mubr.bf16.gmra.mxu0 %v4589
    %v6439 = vpop.f32.mrf.mxu0
    %v6440 = vadd.f32 %v6389, %v6439
    %v6441 = vpop.f32.mrf.mxu0
    %v6442 = vadd.f32 %v6391, %v6441
    %v6443 = vpop.f32.mrf.mxu0
    %v6444 = vpop.f32.mrf.mxu0
    %6445 = vdwg.mxu0
    %6446 = vmatprep.subr.bf16.mxu0 %v5582
    %6447 = vmatpush1.bf16.msra.mxu0 %v5581
    %6448 = vmatprep.subr.bf16.mxu0 %v5578
    %6449 = vmatpush1.bf16.msra.mxu0 %v5577
    %6450 = vmatprep.subr.bf16.mxu0 %v5574
    %6451 = vmatpush1.bf16.msra.mxu0 %v5573
    %6452 = vmatprep.subr.bf16.mxu0 %v5570
    %6453 = vmatpush1.bf16.msra.mxu0 %v5569
    %6454 = vmatprep.subr.bf16.mxu0 %v5566
    %6455 = vmatpush1.bf16.msra.mxu0 %v5565
    %6456 = vmatprep.subr.bf16.mxu0 %v5562
    %6457 = vmatpush1.bf16.msra.mxu0 %v5561
    %6458 = vmatprep.subr.bf16.mxu0 %v5558
    %6459 = vmatpush1.bf16.msra.mxu0 %v5557
    %6460 = vmatprep.subr.bf16.mxu0 %v5554
    %6461 = vmatpush1.bf16.msra.mxu0 %v5553
    %6462 = vmatprep.subr.bf16.mxu0 %v5614
    %6463 = vmatpush2.bf16.msra.mxu0 %v5613
    %6464 = vmatprep.subr.bf16.mxu0 %v5610
    %6465 = vmatpush2.bf16.msra.mxu0 %v5609
    %6466 = vmatprep.subr.bf16.mxu0 %v5606
    %6467 = vmatpush2.bf16.msra.mxu0 %v5605
    %6468 = vmatprep.subr.bf16.mxu0 %v5602
    %6469 = vmatpush2.bf16.msra.mxu0 %v5601
    %6470 = vmatprep.subr.bf16.mxu0 %v5598
    %6471 = vmatpush2.bf16.msra.mxu0 %v5597
    %6472 = vmatprep.subr.bf16.mxu0 %v5594
    %6473 = vmatpush2.bf16.msra.mxu0 %v5593
    %6474 = vmatprep.subr.bf16.mxu0 %v5590
    %6475 = vmatpush2.bf16.msra.mxu0 %v5589
    %6476 = vmatprep.subr.bf16.mxu0 %v5586
    %6477 = vmatpush2.bf16.msra.mxu0 %v5585
    %6478 = vmatprep.mubr.bf16.mxu0 %v4572
    %6479 = vmatmul.mubr.bf16.gmra.mxu0 %v4571
    %v6480 = vpop.f32.mrf.mxu0
    %v6481 = vadd.f32 0.0, %v6480
    %v6482 = vpop.f32.mrf.mxu0
    %v6483 = vadd.f32 0.0, %v6482
    %v6484 = vpop.f32.mrf.mxu0
    %v6485 = vadd.f32 0.0, %v6484
    %v6486 = vpop.f32.mrf.mxu0
    %v6487 = vadd.f32 0.0, %v6486
    %6488 = vmatprep.mubr.bf16.mxu0 %v4582
    %6489 = vmatmul.mubr.bf16.gmra.mxu0 %v4581
    %v6490 = vpop.f32.mrf.mxu0
    %v6491 = vadd.f32 0.0, %v6490
    %v6492 = vpop.f32.mrf.mxu0
    %v6493 = vadd.f32 0.0, %v6492
    %v6494 = vpop.f32.mrf.mxu0
    %v6495 = vpop.f32.mrf.mxu0
    %6496 = vdwg.mxu0
    %6497 = vmatprep.subr.bf16.mxu0 %v5646
    %6498 = vmatpush1.bf16.msra.mxu0 %v5645
    %6499 = vmatprep.subr.bf16.mxu0 %v5642
    %6500 = vmatpush1.bf16.msra.mxu0 %v5641
    %6501 = vmatprep.subr.bf16.mxu0 %v5638
    %6502 = vmatpush1.bf16.msra.mxu0 %v5637
    %6503 = vmatprep.subr.bf16.mxu0 %v5634
    %6504 = vmatpush1.bf16.msra.mxu0 %v5633
    %6505 = vmatprep.subr.bf16.mxu0 %v5630
    %6506 = vmatpush1.bf16.msra.mxu0 %v5629
    %6507 = vmatprep.subr.bf16.mxu0 %v5626
    %6508 = vmatpush1.bf16.msra.mxu0 %v5625
    %6509 = vmatprep.subr.bf16.mxu0 %v5622
    %6510 = vmatpush1.bf16.msra.mxu0 %v5621
    %6511 = vmatprep.subr.bf16.mxu0 %v5618
    %6512 = vmatpush1.bf16.msra.mxu0 %v5617
    %6513 = vmatprep.subr.bf16.mxu0 %v5678
    %6514 = vmatpush2.bf16.msra.mxu0 %v5677
    %6515 = vmatprep.subr.bf16.mxu0 %v5674
    %6516 = vmatpush2.bf16.msra.mxu0 %v5673
    %6517 = vmatprep.subr.bf16.mxu0 %v5670
    %6518 = vmatpush2.bf16.msra.mxu0 %v5669
    %6519 = vmatprep.subr.bf16.mxu0 %v5666
    %6520 = vmatpush2.bf16.msra.mxu0 %v5665
    %6521 = vmatprep.subr.bf16.mxu0 %v5662
    %6522 = vmatpush2.bf16.msra.mxu0 %v5661
    %6523 = vmatprep.subr.bf16.mxu0 %v5658
    %6524 = vmatpush2.bf16.msra.mxu0 %v5657
    %6525 = vmatprep.subr.bf16.mxu0 %v5654
    %6526 = vmatpush2.bf16.msra.mxu0 %v5653
    %6527 = vmatprep.subr.bf16.mxu0 %v5650
    %6528 = vmatpush2.bf16.msra.mxu0 %v5649
    %6529 = vmatprep.mubr.bf16.mxu0 %v4574
    %6530 = vmatmul.mubr.bf16.gmra.mxu0 %v4573
    %v6531 = vpop.f32.mrf.mxu0
    %v6532 = vadd.f32 %v6481, %v6531
    %v6533 = vpop.f32.mrf.mxu0
    %v6534 = vadd.f32 %v6483, %v6533
    %v6535 = vpop.f32.mrf.mxu0
    %v6536 = vadd.f32 %v6485, %v6535
    %v6537 = vpop.f32.mrf.mxu0
    %v6538 = vadd.f32 %v6487, %v6537
    %6539 = vmatprep.mubr.bf16.mxu0 %v4584
    %6540 = vmatmul.mubr.bf16.gmra.mxu0 %v4583
    %v6541 = vpop.f32.mrf.mxu0
    %v6542 = vadd.f32 %v6491, %v6541
    %v6543 = vpop.f32.mrf.mxu0
    %v6544 = vadd.f32 %v6493, %v6543
    %v6545 = vpop.f32.mrf.mxu0
    %v6546 = vpop.f32.mrf.mxu0
    %6547 = vdwg.mxu0
    %6548 = vmatprep.subr.bf16.mxu0 %v5710
    %6549 = vmatpush1.bf16.msra.mxu0 %v5709
    %6550 = vmatprep.subr.bf16.mxu0 %v5706
    %6551 = vmatpush1.bf16.msra.mxu0 %v5705
    %6552 = vmatprep.subr.bf16.mxu0 %v5702
    %6553 = vmatpush1.bf16.msra.mxu0 %v5701
    %6554 = vmatprep.subr.bf16.mxu0 %v5698
    %6555 = vmatpush1.bf16.msra.mxu0 %v5697
    %6556 = vmatprep.subr.bf16.mxu0 %v5694
    %6557 = vmatpush1.bf16.msra.mxu0 %v5693
    %6558 = vmatprep.subr.bf16.mxu0 %v5690
    %6559 = vmatpush1.bf16.msra.mxu0 %v5689
    %6560 = vmatprep.subr.bf16.mxu0 %v5686
    %6561 = vmatpush1.bf16.msra.mxu0 %v5685
    %6562 = vmatprep.subr.bf16.mxu0 %v5682
    %6563 = vmatpush1.bf16.msra.mxu0 %v5681
    %6564 = vmatprep.subr.bf16.mxu0 %v5742
    %6565 = vmatpush2.bf16.msra.mxu0 %v5741
    %6566 = vmatprep.subr.bf16.mxu0 %v5738
    %6567 = vmatpush2.bf16.msra.mxu0 %v5737
    %6568 = vmatprep.subr.bf16.mxu0 %v5734
    %6569 = vmatpush2.bf16.msra.mxu0 %v5733
    %6570 = vmatprep.subr.bf16.mxu0 %v5730
    %6571 = vmatpush2.bf16.msra.mxu0 %v5729
    %6572 = vmatprep.subr.bf16.mxu0 %v5726
    %6573 = vmatpush2.bf16.msra.mxu0 %v5725
    %6574 = vmatprep.subr.bf16.mxu0 %v5722
    %6575 = vmatpush2.bf16.msra.mxu0 %v5721
    %6576 = vmatprep.subr.bf16.mxu0 %v5718
    %6577 = vmatpush2.bf16.msra.mxu0 %v5717
    %6578 = vmatprep.subr.bf16.mxu0 %v5714
    %6579 = vmatpush2.bf16.msra.mxu0 %v5713
    %6580 = vmatprep.mubr.bf16.mxu0 %v4576
    %6581 = vmatmul.mubr.bf16.gmra.mxu0 %v4575
    %v6582 = vpop.f32.mrf.mxu0
    %v6583 = vadd.f32 %v6532, %v6582
    %v6584 = vpop.f32.mrf.mxu0
    %v6585 = vadd.f32 %v6534, %v6584
    %v6586 = vpop.f32.mrf.mxu0
    %v6587 = vadd.f32 %v6536, %v6586
    %v6588 = vpop.f32.mrf.mxu0
    %v6589 = vadd.f32 %v6538, %v6588
    %6590 = vmatprep.mubr.bf16.mxu0 %v4586
    %6591 = vmatmul.mubr.bf16.gmra.mxu0 %v4585
    %v6592 = vpop.f32.mrf.mxu0
    %v6593 = vadd.f32 %v6542, %v6592
    %v6594 = vpop.f32.mrf.mxu0
    %v6595 = vadd.f32 %v6544, %v6594
    %v6596 = vpop.f32.mrf.mxu0
    %v6597 = vpop.f32.mrf.mxu0
    %6598 = vdwg.mxu0
    %6599 = vmatprep.subr.bf16.mxu0 %v5774
    %6600 = vmatpush1.bf16.msra.mxu0 %v5773
    %6601 = vmatprep.subr.bf16.mxu0 %v5770
    %6602 = vmatpush1.bf16.msra.mxu0 %v5769
    %6603 = vmatprep.subr.bf16.mxu0 %v5766
    %6604 = vmatpush1.bf16.msra.mxu0 %v5765
    %6605 = vmatprep.subr.bf16.mxu0 %v5762
    %6606 = vmatpush1.bf16.msra.mxu0 %v5761
    %6607 = vmatprep.subr.bf16.mxu0 %v5758
    %6608 = vmatpush1.bf16.msra.mxu0 %v5757
    %6609 = vmatprep.subr.bf16.mxu0 %v5754
    %6610 = vmatpush1.bf16.msra.mxu0 %v5753
    %6611 = vmatprep.subr.bf16.mxu0 %v5750
    %6612 = vmatpush1.bf16.msra.mxu0 %v5749
    %6613 = vmatprep.subr.bf16.mxu0 %v5746
    %6614 = vmatpush1.bf16.msra.mxu0 %v5745
    %6615 = vmatprep.subr.bf16.mxu0 %v5806
    %6616 = vmatpush2.bf16.msra.mxu0 %v5805
    %6617 = vmatprep.subr.bf16.mxu0 %v5802
    %6618 = vmatpush2.bf16.msra.mxu0 %v5801
    %6619 = vmatprep.subr.bf16.mxu0 %v5798
    %6620 = vmatpush2.bf16.msra.mxu0 %v5797
    %6621 = vmatprep.subr.bf16.mxu0 %v5794
    %6622 = vmatpush2.bf16.msra.mxu0 %v5793
    %6623 = vmatprep.subr.bf16.mxu0 %v5790
    %6624 = vmatpush2.bf16.msra.mxu0 %v5789
    %6625 = vmatprep.subr.bf16.mxu0 %v5786
    %6626 = vmatpush2.bf16.msra.mxu0 %v5785
    %6627 = vmatprep.subr.bf16.mxu0 %v5782
    %6628 = vmatpush2.bf16.msra.mxu0 %v5781
    %6629 = vmatprep.subr.bf16.mxu0 %v5778
    %6630 = vmatpush2.bf16.msra.mxu0 %v5777
    %6631 = vmatprep.mubr.bf16.mxu0 %v4578
    %6632 = vmatmul.mubr.bf16.gmra.mxu0 %v4577
    %v6633 = vpop.f32.mrf.mxu0
    %v6634 = vadd.f32 %v6583, %v6633
    %v6635 = vpop.f32.mrf.mxu0
    %v6636 = vadd.f32 %v6585, %v6635
    %v6637 = vpop.f32.mrf.mxu0
    %v6638 = vadd.f32 %v6587, %v6637
    %v6639 = vpop.f32.mrf.mxu0
    %v6640 = vadd.f32 %v6589, %v6639
    %6641 = vmatprep.mubr.bf16.mxu0 %v4588
    %6642 = vmatmul.mubr.bf16.gmra.mxu0 %v4587
    %v6643 = vpop.f32.mrf.mxu0
    %v6644 = vadd.f32 %v6593, %v6643
    %v6645 = vpop.f32.mrf.mxu0
    %v6646 = vadd.f32 %v6595, %v6645
    %v6647 = vpop.f32.mrf.mxu0
    %v6648 = vpop.f32.mrf.mxu0
    %6649 = vdwg.mxu0
    %6650 = vmatprep.subr.bf16.mxu0 %v5838
    %6651 = vmatpush1.bf16.msra.mxu0 %v5837
    %6652 = vmatprep.subr.bf16.mxu0 %v5834
    %6653 = vmatpush1.bf16.msra.mxu0 %v5833
    %6654 = vmatprep.subr.bf16.mxu0 %v5830
    %6655 = vmatpush1.bf16.msra.mxu0 %v5829
    %6656 = vmatprep.subr.bf16.mxu0 %v5826
    %6657 = vmatpush1.bf16.msra.mxu0 %v5825
    %6658 = vmatprep.subr.bf16.mxu0 %v5822
    %6659 = vmatpush1.bf16.msra.mxu0 %v5821
    %6660 = vmatprep.subr.bf16.mxu0 %v5818
    %6661 = vmatpush1.bf16.msra.mxu0 %v5817
    %6662 = vmatprep.subr.bf16.mxu0 %v5814
    %6663 = vmatpush1.bf16.msra.mxu0 %v5813
    %6664 = vmatprep.subr.bf16.mxu0 %v5810
    %6665 = vmatpush1.bf16.msra.mxu0 %v5809
    %6666 = vmatprep.subr.bf16.mxu0 %v5870
    %6667 = vmatpush2.bf16.msra.mxu0 %v5869
    %6668 = vmatprep.subr.bf16.mxu0 %v5866
    %6669 = vmatpush2.bf16.msra.mxu0 %v5865
    %6670 = vmatprep.subr.bf16.mxu0 %v5862
    %6671 = vmatpush2.bf16.msra.mxu0 %v5861
    %6672 = vmatprep.subr.bf16.mxu0 %v5858
    %6673 = vmatpush2.bf16.msra.mxu0 %v5857
    %6674 = vmatprep.subr.bf16.mxu0 %v5854
    %6675 = vmatpush2.bf16.msra.mxu0 %v5853
    %6676 = vmatprep.subr.bf16.mxu0 %v5850
    %6677 = vmatpush2.bf16.msra.mxu0 %v5849
    %6678 = vmatprep.subr.bf16.mxu0 %v5846
    %6679 = vmatpush2.bf16.msra.mxu0 %v5845
    %6680 = vmatprep.subr.bf16.mxu0 %v5842
    %6681 = vmatpush2.bf16.msra.mxu0 %v5841
    %6682 = vmatprep.mubr.bf16.mxu0 %v4580
    %6683 = vmatmul.mubr.bf16.gmra.mxu0 %v4579
    %v6684 = vpop.f32.mrf.mxu0
    %v6685 = vadd.f32 %v6634, %v6684
    %v6686 = vpop.f32.mrf.mxu0
    %v6687 = vadd.f32 %v6636, %v6686
    %v6688 = vpop.f32.mrf.mxu0
    %v6689 = vadd.f32 %v6638, %v6688
    %v6690 = vpop.f32.mrf.mxu0
    %v6691 = vadd.f32 %v6640, %v6690
    %6692 = vmatprep.mubr.bf16.mxu0 %v4590
    %6693 = vmatmul.mubr.bf16.gmra.mxu0 %v4589
    %v6694 = vpop.f32.mrf.mxu0
    %v6695 = vadd.f32 %v6644, %v6694
    %v6696 = vpop.f32.mrf.mxu0
    %v6697 = vadd.f32 %v6646, %v6696
    %v6698 = vpop.f32.mrf.mxu0
    %v6699 = vpop.f32.mrf.mxu0
    %6700 = vdwg.mxu0
    %v6701 = vmax.f32 %v6430, %v6685
    %v6702 = vmax.f32 %v6432, %v6687
    %v6703 = vmax.f32 %v6434, %v6689
    %v6704 = vmax.f32 %v6436, %v6691
    %v6705 = vmax.f32 %v6440, %v6695
    %v6706 = vmax.f32 %v6442, %v6697
    %v6707 = vmax.f32 %v6701, 0.0
    %v6708 = vmax.f32 %v6702, 0.0
    %v6709 = vmax.f32 %v6703, 0.0
    %v6710 = vmax.f32 %v6704, 0.0
    %v6711 = vmax.f32 %v6705, 0.0
    %v6712 = vmax.f32 %v6706, 0.0
    %v6719 = vcombine.low %v6707, %v6708
    %v6720 = vcombine.high %v6707, %v6708
    %v6722 = vunpack.c.l.s4 1983009808
    %v6723 = vunpack.c.0.s8 %v6722
    %v6724 = vlaneseq
    %v6725 = vshrl.u32 %v6724, 7
    %v6726 = vsub.s32 %v6723, %v6725
    %v6727 = vrot.slane %v6719, %v6726
    %v6729 = vunpack.c.l.s4 1983009808
    %v6730 = vunpack.c.0.s8 %v6729
    %v6731 = vlaneseq
    %v6732 = vshrl.u32 %v6731, 7
    %v6733 = vsub.s32 %v6730, %v6732
    %v6734 = vrot.slane %v6720, %v6733
    %v6735 = vcombine.high %v6727, %v6727
    %v6736 = vcombine.high %v6734, %v6734
    %v6737 = vcombine.low %v6709, %v6710
    %v6738 = vcombine.high %v6709, %v6710
    %v6740 = vunpack.c.l.s4 1983009808
    %v6741 = vunpack.c.0.s8 %v6740
    %v6742 = vlaneseq
    %v6743 = vshrl.u32 %v6742, 7
    %v6744 = vsub.s32 %v6741, %v6743
    %v6745 = vrot.slane %v6737, %v6744
    %v6747 = vunpack.c.l.s4 1983009808
    %v6748 = vunpack.c.0.s8 %v6747
    %v6749 = vlaneseq
    %v6750 = vshrl.u32 %v6749, 7
    %v6751 = vsub.s32 %v6748, %v6750
    %v6752 = vrot.slane %v6738, %v6751
    %v6753 = vcombine.high %v6745, %v6745
    %v6754 = vcombine.high %v6752, %v6752
    %v6755 = vcombine.low %v6711, %v6712
    %v6757 = vunpack.c.l.s4 1983009808
    %v6758 = vunpack.c.0.s8 %v6757
    %v6759 = vlaneseq
    %v6760 = vshrl.u32 %v6759, 7
    %v6761 = vsub.s32 %v6758, %v6760
    %v6762 = vrot.slane %v6755, %v6761
    %v6763 = vcombine.high %v6762, %v6762
    %v6765 = vunpack.c.l.s4 1983009808
    %v6766 = vunpack.c.0.s8 %v6765
    %v6767 = vlaneseq
    %v6768 = vshrl.u32 %v6767, 7
    %v6769 = vsub.s32 %v6766, %v6768
    %v6770 = vrot.slane %v6727, %v6769
    %v6771 = vcombine.high %v6770, %v6770
    %v6773 = vunpack.c.l.s4 1983009808
    %v6774 = vunpack.c.0.s8 %v6773
    %v6775 = vlaneseq
    %v6776 = vshrl.u32 %v6775, 7
    %v6777 = vsub.s32 %v6774, %v6776
    %v6778 = vrot.slane %v6735, %v6777
    %v6779 = vcombine.high %v6778, %v6778
    %v6781 = vunpack.c.l.s4 1983009808
    %v6782 = vunpack.c.0.s8 %v6781
    %v6783 = vlaneseq
    %v6784 = vshrl.u32 %v6783, 7
    %v6785 = vsub.s32 %v6782, %v6784
    %v6786 = vrot.slane %v6734, %v6785
    %v6787 = vcombine.high %v6786, %v6786
    %v6789 = vunpack.c.l.s4 1983009808
    %v6790 = vunpack.c.0.s8 %v6789
    %v6791 = vlaneseq
    %v6792 = vshrl.u32 %v6791, 7
    %v6793 = vsub.s32 %v6790, %v6792
    %v6794 = vrot.slane %v6736, %v6793
    %v6795 = vcombine.high %v6794, %v6794
    %v6797 = vunpack.c.l.s4 1983009808
    %v6798 = vunpack.c.0.s8 %v6797
    %v6799 = vlaneseq
    %v6800 = vshrl.u32 %v6799, 7
    %v6801 = vsub.s32 %v6798, %v6800
    %v6802 = vrot.slane %v6745, %v6801
    %v6803 = vcombine.high %v6802, %v6802
    %v6805 = vunpack.c.l.s4 1983009808
    %v6806 = vunpack.c.0.s8 %v6805
    %v6807 = vlaneseq
    %v6808 = vshrl.u32 %v6807, 7
    %v6809 = vsub.s32 %v6806, %v6808
    %v6810 = vrot.slane %v6753, %v6809
    %v6811 = vcombine.high %v6810, %v6810
    %v6813 = vunpack.c.l.s4 1983009808
    %v6814 = vunpack.c.0.s8 %v6813
    %v6815 = vlaneseq
    %v6816 = vshrl.u32 %v6815, 7
    %v6817 = vsub.s32 %v6814, %v6816
    %v6818 = vrot.slane %v6752, %v6817
    %v6819 = vcombine.high %v6818, %v6818
    %v6821 = vunpack.c.l.s4 1983009808
    %v6822 = vunpack.c.0.s8 %v6821
    %v6823 = vlaneseq
    %v6824 = vshrl.u32 %v6823, 7
    %v6825 = vsub.s32 %v6822, %v6824
    %v6826 = vrot.slane %v6754, %v6825
    %v6827 = vcombine.high %v6826, %v6826
    %v6829 = vunpack.c.l.s4 1983009808
    %v6830 = vunpack.c.0.s8 %v6829
    %v6831 = vlaneseq
    %v6832 = vshrl.u32 %v6831, 7
    %v6833 = vsub.s32 %v6830, %v6832
    %v6834 = vrot.slane %v6762, %v6833
    %v6835 = vcombine.high %v6834, %v6834
    %v6837 = vunpack.c.l.s4 1983009808
    %v6838 = vunpack.c.0.s8 %v6837
    %v6839 = vlaneseq
    %v6840 = vshrl.u32 %v6839, 7
    %v6841 = vsub.s32 %v6838, %v6840
    %v6842 = vrot.slane %v6763, %v6841
    %v6843 = vcombine.high %v6842, %v6842
    %v6864 = vsel %vm3112, %v6770, -inf
    %v6865 = vrot.slane %v6864, 4
    %v6866 = vmax.f32 %v6864, %v6865
    %v6867 = vrot.slane %v6866, 2
    %v6868 = vmax.f32 %v6866, %v6867
    %v6869 = vrot.slane %v6868, 1
    %v6870 = vmax.f32 %v6868, %v6869
    %v6871 = vsel %vm3112, %v6771, -inf
    %v6872 = vrot.slane %v6871, 4
    %v6873 = vmax.f32 %v6871, %v6872
    %v6874 = vrot.slane %v6873, 2
    %v6875 = vmax.f32 %v6873, %v6874
    %v6876 = vrot.slane %v6875, 1
    %v6877 = vmax.f32 %v6875, %v6876
    %v6878 = vsel %vm3112, %v6778, -inf
    %v6879 = vrot.slane %v6878, 4
    %v6880 = vmax.f32 %v6878, %v6879
    %v6881 = vrot.slane %v6880, 2
    %v6882 = vmax.f32 %v6880, %v6881
    %v6883 = vrot.slane %v6882, 1
    %v6884 = vmax.f32 %v6882, %v6883
    %v6885 = vsel %vm3112, %v6779, -inf
    %v6886 = vrot.slane %v6885, 4
    %v6887 = vmax.f32 %v6885, %v6886
    %v6888 = vrot.slane %v6887, 2
    %v6889 = vmax.f32 %v6887, %v6888
    %v6890 = vrot.slane %v6889, 1
    %v6891 = vmax.f32 %v6889, %v6890
    %v6892 = vsel %vm3112, %v6786, -inf
    %v6893 = vrot.slane %v6892, 4
    %v6894 = vmax.f32 %v6892, %v6893
    %v6895 = vrot.slane %v6894, 2
    %v6896 = vmax.f32 %v6894, %v6895
    %v6897 = vrot.slane %v6896, 1
    %v6898 = vmax.f32 %v6896, %v6897
    %v6899 = vsel %vm3112, %v6787, -inf
    %v6900 = vrot.slane %v6899, 4
    %v6901 = vmax.f32 %v6899, %v6900
    %v6902 = vrot.slane %v6901, 2
    %v6903 = vmax.f32 %v6901, %v6902
    %v6904 = vrot.slane %v6903, 1
    %v6905 = vmax.f32 %v6903, %v6904
    %v6906 = vsel %vm3112, %v6794, -inf
    %v6907 = vrot.slane %v6906, 4
    %v6908 = vmax.f32 %v6906, %v6907
    %v6909 = vrot.slane %v6908, 2
    %v6910 = vmax.f32 %v6908, %v6909
    %v6911 = vrot.slane %v6910, 1
    %v6912 = vmax.f32 %v6910, %v6911
    %v6913 = vsel %vm3112, %v6795, -inf
    %v6914 = vrot.slane %v6913, 4
    %v6915 = vmax.f32 %v6913, %v6914
    %v6916 = vrot.slane %v6915, 2
    %v6917 = vmax.f32 %v6915, %v6916
    %v6918 = vrot.slane %v6917, 1
    %v6919 = vmax.f32 %v6917, %v6918
    %v6920 = vsel %vm3112, %v6802, -inf
    %v6921 = vrot.slane %v6920, 4
    %v6922 = vmax.f32 %v6920, %v6921
    %v6923 = vrot.slane %v6922, 2
    %v6924 = vmax.f32 %v6922, %v6923
    %v6925 = vrot.slane %v6924, 1
    %v6926 = vmax.f32 %v6924, %v6925
    %v6927 = vsel %vm3112, %v6803, -inf
    %v6928 = vrot.slane %v6927, 4
    %v6929 = vmax.f32 %v6927, %v6928
    %v6930 = vrot.slane %v6929, 2
    %v6931 = vmax.f32 %v6929, %v6930
    %v6932 = vrot.slane %v6931, 1
    %v6933 = vmax.f32 %v6931, %v6932
    %v6934 = vsel %vm3112, %v6810, -inf
    %v6935 = vrot.slane %v6934, 4
    %v6936 = vmax.f32 %v6934, %v6935
    %v6937 = vrot.slane %v6936, 2
    %v6938 = vmax.f32 %v6936, %v6937
    %v6939 = vrot.slane %v6938, 1
    %v6940 = vmax.f32 %v6938, %v6939
    %v6941 = vsel %vm3112, %v6811, -inf
    %v6942 = vrot.slane %v6941, 4
    %v6943 = vmax.f32 %v6941, %v6942
    %v6944 = vrot.slane %v6943, 2
    %v6945 = vmax.f32 %v6943, %v6944
    %v6946 = vrot.slane %v6945, 1
    %v6947 = vmax.f32 %v6945, %v6946
    %v6948 = vsel %vm3112, %v6818, -inf
    %v6949 = vrot.slane %v6948, 4
    %v6950 = vmax.f32 %v6948, %v6949
    %v6951 = vrot.slane %v6950, 2
    %v6952 = vmax.f32 %v6950, %v6951
    %v6953 = vrot.slane %v6952, 1
    %v6954 = vmax.f32 %v6952, %v6953
    %v6955 = vsel %vm3112, %v6819, -inf
    %v6956 = vrot.slane %v6955, 4
    %v6957 = vmax.f32 %v6955, %v6956
    %v6958 = vrot.slane %v6957, 2
    %v6959 = vmax.f32 %v6957, %v6958
    %v6960 = vrot.slane %v6959, 1
    %v6961 = vmax.f32 %v6959, %v6960
    %v6962 = vsel %vm3112, %v6826, -inf
    %v6963 = vrot.slane %v6962, 4
    %v6964 = vmax.f32 %v6962, %v6963
    %v6965 = vrot.slane %v6964, 2
    %v6966 = vmax.f32 %v6964, %v6965
    %v6967 = vrot.slane %v6966, 1
    %v6968 = vmax.f32 %v6966, %v6967
    %v6969 = vsel %vm3112, %v6827, -inf
    %v6970 = vrot.slane %v6969, 4
    %v6971 = vmax.f32 %v6969, %v6970
    %v6972 = vrot.slane %v6971, 2
    %v6973 = vmax.f32 %v6971, %v6972
    %v6974 = vrot.slane %v6973, 1
    %v6975 = vmax.f32 %v6973, %v6974
    %v6976 = vsel %vm3112, %v6834, -inf
    %v6977 = vrot.slane %v6976, 4
    %v6978 = vmax.f32 %v6976, %v6977
    %v6979 = vrot.slane %v6978, 2
    %v6980 = vmax.f32 %v6978, %v6979
    %v6981 = vrot.slane %v6980, 1
    %v6982 = vmax.f32 %v6980, %v6981
    %v6983 = vsel %vm3112, %v6835, -inf
    %v6984 = vrot.slane %v6983, 4
    %v6985 = vmax.f32 %v6983, %v6984
    %v6986 = vrot.slane %v6985, 2
    %v6987 = vmax.f32 %v6985, %v6986
    %v6988 = vrot.slane %v6987, 1
    %v6989 = vmax.f32 %v6987, %v6988
    %v6990 = vsel %vm3112, %v6842, -inf
    %v6991 = vrot.slane %v6990, 4
    %v6992 = vmax.f32 %v6990, %v6991
    %v6993 = vrot.slane %v6992, 2
    %v6994 = vmax.f32 %v6992, %v6993
    %v6995 = vrot.slane %v6994, 1
    %v6996 = vmax.f32 %v6994, %v6995
    %v6997 = vsel %vm3112, %v6843, -inf
    %v6998 = vrot.slane %v6997, 4
    %v6999 = vmax.f32 %v6997, %v6998
    %v7000 = vrot.slane %v6999, 2
    %v7001 = vmax.f32 %v6999, %v7000
    %v7002 = vrot.slane %v7001, 1
    %v7003 = vmax.f32 %v7001, %v7002
    %s7004 = smul.u32 1280, 1
    %s7005 = sshll.u32 %s7004, 4
    %7006 = dma.done %s716, %s7005
    %v7027 = vsel %vm3869, %v6884, %v6870
    %v7028 = vsel %vm3871, %v6898, %v7027
    %v7029 = vsel %vm3873, %v6912, %v7028
    %v7030 = vsel %vm3875, %v6926, %v7029
    %v7031 = vsel %vm3877, %v6940, %v7030
    %v7032 = vsel %vm3879, %v6954, %v7031
    %v7033 = vsel %vm3881, %v6968, %v7032
    %v7034 = vsel %vm3869, %v6891, %v6877
    %v7035 = vsel %vm3871, %v6905, %v7034
    %v7036 = vsel %vm3873, %v6919, %v7035
    %v7037 = vsel %vm3875, %v6933, %v7036
    %v7038 = vsel %vm3877, %v6947, %v7037
    %v7039 = vsel %vm3879, %v6961, %v7038
    %v7040 = vsel %vm3881, %v6975, %v7039
    %v7041 = vsel %vm3869, %v6996, %v6982
    %v7042 = vsel %vm3869, %v7003, %v6989
    %vm7047 = vcmask 1040384
    %v7048 = vsel %vm7047, %v7033, 0.0
    %v7049 = vrot.slane %v7033, 4
    %v7050 = vsel %vm3869, %v7049, %v7048
    %v7051 = vsel %vm7047, %v7040, 0.0
    %v7052 = vrot.slane %v7040, 4
    %v7053 = vsel %vm3869, %v7052, %v7051
    %v7054 = vrot.slane %v7033, 1
    %v7055 = vsel %vm7047, %v7054, 0.0
    %v7056 = vrot.slane %v7033, 5
    %v7057 = vsel %vm3869, %v7056, %v7055
    %v7058 = vrot.slane %v7040, 1
    %v7059 = vsel %vm7047, %v7058, 0.0
    %v7060 = vrot.slane %v7040, 5
    %v7061 = vsel %vm3869, %v7060, %v7059
    %v7062 = vrot.slane %v7033, 2
    %v7063 = vsel %vm7047, %v7062, 0.0
    %v7064 = vrot.slane %v7033, 6
    %v7065 = vsel %vm3869, %v7064, %v7063
    %v7066 = vrot.slane %v7040, 2
    %v7067 = vsel %vm7047, %v7066, 0.0
    %v7068 = vrot.slane %v7040, 6
    %v7069 = vsel %vm3869, %v7068, %v7067
    %v7070 = vrot.slane %v7033, 3
    %v7071 = vsel %vm7047, %v7070, 0.0
    %v7072 = vrot.slane %v7041, 7
    %v7073 = vsel %vm3869, %v7072, %v7071
    %v7074 = vrot.slane %v7040, 3
    %v7075 = vsel %vm7047, %v7074, 0.0
    %v7076 = vrot.slane %v7042, 7
    %v7077 = vsel %vm3869, %v7076, %v7075
    %v7078 = vsel %vm7047, %v7049, 0.0
    %v7079 = vsel %vm3869, %v7041, %v7078
    %v7080 = vsel %vm7047, %v7052, 0.0
    %v7081 = vsel %vm3869, %v7042, %v7080
    %v7082 = vld [vmem:[#allocation3] sm:$0xff]
    %v7083 = vld [vmem:[#allocation3 + $0x8] sm:$0xff]
    %v7084 = vld [vmem:[#allocation3 + $0x10] sm:$0xff]
    %v7085 = vld [vmem:[#allocation3 + $0x18] sm:$0xff]
    %v7086 = vld [vmem:[#allocation3 + $0x20] sm:$0xff]
    %v7087 = vld [vmem:[#allocation3 + $0x28] sm:$0xff]
    %v7088 = vld [vmem:[#allocation3 + $0x30] sm:$0xff]
    %v7089 = vld [vmem:[#allocation3 + $0x38] sm:$0xff]
    %v7090 = vld [vmem:[#allocation3 + $0x40] sm:$0xff]
    %v7091 = vld [vmem:[#allocation3 + $0x48] sm:$0xff]
    %v7092 = vld [vmem:[#allocation3 + $0x50] sm:$0xff]
    %v7093 = vld [vmem:[#allocation3 + $0x58] sm:$0xff]
    %v7094 = vld [vmem:[#allocation3 + $0x60] sm:$0xff]
    %v7095 = vld [vmem:[#allocation3 + $0x68] sm:$0xff]
    %v7096 = vld [vmem:[#allocation3 + $0x70] sm:$0xff]
    %v7097 = vld [vmem:[#allocation3 + $0x78] sm:$0xff]
    %v7098 = vld [vmem:[#allocation3 + $0x80] sm:$0xff]
    %v7099 = vld [vmem:[#allocation3 + $0x88] sm:$0xff]
    %v7100 = vld [vmem:[#allocation3 + $0x90] sm:$0xff]
    %v7101 = vld [vmem:[#allocation3 + $0x98] sm:$0xff]
    %v7102 = vld [vmem:[#allocation3 + $0xa0] sm:$0xff]
    %v7103 = vld [vmem:[#allocation3 + $0xa8] sm:$0xff]
    %v7104 = vld [vmem:[#allocation3 + $0xb0] sm:$0xff]
    %v7105 = vld [vmem:[#allocation3 + $0xb8] sm:$0xff]
    %v7106 = vld [vmem:[#allocation3 + $0xc0] sm:$0xff]
    %v7107 = vld [vmem:[#allocation3 + $0xc8] sm:$0xff]
    %v7108 = vld [vmem:[#allocation3 + $0xd0] sm:$0xff]
    %v7109 = vld [vmem:[#allocation3 + $0xd8] sm:$0xff]
    %v7110 = vld [vmem:[#allocation3 + $0xe0] sm:$0xff]
    %v7111 = vld [vmem:[#allocation3 + $0xe8] sm:$0xff]
    %v7112 = vld [vmem:[#allocation3 + $0xf0] sm:$0xff]
    %v7113 = vld [vmem:[#allocation3 + $0xf8] sm:$0xff]
    %v7114 = vld [vmem:[#allocation3 + $0x100] sm:$0xff]
    %v7115 = vld [vmem:[#allocation3 + $0x108] sm:$0xff]
    %v7116 = vld [vmem:[#allocation3 + $0x110] sm:$0xff]
    %v7117 = vld [vmem:[#allocation3 + $0x118] sm:$0xff]
    %v7118 = vld [vmem:[#allocation3 + $0x120] sm:$0xff]
    %v7119 = vld [vmem:[#allocation3 + $0x128] sm:$0xff]
    %v7120 = vld [vmem:[#allocation3 + $0x130] sm:$0xff]
    %v7121 = vld [vmem:[#allocation3 + $0x138] sm:$0xff]
    %v7122 = vld [vmem:[#allocation3 + $0x140] sm:$0xff]
    %v7123 = vld [vmem:[#allocation3 + $0x148] sm:$0xff]
    %v7124 = vld [vmem:[#allocation3 + $0x150] sm:$0xff]
    %v7125 = vld [vmem:[#allocation3 + $0x158] sm:$0xff]
    %v7126 = vld [vmem:[#allocation3 + $0x160] sm:$0xff]
    %v7127 = vld [vmem:[#allocation3 + $0x168] sm:$0xff]
    %v7128 = vld [vmem:[#allocation3 + $0x170] sm:$0xff]
    %v7129 = vld [vmem:[#allocation3 + $0x178] sm:$0xff]
    %v7130 = vld [vmem:[#allocation3 + $0x180] sm:$0xff]
    %v7131 = vld [vmem:[#allocation3 + $0x188] sm:$0xff]
    %v7132 = vld [vmem:[#allocation3 + $0x190] sm:$0xff]
    %v7133 = vld [vmem:[#allocation3 + $0x198] sm:$0xff]
    %v7134 = vld [vmem:[#allocation3 + $0x1a0] sm:$0xff]
    %v7135 = vld [vmem:[#allocation3 + $0x1a8] sm:$0xff]
    %v7136 = vld [vmem:[#allocation3 + $0x1b0] sm:$0xff]
    %v7137 = vld [vmem:[#allocation3 + $0x1b8] sm:$0xff]
    %v7138 = vld [vmem:[#allocation3 + $0x1c0] sm:$0xff]
    %v7139 = vld [vmem:[#allocation3 + $0x1c8] sm:$0xff]
    %v7140 = vld [vmem:[#allocation3 + $0x1d0] sm:$0xff]
    %v7141 = vld [vmem:[#allocation3 + $0x1d8] sm:$0xff]
    %v7142 = vld [vmem:[#allocation3 + $0x1e0] sm:$0xff]
    %v7143 = vld [vmem:[#allocation3 + $0x1e8] sm:$0xff]
    %v7144 = vld [vmem:[#allocation3 + $0x1f0] sm:$0xff]
    %v7145 = vld [vmem:[#allocation3 + $0x1f8] sm:$0xff]
    %v7146 = vld [vmem:[#allocation3 + $0x200] sm:$0xff]
    %v7147 = vld [vmem:[#allocation3 + $0x208] sm:$0xff]
    %v7148 = vld [vmem:[#allocation3 + $0x210] sm:$0xff]
    %v7149 = vld [vmem:[#allocation3 + $0x218] sm:$0xff]
    %v7150 = vld [vmem:[#allocation3 + $0x220] sm:$0xff]
    %v7151 = vld [vmem:[#allocation3 + $0x228] sm:$0xff]
    %v7152 = vld [vmem:[#allocation3 + $0x230] sm:$0xff]
    %v7153 = vld [vmem:[#allocation3 + $0x238] sm:$0xff]
    %v7154 = vld [vmem:[#allocation3 + $0x240] sm:$0xff]
    %v7155 = vld [vmem:[#allocation3 + $0x248] sm:$0xff]
    %v7156 = vld [vmem:[#allocation3 + $0x250] sm:$0xff]
    %v7157 = vld [vmem:[#allocation3 + $0x258] sm:$0xff]
    %v7158 = vld [vmem:[#allocation3 + $0x260] sm:$0xff]
    %v7159 = vld [vmem:[#allocation3 + $0x268] sm:$0xff]
    %v7160 = vld [vmem:[#allocation3 + $0x270] sm:$0xff]
    %v7161 = vld [vmem:[#allocation3 + $0x278] sm:$0xff]
    %v7162 = vld [vmem:[#allocation3 + $0x280] sm:$0xff]
    %v7163 = vld [vmem:[#allocation3 + $0x288] sm:$0xff]
    %v7164 = vld [vmem:[#allocation3 + $0x290] sm:$0xff]
    %v7165 = vld [vmem:[#allocation3 + $0x298] sm:$0xff]
    %v7166 = vld [vmem:[#allocation3 + $0x2a0] sm:$0xff]
    %v7167 = vld [vmem:[#allocation3 + $0x2a8] sm:$0xff]
    %v7168 = vld [vmem:[#allocation3 + $0x2b0] sm:$0xff]
    %v7169 = vld [vmem:[#allocation3 + $0x2b8] sm:$0xff]
    %v7170 = vld [vmem:[#allocation3 + $0x2c0] sm:$0xff]
    %v7171 = vld [vmem:[#allocation3 + $0x2c8] sm:$0xff]
    %v7172 = vld [vmem:[#allocation3 + $0x2d0] sm:$0xff]
    %v7173 = vld [vmem:[#allocation3 + $0x2d8] sm:$0xff]
    %v7174 = vld [vmem:[#allocation3 + $0x2e0] sm:$0xff]
    %v7175 = vld [vmem:[#allocation3 + $0x2e8] sm:$0xff]
    %v7176 = vld [vmem:[#allocation3 + $0x2f0] sm:$0xff]
    %v7177 = vld [vmem:[#allocation3 + $0x2f8] sm:$0xff]
    %v7178 = vld [vmem:[#allocation3 + $0x300] sm:$0xff]
    %v7179 = vld [vmem:[#allocation3 + $0x308] sm:$0xff]
    %v7180 = vld [vmem:[#allocation3 + $0x310] sm:$0xff]
    %v7181 = vld [vmem:[#allocation3 + $0x318] sm:$0xff]
    %v7182 = vld [vmem:[#allocation3 + $0x320] sm:$0xff]
    %v7183 = vld [vmem:[#allocation3 + $0x328] sm:$0xff]
    %v7184 = vld [vmem:[#allocation3 + $0x330] sm:$0xff]
    %v7185 = vld [vmem:[#allocation3 + $0x338] sm:$0xff]
    %v7186 = vld [vmem:[#allocation3 + $0x340] sm:$0xff]
    %v7187 = vld [vmem:[#allocation3 + $0x348] sm:$0xff]
    %v7188 = vld [vmem:[#allocation3 + $0x350] sm:$0xff]
    %v7189 = vld [vmem:[#allocation3 + $0x358] sm:$0xff]
    %v7190 = vld [vmem:[#allocation3 + $0x360] sm:$0xff]
    %v7191 = vld [vmem:[#allocation3 + $0x368] sm:$0xff]
    %v7192 = vld [vmem:[#allocation3 + $0x370] sm:$0xff]
    %v7193 = vld [vmem:[#allocation3 + $0x378] sm:$0xff]
    %v7194 = vld [vmem:[#allocation3 + $0x380] sm:$0xff]
    %v7195 = vld [vmem:[#allocation3 + $0x388] sm:$0xff]
    %v7196 = vld [vmem:[#allocation3 + $0x390] sm:$0xff]
    %v7197 = vld [vmem:[#allocation3 + $0x398] sm:$0xff]
    %v7198 = vld [vmem:[#allocation3 + $0x3a0] sm:$0xff]
    %v7199 = vld [vmem:[#allocation3 + $0x3a8] sm:$0xff]
    %v7200 = vld [vmem:[#allocation3 + $0x3b0] sm:$0xff]
    %v7201 = vld [vmem:[#allocation3 + $0x3b8] sm:$0xff]
    %v7202 = vld [vmem:[#allocation3 + $0x3c0] sm:$0xff]
    %v7203 = vld [vmem:[#allocation3 + $0x3c8] sm:$0xff]
    %v7204 = vld [vmem:[#allocation3 + $0x3d0] sm:$0xff]
    %v7205 = vld [vmem:[#allocation3 + $0x3d8] sm:$0xff]
    %v7206 = vld [vmem:[#allocation3 + $0x3e0] sm:$0xff]
    %v7207 = vld [vmem:[#allocation3 + $0x3e8] sm:$0xff]
    %v7208 = vld [vmem:[#allocation3 + $0x3f0] sm:$0xff]
    %v7209 = vld [vmem:[#allocation3 + $0x3f8] sm:$0xff]
    %v7210 = vld [vmem:[#allocation3 + $0x400] sm:$0xff]
    %v7211 = vld [vmem:[#allocation3 + $0x408] sm:$0xff]
    %v7212 = vld [vmem:[#allocation3 + $0x410] sm:$0xff]
    %v7213 = vld [vmem:[#allocation3 + $0x418] sm:$0xff]
    %v7214 = vld [vmem:[#allocation3 + $0x420] sm:$0xff]
    %v7215 = vld [vmem:[#allocation3 + $0x428] sm:$0xff]
    %v7216 = vld [vmem:[#allocation3 + $0x430] sm:$0xff]
    %v7217 = vld [vmem:[#allocation3 + $0x438] sm:$0xff]
    %v7218 = vld [vmem:[#allocation3 + $0x440] sm:$0xff]
    %v7219 = vld [vmem:[#allocation3 + $0x448] sm:$0xff]
    %v7220 = vld [vmem:[#allocation3 + $0x450] sm:$0xff]
    %v7221 = vld [vmem:[#allocation3 + $0x458] sm:$0xff]
    %v7222 = vld [vmem:[#allocation3 + $0x460] sm:$0xff]
    %v7223 = vld [vmem:[#allocation3 + $0x468] sm:$0xff]
    %v7224 = vld [vmem:[#allocation3 + $0x470] sm:$0xff]
    %v7225 = vld [vmem:[#allocation3 + $0x478] sm:$0xff]
    %v7226 = vld [vmem:[#allocation3 + $0x480] sm:$0xff]
    %v7227 = vld [vmem:[#allocation3 + $0x488] sm:$0xff]
    %v7228 = vld [vmem:[#allocation3 + $0x490] sm:$0xff]
    %v7229 = vld [vmem:[#allocation3 + $0x498] sm:$0xff]
    %v7230 = vld [vmem:[#allocation3 + $0x4a0] sm:$0xff]
    %v7231 = vld [vmem:[#allocation3 + $0x4a8] sm:$0xff]
    %v7232 = vld [vmem:[#allocation3 + $0x4b0] sm:$0xff]
    %v7233 = vld [vmem:[#allocation3 + $0x4b8] sm:$0xff]
    %v7234 = vld [vmem:[#allocation3 + $0x4c0] sm:$0xff]
    %v7235 = vld [vmem:[#allocation3 + $0x4c8] sm:$0xff]
    %v7236 = vld [vmem:[#allocation3 + $0x4d0] sm:$0xff]
    %v7237 = vld [vmem:[#allocation3 + $0x4d8] sm:$0xff]
    %v7238 = vld [vmem:[#allocation3 + $0x4e0] sm:$0xff]
    %v7239 = vld [vmem:[#allocation3 + $0x4e8] sm:$0xff]
    %v7240 = vld [vmem:[#allocation3 + $0x4f0] sm:$0xff]
    %v7241 = vld [vmem:[#allocation3 + $0x4f8] sm:$0xff]
    %7242 = vmatprep.subr.mxu0 0.0
    %7243 = vmatpush1.msra.mxu0 %v7097
    %7244 = vmatprep.subr.mxu0 0.0
    %7245 = vmatpush1.msra.mxu0 %v7096
    %7246 = vmatprep.subr.mxu0 0.0
    %7247 = vmatpush1.msra.mxu0 %v7095
    %7248 = vmatprep.subr.mxu0 0.0
    %7249 = vmatpush1.msra.mxu0 %v7094
    %7250 = vmatprep.subr.mxu0 0.0
    %7251 = vmatpush1.msra.mxu0 %v7093
    %7252 = vmatprep.subr.mxu0 0.0
    %7253 = vmatpush1.msra.mxu0 %v7092
    %7254 = vmatprep.subr.mxu0 0.0
    %7255 = vmatpush1.msra.mxu0 %v7091
    %7256 = vmatprep.subr.mxu0 0.0
    %7257 = vmatpush1.msra.mxu0 %v7090
    %7258 = vmatprep.subr.mxu0 0.0
    %7259 = vmatpush1.msra.mxu0 %v7089
    %7260 = vmatprep.subr.mxu0 0.0
    %7261 = vmatpush1.msra.mxu0 %v7088
    %7262 = vmatprep.subr.mxu0 0.0
    %7263 = vmatpush1.msra.mxu0 %v7087
    %7264 = vmatprep.subr.mxu0 0.0
    %7265 = vmatpush1.msra.mxu0 %v7086
    %7266 = vmatprep.subr.mxu0 0.0
    %7267 = vmatpush1.msra.mxu0 %v7085
    %7268 = vmatprep.subr.mxu0 0.0
    %7269 = vmatpush1.msra.mxu0 %v7084
    %7270 = vmatprep.subr.mxu0 0.0
    %7271 = vmatpush1.msra.mxu0 %v7083
    %7272 = vmatprep.subr.mxu0 0.0
    %7273 = vmatpush1.msra.mxu0 %v7082
    %7274 = vmatprep.subr.mxu0 0.0
    %7275 = vmatpush2.msra.mxu0 %v7113
    %7276 = vmatprep.subr.mxu0 0.0
    %7277 = vmatpush2.msra.mxu0 %v7112
    %7278 = vmatprep.subr.mxu0 0.0
    %7279 = vmatpush2.msra.mxu0 %v7111
    %7280 = vmatprep.subr.mxu0 0.0
    %7281 = vmatpush2.msra.mxu0 %v7110
    %7282 = vmatprep.subr.mxu0 0.0
    %7283 = vmatpush2.msra.mxu0 %v7109
    %7284 = vmatprep.subr.mxu0 0.0
    %7285 = vmatpush2.msra.mxu0 %v7108
    %7286 = vmatprep.subr.mxu0 0.0
    %7287 = vmatpush2.msra.mxu0 %v7107
    %7288 = vmatprep.subr.mxu0 0.0
    %7289 = vmatpush2.msra.mxu0 %v7106
    %7290 = vmatprep.subr.mxu0 0.0
    %7291 = vmatpush2.msra.mxu0 %v7105
    %7292 = vmatprep.subr.mxu0 0.0
    %7293 = vmatpush2.msra.mxu0 %v7104
    %7294 = vmatprep.subr.mxu0 0.0
    %7295 = vmatpush2.msra.mxu0 %v7103
    %7296 = vmatprep.subr.mxu0 0.0
    %7297 = vmatpush2.msra.mxu0 %v7102
    %7298 = vmatprep.subr.mxu0 0.0
    %7299 = vmatpush2.msra.mxu0 %v7101
    %7300 = vmatprep.subr.mxu0 0.0
    %7301 = vmatpush2.msra.mxu0 %v7100
    %7302 = vmatprep.subr.mxu0 0.0
    %7303 = vmatpush2.msra.mxu0 %v7099
    %7304 = vmatprep.subr.mxu0 0.0
    %7305 = vmatpush2.msra.mxu0 %v7098
    %7306 = vmatprep.mubr.f32.mxu0 %v7053
    %7307 = vmatmul.mubr.f32.gmra.mxu0 %v7050
    %v7308 = vpop.f32.mrf.mxu0
    %v7309 = vadd.f32 0.0, %v7308
    %v7310 = vpop.f32.mrf.mxu0
    %7311 = vdwg.mxu0
    %7312 = vmatprep.subr.mxu0 0.0
    %7313 = vmatpush1.msra.mxu0 %v7129
    %7314 = vmatprep.subr.mxu0 0.0
    %7315 = vmatpush1.msra.mxu0 %v7128
    %7316 = vmatprep.subr.mxu0 0.0
    %7317 = vmatpush1.msra.mxu0 %v7127
    %7318 = vmatprep.subr.mxu0 0.0
    %7319 = vmatpush1.msra.mxu0 %v7126
    %7320 = vmatprep.subr.mxu0 0.0
    %7321 = vmatpush1.msra.mxu0 %v7125
    %7322 = vmatprep.subr.mxu0 0.0
    %7323 = vmatpush1.msra.mxu0 %v7124
    %7324 = vmatprep.subr.mxu0 0.0
    %7325 = vmatpush1.msra.mxu0 %v7123
    %7326 = vmatprep.subr.mxu0 0.0
    %7327 = vmatpush1.msra.mxu0 %v7122
    %7328 = vmatprep.subr.mxu0 0.0
    %7329 = vmatpush1.msra.mxu0 %v7121
    %7330 = vmatprep.subr.mxu0 0.0
    %7331 = vmatpush1.msra.mxu0 %v7120
    %7332 = vmatprep.subr.mxu0 0.0
    %7333 = vmatpush1.msra.mxu0 %v7119
    %7334 = vmatprep.subr.mxu0 0.0
    %7335 = vmatpush1.msra.mxu0 %v7118
    %7336 = vmatprep.subr.mxu0 0.0
    %7337 = vmatpush1.msra.mxu0 %v7117
    %7338 = vmatprep.subr.mxu0 0.0
    %7339 = vmatpush1.msra.mxu0 %v7116
    %7340 = vmatprep.subr.mxu0 0.0
    %7341 = vmatpush1.msra.mxu0 %v7115
    %7342 = vmatprep.subr.mxu0 0.0
    %7343 = vmatpush1.msra.mxu0 %v7114
    %7344 = vmatprep.subr.mxu0 0.0
    %7345 = vmatpush2.msra.mxu0 %v7145
    %7346 = vmatprep.subr.mxu0 0.0
    %7347 = vmatpush2.msra.mxu0 %v7144
    %7348 = vmatprep.subr.mxu0 0.0
    %7349 = vmatpush2.msra.mxu0 %v7143
    %7350 = vmatprep.subr.mxu0 0.0
    %7351 = vmatpush2.msra.mxu0 %v7142
    %7352 = vmatprep.subr.mxu0 0.0
    %7353 = vmatpush2.msra.mxu0 %v7141
    %7354 = vmatprep.subr.mxu0 0.0
    %7355 = vmatpush2.msra.mxu0 %v7140
    %7356 = vmatprep.subr.mxu0 0.0
    %7357 = vmatpush2.msra.mxu0 %v7139
    %7358 = vmatprep.subr.mxu0 0.0
    %7359 = vmatpush2.msra.mxu0 %v7138
    %7360 = vmatprep.subr.mxu0 0.0
    %7361 = vmatpush2.msra.mxu0 %v7137
    %7362 = vmatprep.subr.mxu0 0.0
    %7363 = vmatpush2.msra.mxu0 %v7136
    %7364 = vmatprep.subr.mxu0 0.0
    %7365 = vmatpush2.msra.mxu0 %v7135
    %7366 = vmatprep.subr.mxu0 0.0
    %7367 = vmatpush2.msra.mxu0 %v7134
    %7368 = vmatprep.subr.mxu0 0.0
    %7369 = vmatpush2.msra.mxu0 %v7133
    %7370 = vmatprep.subr.mxu0 0.0
    %7371 = vmatpush2.msra.mxu0 %v7132
    %7372 = vmatprep.subr.mxu0 0.0
    %7373 = vmatpush2.msra.mxu0 %v7131
    %7374 = vmatprep.subr.mxu0 0.0
    %7375 = vmatpush2.msra.mxu0 %v7130
    %7376 = vmatprep.mubr.f32.mxu0 %v7061
    %7377 = vmatmul.mubr.f32.gmra.mxu0 %v7057
    %v7378 = vpop.f32.mrf.mxu0
    %v7379 = vadd.f32 %v7309, %v7378
    %v7380 = vpop.f32.mrf.mxu0
    %7381 = vdwg.mxu0
    %7382 = vmatprep.subr.mxu0 0.0
    %7383 = vmatpush1.msra.mxu0 %v7161
    %7384 = vmatprep.subr.mxu0 0.0
    %7385 = vmatpush1.msra.mxu0 %v7160
    %7386 = vmatprep.subr.mxu0 0.0
    %7387 = vmatpush1.msra.mxu0 %v7159
    %7388 = vmatprep.subr.mxu0 0.0
    %7389 = vmatpush1.msra.mxu0 %v7158
    %7390 = vmatprep.subr.mxu0 0.0
    %7391 = vmatpush1.msra.mxu0 %v7157
    %7392 = vmatprep.subr.mxu0 0.0
    %7393 = vmatpush1.msra.mxu0 %v7156
    %7394 = vmatprep.subr.mxu0 0.0
    %7395 = vmatpush1.msra.mxu0 %v7155
    %7396 = vmatprep.subr.mxu0 0.0
    %7397 = vmatpush1.msra.mxu0 %v7154
    %7398 = vmatprep.subr.mxu0 0.0
    %7399 = vmatpush1.msra.mxu0 %v7153
    %7400 = vmatprep.subr.mxu0 0.0
    %7401 = vmatpush1.msra.mxu0 %v7152
    %7402 = vmatprep.subr.mxu0 0.0
    %7403 = vmatpush1.msra.mxu0 %v7151
    %7404 = vmatprep.subr.mxu0 0.0
    %7405 = vmatpush1.msra.mxu0 %v7150
    %7406 = vmatprep.subr.mxu0 0.0
    %7407 = vmatpush1.msra.mxu0 %v7149
    %7408 = vmatprep.subr.mxu0 0.0
    %7409 = vmatpush1.msra.mxu0 %v7148
    %7410 = vmatprep.subr.mxu0 0.0
    %7411 = vmatpush1.msra.mxu0 %v7147
    %7412 = vmatprep.subr.mxu0 0.0
    %7413 = vmatpush1.msra.mxu0 %v7146
    %7414 = vmatprep.subr.mxu0 0.0
    %7415 = vmatpush2.msra.mxu0 %v7177
    %7416 = vmatprep.subr.mxu0 0.0
    %7417 = vmatpush2.msra.mxu0 %v7176
    %7418 = vmatprep.subr.mxu0 0.0
    %7419 = vmatpush2.msra.mxu0 %v7175
    %7420 = vmatprep.subr.mxu0 0.0
    %7421 = vmatpush2.msra.mxu0 %v7174
    %7422 = vmatprep.subr.mxu0 0.0
    %7423 = vmatpush2.msra.mxu0 %v7173
    %7424 = vmatprep.subr.mxu0 0.0
    %7425 = vmatpush2.msra.mxu0 %v7172
    %7426 = vmatprep.subr.mxu0 0.0
    %7427 = vmatpush2.msra.mxu0 %v7171
    %7428 = vmatprep.subr.mxu0 0.0
    %7429 = vmatpush2.msra.mxu0 %v7170
    %7430 = vmatprep.subr.mxu0 0.0
    %7431 = vmatpush2.msra.mxu0 %v7169
    %7432 = vmatprep.subr.mxu0 0.0
    %7433 = vmatpush2.msra.mxu0 %v7168
    %7434 = vmatprep.subr.mxu0 0.0
    %7435 = vmatpush2.msra.mxu0 %v7167
    %7436 = vmatprep.subr.mxu0 0.0
    %7437 = vmatpush2.msra.mxu0 %v7166
    %7438 = vmatprep.subr.mxu0 0.0
    %7439 = vmatpush2.msra.mxu0 %v7165
    %7440 = vmatprep.subr.mxu0 0.0
    %7441 = vmatpush2.msra.mxu0 %v7164
    %7442 = vmatprep.subr.mxu0 0.0
    %7443 = vmatpush2.msra.mxu0 %v7163
    %7444 = vmatprep.subr.mxu0 0.0
    %7445 = vmatpush2.msra.mxu0 %v7162
    %7446 = vmatprep.mubr.f32.mxu0 %v7069
    %7447 = vmatmul.mubr.f32.gmra.mxu0 %v7065
    %v7448 = vpop.f32.mrf.mxu0
    %v7449 = vadd.f32 %v7379, %v7448
    %v7450 = vpop.f32.mrf.mxu0
    %7451 = vdwg.mxu0
    %7452 = vmatprep.subr.mxu0 0.0
    %7453 = vmatpush1.msra.mxu0 %v7193
    %7454 = vmatprep.subr.mxu0 0.0
    %7455 = vmatpush1.msra.mxu0 %v7192
    %7456 = vmatprep.subr.mxu0 0.0
    %7457 = vmatpush1.msra.mxu0 %v7191
    %7458 = vmatprep.subr.mxu0 0.0
    %7459 = vmatpush1.msra.mxu0 %v7190
    %7460 = vmatprep.subr.mxu0 0.0
    %7461 = vmatpush1.msra.mxu0 %v7189
    %7462 = vmatprep.subr.mxu0 0.0
    %7463 = vmatpush1.msra.mxu0 %v7188
    %7464 = vmatprep.subr.mxu0 0.0
    %7465 = vmatpush1.msra.mxu0 %v7187
    %7466 = vmatprep.subr.mxu0 0.0
    %7467 = vmatpush1.msra.mxu0 %v7186
    %7468 = vmatprep.subr.mxu0 0.0
    %7469 = vmatpush1.msra.mxu0 %v7185
    %7470 = vmatprep.subr.mxu0 0.0
    %7471 = vmatpush1.msra.mxu0 %v7184
    %7472 = vmatprep.subr.mxu0 0.0
    %7473 = vmatpush1.msra.mxu0 %v7183
    %7474 = vmatprep.subr.mxu0 0.0
    %7475 = vmatpush1.msra.mxu0 %v7182
    %7476 = vmatprep.subr.mxu0 0.0
    %7477 = vmatpush1.msra.mxu0 %v7181
    %7478 = vmatprep.subr.mxu0 0.0
    %7479 = vmatpush1.msra.mxu0 %v7180
    %7480 = vmatprep.subr.mxu0 0.0
    %7481 = vmatpush1.msra.mxu0 %v7179
    %7482 = vmatprep.subr.mxu0 0.0
    %7483 = vmatpush1.msra.mxu0 %v7178
    %7484 = vmatprep.subr.mxu0 0.0
    %7485 = vmatpush2.msra.mxu0 %v7209
    %7486 = vmatprep.subr.mxu0 0.0
    %7487 = vmatpush2.msra.mxu0 %v7208
    %7488 = vmatprep.subr.mxu0 0.0
    %7489 = vmatpush2.msra.mxu0 %v7207
    %7490 = vmatprep.subr.mxu0 0.0
    %7491 = vmatpush2.msra.mxu0 %v7206
    %7492 = vmatprep.subr.mxu0 0.0
    %7493 = vmatpush2.msra.mxu0 %v7205
    %7494 = vmatprep.subr.mxu0 0.0
    %7495 = vmatpush2.msra.mxu0 %v7204
    %7496 = vmatprep.subr.mxu0 0.0
    %7497 = vmatpush2.msra.mxu0 %v7203
    %7498 = vmatprep.subr.mxu0 0.0
    %7499 = vmatpush2.msra.mxu0 %v7202
    %7500 = vmatprep.subr.mxu0 0.0
    %7501 = vmatpush2.msra.mxu0 %v7201
    %7502 = vmatprep.subr.mxu0 0.0
    %7503 = vmatpush2.msra.mxu0 %v7200
    %7504 = vmatprep.subr.mxu0 0.0
    %7505 = vmatpush2.msra.mxu0 %v7199
    %7506 = vmatprep.subr.mxu0 0.0
    %7507 = vmatpush2.msra.mxu0 %v7198
    %7508 = vmatprep.subr.mxu0 0.0
    %7509 = vmatpush2.msra.mxu0 %v7197
    %7510 = vmatprep.subr.mxu0 0.0
    %7511 = vmatpush2.msra.mxu0 %v7196
    %7512 = vmatprep.subr.mxu0 0.0
    %7513 = vmatpush2.msra.mxu0 %v7195
    %7514 = vmatprep.subr.mxu0 0.0
    %7515 = vmatpush2.msra.mxu0 %v7194
    %7516 = vmatprep.mubr.f32.mxu0 %v7077
    %7517 = vmatmul.mubr.f32.gmra.mxu0 %v7073
    %v7518 = vpop.f32.mrf.mxu0
    %v7519 = vadd.f32 %v7449, %v7518
    %v7520 = vpop.f32.mrf.mxu0
    %7521 = vdwg.mxu0
    %7522 = vmatprep.subr.mxu0 0.0
    %7523 = vmatpush1.msra.mxu0 %v7225
    %7524 = vmatprep.subr.mxu0 0.0
    %7525 = vmatpush1.msra.mxu0 %v7224
    %7526 = vmatprep.subr.mxu0 0.0
    %7527 = vmatpush1.msra.mxu0 %v7223
    %7528 = vmatprep.subr.mxu0 0.0
    %7529 = vmatpush1.msra.mxu0 %v7222
    %7530 = vmatprep.subr.mxu0 0.0
    %7531 = vmatpush1.msra.mxu0 %v7221
    %7532 = vmatprep.subr.mxu0 0.0
    %7533 = vmatpush1.msra.mxu0 %v7220
    %7534 = vmatprep.subr.mxu0 0.0
    %7535 = vmatpush1.msra.mxu0 %v7219
    %7536 = vmatprep.subr.mxu0 0.0
    %7537 = vmatpush1.msra.mxu0 %v7218
    %7538 = vmatprep.subr.mxu0 0.0
    %7539 = vmatpush1.msra.mxu0 %v7217
    %7540 = vmatprep.subr.mxu0 0.0
    %7541 = vmatpush1.msra.mxu0 %v7216
    %7542 = vmatprep.subr.mxu0 0.0
    %7543 = vmatpush1.msra.mxu0 %v7215
    %7544 = vmatprep.subr.mxu0 0.0
    %7545 = vmatpush1.msra.mxu0 %v7214
    %7546 = vmatprep.subr.mxu0 0.0
    %7547 = vmatpush1.msra.mxu0 %v7213
    %7548 = vmatprep.subr.mxu0 0.0
    %7549 = vmatpush1.msra.mxu0 %v7212
    %7550 = vmatprep.subr.mxu0 0.0
    %7551 = vmatpush1.msra.mxu0 %v7211
    %7552 = vmatprep.subr.mxu0 0.0
    %7553 = vmatpush1.msra.mxu0 %v7210
    %7554 = vmatprep.subr.mxu0 0.0
    %7555 = vmatpush2.msra.mxu0 %v7241
    %7556 = vmatprep.subr.mxu0 0.0
    %7557 = vmatpush2.msra.mxu0 %v7240
    %7558 = vmatprep.subr.mxu0 0.0
    %7559 = vmatpush2.msra.mxu0 %v7239
    %7560 = vmatprep.subr.mxu0 0.0
    %7561 = vmatpush2.msra.mxu0 %v7238
    %7562 = vmatprep.subr.mxu0 0.0
    %7563 = vmatpush2.msra.mxu0 %v7237
    %7564 = vmatprep.subr.mxu0 0.0
    %7565 = vmatpush2.msra.mxu0 %v7236
    %7566 = vmatprep.subr.mxu0 0.0
    %7567 = vmatpush2.msra.mxu0 %v7235
    %7568 = vmatprep.subr.mxu0 0.0
    %7569 = vmatpush2.msra.mxu0 %v7234
    %7570 = vmatprep.subr.mxu0 0.0
    %7571 = vmatpush2.msra.mxu0 %v7233
    %7572 = vmatprep.subr.mxu0 0.0
    %7573 = vmatpush2.msra.mxu0 %v7232
    %7574 = vmatprep.subr.mxu0 0.0
    %7575 = vmatpush2.msra.mxu0 %v7231
    %7576 = vmatprep.subr.mxu0 0.0
    %7577 = vmatpush2.msra.mxu0 %v7230
    %7578 = vmatprep.subr.mxu0 0.0
    %7579 = vmatpush2.msra.mxu0 %v7229
    %7580 = vmatprep.subr.mxu0 0.0
    %7581 = vmatpush2.msra.mxu0 %v7228
    %7582 = vmatprep.subr.mxu0 0.0
    %7583 = vmatpush2.msra.mxu0 %v7227
    %7584 = vmatprep.subr.mxu0 0.0
    %7585 = vmatpush2.msra.mxu0 %v7226
    %7586 = vmatprep.mubr.f32.mxu0 %v7081
    %7587 = vmatmul.mubr.f32.gmra.mxu0 %v7079
    %v7588 = vpop.f32.mrf.mxu0
    %v7589 = vadd.f32 %v7519, %v7588
    %v7590 = vpop.f32.mrf.mxu0
    %7591 = vdwg.mxu0
    %v7592 = vmax.f32 %v7589, 0.0
    %v7593 = vld [vmem:[%s4] sm:$0xff]
    %v7594 = vld [vmem:[%s4 + $0x8] sm:$0xff]
    %v7595 = vld [vmem:[%s4 + $0x10] sm:$0xff]
    %v7596 = vld [vmem:[%s4 + $0x18] sm:$0xff]
    %v7597 = vld [vmem:[%s4 + $0x20] sm:$0xff]
    %v7598 = vld [vmem:[%s4 + $0x28] sm:$0xff]
    %v7599 = vld [vmem:[%s4 + $0x30] sm:$0xff]
    %v7600 = vld [vmem:[%s4 + $0x38] sm:$0xff]
    %vm7601 = vcmask 523264
    %v7603 = vsel %vm7601, %v7592, 0
    %7605 = vmatprep.subr.mxu0 0.0
    %7606 = vmatpush1.msra.mxu0 0.0
    %7607 = vmatprep.subr.mxu0 0.0
    %7608 = vmatpush1.msra.mxu0 0.0
    %7609 = vmatprep.subr.mxu0 0.0
    %7610 = vmatpush1.msra.mxu0 0.0
    %7611 = vmatprep.subr.mxu0 0.0
    %7612 = vmatpush1.msra.mxu0 0.0
    %7613 = vmatprep.subr.mxu0 0.0
    %7614 = vmatpush1.msra.mxu0 0.0
    %7615 = vmatprep.subr.mxu0 0.0
    %7616 = vmatpush1.msra.mxu0 0.0
    %7617 = vmatprep.subr.mxu0 0.0
    %7618 = vmatpush1.msra.mxu0 0.0
    %7619 = vmatprep.subr.mxu0 0.0
    %7620 = vmatpush1.msra.mxu0 0.0
    %7621 = vmatprep.subr.mxu0 0.0
    %7622 = vmatpush1.msra.mxu0 %v7600
    %7623 = vmatprep.subr.mxu0 0.0
    %7624 = vmatpush1.msra.mxu0 %v7599
    %7625 = vmatprep.subr.mxu0 0.0
    %7626 = vmatpush1.msra.mxu0 %v7598
    %7627 = vmatprep.subr.mxu0 0.0
    %7628 = vmatpush1.msra.mxu0 %v7597
    %7629 = vmatprep.subr.mxu0 0.0
    %7630 = vmatpush1.msra.mxu0 %v7596
    %7631 = vmatprep.subr.mxu0 0.0
    %7632 = vmatpush1.msra.mxu0 %v7595
    %7633 = vmatprep.subr.mxu0 0.0
    %7634 = vmatpush1.msra.mxu0 %v7594
    %7635 = vmatprep.subr.mxu0 0.0
    %7636 = vmatpush1.msra.mxu0 %v7593
    %7637 = vmatprep.subr.mxu0 0.0
    %7638 = vmatpush2.msra.mxu0 0.0
    %7639 = vmatprep.subr.mxu0 0.0
    %7640 = vmatpush2.msra.mxu0 0.0
    %7641 = vmatprep.subr.mxu0 0.0
    %7642 = vmatpush2.msra.mxu0 0.0
    %7643 = vmatprep.subr.mxu0 0.0
    %7644 = vmatpush2.msra.mxu0 0.0
    %7645 = vmatprep.subr.mxu0 0.0
    %7646 = vmatpush2.msra.mxu0 0.0
    %7647 = vmatprep.subr.mxu0 0.0
    %7648 = vmatpush2.msra.mxu0 0.0
    %7649 = vmatprep.subr.mxu0 0.0
    %7650 = vmatpush2.msra.mxu0 0.0
    %7651 = vmatprep.subr.mxu0 0.0
    %7652 = vmatpush2.msra.mxu0 0.0
    %7653 = vmatprep.subr.mxu0 0.0
    %7654 = vmatpush2.msra.mxu0 0.0
    %7655 = vmatprep.subr.mxu0 0.0
    %7656 = vmatpush2.msra.mxu0 0.0
    %7657 = vmatprep.subr.mxu0 0.0
    %7658 = vmatpush2.msra.mxu0 0.0
    %7659 = vmatprep.subr.mxu0 0.0
    %7660 = vmatpush2.msra.mxu0 0.0
    %7661 = vmatprep.subr.mxu0 0.0
    %7662 = vmatpush2.msra.mxu0 0.0
    %7663 = vmatprep.subr.mxu0 0.0
    %7664 = vmatpush2.msra.mxu0 0.0
    %7665 = vmatprep.subr.mxu0 0.0
    %7666 = vmatpush2.msra.mxu0 0.0
    %7667 = vmatprep.subr.mxu0 0.0
    %7668 = vmatpush2.msra.mxu0 0.0
    %7669 = vmatprep.mubr.f32.mxu0 0.0
    %7670 = vmatmul.mubr.f32.gmra.mxu0 %v7603
    %v7671 = vpop.f32.mrf.mxu0
    %v7672 = vadd.f32 0.0, %v7671
    %v7673 = vpop.f32.mrf.mxu0
    %7674 = vdwg.mxu0
    %v7675 = vmax.f32 %v7672, 0.0
    %v7676 = vld [vmem:[%s5] sm:$0xff]
    %v7677 = vld [vmem:[%s5 + $0x8] sm:$0xff]
    %v7678 = vld [vmem:[%s5 + $0x10] sm:$0xff]
    %v7679 = vld [vmem:[%s5 + $0x18] sm:$0xff]
    %vm7680 = vcmask 261120
    %v7682 = vsel %vm7680, %v7675, 0
    %7684 = vmatprep.subr.mxu0 0.0
    %7685 = vmatpush1.msra.mxu0 0.0
    %7686 = vmatprep.subr.mxu0 0.0
    %7687 = vmatpush1.msra.mxu0 0.0
    %7688 = vmatprep.subr.mxu0 0.0
    %7689 = vmatpush1.msra.mxu0 0.0
    %7690 = vmatprep.subr.mxu0 0.0
    %7691 = vmatpush1.msra.mxu0 0.0
    %7692 = vmatprep.subr.mxu0 0.0
    %7693 = vmatpush1.msra.mxu0 0.0
    %7694 = vmatprep.subr.mxu0 0.0
    %7695 = vmatpush1.msra.mxu0 0.0
    %7696 = vmatprep.subr.mxu0 0.0
    %7697 = vmatpush1.msra.mxu0 0.0
    %7698 = vmatprep.subr.mxu0 0.0
    %7699 = vmatpush1.msra.mxu0 0.0
    %7700 = vmatprep.subr.mxu0 0.0
    %7701 = vmatpush1.msra.mxu0 0.0
    %7702 = vmatprep.subr.mxu0 0.0
    %7703 = vmatpush1.msra.mxu0 0.0
    %7704 = vmatprep.subr.mxu0 0.0
    %7705 = vmatpush1.msra.mxu0 0.0
    %7706 = vmatprep.subr.mxu0 0.0
    %7707 = vmatpush1.msra.mxu0 0.0
    %7708 = vmatprep.subr.mxu0 0.0
    %7709 = vmatpush1.msra.mxu0 %v7679
    %7710 = vmatprep.subr.mxu0 0.0
    %7711 = vmatpush1.msra.mxu0 %v7678
    %7712 = vmatprep.subr.mxu0 0.0
    %7713 = vmatpush1.msra.mxu0 %v7677
    %7714 = vmatprep.subr.mxu0 0.0
    %7715 = vmatpush1.msra.mxu0 %v7676
    %7716 = vmatprep.subr.mxu0 0.0
    %7717 = vmatpush2.msra.mxu0 0.0
    %7718 = vmatprep.subr.mxu0 0.0
    %7719 = vmatpush2.msra.mxu0 0.0
    %7720 = vmatprep.subr.mxu0 0.0
    %7721 = vmatpush2.msra.mxu0 0.0
    %7722 = vmatprep.subr.mxu0 0.0
    %7723 = vmatpush2.msra.mxu0 0.0
    %7724 = vmatprep.subr.mxu0 0.0
    %7725 = vmatpush2.msra.mxu0 0.0
    %7726 = vmatprep.subr.mxu0 0.0
    %7727 = vmatpush2.msra.mxu0 0.0
    %7728 = vmatprep.subr.mxu0 0.0
    %7729 = vmatpush2.msra.mxu0 0.0
    %7730 = vmatprep.subr.mxu0 0.0
    %7731 = vmatpush2.msra.mxu0 0.0
    %7732 = vmatprep.subr.mxu0 0.0
    %7733 = vmatpush2.msra.mxu0 0.0
    %7734 = vmatprep.subr.mxu0 0.0
    %7735 = vmatpush2.msra.mxu0 0.0
    %7736 = vmatprep.subr.mxu0 0.0
    %7737 = vmatpush2.msra.mxu0 0.0
    %7738 = vmatprep.subr.mxu0 0.0
    %7739 = vmatpush2.msra.mxu0 0.0
    %7740 = vmatprep.subr.mxu0 0.0
    %7741 = vmatpush2.msra.mxu0 0.0
    %7742 = vmatprep.subr.mxu0 0.0
    %7743 = vmatpush2.msra.mxu0 0.0
    %7744 = vmatprep.subr.mxu0 0.0
    %7745 = vmatpush2.msra.mxu0 0.0
    %7746 = vmatprep.subr.mxu0 0.0
    %7747 = vmatpush2.msra.mxu0 0.0
    %7748 = vmatprep.mubr.f32.mxu0 0.0
    %7749 = vmatmul.mubr.f32.gmra.mxu0 %v7682
    %v7750 = vpop.f32.mrf.mxu0
    %v7751 = vadd.f32 0.0, %v7750
    %v7752 = vpop.f32.mrf.mxu0
    %7753 = vdwg.mxu0
    %7754 = vst [vmem:[#allocation8] sm:$0x3] %v7751
    // Predicated region
    $region90: #{forward.1} parent=1 // pred_check
      _
    $region91: #{forward.1} parent=1 // pred_check_branch
      %7756 = sbr.rel (0) target = $region93
    $region92: #{forward.1} parent=1 // pred_region
      %s7758 = ssub.s32 32, 32
      %7759 = vsyncadd [#allocation7], %s7758
      %s7761 = sshll.u32 [#allocation8], 4
      %s7762 = int_to_ptr.vmem [resolvable:$true] %s7761
      %7764 = dma.vmem_to_hbm [thread:$0]  %s7762, 32, %s6, [#allocation7]
    $region93: #{forward.1} parent=1 // pred_fallthru
      _
    // Predicated region
    $region94: #{forward.1} parent=1 // pred_check
      _
    $region95: #{forward.1} parent=1 // pred_check_branch
      %7766 = sbr.rel (0) target = $region97
    $region96: #{forward.1} parent=1 // pred_region
      %7767 = dma.done [#allocation7], 32
    $region97: #{forward.1} parent=1 // pred_fallthru
      _
    %7768 = vsyncpa [#allocation6], 1
    %7769 = vsyncpa [#allocation7], 1
  %7770 = vsyncmov [#allocation4]
  %s7771 = vpop.sfrf %7770
  %p7772 = scmp.eq.s32.totalorder %s7771, 0
  %p7773 = pneg %p7772
  %7775 = shalt.err (%p7773)
  %s7776 = scalar_lea.sflag [#allocation4], 1
  %7777 = vsyncmov %s7776
  %s7778 = vpop.sfrf %7777
  %p7779 = scmp.eq.s32.totalorder %s7778, 0
  %p7780 = pneg %p7779
  %7782 = shalt.err (%p7780)

</llo_original>
